<compile_context>
chip_gen: v7x
topology: tpu7x:2x2x1
jax: 0.10.0
libtpu: 0.0.40
codegen_flags: <defaults>
</compile_context>

<pallas_src>
import functools
import math

import jax
import jax.numpy as jnp
from jax.experimental import pallas as pl
from jax.experimental.pallas import tpu as pltpu


MXU_DTYPE = jnp.float32   # TODO(synk): jnp.bfloat16 once tolerance is loosened.
LN_EPS = 1e-5
NEG_INF = -1e9


def _mm(a, b):
    """a @ b on the MXU with f32 accumulation."""
    return jnp.dot(a.astype(MXU_DTYPE), b.astype(MXU_DTYPE),
                   preferred_element_type=jnp.float32)


def _mm_t(a, b):
    """a @ b.T (contract last dims) on the MXU with f32 accumulation."""
    return jnp.einsum("qd,kd->qk", a.astype(MXU_DTYPE), b.astype(MXU_DTYPE),
                      preferred_element_type=jnp.float32)


# --------------------------- fused forward kernel ----------------------------

def _fused_transformer_kernel(*refs, names, heads, n_enc, n_dec):
    """One grid step = the whole transformer for one batch element."""
    x_ref, pos_ref, mask_ref = refs[0], refs[1], refs[2]
    o_ref = refs[-1]
    w = dict(zip(names, refs[3:-1]))

    T, C = pos_ref.shape
    Dh = C // heads

    def ln(y, pref):
        mean = jnp.mean(y, axis=-1, keepdims=True)
        d = y - mean
        var = jnp.mean(d * d, axis=-1, keepdims=True)
        return (d * jax.lax.rsqrt(var + LN_EPS) * w[pref + "_w"][...]
                + w[pref + "_b"][...])

    def attn_core(q, k, v, mask_add):
        # Per-head attention on 2D tiles; head outputs are concatenated
        # straight back into the lane-dense (T, C) activation layout (no
        # head-major transposes, no per-head stores).
        outs = []
        for h in range(heads):
            sl = slice(h * Dh, (h + 1) * Dh)
            s = _mm_t(q[:, sl], k[:, sl])                      # (Tq, Tk)
            if mask_add is not None:
                s = s + mask_add
            s = s - jnp.max(s, axis=-1, keepdims=True)
            prob = jnp.exp(s)
            # TODO(synk): pl.reciprocal(..., approx=True) (EUP slot) once a
            # looser numerical tolerance is acceptable.
            prob = prob * pl.reciprocal(
                jnp.sum(prob, axis=-1, keepdims=True), approx=False)
            outs.append(_mm(prob, v[:, sl]))                   # (Tq, Dh)
        return jnp.concatenate(outs, axis=-1)                  # (Tq, C)

    def self_attn(y, pref, mask_add):
        # Fused QKV projection; the 1/sqrt(Dh) scale is pre-folded into the
        # Q rows of the weight/bias.
        qkv = _mm(y, w[pref + "_qkv_w"][...]) + w[pref + "_qkv_b"][...]
        o = attn_core(qkv[:, :C], qkv[:, C:2 * C], qkv[:, 2 * C:], mask_add)
        return _mm(o, w[pref + "_out_w"][...]) + w[pref + "_out_b"][...]

    def cross_attn(y, mem, pref):
        q = _mm(y, w[pref + "_q_w"][...]) + w[pref + "_q_b"][...]
        kv = _mm(mem, w[pref + "_kv_w"][...]) + w[pref + "_kv_b"][...]
        o = attn_core(q, kv[:, :C], kv[:, C:], None)
        return _mm(o, w[pref + "_out_w"][...]) + w[pref + "_out_b"][...]

    def ffn(y, pref):
        h1 = jnp.maximum(
            _mm(y, w[pref + "_l1_w"][...]) + w[pref + "_l1_b"][...], 0.0)
        return _mm(h1, w[pref + "_l2_w"][...]) + w[pref + "_l2_b"][...]

    # Positional encodings (sinusoidal + learned, pre-summed) added in-kernel.
    x = x_ref[0] + pos_ref[...]                                # (T, C)
    mask_add = mask_ref[...]                                   # (T, T)

    # ------------- encoder (post-norm, ReLU FFN, eval mode) -------------
    mem = x
    for i in range(n_enc):
        pref = f"enc{i}"
        mem = ln(mem + self_attn(mem, pref + "_sa", None), pref + "_n1")
        mem = ln(mem + ffn(mem, pref), pref + "_n2")
    mem = ln(mem, "enc_norm")                                  # no-residual path

    # ------------------------------ decoder ------------------------------
    out = x
    for i in range(n_dec):
        pref = f"dec{i}"
        out = ln(out + self_attn(out, pref + "_sa", mask_add), pref + "_n1")
        out = ln(out + cross_attn(out, mem, pref + "_ca"), pref + "_n2")
        out = ln(out + ffn(out, pref), pref + "_n3")
    out = ln(out, "dec_norm")                                  # no-residual path

    o_ref[0] = out.astype(o_ref.dtype)


# ------------------- one-time parameter preparation --------------------------

def prepare_fused_inputs(params, heads, seq_len):
    """Pre-transpose weights, fold the 1/sqrt(Dh) scale into Q, reshape biases
    to (1, N), and pre-sum the two positional encodings.  Done once, outside
    the forward, so the forward is a single pallas_call."""
    C = params["enc_norm_w"].shape[0]
    scale = (C // heads) ** -0.5

    names, arrs = [], []

    def add(name, a):
        names.append(name)
        arrs.append(jnp.asarray(a, jnp.float32))

    def add_bias(name, b):
        add(name, jnp.asarray(b, jnp.float32).reshape(1, -1))

    def add_ln(pref, wv, bv):
        add_bias(pref + "_w", wv)
        add_bias(pref + "_b", bv)

    def add_self_attn(pref, ap):
        w_, b_ = ap["in_proj_weight"], ap["in_proj_bias"]
        wq, bq = w_[:C] * scale, b_[:C] * scale
        add(pref + "_qkv_w", jnp.concatenate([wq, w_[C:]], axis=0).T)   # (C,3C)
        add_bias(pref + "_qkv_b", jnp.concatenate([bq, b_[C:]]))
        add(pref + "_out_w", ap["out_proj_weight"].T)
        add_bias(pref + "_out_b", ap["out_proj_bias"])

    def add_cross_attn(pref, ap):
        w_, b_ = ap["in_proj_weight"], ap["in_proj_bias"]
        add(pref + "_q_w", (w_[:C] * scale).T)
        add_bias(pref + "_q_b", b_[:C] * scale)
        add(pref + "_kv_w", w_[C:].T)                                   # (C,2C)
        add_bias(pref + "_kv_b", b_[C:])
        add(pref + "_out_w", ap["out_proj_weight"].T)
        add_bias(pref + "_out_b", ap["out_proj_bias"])

    def add_ffn(pref, lp):
        add(pref + "_l1_w", lp["linear1_w"].T)
        add_bias(pref + "_l1_b", lp["linear1_b"])
        add(pref + "_l2_w", lp["linear2_w"].T)
        add_bias(pref + "_l2_b", lp["linear2_b"])

    for i, lp in enumerate(params["encoder_layers"]):
        pref = f"enc{i}"
        add_self_attn(pref + "_sa", lp["self_attn"])
        add_ln(pref + "_n1", lp["norm1_w"], lp["norm1_b"])
        add_ffn(pref, lp)
        add_ln(pref + "_n2", lp["norm2_w"], lp["norm2_b"])
    add_ln("enc_norm", params["enc_norm_w"], params["enc_norm_b"])

    for i, lp in enumerate(params["decoder_layers"]):
        pref = f"dec{i}"
        add_self_attn(pref + "_sa", lp["self_attn"])
        add_ln(pref + "_n1", lp["norm1_w"], lp["norm1_b"])
        add_cross_attn(pref + "_ca", lp["cross_attn"])
        add_ln(pref + "_n2", lp["norm2_w"], lp["norm2_b"])
        add_ffn(pref, lp)
        add_ln(pref + "_n3", lp["norm3_w"], lp["norm3_b"])
    add_ln("dec_norm", params["dec_norm_w"], params["dec_norm_b"])

    pos = (params["pe"][:seq_len, 0, :]
           + params["lpe"][:seq_len]).astype(jnp.float32)      # (T, C)
    return tuple(names), arrs, pos


# ------------------------------ forward wrapper -------------------------------

def traffic_transformer_forward(x, mask, prepared, heads, n_enc, n_dec):
    """Matches TrafficTransformer.forward in eval mode (dropout = identity).

    x: (B, T, C) float32.  mask: (T, T) bool tgt_mask (True = masked).
    """
    names, weights, pos = prepared
    B, T, C = x.shape
    mask_add = jnp.where(mask, NEG_INF, 0.0).astype(jnp.float32)

    in_specs = (
        [pl.BlockSpec((1, T, C), lambda b: (b, 0, 0)),       # per-batch input
         pl.BlockSpec((T, C), lambda b: (0, 0)),             # positional enc
         pl.BlockSpec((T, T), lambda b: (0, 0))]             # additive tgt mask
        + [pl.BlockSpec(a.shape, lambda b: (0, 0)) for a in weights]
    )

    kernel = functools.partial(_fused_transformer_kernel, names=names,
                               heads=heads, n_enc=n_enc, n_dec=n_dec)
    return pl.pallas_call(
        kernel,
        out_shape=jax.ShapeDtypeStruct((B, T, C), jnp.float32),
        grid=(B,),
        in_specs=in_specs,
        out_specs=pl.BlockSpec((1, T, C), lambda b: (b, 0, 0)),
        compiler_params=pltpu.CompilerParams(
            dimension_semantics=("parallel",)),
    )(x.astype(jnp.float32), pos, mask_add, *weights)


# ----------------------------- pure-JAX reference -----------------------------

def _ln_ref(x, g, b, eps=1e-5):
    mean = jnp.mean(x, axis=-1, keepdims=True)
    var = jnp.mean((x - mean) ** 2, axis=-1, keepdims=True)
    return (x - mean) / jnp.sqrt(var + eps) * g + b


def _mha_ref(q_src, kv_src, p, heads, attn_mask=None):
    Tq, B, C = q_src.shape
    Tk = kv_src.shape[0]
    Dh = C // heads
    w, bias = p["in_proj_weight"], p["in_proj_bias"]
    q = q_src.reshape(Tq * B, C) @ w[:C].T + bias[:C]
    k = kv_src.reshape(Tk * B, C) @ w[C:2 * C].T + bias[C:2 * C]
    v = kv_src.reshape(Tk * B, C) @ w[2 * C:].T + bias[2 * C:]
    qh = q.reshape(Tq, B, heads, Dh).transpose(1, 2, 0, 3) * (Dh ** -0.5)
    kh = k.reshape(Tk, B, heads, Dh).transpose(1, 2, 0, 3)
    vh = v.reshape(Tk, B, heads, Dh).transpose(1, 2, 0, 3)
    s = jnp.einsum("bhqd,bhkd->bhqk", qh, kh)
    if attn_mask is not None:
        s = s + jnp.where(attn_mask, NEG_INF, 0.0)
    a = jax.nn.softmax(s, axis=-1)
    o = jnp.einsum("bhqk,bhkd->bhqd", a, vh)
    o = o.transpose(2, 0, 1, 3).reshape(Tq * B, C)
    o = o @ p["out_proj_weight"].T + p["out_proj_bias"]
    return o.reshape(Tq, B, C)


def _enc_layer_ref(x, p, heads):
    a = _mha_ref(x, x, p["self_attn"], heads)
    x = _ln_ref(x + a, p["norm1_w"], p["norm1_b"])
    h = jnp.maximum(x @ p["linear1_w"].T + p["linear1_b"], 0.0)
    h = h @ p["linear2_w"].T + p["linear2_b"]
    return _ln_ref(x + h, p["norm2_w"], p["norm2_b"])


def _dec_layer_ref(x, mem, tgt_mask, p, heads):
    a = _mha_ref(x, x, p["self_attn"], heads, attn_mask=tgt_mask)
    x = _ln_ref(x + a, p["norm1_w"], p["norm1_b"])
    a = _mha_ref(x, mem, p["cross_attn"], heads)
    x = _ln_ref(x + a, p["norm2_w"], p["norm2_b"])
    h = jnp.maximum(x @ p["linear1_w"].T + p["linear1_b"], 0.0)
    h = h @ p["linear2_w"].T + p["linear2_b"]
    return _ln_ref(x + h, p["norm3_w"], p["norm3_b"])


def _forward_ref(inp, mask, params, heads):
    B, T, C = inp.shape
    x = jnp.transpose(inp, (1, 0, 2))
    x = x + params["pe"][:T]
    x = x + params["lpe"][:T][:, None, :]
    mem = x
    for lp in params["encoder_layers"]:
        mem = _enc_layer_ref(mem, lp, heads)
    mem = _ln_ref(mem, params["enc_norm_w"], params["enc_norm_b"])
    out = x
    for lp in params["decoder_layers"]:
        out = _dec_layer_ref(out, mem, mask, lp, heads)
    out = _ln_ref(out, params["dec_norm_w"], params["dec_norm_b"])
    return jnp.transpose(out, (1, 0, 2))


# --------------------------------- parameters ---------------------------------

def _make_params(key, in_dim, ff_dim, n_enc, n_dec, max_len=500):
    def uni(k, shape, bound):
        return jax.random.uniform(k, shape, jnp.float32, -bound, bound)

    def attn_params(k):
        k1, k2, k3, k4 = jax.random.split(k, 4)
        bound = 1.0 / math.sqrt(in_dim)
        return {
            "in_proj_weight": uni(k1, (3 * in_dim, in_dim), bound),
            "in_proj_bias": uni(k2, (3 * in_dim,), bound),
            "out_proj_weight": uni(k3, (in_dim, in_dim), bound),
            "out_proj_bias": uni(k4, (in_dim,), bound),
        }

    def layer_params(k, decoder):
        ks = jax.random.split(k, 6)
        b1 = 1.0 / math.sqrt(in_dim)
        b2 = 1.0 / math.sqrt(ff_dim)
        p = {
            "self_attn": attn_params(ks[0]),
            "linear1_w": uni(ks[1], (ff_dim, in_dim), b1),
            "linear1_b": uni(ks[2], (ff_dim,), b1),
            "linear2_w": uni(ks[3], (in_dim, ff_dim), b2),
            "linear2_b": uni(ks[4], (in_dim,), b2),
            "norm1_w": jnp.ones((in_dim,), jnp.float32),
            "norm1_b": jnp.zeros((in_dim,), jnp.float32),
            "norm2_w": jnp.ones((in_dim,), jnp.float32),
            "norm2_b": jnp.zeros((in_dim,), jnp.float32),
        }
        if decoder:
            p["cross_attn"] = attn_params(ks[5])
            p["norm3_w"] = jnp.ones((in_dim,), jnp.float32)
            p["norm3_b"] = jnp.zeros((in_dim,), jnp.float32)
        return p

    keys = jax.random.split(key, 1 + n_enc + n_dec)

    # Sinusoidal PE (PositionalEncoding buffer), stored as (max_len, 1, d_model).
    position = jnp.arange(max_len, dtype=jnp.float32)[:, None]
    div_term = jnp.exp(jnp.arange(0, in_dim, 2, dtype=jnp.float32)
                       * (-math.log(10000.0) / in_dim))
    pe = jnp.zeros((max_len, in_dim), jnp.float32)
    pe = pe.at[:, 0::2].set(jnp.sin(position * div_term))
    pe = pe.at[:, 1::2].set(jnp.cos(position * div_term))

    return {
        "pe": pe[:, None, :],
        "lpe": jax.random.normal(keys[0], (max_len, in_dim), jnp.float32),
        "encoder_layers": [layer_params(keys[1 + i], decoder=False)
                           for i in range(n_enc)],
        "decoder_layers": [layer_params(keys[1 + n_enc + i], decoder=True)
                           for i in range(n_dec)],
        "enc_norm_w": jnp.ones((in_dim,), jnp.float32),
        "enc_norm_b": jnp.zeros((in_dim,), jnp.float32),
        "dec_norm_w": jnp.ones((in_dim,), jnp.float32),
        "dec_norm_b": jnp.zeros((in_dim,), jnp.float32),
    }


# ------------------------------------ main ------------------------------------

if __name__ == "__main__":
    # forward(input, mask): input (batch, seq, in_dim); mask = eye(seq) bool.
    B, T, C = 2, 12, 64
    heads, layers = 8, 1
    ff_dim = 4 * C

    key = jax.random.PRNGKey(0)
    k_par, k_in = jax.random.split(key)
    params = _make_params(k_par, C, ff_dim, layers, layers)
    x = jax.random.normal(k_in, (B, T, C), jnp.float32)
    mask = jnp.eye(T, dtype=bool)              # TrafficTransformer._gen_mask

    prepared = prepare_fused_inputs(params, heads, T)   # one-time weight prep
    out = traffic_transformer_forward(x, mask, prepared, heads, layers, layers)
    out = jax.block_until_ready(out)
    assert out.shape == (B, T, C), out.shape

    ref = _forward_ref(x, mask, params, heads)
    err = float(jnp.max(jnp.abs(out - ref)))
    assert jnp.allclose(out, ref, atol=2e-3, rtol=2e-3), f"max abs err {err}"

    print("KERNEL_OK")
</pallas_src>

<mosaic_0001>
module attributes {stable_mosaic.version = 11 : i64} {
  func.func @_fused_transformer_kernel(%arg0: i32, %arg1: memref<1x12x64xf32, #tpu.memory_space<vmem>>, %arg2: memref<12x64xf32, #tpu.memory_space<vmem>>, %arg3: memref<12x12xf32, #tpu.memory_space<vmem>>, %arg4: memref<64x192xf32, #tpu.memory_space<vmem>>, %arg5: memref<1x192xf32, #tpu.memory_space<vmem>>, %arg6: memref<64x64xf32, #tpu.memory_space<vmem>>, %arg7: memref<1x64xf32, #tpu.memory_space<vmem>>, %arg8: memref<1x64xf32, #tpu.memory_space<vmem>>, %arg9: memref<1x64xf32, #tpu.memory_space<vmem>>, %arg10: memref<64x256xf32, #tpu.memory_space<vmem>>, %arg11: memref<1x256xf32, #tpu.memory_space<vmem>>, %arg12: memref<256x64xf32, #tpu.memory_space<vmem>>, %arg13: memref<1x64xf32, #tpu.memory_space<vmem>>, %arg14: memref<1x64xf32, #tpu.memory_space<vmem>>, %arg15: memref<1x64xf32, #tpu.memory_space<vmem>>, %arg16: memref<1x64xf32, #tpu.memory_space<vmem>>, %arg17: memref<1x64xf32, #tpu.memory_space<vmem>>, %arg18: memref<64x192xf32, #tpu.memory_space<vmem>>, %arg19: memref<1x192xf32, #tpu.memory_space<vmem>>, %arg20: memref<64x64xf32, #tpu.memory_space<vmem>>, %arg21: memref<1x64xf32, #tpu.memory_space<vmem>>, %arg22: memref<1x64xf32, #tpu.memory_space<vmem>>, %arg23: memref<1x64xf32, #tpu.memory_space<vmem>>, %arg24: memref<64x64xf32, #tpu.memory_space<vmem>>, %arg25: memref<1x64xf32, #tpu.memory_space<vmem>>, %arg26: memref<64x128xf32, #tpu.memory_space<vmem>>, %arg27: memref<1x128xf32, #tpu.memory_space<vmem>>, %arg28: memref<64x64xf32, #tpu.memory_space<vmem>>, %arg29: memref<1x64xf32, #tpu.memory_space<vmem>>, %arg30: memref<1x64xf32, #tpu.memory_space<vmem>>, %arg31: memref<1x64xf32, #tpu.memory_space<vmem>>, %arg32: memref<64x256xf32, #tpu.memory_space<vmem>>, %arg33: memref<1x256xf32, #tpu.memory_space<vmem>>, %arg34: memref<256x64xf32, #tpu.memory_space<vmem>>, %arg35: memref<1x64xf32, #tpu.memory_space<vmem>>, %arg36: memref<1x64xf32, #tpu.memory_space<vmem>>, %arg37: memref<1x64xf32, #tpu.memory_space<vmem>>, %arg38: memref<1x64xf32, #tpu.memory_space<vmem>>, %arg39: memref<1x64xf32, #tpu.memory_space<vmem>>, %arg40: memref<1x12x64xf32, #tpu.memory_space<vmem>>) attributes {dimension_semantics = [#tpu.dimension_semantics<parallel>], iteration_bounds = array<i64: 2>, scalar_prefetch = 0 : i64, scratch_operands = 0 : i64, tpu.core_type = #tpu.core_type<tc>, window_params = [{transform_indices = @transform_0, window_bounds = array<i64: 1, 12, 64>}, {pipeline_mode = #tpu.pipeline_mode<synchronous>, transform_indices = @transform_1, window_bounds = array<i64: 12, 64>}, {pipeline_mode = #tpu.pipeline_mode<synchronous>, transform_indices = @transform_2, window_bounds = array<i64: 12, 12>}, {pipeline_mode = #tpu.pipeline_mode<synchronous>, transform_indices = @transform_3, window_bounds = array<i64: 64, 192>}, {pipeline_mode = #tpu.pipeline_mode<synchronous>, transform_indices = @transform_4, window_bounds = array<i64: 1, 192>}, {pipeline_mode = #tpu.pipeline_mode<synchronous>, transform_indices = @transform_5, window_bounds = array<i64: 64, 64>}, {pipeline_mode = #tpu.pipeline_mode<synchronous>, transform_indices = @transform_6, window_bounds = array<i64: 1, 64>}, {pipeline_mode = #tpu.pipeline_mode<synchronous>, transform_indices = @transform_7, window_bounds = array<i64: 1, 64>}, {pipeline_mode = #tpu.pipeline_mode<synchronous>, transform_indices = @transform_8, window_bounds = array<i64: 1, 64>}, {pipeline_mode = #tpu.pipeline_mode<synchronous>, transform_indices = @transform_9, window_bounds = array<i64: 64, 256>}, {pipeline_mode = #tpu.pipeline_mode<synchronous>, transform_indices = @transform_10, window_bounds = array<i64: 1, 256>}, {pipeline_mode = #tpu.pipeline_mode<synchronous>, transform_indices = @transform_11, window_bounds = array<i64: 256, 64>}, {pipeline_mode = #tpu.pipeline_mode<synchronous>, transform_indices = @transform_12, window_bounds = array<i64: 1, 64>}, {pipeline_mode = #tpu.pipeline_mode<synchronous>, transform_indices = @transform_13, window_bounds = array<i64: 1, 64>}, {pipeline_mode = #tpu.pipeline_mode<synchronous>, transform_indices = @transform_14, window_bounds = array<i64: 1, 64>}, {pipeline_mode = #tpu.pipeline_mode<synchronous>, transform_indices = @transform_15, window_bounds = array<i64: 1, 64>}, {pipeline_mode = #tpu.pipeline_mode<synchronous>, transform_indices = @transform_16, window_bounds = array<i64: 1, 64>}, {pipeline_mode = #tpu.pipeline_mode<synchronous>, transform_indices = @transform_17, window_bounds = array<i64: 64, 192>}, {pipeline_mode = #tpu.pipeline_mode<synchronous>, transform_indices = @transform_18, window_bounds = array<i64: 1, 192>}, {pipeline_mode = #tpu.pipeline_mode<synchronous>, transform_indices = @transform_19, window_bounds = array<i64: 64, 64>}, {pipeline_mode = #tpu.pipeline_mode<synchronous>, transform_indices = @transform_20, window_bounds = array<i64: 1, 64>}, {pipeline_mode = #tpu.pipeline_mode<synchronous>, transform_indices = @transform_21, window_bounds = array<i64: 1, 64>}, {pipeline_mode = #tpu.pipeline_mode<synchronous>, transform_indices = @transform_22, window_bounds = array<i64: 1, 64>}, {pipeline_mode = #tpu.pipeline_mode<synchronous>, transform_indices = @transform_23, window_bounds = array<i64: 64, 64>}, {pipeline_mode = #tpu.pipeline_mode<synchronous>, transform_indices = @transform_24, window_bounds = array<i64: 1, 64>}, {pipeline_mode = #tpu.pipeline_mode<synchronous>, transform_indices = @transform_25, window_bounds = array<i64: 64, 128>}, {pipeline_mode = #tpu.pipeline_mode<synchronous>, transform_indices = @transform_26, window_bounds = array<i64: 1, 128>}, {pipeline_mode = #tpu.pipeline_mode<synchronous>, transform_indices = @transform_27, window_bounds = array<i64: 64, 64>}, {pipeline_mode = #tpu.pipeline_mode<synchronous>, transform_indices = @transform_28, window_bounds = array<i64: 1, 64>}, {pipeline_mode = #tpu.pipeline_mode<synchronous>, transform_indices = @transform_29, window_bounds = array<i64: 1, 64>}, {pipeline_mode = #tpu.pipeline_mode<synchronous>, transform_indices = @transform_30, window_bounds = array<i64: 1, 64>}, {pipeline_mode = #tpu.pipeline_mode<synchronous>, transform_indices = @transform_31, window_bounds = array<i64: 64, 256>}, {pipeline_mode = #tpu.pipeline_mode<synchronous>, transform_indices = @transform_32, window_bounds = array<i64: 1, 256>}, {pipeline_mode = #tpu.pipeline_mode<synchronous>, transform_indices = @transform_33, window_bounds = array<i64: 256, 64>}, {pipeline_mode = #tpu.pipeline_mode<synchronous>, transform_indices = @transform_34, window_bounds = array<i64: 1, 64>}, {pipeline_mode = #tpu.pipeline_mode<synchronous>, transform_indices = @transform_35, window_bounds = array<i64: 1, 64>}, {pipeline_mode = #tpu.pipeline_mode<synchronous>, transform_indices = @transform_36, window_bounds = array<i64: 1, 64>}, {pipeline_mode = #tpu.pipeline_mode<synchronous>, transform_indices = @transform_37, window_bounds = array<i64: 1, 64>}, {pipeline_mode = #tpu.pipeline_mode<synchronous>, transform_indices = @transform_38, window_bounds = array<i64: 1, 64>}, {transform_indices = @transform_39, window_bounds = array<i64: 1, 12, 64>}]} {
    %c0 = arith.constant 0 : index
    %c0_0 = arith.constant 0 : index
    %c0_1 = arith.constant 0 : index
    %0 = vector.load %arg1[%c0, %c0_0, %c0_1] : memref<1x12x64xf32, #tpu.memory_space<vmem>>, vector<1x12x64xf32>
    %1 = vector.shape_cast %0 : vector<1x12x64xf32> to vector<12x64xf32>
    %c0_2 = arith.constant 0 : index
    %c0_3 = arith.constant 0 : index
    %2 = vector.load %arg2[%c0_2, %c0_3] : memref<12x64xf32, #tpu.memory_space<vmem>>, vector<12x64xf32>
    %3 = arith.addf %1, %2 : vector<12x64xf32>
    %c0_4 = arith.constant 0 : index
    %c0_5 = arith.constant 0 : index
    %4 = vector.load %arg3[%c0_4, %c0_5] : memref<12x12xf32, #tpu.memory_space<vmem>>, vector<12x12xf32>
    %c0_6 = arith.constant 0 : index
    %c0_7 = arith.constant 0 : index
    %5 = vector.load %arg4[%c0_6, %c0_7] : memref<64x192xf32, #tpu.memory_space<vmem>>, vector<64x192xf32>
    %cst = arith.constant dense<0.000000e+00> : vector<12x192xf32>
    %6 = tpu.matmul %3, %5, %cst {dimension_numbers = #tpu.dot_dimension_numbers<[1], [0], [0], [1], [0, 0, 1, 1], [], []>} : vector<12x64xf32>, vector<64x192xf32>, vector<12x192xf32> -> vector<12x192xf32>
    %c0_8 = arith.constant 0 : index
    %c0_9 = arith.constant 0 : index
    %7 = vector.load %arg5[%c0_8, %c0_9] : memref<1x192xf32, #tpu.memory_space<vmem>>, vector<1x192xf32>
    %8 = vector.broadcast %7 : vector<1x192xf32> to vector<12x192xf32>
    %9 = arith.addf %6, %8 : vector<12x192xf32>
    %10 = vector.extract_strided_slice %9 {offsets = [0, 0], sizes = [12, 64], strides = [1, 1]} : vector<12x192xf32> to vector<12x64xf32>
    %11 = vector.extract_strided_slice %9 {offsets = [0, 64], sizes = [12, 64], strides = [1, 1]} : vector<12x192xf32> to vector<12x64xf32>
    %12 = vector.extract_strided_slice %9 {offsets = [0, 128], sizes = [12, 64], strides = [1, 1]} : vector<12x192xf32> to vector<12x64xf32>
    %13 = vector.extract_strided_slice %10 {offsets = [0, 0], sizes = [12, 8], strides = [1, 1]} : vector<12x64xf32> to vector<12x8xf32>
    %14 = vector.extract_strided_slice %11 {offsets = [0, 0], sizes = [12, 8], strides = [1, 1]} : vector<12x64xf32> to vector<12x8xf32>
    "tpu.trace_start"() <{level = 10 : i32, message = "qd,kd->qk"}> : () -> ()
    %cst_10 = arith.constant dense<0.000000e+00> : vector<12x12xf32>
    %15 = tpu.matmul %13, %14, %cst_10 {dimension_numbers = #tpu.dot_dimension_numbers<[1], [1], [0], [0], [0, 0, 1, 0], [], []>} : vector<12x8xf32>, vector<12x8xf32>, vector<12x12xf32> -> vector<12x12xf32>
    "tpu.trace_stop"() : () -> ()
    %cst_11 = arith.constant dense<0xFF800000> : vector<12xf32>
    %16 = vector.multi_reduction <maximumf>, %15, %cst_11 [1] : vector<12x12xf32> to vector<12xf32>
    %17 = vector.shape_cast %16 : vector<12xf32> to vector<12x1xf32>
    %18 = vector.broadcast %17 : vector<12x1xf32> to vector<12x12xf32>
    %19 = arith.subf %15, %18 : vector<12x12xf32>
    %20 = math.exp %19 : vector<12x12xf32>
    %cst_12 = arith.constant dense<0.000000e+00> : vector<12xf32>
    %21 = vector.multi_reduction <add>, %20, %cst_12 [1] : vector<12x12xf32> to vector<12xf32>
    %22 = vector.shape_cast %21 : vector<12xf32> to vector<12x1xf32>
    %23 = tpu.reciprocal %22 : vector<12x1xf32> -> vector<12x1xf32>
    %24 = vector.broadcast %23 : vector<12x1xf32> to vector<12x12xf32>
    %25 = arith.mulf %20, %24 : vector<12x12xf32>
    %26 = vector.extract_strided_slice %12 {offsets = [0, 0], sizes = [12, 8], strides = [1, 1]} : vector<12x64xf32> to vector<12x8xf32>
    %cst_13 = arith.constant dense<0.000000e+00> : vector<12x8xf32>
    %27 = tpu.matmul %25, %26, %cst_13 {dimension_numbers = #tpu.dot_dimension_numbers<[1], [0], [0], [1], [0, 0, 1, 1], [], []>} : vector<12x12xf32>, vector<12x8xf32>, vector<12x8xf32> -> vector<12x8xf32>
    %28 = vector.extract_strided_slice %10 {offsets = [0, 8], sizes = [12, 8], strides = [1, 1]} : vector<12x64xf32> to vector<12x8xf32>
    %29 = vector.extract_strided_slice %11 {offsets = [0, 8], sizes = [12, 8], strides = [1, 1]} : vector<12x64xf32> to vector<12x8xf32>
    "tpu.trace_start"() <{level = 10 : i32, message = "qd,kd->qk"}> : () -> ()
    %cst_14 = arith.constant dense<0.000000e+00> : vector<12x12xf32>
    %30 = tpu.matmul %28, %29, %cst_14 {dimension_numbers = #tpu.dot_dimension_numbers<[1], [1], [0], [0], [0, 0, 1, 0], [], []>} : vector<12x8xf32>, vector<12x8xf32>, vector<12x12xf32> -> vector<12x12xf32>
    "tpu.trace_stop"() : () -> ()
    %cst_15 = arith.constant dense<0xFF800000> : vector<12xf32>
    %31 = vector.multi_reduction <maximumf>, %30, %cst_15 [1] : vector<12x12xf32> to vector<12xf32>
    %32 = vector.shape_cast %31 : vector<12xf32> to vector<12x1xf32>
    %33 = vector.broadcast %32 : vector<12x1xf32> to vector<12x12xf32>
    %34 = arith.subf %30, %33 : vector<12x12xf32>
    %35 = math.exp %34 : vector<12x12xf32>
    %cst_16 = arith.constant dense<0.000000e+00> : vector<12xf32>
    %36 = vector.multi_reduction <add>, %35, %cst_16 [1] : vector<12x12xf32> to vector<12xf32>
    %37 = vector.shape_cast %36 : vector<12xf32> to vector<12x1xf32>
    %38 = tpu.reciprocal %37 : vector<12x1xf32> -> vector<12x1xf32>
    %39 = vector.broadcast %38 : vector<12x1xf32> to vector<12x12xf32>
    %40 = arith.mulf %35, %39 : vector<12x12xf32>
    %41 = vector.extract_strided_slice %12 {offsets = [0, 8], sizes = [12, 8], strides = [1, 1]} : vector<12x64xf32> to vector<12x8xf32>
    %cst_17 = arith.constant dense<0.000000e+00> : vector<12x8xf32>
    %42 = tpu.matmul %40, %41, %cst_17 {dimension_numbers = #tpu.dot_dimension_numbers<[1], [0], [0], [1], [0, 0, 1, 1], [], []>} : vector<12x12xf32>, vector<12x8xf32>, vector<12x8xf32> -> vector<12x8xf32>
    %43 = vector.extract_strided_slice %10 {offsets = [0, 16], sizes = [12, 8], strides = [1, 1]} : vector<12x64xf32> to vector<12x8xf32>
    %44 = vector.extract_strided_slice %11 {offsets = [0, 16], sizes = [12, 8], strides = [1, 1]} : vector<12x64xf32> to vector<12x8xf32>
    "tpu.trace_start"() <{level = 10 : i32, message = "qd,kd->qk"}> : () -> ()
    %cst_18 = arith.constant dense<0.000000e+00> : vector<12x12xf32>
    %45 = tpu.matmul %43, %44, %cst_18 {dimension_numbers = #tpu.dot_dimension_numbers<[1], [1], [0], [0], [0, 0, 1, 0], [], []>} : vector<12x8xf32>, vector<12x8xf32>, vector<12x12xf32> -> vector<12x12xf32>
    "tpu.trace_stop"() : () -> ()
    %cst_19 = arith.constant dense<0xFF800000> : vector<12xf32>
    %46 = vector.multi_reduction <maximumf>, %45, %cst_19 [1] : vector<12x12xf32> to vector<12xf32>
    %47 = vector.shape_cast %46 : vector<12xf32> to vector<12x1xf32>
    %48 = vector.broadcast %47 : vector<12x1xf32> to vector<12x12xf32>
    %49 = arith.subf %45, %48 : vector<12x12xf32>
    %50 = math.exp %49 : vector<12x12xf32>
    %cst_20 = arith.constant dense<0.000000e+00> : vector<12xf32>
    %51 = vector.multi_reduction <add>, %50, %cst_20 [1] : vector<12x12xf32> to vector<12xf32>
    %52 = vector.shape_cast %51 : vector<12xf32> to vector<12x1xf32>
    %53 = tpu.reciprocal %52 : vector<12x1xf32> -> vector<12x1xf32>
    %54 = vector.broadcast %53 : vector<12x1xf32> to vector<12x12xf32>
    %55 = arith.mulf %50, %54 : vector<12x12xf32>
    %56 = vector.extract_strided_slice %12 {offsets = [0, 16], sizes = [12, 8], strides = [1, 1]} : vector<12x64xf32> to vector<12x8xf32>
    %cst_21 = arith.constant dense<0.000000e+00> : vector<12x8xf32>
    %57 = tpu.matmul %55, %56, %cst_21 {dimension_numbers = #tpu.dot_dimension_numbers<[1], [0], [0], [1], [0, 0, 1, 1], [], []>} : vector<12x12xf32>, vector<12x8xf32>, vector<12x8xf32> -> vector<12x8xf32>
    %58 = vector.extract_strided_slice %10 {offsets = [0, 24], sizes = [12, 8], strides = [1, 1]} : vector<12x64xf32> to vector<12x8xf32>
    %59 = vector.extract_strided_slice %11 {offsets = [0, 24], sizes = [12, 8], strides = [1, 1]} : vector<12x64xf32> to vector<12x8xf32>
    "tpu.trace_start"() <{level = 10 : i32, message = "qd,kd->qk"}> : () -> ()
    %cst_22 = arith.constant dense<0.000000e+00> : vector<12x12xf32>
    %60 = tpu.matmul %58, %59, %cst_22 {dimension_numbers = #tpu.dot_dimension_numbers<[1], [1], [0], [0], [0, 0, 1, 0], [], []>} : vector<12x8xf32>, vector<12x8xf32>, vector<12x12xf32> -> vector<12x12xf32>
    "tpu.trace_stop"() : () -> ()
    %cst_23 = arith.constant dense<0xFF800000> : vector<12xf32>
    %61 = vector.multi_reduction <maximumf>, %60, %cst_23 [1] : vector<12x12xf32> to vector<12xf32>
    %62 = vector.shape_cast %61 : vector<12xf32> to vector<12x1xf32>
    %63 = vector.broadcast %62 : vector<12x1xf32> to vector<12x12xf32>
    %64 = arith.subf %60, %63 : vector<12x12xf32>
    %65 = math.exp %64 : vector<12x12xf32>
    %cst_24 = arith.constant dense<0.000000e+00> : vector<12xf32>
    %66 = vector.multi_reduction <add>, %65, %cst_24 [1] : vector<12x12xf32> to vector<12xf32>
    %67 = vector.shape_cast %66 : vector<12xf32> to vector<12x1xf32>
    %68 = tpu.reciprocal %67 : vector<12x1xf32> -> vector<12x1xf32>
    %69 = vector.broadcast %68 : vector<12x1xf32> to vector<12x12xf32>
    %70 = arith.mulf %65, %69 : vector<12x12xf32>
    %71 = vector.extract_strided_slice %12 {offsets = [0, 24], sizes = [12, 8], strides = [1, 1]} : vector<12x64xf32> to vector<12x8xf32>
    %cst_25 = arith.constant dense<0.000000e+00> : vector<12x8xf32>
    %72 = tpu.matmul %70, %71, %cst_25 {dimension_numbers = #tpu.dot_dimension_numbers<[1], [0], [0], [1], [0, 0, 1, 1], [], []>} : vector<12x12xf32>, vector<12x8xf32>, vector<12x8xf32> -> vector<12x8xf32>
    %73 = vector.extract_strided_slice %10 {offsets = [0, 32], sizes = [12, 8], strides = [1, 1]} : vector<12x64xf32> to vector<12x8xf32>
    %74 = vector.extract_strided_slice %11 {offsets = [0, 32], sizes = [12, 8], strides = [1, 1]} : vector<12x64xf32> to vector<12x8xf32>
    "tpu.trace_start"() <{level = 10 : i32, message = "qd,kd->qk"}> : () -> ()
    %cst_26 = arith.constant dense<0.000000e+00> : vector<12x12xf32>
    %75 = tpu.matmul %73, %74, %cst_26 {dimension_numbers = #tpu.dot_dimension_numbers<[1], [1], [0], [0], [0, 0, 1, 0], [], []>} : vector<12x8xf32>, vector<12x8xf32>, vector<12x12xf32> -> vector<12x12xf32>
    "tpu.trace_stop"() : () -> ()
    %cst_27 = arith.constant dense<0xFF800000> : vector<12xf32>
    %76 = vector.multi_reduction <maximumf>, %75, %cst_27 [1] : vector<12x12xf32> to vector<12xf32>
    %77 = vector.shape_cast %76 : vector<12xf32> to vector<12x1xf32>
    %78 = vector.broadcast %77 : vector<12x1xf32> to vector<12x12xf32>
    %79 = arith.subf %75, %78 : vector<12x12xf32>
    %80 = math.exp %79 : vector<12x12xf32>
    %cst_28 = arith.constant dense<0.000000e+00> : vector<12xf32>
    %81 = vector.multi_reduction <add>, %80, %cst_28 [1] : vector<12x12xf32> to vector<12xf32>
    %82 = vector.shape_cast %81 : vector<12xf32> to vector<12x1xf32>
    %83 = tpu.reciprocal %82 : vector<12x1xf32> -> vector<12x1xf32>
    %84 = vector.broadcast %83 : vector<12x1xf32> to vector<12x12xf32>
    %85 = arith.mulf %80, %84 : vector<12x12xf32>
    %86 = vector.extract_strided_slice %12 {offsets = [0, 32], sizes = [12, 8], strides = [1, 1]} : vector<12x64xf32> to vector<12x8xf32>
    %cst_29 = arith.constant dense<0.000000e+00> : vector<12x8xf32>
    %87 = tpu.matmul %85, %86, %cst_29 {dimension_numbers = #tpu.dot_dimension_numbers<[1], [0], [0], [1], [0, 0, 1, 1], [], []>} : vector<12x12xf32>, vector<12x8xf32>, vector<12x8xf32> -> vector<12x8xf32>
    %88 = vector.extract_strided_slice %10 {offsets = [0, 40], sizes = [12, 8], strides = [1, 1]} : vector<12x64xf32> to vector<12x8xf32>
    %89 = vector.extract_strided_slice %11 {offsets = [0, 40], sizes = [12, 8], strides = [1, 1]} : vector<12x64xf32> to vector<12x8xf32>
    "tpu.trace_start"() <{level = 10 : i32, message = "qd,kd->qk"}> : () -> ()
    %cst_30 = arith.constant dense<0.000000e+00> : vector<12x12xf32>
    %90 = tpu.matmul %88, %89, %cst_30 {dimension_numbers = #tpu.dot_dimension_numbers<[1], [1], [0], [0], [0, 0, 1, 0], [], []>} : vector<12x8xf32>, vector<12x8xf32>, vector<12x12xf32> -> vector<12x12xf32>
    "tpu.trace_stop"() : () -> ()
    %cst_31 = arith.constant dense<0xFF800000> : vector<12xf32>
    %91 = vector.multi_reduction <maximumf>, %90, %cst_31 [1] : vector<12x12xf32> to vector<12xf32>
    %92 = vector.shape_cast %91 : vector<12xf32> to vector<12x1xf32>
    %93 = vector.broadcast %92 : vector<12x1xf32> to vector<12x12xf32>
    %94 = arith.subf %90, %93 : vector<12x12xf32>
    %95 = math.exp %94 : vector<12x12xf32>
    %cst_32 = arith.constant dense<0.000000e+00> : vector<12xf32>
    %96 = vector.multi_reduction <add>, %95, %cst_32 [1] : vector<12x12xf32> to vector<12xf32>
    %97 = vector.shape_cast %96 : vector<12xf32> to vector<12x1xf32>
    %98 = tpu.reciprocal %97 : vector<12x1xf32> -> vector<12x1xf32>
    %99 = vector.broadcast %98 : vector<12x1xf32> to vector<12x12xf32>
    %100 = arith.mulf %95, %99 : vector<12x12xf32>
    %101 = vector.extract_strided_slice %12 {offsets = [0, 40], sizes = [12, 8], strides = [1, 1]} : vector<12x64xf32> to vector<12x8xf32>
    %cst_33 = arith.constant dense<0.000000e+00> : vector<12x8xf32>
    %102 = tpu.matmul %100, %101, %cst_33 {dimension_numbers = #tpu.dot_dimension_numbers<[1], [0], [0], [1], [0, 0, 1, 1], [], []>} : vector<12x12xf32>, vector<12x8xf32>, vector<12x8xf32> -> vector<12x8xf32>
    %103 = vector.extract_strided_slice %10 {offsets = [0, 48], sizes = [12, 8], strides = [1, 1]} : vector<12x64xf32> to vector<12x8xf32>
    %104 = vector.extract_strided_slice %11 {offsets = [0, 48], sizes = [12, 8], strides = [1, 1]} : vector<12x64xf32> to vector<12x8xf32>
    "tpu.trace_start"() <{level = 10 : i32, message = "qd,kd->qk"}> : () -> ()
    %cst_34 = arith.constant dense<0.000000e+00> : vector<12x12xf32>
    %105 = tpu.matmul %103, %104, %cst_34 {dimension_numbers = #tpu.dot_dimension_numbers<[1], [1], [0], [0], [0, 0, 1, 0], [], []>} : vector<12x8xf32>, vector<12x8xf32>, vector<12x12xf32> -> vector<12x12xf32>
    "tpu.trace_stop"() : () -> ()
    %cst_35 = arith.constant dense<0xFF800000> : vector<12xf32>
    %106 = vector.multi_reduction <maximumf>, %105, %cst_35 [1] : vector<12x12xf32> to vector<12xf32>
    %107 = vector.shape_cast %106 : vector<12xf32> to vector<12x1xf32>
    %108 = vector.broadcast %107 : vector<12x1xf32> to vector<12x12xf32>
    %109 = arith.subf %105, %108 : vector<12x12xf32>
    %110 = math.exp %109 : vector<12x12xf32>
    %cst_36 = arith.constant dense<0.000000e+00> : vector<12xf32>
    %111 = vector.multi_reduction <add>, %110, %cst_36 [1] : vector<12x12xf32> to vector<12xf32>
    %112 = vector.shape_cast %111 : vector<12xf32> to vector<12x1xf32>
    %113 = tpu.reciprocal %112 : vector<12x1xf32> -> vector<12x1xf32>
    %114 = vector.broadcast %113 : vector<12x1xf32> to vector<12x12xf32>
    %115 = arith.mulf %110, %114 : vector<12x12xf32>
    %116 = vector.extract_strided_slice %12 {offsets = [0, 48], sizes = [12, 8], strides = [1, 1]} : vector<12x64xf32> to vector<12x8xf32>
    %cst_37 = arith.constant dense<0.000000e+00> : vector<12x8xf32>
    %117 = tpu.matmul %115, %116, %cst_37 {dimension_numbers = #tpu.dot_dimension_numbers<[1], [0], [0], [1], [0, 0, 1, 1], [], []>} : vector<12x12xf32>, vector<12x8xf32>, vector<12x8xf32> -> vector<12x8xf32>
    %118 = vector.extract_strided_slice %10 {offsets = [0, 56], sizes = [12, 8], strides = [1, 1]} : vector<12x64xf32> to vector<12x8xf32>
    %119 = vector.extract_strided_slice %11 {offsets = [0, 56], sizes = [12, 8], strides = [1, 1]} : vector<12x64xf32> to vector<12x8xf32>
    "tpu.trace_start"() <{level = 10 : i32, message = "qd,kd->qk"}> : () -> ()
    %cst_38 = arith.constant dense<0.000000e+00> : vector<12x12xf32>
    %120 = tpu.matmul %118, %119, %cst_38 {dimension_numbers = #tpu.dot_dimension_numbers<[1], [1], [0], [0], [0, 0, 1, 0], [], []>} : vector<12x8xf32>, vector<12x8xf32>, vector<12x12xf32> -> vector<12x12xf32>
    "tpu.trace_stop"() : () -> ()
    %cst_39 = arith.constant dense<0xFF800000> : vector<12xf32>
    %121 = vector.multi_reduction <maximumf>, %120, %cst_39 [1] : vector<12x12xf32> to vector<12xf32>
    %122 = vector.shape_cast %121 : vector<12xf32> to vector<12x1xf32>
    %123 = vector.broadcast %122 : vector<12x1xf32> to vector<12x12xf32>
    %124 = arith.subf %120, %123 : vector<12x12xf32>
    %125 = math.exp %124 : vector<12x12xf32>
    %cst_40 = arith.constant dense<0.000000e+00> : vector<12xf32>
    %126 = vector.multi_reduction <add>, %125, %cst_40 [1] : vector<12x12xf32> to vector<12xf32>
    %127 = vector.shape_cast %126 : vector<12xf32> to vector<12x1xf32>
    %128 = tpu.reciprocal %127 : vector<12x1xf32> -> vector<12x1xf32>
    %129 = vector.broadcast %128 : vector<12x1xf32> to vector<12x12xf32>
    %130 = arith.mulf %125, %129 : vector<12x12xf32>
    %131 = vector.extract_strided_slice %12 {offsets = [0, 56], sizes = [12, 8], strides = [1, 1]} : vector<12x64xf32> to vector<12x8xf32>
    %cst_41 = arith.constant dense<0.000000e+00> : vector<12x8xf32>
    %132 = tpu.matmul %130, %131, %cst_41 {dimension_numbers = #tpu.dot_dimension_numbers<[1], [0], [0], [1], [0, 0, 1, 1], [], []>} : vector<12x12xf32>, vector<12x8xf32>, vector<12x8xf32> -> vector<12x8xf32>
    %133 = tpu.concatenate %27, %42, %57, %72, %87, %102, %117, %132 in 1 : vector<12x8xf32>, vector<12x8xf32>, vector<12x8xf32>, vector<12x8xf32>, vector<12x8xf32>, vector<12x8xf32>, vector<12x8xf32>, vector<12x8xf32> -> vector<12x64xf32>
    %c0_42 = arith.constant 0 : index
    %c0_43 = arith.constant 0 : index
    %134 = vector.load %arg6[%c0_42, %c0_43] : memref<64x64xf32, #tpu.memory_space<vmem>>, vector<64x64xf32>
    %cst_44 = arith.constant dense<0.000000e+00> : vector<12x64xf32>
    %135 = tpu.matmul %133, %134, %cst_44 {dimension_numbers = #tpu.dot_dimension_numbers<[1], [0], [0], [1], [0, 0, 1, 1], [], []>} : vector<12x64xf32>, vector<64x64xf32>, vector<12x64xf32> -> vector<12x64xf32>
    %c0_45 = arith.constant 0 : index
    %c0_46 = arith.constant 0 : index
    %136 = vector.load %arg7[%c0_45, %c0_46] : memref<1x64xf32, #tpu.memory_space<vmem>>, vector<1x64xf32>
    %137 = vector.broadcast %136 : vector<1x64xf32> to vector<12x64xf32>
    %138 = arith.addf %135, %137 : vector<12x64xf32>
    %139 = arith.addf %3, %138 : vector<12x64xf32>
    %cst_47 = arith.constant dense<0.000000e+00> : vector<12xf32>
    %140 = vector.multi_reduction <add>, %139, %cst_47 [1] : vector<12x64xf32> to vector<12xf32>
    %141 = vector.shape_cast %140 : vector<12xf32> to vector<12x1xf32>
    %cst_48 = arith.constant 6.400000e+01 : f32
    %142 = vector.broadcast %cst_48 : f32 to vector<12x1xf32>
    %143 = arith.divf %141, %142 : vector<12x1xf32>
    %144 = vector.broadcast %143 : vector<12x1xf32> to vector<12x64xf32>
    %145 = arith.subf %139, %144 : vector<12x64xf32>
    %146 = arith.mulf %145, %145 : vector<12x64xf32>
    %cst_49 = arith.constant dense<0.000000e+00> : vector<12xf32>
    %147 = vector.multi_reduction <add>, %146, %cst_49 [1] : vector<12x64xf32> to vector<12xf32>
    %148 = vector.shape_cast %147 : vector<12xf32> to vector<12x1xf32>
    %cst_50 = arith.constant 6.400000e+01 : f32
    %149 = vector.broadcast %cst_50 : f32 to vector<12x1xf32>
    %150 = arith.divf %148, %149 : vector<12x1xf32>
    %cst_51 = arith.constant 9.99999974E-6 : f32
    %151 = vector.broadcast %cst_51 : f32 to vector<12x1xf32>
    %152 = arith.addf %150, %151 : vector<12x1xf32>
    %153 = math.rsqrt %152 : vector<12x1xf32>
    %154 = vector.broadcast %153 : vector<12x1xf32> to vector<12x64xf32>
    %155 = arith.mulf %145, %154 : vector<12x64xf32>
    %c0_52 = arith.constant 0 : index
    %c0_53 = arith.constant 0 : index
    %156 = vector.load %arg8[%c0_52, %c0_53] : memref<1x64xf32, #tpu.memory_space<vmem>>, vector<1x64xf32>
    %157 = vector.broadcast %156 : vector<1x64xf32> to vector<12x64xf32>
    %158 = arith.mulf %155, %157 : vector<12x64xf32>
    %c0_54 = arith.constant 0 : index
    %c0_55 = arith.constant 0 : index
    %159 = vector.load %arg9[%c0_54, %c0_55] : memref<1x64xf32, #tpu.memory_space<vmem>>, vector<1x64xf32>
    %160 = vector.broadcast %159 : vector<1x64xf32> to vector<12x64xf32>
    %161 = arith.addf %158, %160 : vector<12x64xf32>
    %c0_56 = arith.constant 0 : index
    %c0_57 = arith.constant 0 : index
    %162 = vector.load %arg10[%c0_56, %c0_57] : memref<64x256xf32, #tpu.memory_space<vmem>>, vector<64x256xf32>
    %cst_58 = arith.constant dense<0.000000e+00> : vector<12x256xf32>
    %163 = tpu.matmul %161, %162, %cst_58 {dimension_numbers = #tpu.dot_dimension_numbers<[1], [0], [0], [1], [0, 0, 1, 1], [], []>} : vector<12x64xf32>, vector<64x256xf32>, vector<12x256xf32> -> vector<12x256xf32>
    %c0_59 = arith.constant 0 : index
    %c0_60 = arith.constant 0 : index
    %164 = vector.load %arg11[%c0_59, %c0_60] : memref<1x256xf32, #tpu.memory_space<vmem>>, vector<1x256xf32>
    %165 = vector.broadcast %164 : vector<1x256xf32> to vector<12x256xf32>
    %166 = arith.addf %163, %165 : vector<12x256xf32>
    %cst_61 = arith.constant 0.000000e+00 : f32
    %167 = vector.broadcast %cst_61 : f32 to vector<12x256xf32>
    %168 = arith.maximumf %166, %167 : vector<12x256xf32>
    %c0_62 = arith.constant 0 : index
    %c0_63 = arith.constant 0 : index
    %169 = vector.load %arg12[%c0_62, %c0_63] : memref<256x64xf32, #tpu.memory_space<vmem>>, vector<256x64xf32>
    %cst_64 = arith.constant dense<0.000000e+00> : vector<12x64xf32>
    %170 = tpu.matmul %168, %169, %cst_64 {dimension_numbers = #tpu.dot_dimension_numbers<[1], [0], [0], [1], [0, 0, 1, 1], [], []>} : vector<12x256xf32>, vector<256x64xf32>, vector<12x64xf32> -> vector<12x64xf32>
    %c0_65 = arith.constant 0 : index
    %c0_66 = arith.constant 0 : index
    %171 = vector.load %arg13[%c0_65, %c0_66] : memref<1x64xf32, #tpu.memory_space<vmem>>, vector<1x64xf32>
    %172 = vector.broadcast %171 : vector<1x64xf32> to vector<12x64xf32>
    %173 = arith.addf %170, %172 : vector<12x64xf32>
    %174 = arith.addf %161, %173 : vector<12x64xf32>
    %cst_67 = arith.constant dense<0.000000e+00> : vector<12xf32>
    %175 = vector.multi_reduction <add>, %174, %cst_67 [1] : vector<12x64xf32> to vector<12xf32>
    %176 = vector.shape_cast %175 : vector<12xf32> to vector<12x1xf32>
    %cst_68 = arith.constant 6.400000e+01 : f32
    %177 = vector.broadcast %cst_68 : f32 to vector<12x1xf32>
    %178 = arith.divf %176, %177 : vector<12x1xf32>
    %179 = vector.broadcast %178 : vector<12x1xf32> to vector<12x64xf32>
    %180 = arith.subf %174, %179 : vector<12x64xf32>
    %181 = arith.mulf %180, %180 : vector<12x64xf32>
    %cst_69 = arith.constant dense<0.000000e+00> : vector<12xf32>
    %182 = vector.multi_reduction <add>, %181, %cst_69 [1] : vector<12x64xf32> to vector<12xf32>
    %183 = vector.shape_cast %182 : vector<12xf32> to vector<12x1xf32>
    %cst_70 = arith.constant 6.400000e+01 : f32
    %184 = vector.broadcast %cst_70 : f32 to vector<12x1xf32>
    %185 = arith.divf %183, %184 : vector<12x1xf32>
    %cst_71 = arith.constant 9.99999974E-6 : f32
    %186 = vector.broadcast %cst_71 : f32 to vector<12x1xf32>
    %187 = arith.addf %185, %186 : vector<12x1xf32>
    %188 = math.rsqrt %187 : vector<12x1xf32>
    %189 = vector.broadcast %188 : vector<12x1xf32> to vector<12x64xf32>
    %190 = arith.mulf %180, %189 : vector<12x64xf32>
    %c0_72 = arith.constant 0 : index
    %c0_73 = arith.constant 0 : index
    %191 = vector.load %arg14[%c0_72, %c0_73] : memref<1x64xf32, #tpu.memory_space<vmem>>, vector<1x64xf32>
    %192 = vector.broadcast %191 : vector<1x64xf32> to vector<12x64xf32>
    %193 = arith.mulf %190, %192 : vector<12x64xf32>
    %c0_74 = arith.constant 0 : index
    %c0_75 = arith.constant 0 : index
    %194 = vector.load %arg15[%c0_74, %c0_75] : memref<1x64xf32, #tpu.memory_space<vmem>>, vector<1x64xf32>
    %195 = vector.broadcast %194 : vector<1x64xf32> to vector<12x64xf32>
    %196 = arith.addf %193, %195 : vector<12x64xf32>
    %cst_76 = arith.constant dense<0.000000e+00> : vector<12xf32>
    %197 = vector.multi_reduction <add>, %196, %cst_76 [1] : vector<12x64xf32> to vector<12xf32>
    %198 = vector.shape_cast %197 : vector<12xf32> to vector<12x1xf32>
    %cst_77 = arith.constant 6.400000e+01 : f32
    %199 = vector.broadcast %cst_77 : f32 to vector<12x1xf32>
    %200 = arith.divf %198, %199 : vector<12x1xf32>
    %201 = vector.broadcast %200 : vector<12x1xf32> to vector<12x64xf32>
    %202 = arith.subf %196, %201 : vector<12x64xf32>
    %203 = arith.mulf %202, %202 : vector<12x64xf32>
    %cst_78 = arith.constant dense<0.000000e+00> : vector<12xf32>
    %204 = vector.multi_reduction <add>, %203, %cst_78 [1] : vector<12x64xf32> to vector<12xf32>
    %205 = vector.shape_cast %204 : vector<12xf32> to vector<12x1xf32>
    %cst_79 = arith.constant 6.400000e+01 : f32
    %206 = vector.broadcast %cst_79 : f32 to vector<12x1xf32>
    %207 = arith.divf %205, %206 : vector<12x1xf32>
    %cst_80 = arith.constant 9.99999974E-6 : f32
    %208 = vector.broadcast %cst_80 : f32 to vector<12x1xf32>
    %209 = arith.addf %207, %208 : vector<12x1xf32>
    %210 = math.rsqrt %209 : vector<12x1xf32>
    %211 = vector.broadcast %210 : vector<12x1xf32> to vector<12x64xf32>
    %212 = arith.mulf %202, %211 : vector<12x64xf32>
    %c0_81 = arith.constant 0 : index
    %c0_82 = arith.constant 0 : index
    %213 = vector.load %arg16[%c0_81, %c0_82] : memref<1x64xf32, #tpu.memory_space<vmem>>, vector<1x64xf32>
    %214 = vector.broadcast %213 : vector<1x64xf32> to vector<12x64xf32>
    %215 = arith.mulf %212, %214 : vector<12x64xf32>
    %c0_83 = arith.constant 0 : index
    %c0_84 = arith.constant 0 : index
    %216 = vector.load %arg17[%c0_83, %c0_84] : memref<1x64xf32, #tpu.memory_space<vmem>>, vector<1x64xf32>
    %217 = vector.broadcast %216 : vector<1x64xf32> to vector<12x64xf32>
    %218 = arith.addf %215, %217 : vector<12x64xf32>
    %c0_85 = arith.constant 0 : index
    %c0_86 = arith.constant 0 : index
    %219 = vector.load %arg18[%c0_85, %c0_86] : memref<64x192xf32, #tpu.memory_space<vmem>>, vector<64x192xf32>
    %cst_87 = arith.constant dense<0.000000e+00> : vector<12x192xf32>
    %220 = tpu.matmul %3, %219, %cst_87 {dimension_numbers = #tpu.dot_dimension_numbers<[1], [0], [0], [1], [0, 0, 1, 1], [], []>} : vector<12x64xf32>, vector<64x192xf32>, vector<12x192xf32> -> vector<12x192xf32>
    %c0_88 = arith.constant 0 : index
    %c0_89 = arith.constant 0 : index
    %221 = vector.load %arg19[%c0_88, %c0_89] : memref<1x192xf32, #tpu.memory_space<vmem>>, vector<1x192xf32>
    %222 = vector.broadcast %221 : vector<1x192xf32> to vector<12x192xf32>
    %223 = arith.addf %220, %222 : vector<12x192xf32>
    %224 = vector.extract_strided_slice %223 {offsets = [0, 0], sizes = [12, 64], strides = [1, 1]} : vector<12x192xf32> to vector<12x64xf32>
    %225 = vector.extract_strided_slice %223 {offsets = [0, 64], sizes = [12, 64], strides = [1, 1]} : vector<12x192xf32> to vector<12x64xf32>
    %226 = vector.extract_strided_slice %223 {offsets = [0, 128], sizes = [12, 64], strides = [1, 1]} : vector<12x192xf32> to vector<12x64xf32>
    %227 = vector.extract_strided_slice %224 {offsets = [0, 0], sizes = [12, 8], strides = [1, 1]} : vector<12x64xf32> to vector<12x8xf32>
    %228 = vector.extract_strided_slice %225 {offsets = [0, 0], sizes = [12, 8], strides = [1, 1]} : vector<12x64xf32> to vector<12x8xf32>
    "tpu.trace_start"() <{level = 10 : i32, message = "qd,kd->qk"}> : () -> ()
    %cst_90 = arith.constant dense<0.000000e+00> : vector<12x12xf32>
    %229 = tpu.matmul %227, %228, %cst_90 {dimension_numbers = #tpu.dot_dimension_numbers<[1], [1], [0], [0], [0, 0, 1, 0], [], []>} : vector<12x8xf32>, vector<12x8xf32>, vector<12x12xf32> -> vector<12x12xf32>
    "tpu.trace_stop"() : () -> ()
    %230 = arith.addf %229, %4 : vector<12x12xf32>
    %cst_91 = arith.constant dense<0xFF800000> : vector<12xf32>
    %231 = vector.multi_reduction <maximumf>, %230, %cst_91 [1] : vector<12x12xf32> to vector<12xf32>
    %232 = vector.shape_cast %231 : vector<12xf32> to vector<12x1xf32>
    %233 = vector.broadcast %232 : vector<12x1xf32> to vector<12x12xf32>
    %234 = arith.subf %230, %233 : vector<12x12xf32>
    %235 = math.exp %234 : vector<12x12xf32>
    %cst_92 = arith.constant dense<0.000000e+00> : vector<12xf32>
    %236 = vector.multi_reduction <add>, %235, %cst_92 [1] : vector<12x12xf32> to vector<12xf32>
    %237 = vector.shape_cast %236 : vector<12xf32> to vector<12x1xf32>
    %238 = tpu.reciprocal %237 : vector<12x1xf32> -> vector<12x1xf32>
    %239 = vector.broadcast %238 : vector<12x1xf32> to vector<12x12xf32>
    %240 = arith.mulf %235, %239 : vector<12x12xf32>
    %241 = vector.extract_strided_slice %226 {offsets = [0, 0], sizes = [12, 8], strides = [1, 1]} : vector<12x64xf32> to vector<12x8xf32>
    %cst_93 = arith.constant dense<0.000000e+00> : vector<12x8xf32>
    %242 = tpu.matmul %240, %241, %cst_93 {dimension_numbers = #tpu.dot_dimension_numbers<[1], [0], [0], [1], [0, 0, 1, 1], [], []>} : vector<12x12xf32>, vector<12x8xf32>, vector<12x8xf32> -> vector<12x8xf32>
    %243 = vector.extract_strided_slice %224 {offsets = [0, 8], sizes = [12, 8], strides = [1, 1]} : vector<12x64xf32> to vector<12x8xf32>
    %244 = vector.extract_strided_slice %225 {offsets = [0, 8], sizes = [12, 8], strides = [1, 1]} : vector<12x64xf32> to vector<12x8xf32>
    "tpu.trace_start"() <{level = 10 : i32, message = "qd,kd->qk"}> : () -> ()
    %cst_94 = arith.constant dense<0.000000e+00> : vector<12x12xf32>
    %245 = tpu.matmul %243, %244, %cst_94 {dimension_numbers = #tpu.dot_dimension_numbers<[1], [1], [0], [0], [0, 0, 1, 0], [], []>} : vector<12x8xf32>, vector<12x8xf32>, vector<12x12xf32> -> vector<12x12xf32>
    "tpu.trace_stop"() : () -> ()
    %246 = arith.addf %245, %4 : vector<12x12xf32>
    %cst_95 = arith.constant dense<0xFF800000> : vector<12xf32>
    %247 = vector.multi_reduction <maximumf>, %246, %cst_95 [1] : vector<12x12xf32> to vector<12xf32>
    %248 = vector.shape_cast %247 : vector<12xf32> to vector<12x1xf32>
    %249 = vector.broadcast %248 : vector<12x1xf32> to vector<12x12xf32>
    %250 = arith.subf %246, %249 : vector<12x12xf32>
    %251 = math.exp %250 : vector<12x12xf32>
    %cst_96 = arith.constant dense<0.000000e+00> : vector<12xf32>
    %252 = vector.multi_reduction <add>, %251, %cst_96 [1] : vector<12x12xf32> to vector<12xf32>
    %253 = vector.shape_cast %252 : vector<12xf32> to vector<12x1xf32>
    %254 = tpu.reciprocal %253 : vector<12x1xf32> -> vector<12x1xf32>
    %255 = vector.broadcast %254 : vector<12x1xf32> to vector<12x12xf32>
    %256 = arith.mulf %251, %255 : vector<12x12xf32>
    %257 = vector.extract_strided_slice %226 {offsets = [0, 8], sizes = [12, 8], strides = [1, 1]} : vector<12x64xf32> to vector<12x8xf32>
    %cst_97 = arith.constant dense<0.000000e+00> : vector<12x8xf32>
    %258 = tpu.matmul %256, %257, %cst_97 {dimension_numbers = #tpu.dot_dimension_numbers<[1], [0], [0], [1], [0, 0, 1, 1], [], []>} : vector<12x12xf32>, vector<12x8xf32>, vector<12x8xf32> -> vector<12x8xf32>
    %259 = vector.extract_strided_slice %224 {offsets = [0, 16], sizes = [12, 8], strides = [1, 1]} : vector<12x64xf32> to vector<12x8xf32>
    %260 = vector.extract_strided_slice %225 {offsets = [0, 16], sizes = [12, 8], strides = [1, 1]} : vector<12x64xf32> to vector<12x8xf32>
    "tpu.trace_start"() <{level = 10 : i32, message = "qd,kd->qk"}> : () -> ()
    %cst_98 = arith.constant dense<0.000000e+00> : vector<12x12xf32>
    %261 = tpu.matmul %259, %260, %cst_98 {dimension_numbers = #tpu.dot_dimension_numbers<[1], [1], [0], [0], [0, 0, 1, 0], [], []>} : vector<12x8xf32>, vector<12x8xf32>, vector<12x12xf32> -> vector<12x12xf32>
    "tpu.trace_stop"() : () -> ()
    %262 = arith.addf %261, %4 : vector<12x12xf32>
    %cst_99 = arith.constant dense<0xFF800000> : vector<12xf32>
    %263 = vector.multi_reduction <maximumf>, %262, %cst_99 [1] : vector<12x12xf32> to vector<12xf32>
    %264 = vector.shape_cast %263 : vector<12xf32> to vector<12x1xf32>
    %265 = vector.broadcast %264 : vector<12x1xf32> to vector<12x12xf32>
    %266 = arith.subf %262, %265 : vector<12x12xf32>
    %267 = math.exp %266 : vector<12x12xf32>
    %cst_100 = arith.constant dense<0.000000e+00> : vector<12xf32>
    %268 = vector.multi_reduction <add>, %267, %cst_100 [1] : vector<12x12xf32> to vector<12xf32>
    %269 = vector.shape_cast %268 : vector<12xf32> to vector<12x1xf32>
    %270 = tpu.reciprocal %269 : vector<12x1xf32> -> vector<12x1xf32>
    %271 = vector.broadcast %270 : vector<12x1xf32> to vector<12x12xf32>
    %272 = arith.mulf %267, %271 : vector<12x12xf32>
    %273 = vector.extract_strided_slice %226 {offsets = [0, 16], sizes = [12, 8], strides = [1, 1]} : vector<12x64xf32> to vector<12x8xf32>
    %cst_101 = arith.constant dense<0.000000e+00> : vector<12x8xf32>
    %274 = tpu.matmul %272, %273, %cst_101 {dimension_numbers = #tpu.dot_dimension_numbers<[1], [0], [0], [1], [0, 0, 1, 1], [], []>} : vector<12x12xf32>, vector<12x8xf32>, vector<12x8xf32> -> vector<12x8xf32>
    %275 = vector.extract_strided_slice %224 {offsets = [0, 24], sizes = [12, 8], strides = [1, 1]} : vector<12x64xf32> to vector<12x8xf32>
    %276 = vector.extract_strided_slice %225 {offsets = [0, 24], sizes = [12, 8], strides = [1, 1]} : vector<12x64xf32> to vector<12x8xf32>
    "tpu.trace_start"() <{level = 10 : i32, message = "qd,kd->qk"}> : () -> ()
    %cst_102 = arith.constant dense<0.000000e+00> : vector<12x12xf32>
    %277 = tpu.matmul %275, %276, %cst_102 {dimension_numbers = #tpu.dot_dimension_numbers<[1], [1], [0], [0], [0, 0, 1, 0], [], []>} : vector<12x8xf32>, vector<12x8xf32>, vector<12x12xf32> -> vector<12x12xf32>
    "tpu.trace_stop"() : () -> ()
    %278 = arith.addf %277, %4 : vector<12x12xf32>
    %cst_103 = arith.constant dense<0xFF800000> : vector<12xf32>
    %279 = vector.multi_reduction <maximumf>, %278, %cst_103 [1] : vector<12x12xf32> to vector<12xf32>
    %280 = vector.shape_cast %279 : vector<12xf32> to vector<12x1xf32>
    %281 = vector.broadcast %280 : vector<12x1xf32> to vector<12x12xf32>
    %282 = arith.subf %278, %281 : vector<12x12xf32>
    %283 = math.exp %282 : vector<12x12xf32>
    %cst_104 = arith.constant dense<0.000000e+00> : vector<12xf32>
    %284 = vector.multi_reduction <add>, %283, %cst_104 [1] : vector<12x12xf32> to vector<12xf32>
    %285 = vector.shape_cast %284 : vector<12xf32> to vector<12x1xf32>
    %286 = tpu.reciprocal %285 : vector<12x1xf32> -> vector<12x1xf32>
    %287 = vector.broadcast %286 : vector<12x1xf32> to vector<12x12xf32>
    %288 = arith.mulf %283, %287 : vector<12x12xf32>
    %289 = vector.extract_strided_slice %226 {offsets = [0, 24], sizes = [12, 8], strides = [1, 1]} : vector<12x64xf32> to vector<12x8xf32>
    %cst_105 = arith.constant dense<0.000000e+00> : vector<12x8xf32>
    %290 = tpu.matmul %288, %289, %cst_105 {dimension_numbers = #tpu.dot_dimension_numbers<[1], [0], [0], [1], [0, 0, 1, 1], [], []>} : vector<12x12xf32>, vector<12x8xf32>, vector<12x8xf32> -> vector<12x8xf32>
    %291 = vector.extract_strided_slice %224 {offsets = [0, 32], sizes = [12, 8], strides = [1, 1]} : vector<12x64xf32> to vector<12x8xf32>
    %292 = vector.extract_strided_slice %225 {offsets = [0, 32], sizes = [12, 8], strides = [1, 1]} : vector<12x64xf32> to vector<12x8xf32>
    "tpu.trace_start"() <{level = 10 : i32, message = "qd,kd->qk"}> : () -> ()
    %cst_106 = arith.constant dense<0.000000e+00> : vector<12x12xf32>
    %293 = tpu.matmul %291, %292, %cst_106 {dimension_numbers = #tpu.dot_dimension_numbers<[1], [1], [0], [0], [0, 0, 1, 0], [], []>} : vector<12x8xf32>, vector<12x8xf32>, vector<12x12xf32> -> vector<12x12xf32>
    "tpu.trace_stop"() : () -> ()
    %294 = arith.addf %293, %4 : vector<12x12xf32>
    %cst_107 = arith.constant dense<0xFF800000> : vector<12xf32>
    %295 = vector.multi_reduction <maximumf>, %294, %cst_107 [1] : vector<12x12xf32> to vector<12xf32>
    %296 = vector.shape_cast %295 : vector<12xf32> to vector<12x1xf32>
    %297 = vector.broadcast %296 : vector<12x1xf32> to vector<12x12xf32>
    %298 = arith.subf %294, %297 : vector<12x12xf32>
    %299 = math.exp %298 : vector<12x12xf32>
    %cst_108 = arith.constant dense<0.000000e+00> : vector<12xf32>
    %300 = vector.multi_reduction <add>, %299, %cst_108 [1] : vector<12x12xf32> to vector<12xf32>
    %301 = vector.shape_cast %300 : vector<12xf32> to vector<12x1xf32>
    %302 = tpu.reciprocal %301 : vector<12x1xf32> -> vector<12x1xf32>
    %303 = vector.broadcast %302 : vector<12x1xf32> to vector<12x12xf32>
    %304 = arith.mulf %299, %303 : vector<12x12xf32>
    %305 = vector.extract_strided_slice %226 {offsets = [0, 32], sizes = [12, 8], strides = [1, 1]} : vector<12x64xf32> to vector<12x8xf32>
    %cst_109 = arith.constant dense<0.000000e+00> : vector<12x8xf32>
    %306 = tpu.matmul %304, %305, %cst_109 {dimension_numbers = #tpu.dot_dimension_numbers<[1], [0], [0], [1], [0, 0, 1, 1], [], []>} : vector<12x12xf32>, vector<12x8xf32>, vector<12x8xf32> -> vector<12x8xf32>
    %307 = vector.extract_strided_slice %224 {offsets = [0, 40], sizes = [12, 8], strides = [1, 1]} : vector<12x64xf32> to vector<12x8xf32>
    %308 = vector.extract_strided_slice %225 {offsets = [0, 40], sizes = [12, 8], strides = [1, 1]} : vector<12x64xf32> to vector<12x8xf32>
    "tpu.trace_start"() <{level = 10 : i32, message = "qd,kd->qk"}> : () -> ()
    %cst_110 = arith.constant dense<0.000000e+00> : vector<12x12xf32>
    %309 = tpu.matmul %307, %308, %cst_110 {dimension_numbers = #tpu.dot_dimension_numbers<[1], [1], [0], [0], [0, 0, 1, 0], [], []>} : vector<12x8xf32>, vector<12x8xf32>, vector<12x12xf32> -> vector<12x12xf32>
    "tpu.trace_stop"() : () -> ()
    %310 = arith.addf %309, %4 : vector<12x12xf32>
    %cst_111 = arith.constant dense<0xFF800000> : vector<12xf32>
    %311 = vector.multi_reduction <maximumf>, %310, %cst_111 [1] : vector<12x12xf32> to vector<12xf32>
    %312 = vector.shape_cast %311 : vector<12xf32> to vector<12x1xf32>
    %313 = vector.broadcast %312 : vector<12x1xf32> to vector<12x12xf32>
    %314 = arith.subf %310, %313 : vector<12x12xf32>
    %315 = math.exp %314 : vector<12x12xf32>
    %cst_112 = arith.constant dense<0.000000e+00> : vector<12xf32>
    %316 = vector.multi_reduction <add>, %315, %cst_112 [1] : vector<12x12xf32> to vector<12xf32>
    %317 = vector.shape_cast %316 : vector<12xf32> to vector<12x1xf32>
    %318 = tpu.reciprocal %317 : vector<12x1xf32> -> vector<12x1xf32>
    %319 = vector.broadcast %318 : vector<12x1xf32> to vector<12x12xf32>
    %320 = arith.mulf %315, %319 : vector<12x12xf32>
    %321 = vector.extract_strided_slice %226 {offsets = [0, 40], sizes = [12, 8], strides = [1, 1]} : vector<12x64xf32> to vector<12x8xf32>
    %cst_113 = arith.constant dense<0.000000e+00> : vector<12x8xf32>
    %322 = tpu.matmul %320, %321, %cst_113 {dimension_numbers = #tpu.dot_dimension_numbers<[1], [0], [0], [1], [0, 0, 1, 1], [], []>} : vector<12x12xf32>, vector<12x8xf32>, vector<12x8xf32> -> vector<12x8xf32>
    %323 = vector.extract_strided_slice %224 {offsets = [0, 48], sizes = [12, 8], strides = [1, 1]} : vector<12x64xf32> to vector<12x8xf32>
    %324 = vector.extract_strided_slice %225 {offsets = [0, 48], sizes = [12, 8], strides = [1, 1]} : vector<12x64xf32> to vector<12x8xf32>
    "tpu.trace_start"() <{level = 10 : i32, message = "qd,kd->qk"}> : () -> ()
    %cst_114 = arith.constant dense<0.000000e+00> : vector<12x12xf32>
    %325 = tpu.matmul %323, %324, %cst_114 {dimension_numbers = #tpu.dot_dimension_numbers<[1], [1], [0], [0], [0, 0, 1, 0], [], []>} : vector<12x8xf32>, vector<12x8xf32>, vector<12x12xf32> -> vector<12x12xf32>
    "tpu.trace_stop"() : () -> ()
    %326 = arith.addf %325, %4 : vector<12x12xf32>
    %cst_115 = arith.constant dense<0xFF800000> : vector<12xf32>
    %327 = vector.multi_reduction <maximumf>, %326, %cst_115 [1] : vector<12x12xf32> to vector<12xf32>
    %328 = vector.shape_cast %327 : vector<12xf32> to vector<12x1xf32>
    %329 = vector.broadcast %328 : vector<12x1xf32> to vector<12x12xf32>
    %330 = arith.subf %326, %329 : vector<12x12xf32>
    %331 = math.exp %330 : vector<12x12xf32>
    %cst_116 = arith.constant dense<0.000000e+00> : vector<12xf32>
    %332 = vector.multi_reduction <add>, %331, %cst_116 [1] : vector<12x12xf32> to vector<12xf32>
    %333 = vector.shape_cast %332 : vector<12xf32> to vector<12x1xf32>
    %334 = tpu.reciprocal %333 : vector<12x1xf32> -> vector<12x1xf32>
    %335 = vector.broadcast %334 : vector<12x1xf32> to vector<12x12xf32>
    %336 = arith.mulf %331, %335 : vector<12x12xf32>
    %337 = vector.extract_strided_slice %226 {offsets = [0, 48], sizes = [12, 8], strides = [1, 1]} : vector<12x64xf32> to vector<12x8xf32>
    %cst_117 = arith.constant dense<0.000000e+00> : vector<12x8xf32>
    %338 = tpu.matmul %336, %337, %cst_117 {dimension_numbers = #tpu.dot_dimension_numbers<[1], [0], [0], [1], [0, 0, 1, 1], [], []>} : vector<12x12xf32>, vector<12x8xf32>, vector<12x8xf32> -> vector<12x8xf32>
    %339 = vector.extract_strided_slice %224 {offsets = [0, 56], sizes = [12, 8], strides = [1, 1]} : vector<12x64xf32> to vector<12x8xf32>
    %340 = vector.extract_strided_slice %225 {offsets = [0, 56], sizes = [12, 8], strides = [1, 1]} : vector<12x64xf32> to vector<12x8xf32>
    "tpu.trace_start"() <{level = 10 : i32, message = "qd,kd->qk"}> : () -> ()
    %cst_118 = arith.constant dense<0.000000e+00> : vector<12x12xf32>
    %341 = tpu.matmul %339, %340, %cst_118 {dimension_numbers = #tpu.dot_dimension_numbers<[1], [1], [0], [0], [0, 0, 1, 0], [], []>} : vector<12x8xf32>, vector<12x8xf32>, vector<12x12xf32> -> vector<12x12xf32>
    "tpu.trace_stop"() : () -> ()
    %342 = arith.addf %341, %4 : vector<12x12xf32>
    %cst_119 = arith.constant dense<0xFF800000> : vector<12xf32>
    %343 = vector.multi_reduction <maximumf>, %342, %cst_119 [1] : vector<12x12xf32> to vector<12xf32>
    %344 = vector.shape_cast %343 : vector<12xf32> to vector<12x1xf32>
    %345 = vector.broadcast %344 : vector<12x1xf32> to vector<12x12xf32>
    %346 = arith.subf %342, %345 : vector<12x12xf32>
    %347 = math.exp %346 : vector<12x12xf32>
    %cst_120 = arith.constant dense<0.000000e+00> : vector<12xf32>
    %348 = vector.multi_reduction <add>, %347, %cst_120 [1] : vector<12x12xf32> to vector<12xf32>
    %349 = vector.shape_cast %348 : vector<12xf32> to vector<12x1xf32>
    %350 = tpu.reciprocal %349 : vector<12x1xf32> -> vector<12x1xf32>
    %351 = vector.broadcast %350 : vector<12x1xf32> to vector<12x12xf32>
    %352 = arith.mulf %347, %351 : vector<12x12xf32>
    %353 = vector.extract_strided_slice %226 {offsets = [0, 56], sizes = [12, 8], strides = [1, 1]} : vector<12x64xf32> to vector<12x8xf32>
    %cst_121 = arith.constant dense<0.000000e+00> : vector<12x8xf32>
    %354 = tpu.matmul %352, %353, %cst_121 {dimension_numbers = #tpu.dot_dimension_numbers<[1], [0], [0], [1], [0, 0, 1, 1], [], []>} : vector<12x12xf32>, vector<12x8xf32>, vector<12x8xf32> -> vector<12x8xf32>
    %355 = tpu.concatenate %242, %258, %274, %290, %306, %322, %338, %354 in 1 : vector<12x8xf32>, vector<12x8xf32>, vector<12x8xf32>, vector<12x8xf32>, vector<12x8xf32>, vector<12x8xf32>, vector<12x8xf32>, vector<12x8xf32> -> vector<12x64xf32>
    %c0_122 = arith.constant 0 : index
    %c0_123 = arith.constant 0 : index
    %356 = vector.load %arg20[%c0_122, %c0_123] : memref<64x64xf32, #tpu.memory_space<vmem>>, vector<64x64xf32>
    %cst_124 = arith.constant dense<0.000000e+00> : vector<12x64xf32>
    %357 = tpu.matmul %355, %356, %cst_124 {dimension_numbers = #tpu.dot_dimension_numbers<[1], [0], [0], [1], [0, 0, 1, 1], [], []>} : vector<12x64xf32>, vector<64x64xf32>, vector<12x64xf32> -> vector<12x64xf32>
    %c0_125 = arith.constant 0 : index
    %c0_126 = arith.constant 0 : index
    %358 = vector.load %arg21[%c0_125, %c0_126] : memref<1x64xf32, #tpu.memory_space<vmem>>, vector<1x64xf32>
    %359 = vector.broadcast %358 : vector<1x64xf32> to vector<12x64xf32>
    %360 = arith.addf %357, %359 : vector<12x64xf32>
    %361 = arith.addf %3, %360 : vector<12x64xf32>
    %cst_127 = arith.constant dense<0.000000e+00> : vector<12xf32>
    %362 = vector.multi_reduction <add>, %361, %cst_127 [1] : vector<12x64xf32> to vector<12xf32>
    %363 = vector.shape_cast %362 : vector<12xf32> to vector<12x1xf32>
    %cst_128 = arith.constant 6.400000e+01 : f32
    %364 = vector.broadcast %cst_128 : f32 to vector<12x1xf32>
    %365 = arith.divf %363, %364 : vector<12x1xf32>
    %366 = vector.broadcast %365 : vector<12x1xf32> to vector<12x64xf32>
    %367 = arith.subf %361, %366 : vector<12x64xf32>
    %368 = arith.mulf %367, %367 : vector<12x64xf32>
    %cst_129 = arith.constant dense<0.000000e+00> : vector<12xf32>
    %369 = vector.multi_reduction <add>, %368, %cst_129 [1] : vector<12x64xf32> to vector<12xf32>
    %370 = vector.shape_cast %369 : vector<12xf32> to vector<12x1xf32>
    %cst_130 = arith.constant 6.400000e+01 : f32
    %371 = vector.broadcast %cst_130 : f32 to vector<12x1xf32>
    %372 = arith.divf %370, %371 : vector<12x1xf32>
    %cst_131 = arith.constant 9.99999974E-6 : f32
    %373 = vector.broadcast %cst_131 : f32 to vector<12x1xf32>
    %374 = arith.addf %372, %373 : vector<12x1xf32>
    %375 = math.rsqrt %374 : vector<12x1xf32>
    %376 = vector.broadcast %375 : vector<12x1xf32> to vector<12x64xf32>
    %377 = arith.mulf %367, %376 : vector<12x64xf32>
    %c0_132 = arith.constant 0 : index
    %c0_133 = arith.constant 0 : index
    %378 = vector.load %arg22[%c0_132, %c0_133] : memref<1x64xf32, #tpu.memory_space<vmem>>, vector<1x64xf32>
    %379 = vector.broadcast %378 : vector<1x64xf32> to vector<12x64xf32>
    %380 = arith.mulf %377, %379 : vector<12x64xf32>
    %c0_134 = arith.constant 0 : index
    %c0_135 = arith.constant 0 : index
    %381 = vector.load %arg23[%c0_134, %c0_135] : memref<1x64xf32, #tpu.memory_space<vmem>>, vector<1x64xf32>
    %382 = vector.broadcast %381 : vector<1x64xf32> to vector<12x64xf32>
    %383 = arith.addf %380, %382 : vector<12x64xf32>
    %c0_136 = arith.constant 0 : index
    %c0_137 = arith.constant 0 : index
    %384 = vector.load %arg24[%c0_136, %c0_137] : memref<64x64xf32, #tpu.memory_space<vmem>>, vector<64x64xf32>
    %cst_138 = arith.constant dense<0.000000e+00> : vector<12x64xf32>
    %385 = tpu.matmul %383, %384, %cst_138 {dimension_numbers = #tpu.dot_dimension_numbers<[1], [0], [0], [1], [0, 0, 1, 1], [], []>} : vector<12x64xf32>, vector<64x64xf32>, vector<12x64xf32> -> vector<12x64xf32>
    %c0_139 = arith.constant 0 : index
    %c0_140 = arith.constant 0 : index
    %386 = vector.load %arg25[%c0_139, %c0_140] : memref<1x64xf32, #tpu.memory_space<vmem>>, vector<1x64xf32>
    %387 = vector.broadcast %386 : vector<1x64xf32> to vector<12x64xf32>
    %388 = arith.addf %385, %387 : vector<12x64xf32>
    %c0_141 = arith.constant 0 : index
    %c0_142 = arith.constant 0 : index
    %389 = vector.load %arg26[%c0_141, %c0_142] : memref<64x128xf32, #tpu.memory_space<vmem>>, vector<64x128xf32>
    %cst_143 = arith.constant dense<0.000000e+00> : vector<12x128xf32>
    %390 = tpu.matmul %218, %389, %cst_143 {dimension_numbers = #tpu.dot_dimension_numbers<[1], [0], [0], [1], [0, 0, 1, 1], [], []>} : vector<12x64xf32>, vector<64x128xf32>, vector<12x128xf32> -> vector<12x128xf32>
    %c0_144 = arith.constant 0 : index
    %c0_145 = arith.constant 0 : index
    %391 = vector.load %arg27[%c0_144, %c0_145] : memref<1x128xf32, #tpu.memory_space<vmem>>, vector<1x128xf32>
    %392 = vector.broadcast %391 : vector<1x128xf32> to vector<12x128xf32>
    %393 = arith.addf %390, %392 : vector<12x128xf32>
    %394 = vector.extract_strided_slice %393 {offsets = [0, 0], sizes = [12, 64], strides = [1, 1]} : vector<12x128xf32> to vector<12x64xf32>
    %395 = vector.extract_strided_slice %393 {offsets = [0, 64], sizes = [12, 64], strides = [1, 1]} : vector<12x128xf32> to vector<12x64xf32>
    %396 = vector.extract_strided_slice %388 {offsets = [0, 0], sizes = [12, 8], strides = [1, 1]} : vector<12x64xf32> to vector<12x8xf32>
    %397 = vector.extract_strided_slice %394 {offsets = [0, 0], sizes = [12, 8], strides = [1, 1]} : vector<12x64xf32> to vector<12x8xf32>
    "tpu.trace_start"() <{level = 10 : i32, message = "qd,kd->qk"}> : () -> ()
    %cst_146 = arith.constant dense<0.000000e+00> : vector<12x12xf32>
    %398 = tpu.matmul %396, %397, %cst_146 {dimension_numbers = #tpu.dot_dimension_numbers<[1], [1], [0], [0], [0, 0, 1, 0], [], []>} : vector<12x8xf32>, vector<12x8xf32>, vector<12x12xf32> -> vector<12x12xf32>
    "tpu.trace_stop"() : () -> ()
    %cst_147 = arith.constant dense<0xFF800000> : vector<12xf32>
    %399 = vector.multi_reduction <maximumf>, %398, %cst_147 [1] : vector<12x12xf32> to vector<12xf32>
    %400 = vector.shape_cast %399 : vector<12xf32> to vector<12x1xf32>
    %401 = vector.broadcast %400 : vector<12x1xf32> to vector<12x12xf32>
    %402 = arith.subf %398, %401 : vector<12x12xf32>
    %403 = math.exp %402 : vector<12x12xf32>
    %cst_148 = arith.constant dense<0.000000e+00> : vector<12xf32>
    %404 = vector.multi_reduction <add>, %403, %cst_148 [1] : vector<12x12xf32> to vector<12xf32>
    %405 = vector.shape_cast %404 : vector<12xf32> to vector<12x1xf32>
    %406 = tpu.reciprocal %405 : vector<12x1xf32> -> vector<12x1xf32>
    %407 = vector.broadcast %406 : vector<12x1xf32> to vector<12x12xf32>
    %408 = arith.mulf %403, %407 : vector<12x12xf32>
    %409 = vector.extract_strided_slice %395 {offsets = [0, 0], sizes = [12, 8], strides = [1, 1]} : vector<12x64xf32> to vector<12x8xf32>
    %cst_149 = arith.constant dense<0.000000e+00> : vector<12x8xf32>
    %410 = tpu.matmul %408, %409, %cst_149 {dimension_numbers = #tpu.dot_dimension_numbers<[1], [0], [0], [1], [0, 0, 1, 1], [], []>} : vector<12x12xf32>, vector<12x8xf32>, vector<12x8xf32> -> vector<12x8xf32>
    %411 = vector.extract_strided_slice %388 {offsets = [0, 8], sizes = [12, 8], strides = [1, 1]} : vector<12x64xf32> to vector<12x8xf32>
    %412 = vector.extract_strided_slice %394 {offsets = [0, 8], sizes = [12, 8], strides = [1, 1]} : vector<12x64xf32> to vector<12x8xf32>
    "tpu.trace_start"() <{level = 10 : i32, message = "qd,kd->qk"}> : () -> ()
    %cst_150 = arith.constant dense<0.000000e+00> : vector<12x12xf32>
    %413 = tpu.matmul %411, %412, %cst_150 {dimension_numbers = #tpu.dot_dimension_numbers<[1], [1], [0], [0], [0, 0, 1, 0], [], []>} : vector<12x8xf32>, vector<12x8xf32>, vector<12x12xf32> -> vector<12x12xf32>
    "tpu.trace_stop"() : () -> ()
    %cst_151 = arith.constant dense<0xFF800000> : vector<12xf32>
    %414 = vector.multi_reduction <maximumf>, %413, %cst_151 [1] : vector<12x12xf32> to vector<12xf32>
    %415 = vector.shape_cast %414 : vector<12xf32> to vector<12x1xf32>
    %416 = vector.broadcast %415 : vector<12x1xf32> to vector<12x12xf32>
    %417 = arith.subf %413, %416 : vector<12x12xf32>
    %418 = math.exp %417 : vector<12x12xf32>
    %cst_152 = arith.constant dense<0.000000e+00> : vector<12xf32>
    %419 = vector.multi_reduction <add>, %418, %cst_152 [1] : vector<12x12xf32> to vector<12xf32>
    %420 = vector.shape_cast %419 : vector<12xf32> to vector<12x1xf32>
    %421 = tpu.reciprocal %420 : vector<12x1xf32> -> vector<12x1xf32>
    %422 = vector.broadcast %421 : vector<12x1xf32> to vector<12x12xf32>
    %423 = arith.mulf %418, %422 : vector<12x12xf32>
    %424 = vector.extract_strided_slice %395 {offsets = [0, 8], sizes = [12, 8], strides = [1, 1]} : vector<12x64xf32> to vector<12x8xf32>
    %cst_153 = arith.constant dense<0.000000e+00> : vector<12x8xf32>
    %425 = tpu.matmul %423, %424, %cst_153 {dimension_numbers = #tpu.dot_dimension_numbers<[1], [0], [0], [1], [0, 0, 1, 1], [], []>} : vector<12x12xf32>, vector<12x8xf32>, vector<12x8xf32> -> vector<12x8xf32>
    %426 = vector.extract_strided_slice %388 {offsets = [0, 16], sizes = [12, 8], strides = [1, 1]} : vector<12x64xf32> to vector<12x8xf32>
    %427 = vector.extract_strided_slice %394 {offsets = [0, 16], sizes = [12, 8], strides = [1, 1]} : vector<12x64xf32> to vector<12x8xf32>
    "tpu.trace_start"() <{level = 10 : i32, message = "qd,kd->qk"}> : () -> ()
    %cst_154 = arith.constant dense<0.000000e+00> : vector<12x12xf32>
    %428 = tpu.matmul %426, %427, %cst_154 {dimension_numbers = #tpu.dot_dimension_numbers<[1], [1], [0], [0], [0, 0, 1, 0], [], []>} : vector<12x8xf32>, vector<12x8xf32>, vector<12x12xf32> -> vector<12x12xf32>
    "tpu.trace_stop"() : () -> ()
    %cst_155 = arith.constant dense<0xFF800000> : vector<12xf32>
    %429 = vector.multi_reduction <maximumf>, %428, %cst_155 [1] : vector<12x12xf32> to vector<12xf32>
    %430 = vector.shape_cast %429 : vector<12xf32> to vector<12x1xf32>
    %431 = vector.broadcast %430 : vector<12x1xf32> to vector<12x12xf32>
    %432 = arith.subf %428, %431 : vector<12x12xf32>
    %433 = math.exp %432 : vector<12x12xf32>
    %cst_156 = arith.constant dense<0.000000e+00> : vector<12xf32>
    %434 = vector.multi_reduction <add>, %433, %cst_156 [1] : vector<12x12xf32> to vector<12xf32>
    %435 = vector.shape_cast %434 : vector<12xf32> to vector<12x1xf32>
    %436 = tpu.reciprocal %435 : vector<12x1xf32> -> vector<12x1xf32>
    %437 = vector.broadcast %436 : vector<12x1xf32> to vector<12x12xf32>
    %438 = arith.mulf %433, %437 : vector<12x12xf32>
    %439 = vector.extract_strided_slice %395 {offsets = [0, 16], sizes = [12, 8], strides = [1, 1]} : vector<12x64xf32> to vector<12x8xf32>
    %cst_157 = arith.constant dense<0.000000e+00> : vector<12x8xf32>
    %440 = tpu.matmul %438, %439, %cst_157 {dimension_numbers = #tpu.dot_dimension_numbers<[1], [0], [0], [1], [0, 0, 1, 1], [], []>} : vector<12x12xf32>, vector<12x8xf32>, vector<12x8xf32> -> vector<12x8xf32>
    %441 = vector.extract_strided_slice %388 {offsets = [0, 24], sizes = [12, 8], strides = [1, 1]} : vector<12x64xf32> to vector<12x8xf32>
    %442 = vector.extract_strided_slice %394 {offsets = [0, 24], sizes = [12, 8], strides = [1, 1]} : vector<12x64xf32> to vector<12x8xf32>
    "tpu.trace_start"() <{level = 10 : i32, message = "qd,kd->qk"}> : () -> ()
    %cst_158 = arith.constant dense<0.000000e+00> : vector<12x12xf32>
    %443 = tpu.matmul %441, %442, %cst_158 {dimension_numbers = #tpu.dot_dimension_numbers<[1], [1], [0], [0], [0, 0, 1, 0], [], []>} : vector<12x8xf32>, vector<12x8xf32>, vector<12x12xf32> -> vector<12x12xf32>
    "tpu.trace_stop"() : () -> ()
    %cst_159 = arith.constant dense<0xFF800000> : vector<12xf32>
    %444 = vector.multi_reduction <maximumf>, %443, %cst_159 [1] : vector<12x12xf32> to vector<12xf32>
    %445 = vector.shape_cast %444 : vector<12xf32> to vector<12x1xf32>
    %446 = vector.broadcast %445 : vector<12x1xf32> to vector<12x12xf32>
    %447 = arith.subf %443, %446 : vector<12x12xf32>
    %448 = math.exp %447 : vector<12x12xf32>
    %cst_160 = arith.constant dense<0.000000e+00> : vector<12xf32>
    %449 = vector.multi_reduction <add>, %448, %cst_160 [1] : vector<12x12xf32> to vector<12xf32>
    %450 = vector.shape_cast %449 : vector<12xf32> to vector<12x1xf32>
    %451 = tpu.reciprocal %450 : vector<12x1xf32> -> vector<12x1xf32>
    %452 = vector.broadcast %451 : vector<12x1xf32> to vector<12x12xf32>
    %453 = arith.mulf %448, %452 : vector<12x12xf32>
    %454 = vector.extract_strided_slice %395 {offsets = [0, 24], sizes = [12, 8], strides = [1, 1]} : vector<12x64xf32> to vector<12x8xf32>
    %cst_161 = arith.constant dense<0.000000e+00> : vector<12x8xf32>
    %455 = tpu.matmul %453, %454, %cst_161 {dimension_numbers = #tpu.dot_dimension_numbers<[1], [0], [0], [1], [0, 0, 1, 1], [], []>} : vector<12x12xf32>, vector<12x8xf32>, vector<12x8xf32> -> vector<12x8xf32>
    %456 = vector.extract_strided_slice %388 {offsets = [0, 32], sizes = [12, 8], strides = [1, 1]} : vector<12x64xf32> to vector<12x8xf32>
    %457 = vector.extract_strided_slice %394 {offsets = [0, 32], sizes = [12, 8], strides = [1, 1]} : vector<12x64xf32> to vector<12x8xf32>
    "tpu.trace_start"() <{level = 10 : i32, message = "qd,kd->qk"}> : () -> ()
    %cst_162 = arith.constant dense<0.000000e+00> : vector<12x12xf32>
    %458 = tpu.matmul %456, %457, %cst_162 {dimension_numbers = #tpu.dot_dimension_numbers<[1], [1], [0], [0], [0, 0, 1, 0], [], []>} : vector<12x8xf32>, vector<12x8xf32>, vector<12x12xf32> -> vector<12x12xf32>
    "tpu.trace_stop"() : () -> ()
    %cst_163 = arith.constant dense<0xFF800000> : vector<12xf32>
    %459 = vector.multi_reduction <maximumf>, %458, %cst_163 [1] : vector<12x12xf32> to vector<12xf32>
    %460 = vector.shape_cast %459 : vector<12xf32> to vector<12x1xf32>
    %461 = vector.broadcast %460 : vector<12x1xf32> to vector<12x12xf32>
    %462 = arith.subf %458, %461 : vector<12x12xf32>
    %463 = math.exp %462 : vector<12x12xf32>
    %cst_164 = arith.constant dense<0.000000e+00> : vector<12xf32>
    %464 = vector.multi_reduction <add>, %463, %cst_164 [1] : vector<12x12xf32> to vector<12xf32>
    %465 = vector.shape_cast %464 : vector<12xf32> to vector<12x1xf32>
    %466 = tpu.reciprocal %465 : vector<12x1xf32> -> vector<12x1xf32>
    %467 = vector.broadcast %466 : vector<12x1xf32> to vector<12x12xf32>
    %468 = arith.mulf %463, %467 : vector<12x12xf32>
    %469 = vector.extract_strided_slice %395 {offsets = [0, 32], sizes = [12, 8], strides = [1, 1]} : vector<12x64xf32> to vector<12x8xf32>
    %cst_165 = arith.constant dense<0.000000e+00> : vector<12x8xf32>
    %470 = tpu.matmul %468, %469, %cst_165 {dimension_numbers = #tpu.dot_dimension_numbers<[1], [0], [0], [1], [0, 0, 1, 1], [], []>} : vector<12x12xf32>, vector<12x8xf32>, vector<12x8xf32> -> vector<12x8xf32>
    %471 = vector.extract_strided_slice %388 {offsets = [0, 40], sizes = [12, 8], strides = [1, 1]} : vector<12x64xf32> to vector<12x8xf32>
    %472 = vector.extract_strided_slice %394 {offsets = [0, 40], sizes = [12, 8], strides = [1, 1]} : vector<12x64xf32> to vector<12x8xf32>
    "tpu.trace_start"() <{level = 10 : i32, message = "qd,kd->qk"}> : () -> ()
    %cst_166 = arith.constant dense<0.000000e+00> : vector<12x12xf32>
    %473 = tpu.matmul %471, %472, %cst_166 {dimension_numbers = #tpu.dot_dimension_numbers<[1], [1], [0], [0], [0, 0, 1, 0], [], []>} : vector<12x8xf32>, vector<12x8xf32>, vector<12x12xf32> -> vector<12x12xf32>
    "tpu.trace_stop"() : () -> ()
    %cst_167 = arith.constant dense<0xFF800000> : vector<12xf32>
    %474 = vector.multi_reduction <maximumf>, %473, %cst_167 [1] : vector<12x12xf32> to vector<12xf32>
    %475 = vector.shape_cast %474 : vector<12xf32> to vector<12x1xf32>
    %476 = vector.broadcast %475 : vector<12x1xf32> to vector<12x12xf32>
    %477 = arith.subf %473, %476 : vector<12x12xf32>
    %478 = math.exp %477 : vector<12x12xf32>
    %cst_168 = arith.constant dense<0.000000e+00> : vector<12xf32>
    %479 = vector.multi_reduction <add>, %478, %cst_168 [1] : vector<12x12xf32> to vector<12xf32>
    %480 = vector.shape_cast %479 : vector<12xf32> to vector<12x1xf32>
    %481 = tpu.reciprocal %480 : vector<12x1xf32> -> vector<12x1xf32>
    %482 = vector.broadcast %481 : vector<12x1xf32> to vector<12x12xf32>
    %483 = arith.mulf %478, %482 : vector<12x12xf32>
    %484 = vector.extract_strided_slice %395 {offsets = [0, 40], sizes = [12, 8], strides = [1, 1]} : vector<12x64xf32> to vector<12x8xf32>
    %cst_169 = arith.constant dense<0.000000e+00> : vector<12x8xf32>
    %485 = tpu.matmul %483, %484, %cst_169 {dimension_numbers = #tpu.dot_dimension_numbers<[1], [0], [0], [1], [0, 0, 1, 1], [], []>} : vector<12x12xf32>, vector<12x8xf32>, vector<12x8xf32> -> vector<12x8xf32>
    %486 = vector.extract_strided_slice %388 {offsets = [0, 48], sizes = [12, 8], strides = [1, 1]} : vector<12x64xf32> to vector<12x8xf32>
    %487 = vector.extract_strided_slice %394 {offsets = [0, 48], sizes = [12, 8], strides = [1, 1]} : vector<12x64xf32> to vector<12x8xf32>
    "tpu.trace_start"() <{level = 10 : i32, message = "qd,kd->qk"}> : () -> ()
    %cst_170 = arith.constant dense<0.000000e+00> : vector<12x12xf32>
    %488 = tpu.matmul %486, %487, %cst_170 {dimension_numbers = #tpu.dot_dimension_numbers<[1], [1], [0], [0], [0, 0, 1, 0], [], []>} : vector<12x8xf32>, vector<12x8xf32>, vector<12x12xf32> -> vector<12x12xf32>
    "tpu.trace_stop"() : () -> ()
    %cst_171 = arith.constant dense<0xFF800000> : vector<12xf32>
    %489 = vector.multi_reduction <maximumf>, %488, %cst_171 [1] : vector<12x12xf32> to vector<12xf32>
    %490 = vector.shape_cast %489 : vector<12xf32> to vector<12x1xf32>
    %491 = vector.broadcast %490 : vector<12x1xf32> to vector<12x12xf32>
    %492 = arith.subf %488, %491 : vector<12x12xf32>
    %493 = math.exp %492 : vector<12x12xf32>
    %cst_172 = arith.constant dense<0.000000e+00> : vector<12xf32>
    %494 = vector.multi_reduction <add>, %493, %cst_172 [1] : vector<12x12xf32> to vector<12xf32>
    %495 = vector.shape_cast %494 : vector<12xf32> to vector<12x1xf32>
    %496 = tpu.reciprocal %495 : vector<12x1xf32> -> vector<12x1xf32>
    %497 = vector.broadcast %496 : vector<12x1xf32> to vector<12x12xf32>
    %498 = arith.mulf %493, %497 : vector<12x12xf32>
    %499 = vector.extract_strided_slice %395 {offsets = [0, 48], sizes = [12, 8], strides = [1, 1]} : vector<12x64xf32> to vector<12x8xf32>
    %cst_173 = arith.constant dense<0.000000e+00> : vector<12x8xf32>
    %500 = tpu.matmul %498, %499, %cst_173 {dimension_numbers = #tpu.dot_dimension_numbers<[1], [0], [0], [1], [0, 0, 1, 1], [], []>} : vector<12x12xf32>, vector<12x8xf32>, vector<12x8xf32> -> vector<12x8xf32>
    %501 = vector.extract_strided_slice %388 {offsets = [0, 56], sizes = [12, 8], strides = [1, 1]} : vector<12x64xf32> to vector<12x8xf32>
    %502 = vector.extract_strided_slice %394 {offsets = [0, 56], sizes = [12, 8], strides = [1, 1]} : vector<12x64xf32> to vector<12x8xf32>
    "tpu.trace_start"() <{level = 10 : i32, message = "qd,kd->qk"}> : () -> ()
    %cst_174 = arith.constant dense<0.000000e+00> : vector<12x12xf32>
    %503 = tpu.matmul %501, %502, %cst_174 {dimension_numbers = #tpu.dot_dimension_numbers<[1], [1], [0], [0], [0, 0, 1, 0], [], []>} : vector<12x8xf32>, vector<12x8xf32>, vector<12x12xf32> -> vector<12x12xf32>
    "tpu.trace_stop"() : () -> ()
    %cst_175 = arith.constant dense<0xFF800000> : vector<12xf32>
    %504 = vector.multi_reduction <maximumf>, %503, %cst_175 [1] : vector<12x12xf32> to vector<12xf32>
    %505 = vector.shape_cast %504 : vector<12xf32> to vector<12x1xf32>
    %506 = vector.broadcast %505 : vector<12x1xf32> to vector<12x12xf32>
    %507 = arith.subf %503, %506 : vector<12x12xf32>
    %508 = math.exp %507 : vector<12x12xf32>
    %cst_176 = arith.constant dense<0.000000e+00> : vector<12xf32>
    %509 = vector.multi_reduction <add>, %508, %cst_176 [1] : vector<12x12xf32> to vector<12xf32>
    %510 = vector.shape_cast %509 : vector<12xf32> to vector<12x1xf32>
    %511 = tpu.reciprocal %510 : vector<12x1xf32> -> vector<12x1xf32>
    %512 = vector.broadcast %511 : vector<12x1xf32> to vector<12x12xf32>
    %513 = arith.mulf %508, %512 : vector<12x12xf32>
    %514 = vector.extract_strided_slice %395 {offsets = [0, 56], sizes = [12, 8], strides = [1, 1]} : vector<12x64xf32> to vector<12x8xf32>
    %cst_177 = arith.constant dense<0.000000e+00> : vector<12x8xf32>
    %515 = tpu.matmul %513, %514, %cst_177 {dimension_numbers = #tpu.dot_dimension_numbers<[1], [0], [0], [1], [0, 0, 1, 1], [], []>} : vector<12x12xf32>, vector<12x8xf32>, vector<12x8xf32> -> vector<12x8xf32>
    %516 = tpu.concatenate %410, %425, %440, %455, %470, %485, %500, %515 in 1 : vector<12x8xf32>, vector<12x8xf32>, vector<12x8xf32>, vector<12x8xf32>, vector<12x8xf32>, vector<12x8xf32>, vector<12x8xf32>, vector<12x8xf32> -> vector<12x64xf32>
    %c0_178 = arith.constant 0 : index
    %c0_179 = arith.constant 0 : index
    %517 = vector.load %arg28[%c0_178, %c0_179] : memref<64x64xf32, #tpu.memory_space<vmem>>, vector<64x64xf32>
    %cst_180 = arith.constant dense<0.000000e+00> : vector<12x64xf32>
    %518 = tpu.matmul %516, %517, %cst_180 {dimension_numbers = #tpu.dot_dimension_numbers<[1], [0], [0], [1], [0, 0, 1, 1], [], []>} : vector<12x64xf32>, vector<64x64xf32>, vector<12x64xf32> -> vector<12x64xf32>
    %c0_181 = arith.constant 0 : index
    %c0_182 = arith.constant 0 : index
    %519 = vector.load %arg29[%c0_181, %c0_182] : memref<1x64xf32, #tpu.memory_space<vmem>>, vector<1x64xf32>
    %520 = vector.broadcast %519 : vector<1x64xf32> to vector<12x64xf32>
    %521 = arith.addf %518, %520 : vector<12x64xf32>
    %522 = arith.addf %383, %521 : vector<12x64xf32>
    %cst_183 = arith.constant dense<0.000000e+00> : vector<12xf32>
    %523 = vector.multi_reduction <add>, %522, %cst_183 [1] : vector<12x64xf32> to vector<12xf32>
    %524 = vector.shape_cast %523 : vector<12xf32> to vector<12x1xf32>
    %cst_184 = arith.constant 6.400000e+01 : f32
    %525 = vector.broadcast %cst_184 : f32 to vector<12x1xf32>
    %526 = arith.divf %524, %525 : vector<12x1xf32>
    %527 = vector.broadcast %526 : vector<12x1xf32> to vector<12x64xf32>
    %528 = arith.subf %522, %527 : vector<12x64xf32>
    %529 = arith.mulf %528, %528 : vector<12x64xf32>
    %cst_185 = arith.constant dense<0.000000e+00> : vector<12xf32>
    %530 = vector.multi_reduction <add>, %529, %cst_185 [1] : vector<12x64xf32> to vector<12xf32>
    %531 = vector.shape_cast %530 : vector<12xf32> to vector<12x1xf32>
    %cst_186 = arith.constant 6.400000e+01 : f32
    %532 = vector.broadcast %cst_186 : f32 to vector<12x1xf32>
    %533 = arith.divf %531, %532 : vector<12x1xf32>
    %cst_187 = arith.constant 9.99999974E-6 : f32
    %534 = vector.broadcast %cst_187 : f32 to vector<12x1xf32>
    %535 = arith.addf %533, %534 : vector<12x1xf32>
    %536 = math.rsqrt %535 : vector<12x1xf32>
    %537 = vector.broadcast %536 : vector<12x1xf32> to vector<12x64xf32>
    %538 = arith.mulf %528, %537 : vector<12x64xf32>
    %c0_188 = arith.constant 0 : index
    %c0_189 = arith.constant 0 : index
    %539 = vector.load %arg30[%c0_188, %c0_189] : memref<1x64xf32, #tpu.memory_space<vmem>>, vector<1x64xf32>
    %540 = vector.broadcast %539 : vector<1x64xf32> to vector<12x64xf32>
    %541 = arith.mulf %538, %540 : vector<12x64xf32>
    %c0_190 = arith.constant 0 : index
    %c0_191 = arith.constant 0 : index
    %542 = vector.load %arg31[%c0_190, %c0_191] : memref<1x64xf32, #tpu.memory_space<vmem>>, vector<1x64xf32>
    %543 = vector.broadcast %542 : vector<1x64xf32> to vector<12x64xf32>
    %544 = arith.addf %541, %543 : vector<12x64xf32>
    %c0_192 = arith.constant 0 : index
    %c0_193 = arith.constant 0 : index
    %545 = vector.load %arg32[%c0_192, %c0_193] : memref<64x256xf32, #tpu.memory_space<vmem>>, vector<64x256xf32>
    %cst_194 = arith.constant dense<0.000000e+00> : vector<12x256xf32>
    %546 = tpu.matmul %544, %545, %cst_194 {dimension_numbers = #tpu.dot_dimension_numbers<[1], [0], [0], [1], [0, 0, 1, 1], [], []>} : vector<12x64xf32>, vector<64x256xf32>, vector<12x256xf32> -> vector<12x256xf32>
    %c0_195 = arith.constant 0 : index
    %c0_196 = arith.constant 0 : index
    %547 = vector.load %arg33[%c0_195, %c0_196] : memref<1x256xf32, #tpu.memory_space<vmem>>, vector<1x256xf32>
    %548 = vector.broadcast %547 : vector<1x256xf32> to vector<12x256xf32>
    %549 = arith.addf %546, %548 : vector<12x256xf32>
    %cst_197 = arith.constant 0.000000e+00 : f32
    %550 = vector.broadcast %cst_197 : f32 to vector<12x256xf32>
    %551 = arith.maximumf %549, %550 : vector<12x256xf32>
    %c0_198 = arith.constant 0 : index
    %c0_199 = arith.constant 0 : index
    %552 = vector.load %arg34[%c0_198, %c0_199] : memref<256x64xf32, #tpu.memory_space<vmem>>, vector<256x64xf32>
    %cst_200 = arith.constant dense<0.000000e+00> : vector<12x64xf32>
    %553 = tpu.matmul %551, %552, %cst_200 {dimension_numbers = #tpu.dot_dimension_numbers<[1], [0], [0], [1], [0, 0, 1, 1], [], []>} : vector<12x256xf32>, vector<256x64xf32>, vector<12x64xf32> -> vector<12x64xf32>
    %c0_201 = arith.constant 0 : index
    %c0_202 = arith.constant 0 : index
    %554 = vector.load %arg35[%c0_201, %c0_202] : memref<1x64xf32, #tpu.memory_space<vmem>>, vector<1x64xf32>
    %555 = vector.broadcast %554 : vector<1x64xf32> to vector<12x64xf32>
    %556 = arith.addf %553, %555 : vector<12x64xf32>
    %557 = arith.addf %544, %556 : vector<12x64xf32>
    %cst_203 = arith.constant dense<0.000000e+00> : vector<12xf32>
    %558 = vector.multi_reduction <add>, %557, %cst_203 [1] : vector<12x64xf32> to vector<12xf32>
    %559 = vector.shape_cast %558 : vector<12xf32> to vector<12x1xf32>
    %cst_204 = arith.constant 6.400000e+01 : f32
    %560 = vector.broadcast %cst_204 : f32 to vector<12x1xf32>
    %561 = arith.divf %559, %560 : vector<12x1xf32>
    %562 = vector.broadcast %561 : vector<12x1xf32> to vector<12x64xf32>
    %563 = arith.subf %557, %562 : vector<12x64xf32>
    %564 = arith.mulf %563, %563 : vector<12x64xf32>
    %cst_205 = arith.constant dense<0.000000e+00> : vector<12xf32>
    %565 = vector.multi_reduction <add>, %564, %cst_205 [1] : vector<12x64xf32> to vector<12xf32>
    %566 = vector.shape_cast %565 : vector<12xf32> to vector<12x1xf32>
    %cst_206 = arith.constant 6.400000e+01 : f32
    %567 = vector.broadcast %cst_206 : f32 to vector<12x1xf32>
    %568 = arith.divf %566, %567 : vector<12x1xf32>
    %cst_207 = arith.constant 9.99999974E-6 : f32
    %569 = vector.broadcast %cst_207 : f32 to vector<12x1xf32>
    %570 = arith.addf %568, %569 : vector<12x1xf32>
    %571 = math.rsqrt %570 : vector<12x1xf32>
    %572 = vector.broadcast %571 : vector<12x1xf32> to vector<12x64xf32>
    %573 = arith.mulf %563, %572 : vector<12x64xf32>
    %c0_208 = arith.constant 0 : index
    %c0_209 = arith.constant 0 : index
    %574 = vector.load %arg36[%c0_208, %c0_209] : memref<1x64xf32, #tpu.memory_space<vmem>>, vector<1x64xf32>
    %575 = vector.broadcast %574 : vector<1x64xf32> to vector<12x64xf32>
    %576 = arith.mulf %573, %575 : vector<12x64xf32>
    %c0_210 = arith.constant 0 : index
    %c0_211 = arith.constant 0 : index
    %577 = vector.load %arg37[%c0_210, %c0_211] : memref<1x64xf32, #tpu.memory_space<vmem>>, vector<1x64xf32>
    %578 = vector.broadcast %577 : vector<1x64xf32> to vector<12x64xf32>
    %579 = arith.addf %576, %578 : vector<12x64xf32>
    %cst_212 = arith.constant dense<0.000000e+00> : vector<12xf32>
    %580 = vector.multi_reduction <add>, %579, %cst_212 [1] : vector<12x64xf32> to vector<12xf32>
    %581 = vector.shape_cast %580 : vector<12xf32> to vector<12x1xf32>
    %cst_213 = arith.constant 6.400000e+01 : f32
    %582 = vector.broadcast %cst_213 : f32 to vector<12x1xf32>
    %583 = arith.divf %581, %582 : vector<12x1xf32>
    %584 = vector.broadcast %583 : vector<12x1xf32> to vector<12x64xf32>
    %585 = arith.subf %579, %584 : vector<12x64xf32>
    %586 = arith.mulf %585, %585 : vector<12x64xf32>
    %cst_214 = arith.constant dense<0.000000e+00> : vector<12xf32>
    %587 = vector.multi_reduction <add>, %586, %cst_214 [1] : vector<12x64xf32> to vector<12xf32>
    %588 = vector.shape_cast %587 : vector<12xf32> to vector<12x1xf32>
    %cst_215 = arith.constant 6.400000e+01 : f32
    %589 = vector.broadcast %cst_215 : f32 to vector<12x1xf32>
    %590 = arith.divf %588, %589 : vector<12x1xf32>
    %cst_216 = arith.constant 9.99999974E-6 : f32
    %591 = vector.broadcast %cst_216 : f32 to vector<12x1xf32>
    %592 = arith.addf %590, %591 : vector<12x1xf32>
    %593 = math.rsqrt %592 : vector<12x1xf32>
    %594 = vector.broadcast %593 : vector<12x1xf32> to vector<12x64xf32>
    %595 = arith.mulf %585, %594 : vector<12x64xf32>
    %c0_217 = arith.constant 0 : index
    %c0_218 = arith.constant 0 : index
    %596 = vector.load %arg38[%c0_217, %c0_218] : memref<1x64xf32, #tpu.memory_space<vmem>>, vector<1x64xf32>
    %597 = vector.broadcast %596 : vector<1x64xf32> to vector<12x64xf32>
    %598 = arith.mulf %595, %597 : vector<12x64xf32>
    %c0_219 = arith.constant 0 : index
    %c0_220 = arith.constant 0 : index
    %599 = vector.load %arg39[%c0_219, %c0_220] : memref<1x64xf32, #tpu.memory_space<vmem>>, vector<1x64xf32>
    %600 = vector.broadcast %599 : vector<1x64xf32> to vector<12x64xf32>
    %601 = arith.addf %598, %600 : vector<12x64xf32>
    %c0_221 = arith.constant 0 : index
    %c0_222 = arith.constant 0 : index
    %c0_223 = arith.constant 0 : index
    %602 = vector.load %arg40[%c0_221, %c0_222, %c0_223] : memref<1x12x64xf32, #tpu.memory_space<vmem>>, vector<1x12x64xf32>
    %603 = vector.shape_cast %602 : vector<1x12x64xf32> to vector<12x64xf32>
    %604 = vector.shape_cast %601 : vector<12x64xf32> to vector<1x12x64xf32>
    tpu.vector_store %arg40[%c0_221, %c0_222, %c0_223], %604 {strides = array<i32>} : memref<1x12x64xf32, #tpu.memory_space<vmem>>, vector<1x12x64xf32>,
    return
  }
  func.func @transform_0(%arg0: i32) -> (i32, i32, i32) {
    %c0_i32 = arith.constant 0 : i32
    %c0_i32_0 = arith.constant 0 : i32
    %c0_i32_1 = arith.constant 0 : i32
    return %arg0, %c0_i32, %c0_i32_0 : i32, i32, i32
  }
  func.func @transform_1(%arg0: i32) -> (i32, i32) {
    %c0_i32 = arith.constant 0 : i32
    %c0_i32_0 = arith.constant 0 : i32
    %c0_i32_1 = arith.constant 0 : i32
    return %c0_i32, %c0_i32_0 : i32, i32
  }
  func.func @transform_2(%arg0: i32) -> (i32, i32) {
    %c0_i32 = arith.constant 0 : i32
    %c0_i32_0 = arith.constant 0 : i32
    %c0_i32_1 = arith.constant 0 : i32
    return %c0_i32, %c0_i32_0 : i32, i32
  }
  func.func @transform_3(%arg0: i32) -> (i32, i32) {
    %c0_i32 = arith.constant 0 : i32
    %c0_i32_0 = arith.constant 0 : i32
    %c0_i32_1 = arith.constant 0 : i32
    return %c0_i32, %c0_i32_0 : i32, i32
  }
  func.func @transform_4(%arg0: i32) -> (i32, i32) {
    %c0_i32 = arith.constant 0 : i32
    %c0_i32_0 = arith.constant 0 : i32
    %c0_i32_1 = arith.constant 0 : i32
    return %c0_i32, %c0_i32_0 : i32, i32
  }
  func.func @transform_5(%arg0: i32) -> (i32, i32) {
    %c0_i32 = arith.constant 0 : i32
    %c0_i32_0 = arith.constant 0 : i32
    %c0_i32_1 = arith.constant 0 : i32
    return %c0_i32, %c0_i32_0 : i32, i32
  }
  func.func @transform_6(%arg0: i32) -> (i32, i32) {
    %c0_i32 = arith.constant 0 : i32
    %c0_i32_0 = arith.constant 0 : i32
    %c0_i32_1 = arith.constant 0 : i32
    return %c0_i32, %c0_i32_0 : i32, i32
  }
  func.func @transform_7(%arg0: i32) -> (i32, i32) {
    %c0_i32 = arith.constant 0 : i32
    %c0_i32_0 = arith.constant 0 : i32
    %c0_i32_1 = arith.constant 0 : i32
    return %c0_i32, %c0_i32_0 : i32, i32
  }
  func.func @transform_8(%arg0: i32) -> (i32, i32) {
    %c0_i32 = arith.constant 0 : i32
    %c0_i32_0 = arith.constant 0 : i32
    %c0_i32_1 = arith.constant 0 : i32
    return %c0_i32, %c0_i32_0 : i32, i32
  }
  func.func @transform_9(%arg0: i32) -> (i32, i32) {
    %c0_i32 = arith.constant 0 : i32
    %c0_i32_0 = arith.constant 0 : i32
    %c0_i32_1 = arith.constant 0 : i32
    return %c0_i32, %c0_i32_0 : i32, i32
  }
  func.func @transform_10(%arg0: i32) -> (i32, i32) {
    %c0_i32 = arith.constant 0 : i32
    %c0_i32_0 = arith.constant 0 : i32
    %c0_i32_1 = arith.constant 0 : i32
    return %c0_i32, %c0_i32_0 : i32, i32
  }
  func.func @transform_11(%arg0: i32) -> (i32, i32) {
    %c0_i32 = arith.constant 0 : i32
    %c0_i32_0 = arith.constant 0 : i32
    %c0_i32_1 = arith.constant 0 : i32
    return %c0_i32, %c0_i32_0 : i32, i32
  }
  func.func @transform_12(%arg0: i32) -> (i32, i32) {
    %c0_i32 = arith.constant 0 : i32
    %c0_i32_0 = arith.constant 0 : i32
    %c0_i32_1 = arith.constant 0 : i32
    return %c0_i32, %c0_i32_0 : i32, i32
  }
  func.func @transform_13(%arg0: i32) -> (i32, i32) {
    %c0_i32 = arith.constant 0 : i32
    %c0_i32_0 = arith.constant 0 : i32
    %c0_i32_1 = arith.constant 0 : i32
    return %c0_i32, %c0_i32_0 : i32, i32
  }
  func.func @transform_14(%arg0: i32) -> (i32, i32) {
    %c0_i32 = arith.constant 0 : i32
    %c0_i32_0 = arith.constant 0 : i32
    %c0_i32_1 = arith.constant 0 : i32
    return %c0_i32, %c0_i32_0 : i32, i32
  }
  func.func @transform_15(%arg0: i32) -> (i32, i32) {
    %c0_i32 = arith.constant 0 : i32
    %c0_i32_0 = arith.constant 0 : i32
    %c0_i32_1 = arith.constant 0 : i32
    return %c0_i32, %c0_i32_0 : i32, i32
  }
  func.func @transform_16(%arg0: i32) -> (i32, i32) {
    %c0_i32 = arith.constant 0 : i32
    %c0_i32_0 = arith.constant 0 : i32
    %c0_i32_1 = arith.constant 0 : i32
    return %c0_i32, %c0_i32_0 : i32, i32
  }
  func.func @transform_17(%arg0: i32) -> (i32, i32) {
    %c0_i32 = arith.constant 0 : i32
    %c0_i32_0 = arith.constant 0 : i32
    %c0_i32_1 = arith.constant 0 : i32
    return %c0_i32, %c0_i32_0 : i32, i32
  }
  func.func @transform_18(%arg0: i32) -> (i32, i32) {
    %c0_i32 = arith.constant 0 : i32
    %c0_i32_0 = arith.constant 0 : i32
    %c0_i32_1 = arith.constant 0 : i32
    return %c0_i32, %c0_i32_0 : i32, i32
  }
  func.func @transform_19(%arg0: i32) -> (i32, i32) {
    %c0_i32 = arith.constant 0 : i32
    %c0_i32_0 = arith.constant 0 : i32
    %c0_i32_1 = arith.constant 0 : i32
    return %c0_i32, %c0_i32_0 : i32, i32
  }
  func.func @transform_20(%arg0: i32) -> (i32, i32) {
    %c0_i32 = arith.constant 0 : i32
    %c0_i32_0 = arith.constant 0 : i32
    %c0_i32_1 = arith.constant 0 : i32
    return %c0_i32, %c0_i32_0 : i32, i32
  }
  func.func @transform_21(%arg0: i32) -> (i32, i32) {
    %c0_i32 = arith.constant 0 : i32
    %c0_i32_0 = arith.constant 0 : i32
    %c0_i32_1 = arith.constant 0 : i32
    return %c0_i32, %c0_i32_0 : i32, i32
  }
  func.func @transform_22(%arg0: i32) -> (i32, i32) {
    %c0_i32 = arith.constant 0 : i32
    %c0_i32_0 = arith.constant 0 : i32
    %c0_i32_1 = arith.constant 0 : i32
    return %c0_i32, %c0_i32_0 : i32, i32
  }
  func.func @transform_23(%arg0: i32) -> (i32, i32) {
    %c0_i32 = arith.constant 0 : i32
    %c0_i32_0 = arith.constant 0 : i32
    %c0_i32_1 = arith.constant 0 : i32
    return %c0_i32, %c0_i32_0 : i32, i32
  }
  func.func @transform_24(%arg0: i32) -> (i32, i32) {
    %c0_i32 = arith.constant 0 : i32
    %c0_i32_0 = arith.constant 0 : i32
    %c0_i32_1 = arith.constant 0 : i32
    return %c0_i32, %c0_i32_0 : i32, i32
  }
  func.func @transform_25(%arg0: i32) -> (i32, i32) {
    %c0_i32 = arith.constant 0 : i32
    %c0_i32_0 = arith.constant 0 : i32
    %c0_i32_1 = arith.constant 0 : i32
    return %c0_i32, %c0_i32_0 : i32, i32
  }
  func.func @transform_26(%arg0: i32) -> (i32, i32) {
    %c0_i32 = arith.constant 0 : i32
    %c0_i32_0 = arith.constant 0 : i32
    %c0_i32_1 = arith.constant 0 : i32
    return %c0_i32, %c0_i32_0 : i32, i32
  }
  func.func @transform_27(%arg0: i32) -> (i32, i32) {
    %c0_i32 = arith.constant 0 : i32
    %c0_i32_0 = arith.constant 0 : i32
    %c0_i32_1 = arith.constant 0 : i32
    return %c0_i32, %c0_i32_0 : i32, i32
  }
  func.func @transform_28(%arg0: i32) -> (i32, i32) {
    %c0_i32 = arith.constant 0 : i32
    %c0_i32_0 = arith.constant 0 : i32
    %c0_i32_1 = arith.constant 0 : i32
    return %c0_i32, %c0_i32_0 : i32, i32
  }
  func.func @transform_29(%arg0: i32) -> (i32, i32) {
    %c0_i32 = arith.constant 0 : i32
    %c0_i32_0 = arith.constant 0 : i32
    %c0_i32_1 = arith.constant 0 : i32
    return %c0_i32, %c0_i32_0 : i32, i32
  }
  func.func @transform_30(%arg0: i32) -> (i32, i32) {
    %c0_i32 = arith.constant 0 : i32
    %c0_i32_0 = arith.constant 0 : i32
    %c0_i32_1 = arith.constant 0 : i32
    return %c0_i32, %c0_i32_0 : i32, i32
  }
  func.func @transform_31(%arg0: i32) -> (i32, i32) {
    %c0_i32 = arith.constant 0 : i32
    %c0_i32_0 = arith.constant 0 : i32
    %c0_i32_1 = arith.constant 0 : i32
    return %c0_i32, %c0_i32_0 : i32, i32
  }
  func.func @transform_32(%arg0: i32) -> (i32, i32) {
    %c0_i32 = arith.constant 0 : i32
    %c0_i32_0 = arith.constant 0 : i32
    %c0_i32_1 = arith.constant 0 : i32
    return %c0_i32, %c0_i32_0 : i32, i32
  }
  func.func @transform_33(%arg0: i32) -> (i32, i32) {
    %c0_i32 = arith.constant 0 : i32
    %c0_i32_0 = arith.constant 0 : i32
    %c0_i32_1 = arith.constant 0 : i32
    return %c0_i32, %c0_i32_0 : i32, i32
  }
  func.func @transform_34(%arg0: i32) -> (i32, i32) {
    %c0_i32 = arith.constant 0 : i32
    %c0_i32_0 = arith.constant 0 : i32
    %c0_i32_1 = arith.constant 0 : i32
    return %c0_i32, %c0_i32_0 : i32, i32
  }
  func.func @transform_35(%arg0: i32) -> (i32, i32) {
    %c0_i32 = arith.constant 0 : i32
    %c0_i32_0 = arith.constant 0 : i32
    %c0_i32_1 = arith.constant 0 : i32
    return %c0_i32, %c0_i32_0 : i32, i32
  }
  func.func @transform_36(%arg0: i32) -> (i32, i32) {
    %c0_i32 = arith.constant 0 : i32
    %c0_i32_0 = arith.constant 0 : i32
    %c0_i32_1 = arith.constant 0 : i32
    return %c0_i32, %c0_i32_0 : i32, i32
  }
  func.func @transform_37(%arg0: i32) -> (i32, i32) {
    %c0_i32 = arith.constant 0 : i32
    %c0_i32_0 = arith.constant 0 : i32
    %c0_i32_1 = arith.constant 0 : i32
    return %c0_i32, %c0_i32_0 : i32, i32
  }
  func.func @transform_38(%arg0: i32) -> (i32, i32) {
    %c0_i32 = arith.constant 0 : i32
    %c0_i32_0 = arith.constant 0 : i32
    %c0_i32_1 = arith.constant 0 : i32
    return %c0_i32, %c0_i32_0 : i32, i32
  }
  func.func @transform_39(%arg0: i32) -> (i32, i32, i32) {
    %c0_i32 = arith.constant 0 : i32
    %c0_i32_0 = arith.constant 0 : i32
    %c0_i32_1 = arith.constant 0 : i32
    return %arg0, %c0_i32, %c0_i32_0 : i32, i32, i32
  }
}

</mosaic_0001>

<llo_original>
// kernel: tpu_custom_call.1
$region0: #{tpu_custom_call.1}
  #allocation0 [shape = 'u32[]', space=smem, size = 0x4, offset = 0x4, fixed_abs, tag = 'smem constant byte address 0x4 - core index']
  #allocation1 [shape = 'u32[144,128]{1,0:T(1,128)}', space=vmem, size = 0x12000, scoped, tag = 'internal scratch']
  %s0 = inlined_call_operand.smem [shape: u32[40], index: -1, kind: input, shape index: {}]
  %s1 = sld [smem:[%s0]]
  %s2 = scalar_lea.smem %s0, 1
  %s3 = sld [smem:[%s2]]
  %s4 = scalar_lea.smem %s0, 2
  %s5 = sld [smem:[%s4]]
  %s6 = scalar_lea.smem %s0, 3
  %s7 = sld [smem:[%s6]]
  %s8 = scalar_lea.smem %s0, 4
  %s9 = sld [smem:[%s8]]
  %s10 = scalar_lea.smem %s0, 5
  %s11 = sld [smem:[%s10]]
  %s12 = scalar_lea.smem %s0, 6
  %s13 = sld [smem:[%s12]]
  %s14 = scalar_lea.smem %s0, 7
  %s15 = sld [smem:[%s14]]
  %s16 = scalar_lea.smem %s0, 8
  %s17 = sld [smem:[%s16]]
  %s18 = scalar_lea.smem %s0, 9
  %s19 = sld [smem:[%s18]]
  %s20 = scalar_lea.smem %s0, 10
  %s21 = sld [smem:[%s20]]
  %s22 = scalar_lea.smem %s0, 11
  %s23 = sld [smem:[%s22]]
  %s24 = scalar_lea.smem %s0, 12
  %s25 = sld [smem:[%s24]]
  %s26 = scalar_lea.smem %s0, 13
  %s27 = sld [smem:[%s26]]
  %s28 = scalar_lea.smem %s0, 14
  %s29 = sld [smem:[%s28]]
  %s30 = scalar_lea.smem %s0, 15
  %s31 = sld [smem:[%s30]]
  %s32 = scalar_lea.smem %s0, 16
  %s33 = sld [smem:[%s32]]
  %s34 = scalar_lea.smem %s0, 17
  %s35 = sld [smem:[%s34]]
  %s36 = scalar_lea.smem %s0, 18
  %s37 = sld [smem:[%s36]]
  %s38 = scalar_lea.smem %s0, 19
  %s39 = sld [smem:[%s38]]
  %s40 = scalar_lea.smem %s0, 20
  %s41 = sld [smem:[%s40]]
  %s42 = scalar_lea.smem %s0, 21
  %s43 = sld [smem:[%s42]]
  %s44 = scalar_lea.smem %s0, 22
  %s45 = sld [smem:[%s44]]
  %s46 = scalar_lea.smem %s0, 23
  %s47 = sld [smem:[%s46]]
  %s48 = scalar_lea.smem %s0, 24
  %s49 = sld [smem:[%s48]]
  %s50 = scalar_lea.smem %s0, 25
  %s51 = sld [smem:[%s50]]
  %s52 = scalar_lea.smem %s0, 26
  %s53 = sld [smem:[%s52]]
  %s54 = scalar_lea.smem %s0, 27
  %s55 = sld [smem:[%s54]]
  %s56 = scalar_lea.smem %s0, 28
  %s57 = sld [smem:[%s56]]
  %s58 = scalar_lea.smem %s0, 29
  %s59 = sld [smem:[%s58]]
  %s60 = scalar_lea.smem %s0, 30
  %s61 = sld [smem:[%s60]]
  %s62 = scalar_lea.smem %s0, 31
  %s63 = sld [smem:[%s62]]
  %s64 = scalar_lea.smem %s0, 32
  %s65 = sld [smem:[%s64]]
  %s66 = scalar_lea.smem %s0, 33
  %s67 = sld [smem:[%s66]]
  %s68 = scalar_lea.smem %s0, 34
  %s69 = sld [smem:[%s68]]
  %s70 = scalar_lea.smem %s0, 35
  %s71 = sld [smem:[%s70]]
  %s72 = scalar_lea.smem %s0, 36
  %s73 = sld [smem:[%s72]]
  %s74 = scalar_lea.smem %s0, 37
  %s75 = sld [smem:[%s74]]
  %s76 = scalar_lea.smem %s0, 38
  %s77 = sld [smem:[%s76]]
  %s78 = scalar_lea.smem %s0, 39
  %s79 = sld [smem:[%s78]]
  %s80 = sld [smem:[#allocation0]]
  $region241: #{tpu_custom_call.1} parent=0
    _
  %s82 = ssub.s32 1, %s80
  %s83 = scalar_select 0, %s82, %s80
  $region1: #{tpu_custom_call.1} parent=0
    #allocation2 [shape = 'u8[8192]{0}', space=vmem, size = 0x2000, scoped, tag = 'input window, operand 1, single buffered']
    #allocation3 [shape = 's32[2]{0}', space=sflag, size = 0x8, scoped, tag = 'scoped memory for tpu_custom_call.1']
    #allocation4 [shape = 'u8[8192]{0}', space=vmem, size = 0x2000, scoped, tag = 'input window, operand 2, single buffered']
    #allocation5 [shape = 's32[1]{0}', space=sflag, size = 0x4, scoped, tag = 'scoped memory for tpu_custom_call.1']
    #allocation6 [shape = 'u8[512]{0}', space=vmem, size = 0x400, scoped, tag = 'input window, operand 7, single buffered']
    #allocation7 [shape = 'u8[512]{0}', space=vmem, size = 0x400, scoped, tag = 'input window, operand 8, single buffered']
    #allocation8 [shape = 's32[1]{0}', space=sflag, size = 0x4, scoped, tag = 'scoped memory for tpu_custom_call.1']
    #allocation9 [shape = 'u8[512]{0}', space=vmem, size = 0x400, scoped, tag = 'input window, operand 12, single buffered']
    #allocation10 [shape = 'u8[512]{0}', space=vmem, size = 0x400, scoped, tag = 'input window, operand 13, single buffered']
    #allocation11 [shape = 's32[1]{0}', space=sflag, size = 0x4, scoped, tag = 'scoped memory for tpu_custom_call.1']
    #allocation12 [shape = 'u8[512]{0}', space=vmem, size = 0x400, scoped, tag = 'input window, operand 14, single buffered']
    #allocation13 [shape = 'u8[512]{0}', space=vmem, size = 0x400, scoped, tag = 'input window, operand 15, single buffered']
    #allocation14 [shape = 's32[1]{0}', space=sflag, size = 0x4, scoped, tag = 'scoped memory for tpu_custom_call.1']
    #allocation15 [shape = 'u8[512]{0}', space=vmem, size = 0x400, scoped, tag = 'input window, operand 16, single buffered']
    #allocation16 [shape = 'u8[512]{0}', space=vmem, size = 0x400, scoped, tag = 'input window, operand 20, single buffered']
    #allocation17 [shape = 's32[1]{0}', space=sflag, size = 0x4, scoped, tag = 'scoped memory for tpu_custom_call.1']
    #allocation18 [shape = 'u8[512]{0}', space=vmem, size = 0x400, scoped, tag = 'input window, operand 21, single buffered']
    #allocation19 [shape = 'u8[512]{0}', space=vmem, size = 0x400, scoped, tag = 'input window, operand 22, single buffered']
    #allocation20 [shape = 's32[1]{0}', space=sflag, size = 0x4, scoped, tag = 'scoped memory for tpu_custom_call.1']
    #allocation21 [shape = 'u8[32768]{0}', space=vmem, size = 0x8000, scoped, tag = 'input window, operand 27, single buffered']
    %84 = vsyncpa [#allocation3], 0
    %85 = vsyncpa [#allocation5], 0
    %86 = vsyncpa [#allocation8], 0
    %87 = vsyncpa [#allocation11], 0
    %88 = vsyncpa [#allocation14], 0
    %89 = vsyncpa [#allocation17], 0
    %90 = vsyncpa [#allocation20], 0
    loop: start=0, step=1, limit=4
    $region2: #{tpu_custom_call.1} parent=1 // loop_pre_header
      _
    $region3: #{tpu_custom_call.1} parent=1 // loop_header
      %s92 = sphi 0, %s96
      %p93 = scmp.ge.s32.totalorder %s92, 4
      %s102 = sphi 0, %s104
      %s105 = sphi 0, %s102
      %s106 = sphi 0, %s105
      %s122 = sphi 0, %s106
      %s126 = sphi 0, %s126
      %s128 = sphi 0, %s126
      %s129 = sphi 0, %s128
      %s143 = sphi 0, %s129
      %s147 = sphi 0, %s147
      %s149 = sphi 0, %s147
      %s150 = sphi 0, %s149
      %s164 = sphi 0, %s150
      %s168 = sphi 0, %s168
      %s170 = sphi 0, %s168
      %s171 = sphi 0, %s170
      %s185 = sphi 0, %s171
      %s189 = sphi 0, %s189
      %s191 = sphi 0, %s189
      %s192 = sphi 0, %s191
      %s206 = sphi 0, %s192
      %s210 = sphi 0, %s210
      %s212 = sphi 0, %s210
      %s213 = sphi 0, %s212
      %s227 = sphi 0, %s213
      %s231 = sphi 0, %s231
      %s233 = sphi 0, %s231
      %s234 = sphi 0, %s233
      %s248 = sphi 0, %s234
      %s252 = sphi 0, %s252
      %s254 = sphi 0, %s252
      %s255 = sphi 0, %s254
      %s269 = sphi 0, %s255
      %s273 = sphi 0, %s273
      %s275 = sphi 0, %s273
      %s276 = sphi 0, %s275
      %s290 = sphi 0, %s276
      %s294 = sphi 0, %s294
      %s296 = sphi 0, %s294
      %s297 = sphi 0, %s296
      %s311 = sphi 0, %s297
      %s315 = sphi 0, %s315
      %s317 = sphi 0, %s315
      %s318 = sphi 0, %s317
      %s332 = sphi 0, %s318
      %s336 = sphi 0, %s336
      %s338 = sphi 0, %s336
      %s339 = sphi 0, %s338
      %s353 = sphi 0, %s339
      %s357 = sphi 0, %s357
      %s359 = sphi 0, %s357
      %s360 = sphi 0, %s359
      %s374 = sphi 0, %s360
      %s378 = sphi 0, %s378
      %s380 = sphi 0, %s378
      %s381 = sphi 0, %s380
      %s395 = sphi 0, %s381
      %s399 = sphi 0, %s399
      %s401 = sphi 0, %s399
      %s402 = sphi 0, %s401
      %s416 = sphi 0, %s402
      %s420 = sphi 0, %s420
      %s422 = sphi 0, %s420
      %s423 = sphi 0, %s422
      %s437 = sphi 0, %s423
      %s441 = sphi 0, %s441
      %s443 = sphi 0, %s441
      %s444 = sphi 0, %s443
      %s458 = sphi 0, %s444
      %s462 = sphi 0, %s462
      %s464 = sphi 0, %s462
      %s465 = sphi 0, %s464
      %s479 = sphi 0, %s465
      %s483 = sphi 0, %s483
      %s485 = sphi 0, %s483
      %s486 = sphi 0, %s485
      %s500 = sphi 0, %s486
      %s504 = sphi 0, %s504
      %s506 = sphi 0, %s504
      %s507 = sphi 0, %s506
      %s521 = sphi 0, %s507
      %s525 = sphi 0, %s525
      %s527 = sphi 0, %s525
      %s528 = sphi 0, %s527
      %s542 = sphi 0, %s528
      %s546 = sphi 0, %s546
      %s548 = sphi 0, %s546
      %s549 = sphi 0, %s548
      %s563 = sphi 0, %s549
      %s567 = sphi 0, %s567
      %s569 = sphi 0, %s567
      %s570 = sphi 0, %s569
      %s584 = sphi 0, %s570
      %s588 = sphi 0, %s588
      %s590 = sphi 0, %s588
      %s591 = sphi 0, %s590
      %s605 = sphi 0, %s591
      %s609 = sphi 0, %s609
      %s611 = sphi 0, %s609
      %s612 = sphi 0, %s611
      %s626 = sphi 0, %s612
      %s630 = sphi 0, %s630
      %s632 = sphi 0, %s630
      %s633 = sphi 0, %s632
      %s647 = sphi 0, %s633
      %s651 = sphi 0, %s651
      %s653 = sphi 0, %s651
      %s654 = sphi 0, %s653
      %s668 = sphi 0, %s654
      %s672 = sphi 0, %s672
      %s674 = sphi 0, %s672
      %s675 = sphi 0, %s674
      %s689 = sphi 0, %s675
      %s693 = sphi 0, %s693
      %s695 = sphi 0, %s693
      %s696 = sphi 0, %s695
      %s710 = sphi 0, %s696
      %s714 = sphi 0, %s714
      %s716 = sphi 0, %s714
      %s717 = sphi 0, %s716
      %s731 = sphi 0, %s717
      %s735 = sphi 0, %s735
      %s737 = sphi 0, %s735
      %s738 = sphi 0, %s737
      %s752 = sphi 0, %s738
      %s756 = sphi 0, %s756
      %s758 = sphi 0, %s756
      %s759 = sphi 0, %s758
      %s773 = sphi 0, %s759
      %s777 = sphi 0, %s777
      %s779 = sphi 0, %s777
      %s780 = sphi 0, %s779
      %s794 = sphi 0, %s780
      %s798 = sphi 0, %s798
      %s800 = sphi 0, %s798
      %s801 = sphi 0, %s800
      %s815 = sphi 0, %s801
      %s819 = sphi 0, %s819
      %s821 = sphi 0, %s819
      %s822 = sphi 0, %s821
      %s836 = sphi 0, %s822
      %s840 = sphi 0, %s840
      %s842 = sphi 0, %s840
      %s843 = sphi 0, %s842
      %s857 = sphi 0, %s843
      %s861 = sphi 0, %s861
      %s863 = sphi 0, %s861
      %s864 = sphi 0, %s863
      %s878 = sphi 0, %s864
      %s882 = sphi 0, %s882
      %s884 = sphi 0, %s882
      %s885 = sphi 0, %s884
      %s899 = sphi 0, %s885
      %s903 = sphi 0, %s903
      %s905 = sphi 0, %s903
      %s906 = sphi 0, %s905
      %s920 = sphi 0, %s906
      %s926 = sphi 0, %s928
      %s929 = sphi 0, %s926
      %s930 = sphi 0, %s929
      %s946 = sphi 0, %s930
    $region4: #{tpu_custom_call.1} parent=1 // loop_header_branch
      %95 = sbr.rel (%p93) target = $region8
    $region5: #{tpu_custom_call.1} parent=1 // loop_body
      %s97 = ssub.s32 %s92, 1
      %s98 = ssub.s32 %s92, 2
      %s99 = sadd.s32 %s92, 1
      %s100 = ssub.s32 %s92, %s99
      %p101 = scmp.eq.s32.totalorder %s100, 0
      %s103 = sadd.s32 %s102, 1
      %s104 = scalar_select %p101, %s102, %s103
      %p107 = pneg %p101
      %p108 = scmp.eq.s32.totalorder %s92, 1
      %p109 = por %p107, %p108
      %p110 = scmp.ne.s32.totalorder %s102, %s105
      %p111 = scmp.eq.s32.totalorder %s92, 0
      %p112 = por %p110, %p111
      %p113 = scmp.ne.s32.totalorder %s102, %s105
      %p114 = scmp.eq.s32.totalorder %s97, 1
      %p115 = por %p113, %p114
      %p116 = scmp.ne.s32.totalorder %s105, %s106
      %p117 = scmp.eq.s32.totalorder %s97, 0
      %p118 = por %p116, %p117
      %p119 = scmp.ne.s32.totalorder %s105, %s106
      %p120 = scmp.eq.s32.totalorder %s98, 1
      %p121 = por %p119, %p120
      %p123 = scmp.ne.s32.totalorder %s106, %s122
      %p124 = scmp.eq.s32.totalorder %s98, 0
      %p125 = por %p123, %p124
      %s127 = sadd.s32 %s126, 1
      %p130 = scmp.eq.s32.totalorder %s92, 1
      %p131 = scmp.ne.s32.totalorder %s126, %s128
      %p132 = scmp.eq.s32.totalorder %s92, 0
      %p133 = por %p131, %p132
      %p134 = scmp.ne.s32.totalorder %s126, %s128
      %p135 = scmp.eq.s32.totalorder %s97, 1
      %p136 = por %p134, %p135
      %p137 = scmp.ne.s32.totalorder %s128, %s129
      %p138 = scmp.eq.s32.totalorder %s97, 0
      %p139 = por %p137, %p138
      %p140 = scmp.ne.s32.totalorder %s128, %s129
      %p141 = scmp.eq.s32.totalorder %s98, 1
      %p142 = por %p140, %p141
      %p144 = scmp.ne.s32.totalorder %s129, %s143
      %p145 = scmp.eq.s32.totalorder %s98, 0
      %p146 = por %p144, %p145
      %s148 = sadd.s32 %s147, 1
      %p151 = scmp.eq.s32.totalorder %s92, 1
      %p152 = scmp.ne.s32.totalorder %s147, %s149
      %p153 = scmp.eq.s32.totalorder %s92, 0
      %p154 = por %p152, %p153
      %p155 = scmp.ne.s32.totalorder %s147, %s149
      %p156 = scmp.eq.s32.totalorder %s97, 1
      %p157 = por %p155, %p156
      %p158 = scmp.ne.s32.totalorder %s149, %s150
      %p159 = scmp.eq.s32.totalorder %s97, 0
      %p160 = por %p158, %p159
      %p161 = scmp.ne.s32.totalorder %s149, %s150
      %p162 = scmp.eq.s32.totalorder %s98, 1
      %p163 = por %p161, %p162
      %p165 = scmp.ne.s32.totalorder %s150, %s164
      %p166 = scmp.eq.s32.totalorder %s98, 0
      %p167 = por %p165, %p166
      %s169 = sadd.s32 %s168, 1
      %p172 = scmp.eq.s32.totalorder %s92, 1
      %p173 = scmp.ne.s32.totalorder %s168, %s170
      %p174 = scmp.eq.s32.totalorder %s92, 0
      %p175 = por %p173, %p174
      %p176 = scmp.ne.s32.totalorder %s168, %s170
      %p177 = scmp.eq.s32.totalorder %s97, 1
      %p178 = por %p176, %p177
      %p179 = scmp.ne.s32.totalorder %s170, %s171
      %p180 = scmp.eq.s32.totalorder %s97, 0
      %p181 = por %p179, %p180
      %p182 = scmp.ne.s32.totalorder %s170, %s171
      %p183 = scmp.eq.s32.totalorder %s98, 1
      %p184 = por %p182, %p183
      %p186 = scmp.ne.s32.totalorder %s171, %s185
      %p187 = scmp.eq.s32.totalorder %s98, 0
      %p188 = por %p186, %p187
      %s190 = sadd.s32 %s189, 1
      %p193 = scmp.eq.s32.totalorder %s92, 1
      %p194 = scmp.ne.s32.totalorder %s189, %s191
      %p195 = scmp.eq.s32.totalorder %s92, 0
      %p196 = por %p194, %p195
      %p197 = scmp.ne.s32.totalorder %s189, %s191
      %p198 = scmp.eq.s32.totalorder %s97, 1
      %p199 = por %p197, %p198
      %p200 = scmp.ne.s32.totalorder %s191, %s192
      %p201 = scmp.eq.s32.totalorder %s97, 0
      %p202 = por %p200, %p201
      %p203 = scmp.ne.s32.totalorder %s191, %s192
      %p204 = scmp.eq.s32.totalorder %s98, 1
      %p205 = por %p203, %p204
      %p207 = scmp.ne.s32.totalorder %s192, %s206
      %p208 = scmp.eq.s32.totalorder %s98, 0
      %p209 = por %p207, %p208
      %s211 = sadd.s32 %s210, 1
      %p214 = scmp.eq.s32.totalorder %s92, 1
      %p215 = scmp.ne.s32.totalorder %s210, %s212
      %p216 = scmp.eq.s32.totalorder %s92, 0
      %p217 = por %p215, %p216
      %p218 = scmp.ne.s32.totalorder %s210, %s212
      %p219 = scmp.eq.s32.totalorder %s97, 1
      %p220 = por %p218, %p219
      %p221 = scmp.ne.s32.totalorder %s212, %s213
      %p222 = scmp.eq.s32.totalorder %s97, 0
      %p223 = por %p221, %p222
      %p224 = scmp.ne.s32.totalorder %s212, %s213
      %p225 = scmp.eq.s32.totalorder %s98, 1
      %p226 = por %p224, %p225
      %p228 = scmp.ne.s32.totalorder %s213, %s227
      %p229 = scmp.eq.s32.totalorder %s98, 0
      %p230 = por %p228, %p229
      %s232 = sadd.s32 %s231, 1
      %p235 = scmp.eq.s32.totalorder %s92, 1
      %p236 = scmp.ne.s32.totalorder %s231, %s233
      %p237 = scmp.eq.s32.totalorder %s92, 0
      %p238 = por %p236, %p237
      %p239 = scmp.ne.s32.totalorder %s231, %s233
      %p240 = scmp.eq.s32.totalorder %s97, 1
      %p241 = por %p239, %p240
      %p242 = scmp.ne.s32.totalorder %s233, %s234
      %p243 = scmp.eq.s32.totalorder %s97, 0
      %p244 = por %p242, %p243
      %p245 = scmp.ne.s32.totalorder %s233, %s234
      %p246 = scmp.eq.s32.totalorder %s98, 1
      %p247 = por %p245, %p246
      %p249 = scmp.ne.s32.totalorder %s234, %s248
      %p250 = scmp.eq.s32.totalorder %s98, 0
      %p251 = por %p249, %p250
      %s253 = sadd.s32 %s252, 1
      %p256 = scmp.eq.s32.totalorder %s92, 1
      %p257 = scmp.ne.s32.totalorder %s252, %s254
      %p258 = scmp.eq.s32.totalorder %s92, 0
      %p259 = por %p257, %p258
      %p260 = scmp.ne.s32.totalorder %s252, %s254
      %p261 = scmp.eq.s32.totalorder %s97, 1
      %p262 = por %p260, %p261
      %p263 = scmp.ne.s32.totalorder %s254, %s255
      %p264 = scmp.eq.s32.totalorder %s97, 0
      %p265 = por %p263, %p264
      %p266 = scmp.ne.s32.totalorder %s254, %s255
      %p267 = scmp.eq.s32.totalorder %s98, 1
      %p268 = por %p266, %p267
      %p270 = scmp.ne.s32.totalorder %s255, %s269
      %p271 = scmp.eq.s32.totalorder %s98, 0
      %p272 = por %p270, %p271
      %s274 = sadd.s32 %s273, 1
      %p277 = scmp.eq.s32.totalorder %s92, 1
      %p278 = scmp.ne.s32.totalorder %s273, %s275
      %p279 = scmp.eq.s32.totalorder %s92, 0
      %p280 = por %p278, %p279
      %p281 = scmp.ne.s32.totalorder %s273, %s275
      %p282 = scmp.eq.s32.totalorder %s97, 1
      %p283 = por %p281, %p282
      %p284 = scmp.ne.s32.totalorder %s275, %s276
      %p285 = scmp.eq.s32.totalorder %s97, 0
      %p286 = por %p284, %p285
      %p287 = scmp.ne.s32.totalorder %s275, %s276
      %p288 = scmp.eq.s32.totalorder %s98, 1
      %p289 = por %p287, %p288
      %p291 = scmp.ne.s32.totalorder %s276, %s290
      %p292 = scmp.eq.s32.totalorder %s98, 0
      %p293 = por %p291, %p292
      %s295 = sadd.s32 %s294, 1
      %p298 = scmp.eq.s32.totalorder %s92, 1
      %p299 = scmp.ne.s32.totalorder %s294, %s296
      %p300 = scmp.eq.s32.totalorder %s92, 0
      %p301 = por %p299, %p300
      %p302 = scmp.ne.s32.totalorder %s294, %s296
      %p303 = scmp.eq.s32.totalorder %s97, 1
      %p304 = por %p302, %p303
      %p305 = scmp.ne.s32.totalorder %s296, %s297
      %p306 = scmp.eq.s32.totalorder %s97, 0
      %p307 = por %p305, %p306
      %p308 = scmp.ne.s32.totalorder %s296, %s297
      %p309 = scmp.eq.s32.totalorder %s98, 1
      %p310 = por %p308, %p309
      %p312 = scmp.ne.s32.totalorder %s297, %s311
      %p313 = scmp.eq.s32.totalorder %s98, 0
      %p314 = por %p312, %p313
      %s316 = sadd.s32 %s315, 1
      %p319 = scmp.eq.s32.totalorder %s92, 1
      %p320 = scmp.ne.s32.totalorder %s315, %s317
      %p321 = scmp.eq.s32.totalorder %s92, 0
      %p322 = por %p320, %p321
      %p323 = scmp.ne.s32.totalorder %s315, %s317
      %p324 = scmp.eq.s32.totalorder %s97, 1
      %p325 = por %p323, %p324
      %p326 = scmp.ne.s32.totalorder %s317, %s318
      %p327 = scmp.eq.s32.totalorder %s97, 0
      %p328 = por %p326, %p327
      %p329 = scmp.ne.s32.totalorder %s317, %s318
      %p330 = scmp.eq.s32.totalorder %s98, 1
      %p331 = por %p329, %p330
      %p333 = scmp.ne.s32.totalorder %s318, %s332
      %p334 = scmp.eq.s32.totalorder %s98, 0
      %p335 = por %p333, %p334
      %s337 = sadd.s32 %s336, 1
      %p340 = scmp.eq.s32.totalorder %s92, 1
      %p341 = scmp.ne.s32.totalorder %s336, %s338
      %p342 = scmp.eq.s32.totalorder %s92, 0
      %p343 = por %p341, %p342
      %p344 = scmp.ne.s32.totalorder %s336, %s338
      %p345 = scmp.eq.s32.totalorder %s97, 1
      %p346 = por %p344, %p345
      %p347 = scmp.ne.s32.totalorder %s338, %s339
      %p348 = scmp.eq.s32.totalorder %s97, 0
      %p349 = por %p347, %p348
      %p350 = scmp.ne.s32.totalorder %s338, %s339
      %p351 = scmp.eq.s32.totalorder %s98, 1
      %p352 = por %p350, %p351
      %p354 = scmp.ne.s32.totalorder %s339, %s353
      %p355 = scmp.eq.s32.totalorder %s98, 0
      %p356 = por %p354, %p355
      %s358 = sadd.s32 %s357, 1
      %p361 = scmp.eq.s32.totalorder %s92, 1
      %p362 = scmp.ne.s32.totalorder %s357, %s359
      %p363 = scmp.eq.s32.totalorder %s92, 0
      %p364 = por %p362, %p363
      %p365 = scmp.ne.s32.totalorder %s357, %s359
      %p366 = scmp.eq.s32.totalorder %s97, 1
      %p367 = por %p365, %p366
      %p368 = scmp.ne.s32.totalorder %s359, %s360
      %p369 = scmp.eq.s32.totalorder %s97, 0
      %p370 = por %p368, %p369
      %p371 = scmp.ne.s32.totalorder %s359, %s360
      %p372 = scmp.eq.s32.totalorder %s98, 1
      %p373 = por %p371, %p372
      %p375 = scmp.ne.s32.totalorder %s360, %s374
      %p376 = scmp.eq.s32.totalorder %s98, 0
      %p377 = por %p375, %p376
      %s379 = sadd.s32 %s378, 1
      %p382 = scmp.eq.s32.totalorder %s92, 1
      %p383 = scmp.ne.s32.totalorder %s378, %s380
      %p384 = scmp.eq.s32.totalorder %s92, 0
      %p385 = por %p383, %p384
      %p386 = scmp.ne.s32.totalorder %s378, %s380
      %p387 = scmp.eq.s32.totalorder %s97, 1
      %p388 = por %p386, %p387
      %p389 = scmp.ne.s32.totalorder %s380, %s381
      %p390 = scmp.eq.s32.totalorder %s97, 0
      %p391 = por %p389, %p390
      %p392 = scmp.ne.s32.totalorder %s380, %s381
      %p393 = scmp.eq.s32.totalorder %s98, 1
      %p394 = por %p392, %p393
      %p396 = scmp.ne.s32.totalorder %s381, %s395
      %p397 = scmp.eq.s32.totalorder %s98, 0
      %p398 = por %p396, %p397
      %s400 = sadd.s32 %s399, 1
      %p403 = scmp.eq.s32.totalorder %s92, 1
      %p404 = scmp.ne.s32.totalorder %s399, %s401
      %p405 = scmp.eq.s32.totalorder %s92, 0
      %p406 = por %p404, %p405
      %p407 = scmp.ne.s32.totalorder %s399, %s401
      %p408 = scmp.eq.s32.totalorder %s97, 1
      %p409 = por %p407, %p408
      %p410 = scmp.ne.s32.totalorder %s401, %s402
      %p411 = scmp.eq.s32.totalorder %s97, 0
      %p412 = por %p410, %p411
      %p413 = scmp.ne.s32.totalorder %s401, %s402
      %p414 = scmp.eq.s32.totalorder %s98, 1
      %p415 = por %p413, %p414
      %p417 = scmp.ne.s32.totalorder %s402, %s416
      %p418 = scmp.eq.s32.totalorder %s98, 0
      %p419 = por %p417, %p418
      %s421 = sadd.s32 %s420, 1
      %p424 = scmp.eq.s32.totalorder %s92, 1
      %p425 = scmp.ne.s32.totalorder %s420, %s422
      %p426 = scmp.eq.s32.totalorder %s92, 0
      %p427 = por %p425, %p426
      %p428 = scmp.ne.s32.totalorder %s420, %s422
      %p429 = scmp.eq.s32.totalorder %s97, 1
      %p430 = por %p428, %p429
      %p431 = scmp.ne.s32.totalorder %s422, %s423
      %p432 = scmp.eq.s32.totalorder %s97, 0
      %p433 = por %p431, %p432
      %p434 = scmp.ne.s32.totalorder %s422, %s423
      %p435 = scmp.eq.s32.totalorder %s98, 1
      %p436 = por %p434, %p435
      %p438 = scmp.ne.s32.totalorder %s423, %s437
      %p439 = scmp.eq.s32.totalorder %s98, 0
      %p440 = por %p438, %p439
      %s442 = sadd.s32 %s441, 1
      %p445 = scmp.eq.s32.totalorder %s92, 1
      %p446 = scmp.ne.s32.totalorder %s441, %s443
      %p447 = scmp.eq.s32.totalorder %s92, 0
      %p448 = por %p446, %p447
      %p449 = scmp.ne.s32.totalorder %s441, %s443
      %p450 = scmp.eq.s32.totalorder %s97, 1
      %p451 = por %p449, %p450
      %p452 = scmp.ne.s32.totalorder %s443, %s444
      %p453 = scmp.eq.s32.totalorder %s97, 0
      %p454 = por %p452, %p453
      %p455 = scmp.ne.s32.totalorder %s443, %s444
      %p456 = scmp.eq.s32.totalorder %s98, 1
      %p457 = por %p455, %p456
      %p459 = scmp.ne.s32.totalorder %s444, %s458
      %p460 = scmp.eq.s32.totalorder %s98, 0
      %p461 = por %p459, %p460
      %s463 = sadd.s32 %s462, 1
      %p466 = scmp.eq.s32.totalorder %s92, 1
      %p467 = scmp.ne.s32.totalorder %s462, %s464
      %p468 = scmp.eq.s32.totalorder %s92, 0
      %p469 = por %p467, %p468
      %p470 = scmp.ne.s32.totalorder %s462, %s464
      %p471 = scmp.eq.s32.totalorder %s97, 1
      %p472 = por %p470, %p471
      %p473 = scmp.ne.s32.totalorder %s464, %s465
      %p474 = scmp.eq.s32.totalorder %s97, 0
      %p475 = por %p473, %p474
      %p476 = scmp.ne.s32.totalorder %s464, %s465
      %p477 = scmp.eq.s32.totalorder %s98, 1
      %p478 = por %p476, %p477
      %p480 = scmp.ne.s32.totalorder %s465, %s479
      %p481 = scmp.eq.s32.totalorder %s98, 0
      %p482 = por %p480, %p481
      %s484 = sadd.s32 %s483, 1
      %p487 = scmp.eq.s32.totalorder %s92, 1
      %p488 = scmp.ne.s32.totalorder %s483, %s485
      %p489 = scmp.eq.s32.totalorder %s92, 0
      %p490 = por %p488, %p489
      %p491 = scmp.ne.s32.totalorder %s483, %s485
      %p492 = scmp.eq.s32.totalorder %s97, 1
      %p493 = por %p491, %p492
      %p494 = scmp.ne.s32.totalorder %s485, %s486
      %p495 = scmp.eq.s32.totalorder %s97, 0
      %p496 = por %p494, %p495
      %p497 = scmp.ne.s32.totalorder %s485, %s486
      %p498 = scmp.eq.s32.totalorder %s98, 1
      %p499 = por %p497, %p498
      %p501 = scmp.ne.s32.totalorder %s486, %s500
      %p502 = scmp.eq.s32.totalorder %s98, 0
      %p503 = por %p501, %p502
      %s505 = sadd.s32 %s504, 1
      %p508 = scmp.eq.s32.totalorder %s92, 1
      %p509 = scmp.ne.s32.totalorder %s504, %s506
      %p510 = scmp.eq.s32.totalorder %s92, 0
      %p511 = por %p509, %p510
      %p512 = scmp.ne.s32.totalorder %s504, %s506
      %p513 = scmp.eq.s32.totalorder %s97, 1
      %p514 = por %p512, %p513
      %p515 = scmp.ne.s32.totalorder %s506, %s507
      %p516 = scmp.eq.s32.totalorder %s97, 0
      %p517 = por %p515, %p516
      %p518 = scmp.ne.s32.totalorder %s506, %s507
      %p519 = scmp.eq.s32.totalorder %s98, 1
      %p520 = por %p518, %p519
      %p522 = scmp.ne.s32.totalorder %s507, %s521
      %p523 = scmp.eq.s32.totalorder %s98, 0
      %p524 = por %p522, %p523
      %s526 = sadd.s32 %s525, 1
      %p529 = scmp.eq.s32.totalorder %s92, 1
      %p530 = scmp.ne.s32.totalorder %s525, %s527
      %p531 = scmp.eq.s32.totalorder %s92, 0
      %p532 = por %p530, %p531
      %p533 = scmp.ne.s32.totalorder %s525, %s527
      %p534 = scmp.eq.s32.totalorder %s97, 1
      %p535 = por %p533, %p534
      %p536 = scmp.ne.s32.totalorder %s527, %s528
      %p537 = scmp.eq.s32.totalorder %s97, 0
      %p538 = por %p536, %p537
      %p539 = scmp.ne.s32.totalorder %s527, %s528
      %p540 = scmp.eq.s32.totalorder %s98, 1
      %p541 = por %p539, %p540
      %p543 = scmp.ne.s32.totalorder %s528, %s542
      %p544 = scmp.eq.s32.totalorder %s98, 0
      %p545 = por %p543, %p544
      %s547 = sadd.s32 %s546, 1
      %p550 = scmp.eq.s32.totalorder %s92, 1
      %p551 = scmp.ne.s32.totalorder %s546, %s548
      %p552 = scmp.eq.s32.totalorder %s92, 0
      %p553 = por %p551, %p552
      %p554 = scmp.ne.s32.totalorder %s546, %s548
      %p555 = scmp.eq.s32.totalorder %s97, 1
      %p556 = por %p554, %p555
      %p557 = scmp.ne.s32.totalorder %s548, %s549
      %p558 = scmp.eq.s32.totalorder %s97, 0
      %p559 = por %p557, %p558
      %p560 = scmp.ne.s32.totalorder %s548, %s549
      %p561 = scmp.eq.s32.totalorder %s98, 1
      %p562 = por %p560, %p561
      %p564 = scmp.ne.s32.totalorder %s549, %s563
      %p565 = scmp.eq.s32.totalorder %s98, 0
      %p566 = por %p564, %p565
      %s568 = sadd.s32 %s567, 1
      %p571 = scmp.eq.s32.totalorder %s92, 1
      %p572 = scmp.ne.s32.totalorder %s567, %s569
      %p573 = scmp.eq.s32.totalorder %s92, 0
      %p574 = por %p572, %p573
      %p575 = scmp.ne.s32.totalorder %s567, %s569
      %p576 = scmp.eq.s32.totalorder %s97, 1
      %p577 = por %p575, %p576
      %p578 = scmp.ne.s32.totalorder %s569, %s570
      %p579 = scmp.eq.s32.totalorder %s97, 0
      %p580 = por %p578, %p579
      %p581 = scmp.ne.s32.totalorder %s569, %s570
      %p582 = scmp.eq.s32.totalorder %s98, 1
      %p583 = por %p581, %p582
      %p585 = scmp.ne.s32.totalorder %s570, %s584
      %p586 = scmp.eq.s32.totalorder %s98, 0
      %p587 = por %p585, %p586
      %s589 = sadd.s32 %s588, 1
      %p592 = scmp.eq.s32.totalorder %s92, 1
      %p593 = scmp.ne.s32.totalorder %s588, %s590
      %p594 = scmp.eq.s32.totalorder %s92, 0
      %p595 = por %p593, %p594
      %p596 = scmp.ne.s32.totalorder %s588, %s590
      %p597 = scmp.eq.s32.totalorder %s97, 1
      %p598 = por %p596, %p597
      %p599 = scmp.ne.s32.totalorder %s590, %s591
      %p600 = scmp.eq.s32.totalorder %s97, 0
      %p601 = por %p599, %p600
      %p602 = scmp.ne.s32.totalorder %s590, %s591
      %p603 = scmp.eq.s32.totalorder %s98, 1
      %p604 = por %p602, %p603
      %p606 = scmp.ne.s32.totalorder %s591, %s605
      %p607 = scmp.eq.s32.totalorder %s98, 0
      %p608 = por %p606, %p607
      %s610 = sadd.s32 %s609, 1
      %p613 = scmp.eq.s32.totalorder %s92, 1
      %p614 = scmp.ne.s32.totalorder %s609, %s611
      %p615 = scmp.eq.s32.totalorder %s92, 0
      %p616 = por %p614, %p615
      %p617 = scmp.ne.s32.totalorder %s609, %s611
      %p618 = scmp.eq.s32.totalorder %s97, 1
      %p619 = por %p617, %p618
      %p620 = scmp.ne.s32.totalorder %s611, %s612
      %p621 = scmp.eq.s32.totalorder %s97, 0
      %p622 = por %p620, %p621
      %p623 = scmp.ne.s32.totalorder %s611, %s612
      %p624 = scmp.eq.s32.totalorder %s98, 1
      %p625 = por %p623, %p624
      %p627 = scmp.ne.s32.totalorder %s612, %s626
      %p628 = scmp.eq.s32.totalorder %s98, 0
      %p629 = por %p627, %p628
      %s631 = sadd.s32 %s630, 1
      %p634 = scmp.eq.s32.totalorder %s92, 1
      %p635 = scmp.ne.s32.totalorder %s630, %s632
      %p636 = scmp.eq.s32.totalorder %s92, 0
      %p637 = por %p635, %p636
      %p638 = scmp.ne.s32.totalorder %s630, %s632
      %p639 = scmp.eq.s32.totalorder %s97, 1
      %p640 = por %p638, %p639
      %p641 = scmp.ne.s32.totalorder %s632, %s633
      %p642 = scmp.eq.s32.totalorder %s97, 0
      %p643 = por %p641, %p642
      %p644 = scmp.ne.s32.totalorder %s632, %s633
      %p645 = scmp.eq.s32.totalorder %s98, 1
      %p646 = por %p644, %p645
      %p648 = scmp.ne.s32.totalorder %s633, %s647
      %p649 = scmp.eq.s32.totalorder %s98, 0
      %p650 = por %p648, %p649
      %s652 = sadd.s32 %s651, 1
      %p655 = scmp.eq.s32.totalorder %s92, 1
      %p656 = scmp.ne.s32.totalorder %s651, %s653
      %p657 = scmp.eq.s32.totalorder %s92, 0
      %p658 = por %p656, %p657
      %p659 = scmp.ne.s32.totalorder %s651, %s653
      %p660 = scmp.eq.s32.totalorder %s97, 1
      %p661 = por %p659, %p660
      %p662 = scmp.ne.s32.totalorder %s653, %s654
      %p663 = scmp.eq.s32.totalorder %s97, 0
      %p664 = por %p662, %p663
      %p665 = scmp.ne.s32.totalorder %s653, %s654
      %p666 = scmp.eq.s32.totalorder %s98, 1
      %p667 = por %p665, %p666
      %p669 = scmp.ne.s32.totalorder %s654, %s668
      %p670 = scmp.eq.s32.totalorder %s98, 0
      %p671 = por %p669, %p670
      %s673 = sadd.s32 %s672, 1
      %p676 = scmp.eq.s32.totalorder %s92, 1
      %p677 = scmp.ne.s32.totalorder %s672, %s674
      %p678 = scmp.eq.s32.totalorder %s92, 0
      %p679 = por %p677, %p678
      %p680 = scmp.ne.s32.totalorder %s672, %s674
      %p681 = scmp.eq.s32.totalorder %s97, 1
      %p682 = por %p680, %p681
      %p683 = scmp.ne.s32.totalorder %s674, %s675
      %p684 = scmp.eq.s32.totalorder %s97, 0
      %p685 = por %p683, %p684
      %p686 = scmp.ne.s32.totalorder %s674, %s675
      %p687 = scmp.eq.s32.totalorder %s98, 1
      %p688 = por %p686, %p687
      %p690 = scmp.ne.s32.totalorder %s675, %s689
      %p691 = scmp.eq.s32.totalorder %s98, 0
      %p692 = por %p690, %p691
      %s694 = sadd.s32 %s693, 1
      %p697 = scmp.eq.s32.totalorder %s92, 1
      %p698 = scmp.ne.s32.totalorder %s693, %s695
      %p699 = scmp.eq.s32.totalorder %s92, 0
      %p700 = por %p698, %p699
      %p701 = scmp.ne.s32.totalorder %s693, %s695
      %p702 = scmp.eq.s32.totalorder %s97, 1
      %p703 = por %p701, %p702
      %p704 = scmp.ne.s32.totalorder %s695, %s696
      %p705 = scmp.eq.s32.totalorder %s97, 0
      %p706 = por %p704, %p705
      %p707 = scmp.ne.s32.totalorder %s695, %s696
      %p708 = scmp.eq.s32.totalorder %s98, 1
      %p709 = por %p707, %p708
      %p711 = scmp.ne.s32.totalorder %s696, %s710
      %p712 = scmp.eq.s32.totalorder %s98, 0
      %p713 = por %p711, %p712
      %s715 = sadd.s32 %s714, 1
      %p718 = scmp.eq.s32.totalorder %s92, 1
      %p719 = scmp.ne.s32.totalorder %s714, %s716
      %p720 = scmp.eq.s32.totalorder %s92, 0
      %p721 = por %p719, %p720
      %p722 = scmp.ne.s32.totalorder %s714, %s716
      %p723 = scmp.eq.s32.totalorder %s97, 1
      %p724 = por %p722, %p723
      %p725 = scmp.ne.s32.totalorder %s716, %s717
      %p726 = scmp.eq.s32.totalorder %s97, 0
      %p727 = por %p725, %p726
      %p728 = scmp.ne.s32.totalorder %s716, %s717
      %p729 = scmp.eq.s32.totalorder %s98, 1
      %p730 = por %p728, %p729
      %p732 = scmp.ne.s32.totalorder %s717, %s731
      %p733 = scmp.eq.s32.totalorder %s98, 0
      %p734 = por %p732, %p733
      %s736 = sadd.s32 %s735, 1
      %p739 = scmp.eq.s32.totalorder %s92, 1
      %p740 = scmp.ne.s32.totalorder %s735, %s737
      %p741 = scmp.eq.s32.totalorder %s92, 0
      %p742 = por %p740, %p741
      %p743 = scmp.ne.s32.totalorder %s735, %s737
      %p744 = scmp.eq.s32.totalorder %s97, 1
      %p745 = por %p743, %p744
      %p746 = scmp.ne.s32.totalorder %s737, %s738
      %p747 = scmp.eq.s32.totalorder %s97, 0
      %p748 = por %p746, %p747
      %p749 = scmp.ne.s32.totalorder %s737, %s738
      %p750 = scmp.eq.s32.totalorder %s98, 1
      %p751 = por %p749, %p750
      %p753 = scmp.ne.s32.totalorder %s738, %s752
      %p754 = scmp.eq.s32.totalorder %s98, 0
      %p755 = por %p753, %p754
      %s757 = sadd.s32 %s756, 1
      %p760 = scmp.eq.s32.totalorder %s92, 1
      %p761 = scmp.ne.s32.totalorder %s756, %s758
      %p762 = scmp.eq.s32.totalorder %s92, 0
      %p763 = por %p761, %p762
      %p764 = scmp.ne.s32.totalorder %s756, %s758
      %p765 = scmp.eq.s32.totalorder %s97, 1
      %p766 = por %p764, %p765
      %p767 = scmp.ne.s32.totalorder %s758, %s759
      %p768 = scmp.eq.s32.totalorder %s97, 0
      %p769 = por %p767, %p768
      %p770 = scmp.ne.s32.totalorder %s758, %s759
      %p771 = scmp.eq.s32.totalorder %s98, 1
      %p772 = por %p770, %p771
      %p774 = scmp.ne.s32.totalorder %s759, %s773
      %p775 = scmp.eq.s32.totalorder %s98, 0
      %p776 = por %p774, %p775
      %s778 = sadd.s32 %s777, 1
      %p781 = scmp.eq.s32.totalorder %s92, 1
      %p782 = scmp.ne.s32.totalorder %s777, %s779
      %p783 = scmp.eq.s32.totalorder %s92, 0
      %p784 = por %p782, %p783
      %p785 = scmp.ne.s32.totalorder %s777, %s779
      %p786 = scmp.eq.s32.totalorder %s97, 1
      %p787 = por %p785, %p786
      %p788 = scmp.ne.s32.totalorder %s779, %s780
      %p789 = scmp.eq.s32.totalorder %s97, 0
      %p790 = por %p788, %p789
      %p791 = scmp.ne.s32.totalorder %s779, %s780
      %p792 = scmp.eq.s32.totalorder %s98, 1
      %p793 = por %p791, %p792
      %p795 = scmp.ne.s32.totalorder %s780, %s794
      %p796 = scmp.eq.s32.totalorder %s98, 0
      %p797 = por %p795, %p796
      %s799 = sadd.s32 %s798, 1
      %p802 = scmp.eq.s32.totalorder %s92, 1
      %p803 = scmp.ne.s32.totalorder %s798, %s800
      %p804 = scmp.eq.s32.totalorder %s92, 0
      %p805 = por %p803, %p804
      %p806 = scmp.ne.s32.totalorder %s798, %s800
      %p807 = scmp.eq.s32.totalorder %s97, 1
      %p808 = por %p806, %p807
      %p809 = scmp.ne.s32.totalorder %s800, %s801
      %p810 = scmp.eq.s32.totalorder %s97, 0
      %p811 = por %p809, %p810
      %p812 = scmp.ne.s32.totalorder %s800, %s801
      %p813 = scmp.eq.s32.totalorder %s98, 1
      %p814 = por %p812, %p813
      %p816 = scmp.ne.s32.totalorder %s801, %s815
      %p817 = scmp.eq.s32.totalorder %s98, 0
      %p818 = por %p816, %p817
      %s820 = sadd.s32 %s819, 1
      %p823 = scmp.eq.s32.totalorder %s92, 1
      %p824 = scmp.ne.s32.totalorder %s819, %s821
      %p825 = scmp.eq.s32.totalorder %s92, 0
      %p826 = por %p824, %p825
      %p827 = scmp.ne.s32.totalorder %s819, %s821
      %p828 = scmp.eq.s32.totalorder %s97, 1
      %p829 = por %p827, %p828
      %p830 = scmp.ne.s32.totalorder %s821, %s822
      %p831 = scmp.eq.s32.totalorder %s97, 0
      %p832 = por %p830, %p831
      %p833 = scmp.ne.s32.totalorder %s821, %s822
      %p834 = scmp.eq.s32.totalorder %s98, 1
      %p835 = por %p833, %p834
      %p837 = scmp.ne.s32.totalorder %s822, %s836
      %p838 = scmp.eq.s32.totalorder %s98, 0
      %p839 = por %p837, %p838
      %s841 = sadd.s32 %s840, 1
      %p844 = scmp.eq.s32.totalorder %s92, 1
      %p845 = scmp.ne.s32.totalorder %s840, %s842
      %p846 = scmp.eq.s32.totalorder %s92, 0
      %p847 = por %p845, %p846
      %p848 = scmp.ne.s32.totalorder %s840, %s842
      %p849 = scmp.eq.s32.totalorder %s97, 1
      %p850 = por %p848, %p849
      %p851 = scmp.ne.s32.totalorder %s842, %s843
      %p852 = scmp.eq.s32.totalorder %s97, 0
      %p853 = por %p851, %p852
      %p854 = scmp.ne.s32.totalorder %s842, %s843
      %p855 = scmp.eq.s32.totalorder %s98, 1
      %p856 = por %p854, %p855
      %p858 = scmp.ne.s32.totalorder %s843, %s857
      %p859 = scmp.eq.s32.totalorder %s98, 0
      %p860 = por %p858, %p859
      %s862 = sadd.s32 %s861, 1
      %p865 = scmp.eq.s32.totalorder %s92, 1
      %p866 = scmp.ne.s32.totalorder %s861, %s863
      %p867 = scmp.eq.s32.totalorder %s92, 0
      %p868 = por %p866, %p867
      %p869 = scmp.ne.s32.totalorder %s861, %s863
      %p870 = scmp.eq.s32.totalorder %s97, 1
      %p871 = por %p869, %p870
      %p872 = scmp.ne.s32.totalorder %s863, %s864
      %p873 = scmp.eq.s32.totalorder %s97, 0
      %p874 = por %p872, %p873
      %p875 = scmp.ne.s32.totalorder %s863, %s864
      %p876 = scmp.eq.s32.totalorder %s98, 1
      %p877 = por %p875, %p876
      %p879 = scmp.ne.s32.totalorder %s864, %s878
      %p880 = scmp.eq.s32.totalorder %s98, 0
      %p881 = por %p879, %p880
      %s883 = sadd.s32 %s882, 1
      %p886 = scmp.eq.s32.totalorder %s92, 1
      %p887 = scmp.ne.s32.totalorder %s882, %s884
      %p888 = scmp.eq.s32.totalorder %s92, 0
      %p889 = por %p887, %p888
      %p890 = scmp.ne.s32.totalorder %s882, %s884
      %p891 = scmp.eq.s32.totalorder %s97, 1
      %p892 = por %p890, %p891
      %p893 = scmp.ne.s32.totalorder %s884, %s885
      %p894 = scmp.eq.s32.totalorder %s97, 0
      %p895 = por %p893, %p894
      %p896 = scmp.ne.s32.totalorder %s884, %s885
      %p897 = scmp.eq.s32.totalorder %s98, 1
      %p898 = por %p896, %p897
      %p900 = scmp.ne.s32.totalorder %s885, %s899
      %p901 = scmp.eq.s32.totalorder %s98, 0
      %p902 = por %p900, %p901
      %s904 = sadd.s32 %s903, 1
      %p907 = scmp.eq.s32.totalorder %s92, 1
      %p908 = scmp.ne.s32.totalorder %s903, %s905
      %p909 = scmp.eq.s32.totalorder %s92, 0
      %p910 = por %p908, %p909
      %p911 = scmp.ne.s32.totalorder %s903, %s905
      %p912 = scmp.eq.s32.totalorder %s97, 1
      %p913 = por %p911, %p912
      %p914 = scmp.ne.s32.totalorder %s905, %s906
      %p915 = scmp.eq.s32.totalorder %s97, 0
      %p916 = por %p914, %p915
      %p917 = scmp.ne.s32.totalorder %s905, %s906
      %p918 = scmp.eq.s32.totalorder %s98, 1
      %p919 = por %p917, %p918
      %p921 = scmp.ne.s32.totalorder %s906, %s920
      %p922 = scmp.eq.s32.totalorder %s98, 0
      %p923 = por %p921, %p922
      %s924 = ssub.s32 %s92, %s99
      %p925 = scmp.eq.s32.totalorder %s924, 0
      %s927 = sadd.s32 %s926, 1
      %s928 = scalar_select %p925, %s926, %s927
      %p931 = pneg %p925
      %p932 = scmp.eq.s32.totalorder %s92, 1
      %p933 = por %p931, %p932
      %p934 = scmp.ne.s32.totalorder %s926, %s929
      %p935 = scmp.eq.s32.totalorder %s92, 0
      %p936 = por %p934, %p935
      %p937 = scmp.ne.s32.totalorder %s926, %s929
      %p938 = scmp.eq.s32.totalorder %s97, 1
      %p939 = por %p937, %p938
      %p940 = scmp.ne.s32.totalorder %s929, %s930
      %p941 = scmp.eq.s32.totalorder %s97, 0
      %p942 = por %p940, %p941
      %p943 = scmp.ne.s32.totalorder %s929, %s930
      %p944 = scmp.eq.s32.totalorder %s98, 1
      %p945 = por %p943, %p944
      %p947 = scmp.ne.s32.totalorder %s930, %s946
      %p948 = scmp.eq.s32.totalorder %s98, 0
      %p949 = por %p947, %p948
      %p950 = scmp.le.s32.totalorder 1, %s92
      %p951 = scmp.lt.s32.totalorder %s92, 3
      %p952 = pnand %p950, %p951
      %p953 = pneg %p952
      // Predicated region
      $region9: #{tpu_custom_call.1} parent=5 // pred_check
        _
      $region10: #{tpu_custom_call.1} parent=5 // pred_check_branch
        %955 = sbr.rel (%p952) target = $region12
      $region11: #{tpu_custom_call.1} parent=5 // pred_region
        %s956 = ssub.s32 %s92, 1
        // Predicated region
        $region13: #{tpu_custom_call.1} parent=11 // pred_check
          %p957 = pneg %p139
        $region14: #{tpu_custom_call.1} parent=11 // pred_check_branch
          %959 = sbr.rel (%p957) target = $region16
        $region15: #{tpu_custom_call.1} parent=11 // pred_region
          %s961 = ssub.s32 256, 256
          %962 = vsyncadd [#allocation3], %s961
          %s963 = sshll.u32 [#allocation2], 4
          %s964 = int_to_ptr.vmem [resolvable:$true] %s963
          %969 = dma.hbm_to_vmem [thread:$0]  %s3, 256, %s964, [#allocation3], 128, 128, 8
        $region16: #{tpu_custom_call.1} parent=11 // pred_fallthru
          _
        // Predicated region
        $region17: #{tpu_custom_call.1} parent=11 // pred_check
          %p970 = pneg %p160
        $region18: #{tpu_custom_call.1} parent=11 // pred_check_branch
          %972 = sbr.rel (%p970) target = $region20
        $region19: #{tpu_custom_call.1} parent=11 // pred_region
          %s974 = ssub.s32 256, 256
          %975 = vsyncadd [#allocation5], %s974
          %s976 = sshll.u32 [#allocation4], 4
          %s977 = int_to_ptr.vmem [resolvable:$true] %s976
          %982 = dma.hbm_to_vmem [thread:$0]  %s5, 256, %s977, [#allocation5], 128, 128, 8
        $region20: #{tpu_custom_call.1} parent=11 // pred_fallthru
          _
        // Predicated region
        $region21: #{tpu_custom_call.1} parent=11 // pred_check
          %p983 = pneg %p181
        $region22: #{tpu_custom_call.1} parent=11 // pred_check_branch
          %985 = sbr.rel (%p983) target = $region24
        $region23: #{tpu_custom_call.1} parent=11 // pred_region
          _
        $region24: #{tpu_custom_call.1} parent=11 // pred_fallthru
          _
        // Predicated region
        $region25: #{tpu_custom_call.1} parent=11 // pred_check
          %p986 = pneg %p202
        $region26: #{tpu_custom_call.1} parent=11 // pred_check_branch
          %988 = sbr.rel (%p986) target = $region28
        $region27: #{tpu_custom_call.1} parent=11 // pred_region
          _
        $region28: #{tpu_custom_call.1} parent=11 // pred_fallthru
          _
        // Predicated region
        $region29: #{tpu_custom_call.1} parent=11 // pred_check
          %p989 = pneg %p223
        $region30: #{tpu_custom_call.1} parent=11 // pred_check_branch
          %991 = sbr.rel (%p989) target = $region32
        $region31: #{tpu_custom_call.1} parent=11 // pred_region
          _
        $region32: #{tpu_custom_call.1} parent=11 // pred_fallthru
          _
        // Predicated region
        $region33: #{tpu_custom_call.1} parent=11 // pred_check
          %p992 = pneg %p244
        $region34: #{tpu_custom_call.1} parent=11 // pred_check_branch
          %994 = sbr.rel (%p992) target = $region36
        $region35: #{tpu_custom_call.1} parent=11 // pred_region
          _
        $region36: #{tpu_custom_call.1} parent=11 // pred_fallthru
          _
        // Predicated region
        $region37: #{tpu_custom_call.1} parent=11 // pred_check
          %p995 = pneg %p265
        $region38: #{tpu_custom_call.1} parent=11 // pred_check_branch
          %997 = sbr.rel (%p995) target = $region40
        $region39: #{tpu_custom_call.1} parent=11 // pred_region
          %s999 = ssub.s32 16, 16
          %1000 = vsyncadd [#allocation5], %s999
          %s1002 = sshll.u32 [#allocation6], 4
          %s1003 = int_to_ptr.vmem [resolvable:$true] %s1002
          %1005 = dma.hbm_to_vmem [thread:$0]  %s15, 16, %s1003, [#allocation5]
        $region40: #{tpu_custom_call.1} parent=11 // pred_fallthru
          _
        // Predicated region
        $region41: #{tpu_custom_call.1} parent=11 // pred_check
          %p1006 = pneg %p286
        $region42: #{tpu_custom_call.1} parent=11 // pred_check_branch
          %1008 = sbr.rel (%p1006) target = $region44
        $region43: #{tpu_custom_call.1} parent=11 // pred_region
          %s1010 = ssub.s32 16, 16
          %1011 = vsyncadd [#allocation8], %s1010
          %s1013 = sshll.u32 [#allocation7], 4
          %s1014 = int_to_ptr.vmem [resolvable:$true] %s1013
          %1016 = dma.hbm_to_vmem [thread:$0]  %s17, 16, %s1014, [#allocation8]
        $region44: #{tpu_custom_call.1} parent=11 // pred_fallthru
          _
        // Predicated region
        $region45: #{tpu_custom_call.1} parent=11 // pred_check
          %p1017 = pneg %p307
        $region46: #{tpu_custom_call.1} parent=11 // pred_check_branch
          %1019 = sbr.rel (%p1017) target = $region48
        $region47: #{tpu_custom_call.1} parent=11 // pred_region
          _
        $region48: #{tpu_custom_call.1} parent=11 // pred_fallthru
          _
        // Predicated region
        $region49: #{tpu_custom_call.1} parent=11 // pred_check
          %p1020 = pneg %p328
        $region50: #{tpu_custom_call.1} parent=11 // pred_check_branch
          %1022 = sbr.rel (%p1020) target = $region52
        $region51: #{tpu_custom_call.1} parent=11 // pred_region
          _
        $region52: #{tpu_custom_call.1} parent=11 // pred_fallthru
          _
        // Predicated region
        $region53: #{tpu_custom_call.1} parent=11 // pred_check
          %p1023 = pneg %p349
        $region54: #{tpu_custom_call.1} parent=11 // pred_check_branch
          %1025 = sbr.rel (%p1023) target = $region56
        $region55: #{tpu_custom_call.1} parent=11 // pred_region
          _
        $region56: #{tpu_custom_call.1} parent=11 // pred_fallthru
          _
        // Predicated region
        $region57: #{tpu_custom_call.1} parent=11 // pred_check
          %p1026 = pneg %p370
        $region58: #{tpu_custom_call.1} parent=11 // pred_check_branch
          %1028 = sbr.rel (%p1026) target = $region60
        $region59: #{tpu_custom_call.1} parent=11 // pred_region
          %s1030 = ssub.s32 16, 16
          %1031 = vsyncadd [#allocation8], %s1030
          %s1033 = sshll.u32 [#allocation9], 4
          %s1034 = int_to_ptr.vmem [resolvable:$true] %s1033
          %1036 = dma.hbm_to_vmem [thread:$0]  %s25, 16, %s1034, [#allocation8]
        $region60: #{tpu_custom_call.1} parent=11 // pred_fallthru
          _
        // Predicated region
        $region61: #{tpu_custom_call.1} parent=11 // pred_check
          %p1037 = pneg %p391
        $region62: #{tpu_custom_call.1} parent=11 // pred_check_branch
          %1039 = sbr.rel (%p1037) target = $region64
        $region63: #{tpu_custom_call.1} parent=11 // pred_region
          %s1041 = ssub.s32 16, 16
          %1042 = vsyncadd [#allocation11], %s1041
          %s1044 = sshll.u32 [#allocation10], 4
          %s1045 = int_to_ptr.vmem [resolvable:$true] %s1044
          %1047 = dma.hbm_to_vmem [thread:$0]  %s27, 16, %s1045, [#allocation11]
        $region64: #{tpu_custom_call.1} parent=11 // pred_fallthru
          _
        // Predicated region
        $region65: #{tpu_custom_call.1} parent=11 // pred_check
          %p1048 = pneg %p412
        $region66: #{tpu_custom_call.1} parent=11 // pred_check_branch
          %1050 = sbr.rel (%p1048) target = $region68
        $region67: #{tpu_custom_call.1} parent=11 // pred_region
          %s1052 = ssub.s32 16, 16
          %1053 = vsyncadd [#allocation11], %s1052
          %s1055 = sshll.u32 [#allocation12], 4
          %s1056 = int_to_ptr.vmem [resolvable:$true] %s1055
          %1058 = dma.hbm_to_vmem [thread:$0]  %s29, 16, %s1056, [#allocation11]
        $region68: #{tpu_custom_call.1} parent=11 // pred_fallthru
          _
        // Predicated region
        $region69: #{tpu_custom_call.1} parent=11 // pred_check
          %p1059 = pneg %p433
        $region70: #{tpu_custom_call.1} parent=11 // pred_check_branch
          %1061 = sbr.rel (%p1059) target = $region72
        $region71: #{tpu_custom_call.1} parent=11 // pred_region
          %s1063 = ssub.s32 16, 16
          %1064 = vsyncadd [#allocation14], %s1063
          %s1066 = sshll.u32 [#allocation13], 4
          %s1067 = int_to_ptr.vmem [resolvable:$true] %s1066
          %1069 = dma.hbm_to_vmem [thread:$0]  %s31, 16, %s1067, [#allocation14]
        $region72: #{tpu_custom_call.1} parent=11 // pred_fallthru
          _
        // Predicated region
        $region73: #{tpu_custom_call.1} parent=11 // pred_check
          %p1070 = pneg %p454
        $region74: #{tpu_custom_call.1} parent=11 // pred_check_branch
          %1072 = sbr.rel (%p1070) target = $region76
        $region75: #{tpu_custom_call.1} parent=11 // pred_region
          %s1074 = ssub.s32 16, 16
          %1075 = vsyncadd [#allocation14], %s1074
          %s1077 = sshll.u32 [#allocation15], 4
          %s1078 = int_to_ptr.vmem [resolvable:$true] %s1077
          %1080 = dma.hbm_to_vmem [thread:$0]  %s33, 16, %s1078, [#allocation14]
        $region76: #{tpu_custom_call.1} parent=11 // pred_fallthru
          _
        // Predicated region
        $region77: #{tpu_custom_call.1} parent=11 // pred_check
          %p1081 = pneg %p475
        $region78: #{tpu_custom_call.1} parent=11 // pred_check_branch
          %1083 = sbr.rel (%p1081) target = $region80
        $region79: #{tpu_custom_call.1} parent=11 // pred_region
          _
        $region80: #{tpu_custom_call.1} parent=11 // pred_fallthru
          _
        // Predicated region
        $region81: #{tpu_custom_call.1} parent=11 // pred_check
          %p1084 = pneg %p496
        $region82: #{tpu_custom_call.1} parent=11 // pred_check_branch
          %1086 = sbr.rel (%p1084) target = $region84
        $region83: #{tpu_custom_call.1} parent=11 // pred_region
          _
        $region84: #{tpu_custom_call.1} parent=11 // pred_fallthru
          _
        // Predicated region
        $region85: #{tpu_custom_call.1} parent=11 // pred_check
          %p1087 = pneg %p517
        $region86: #{tpu_custom_call.1} parent=11 // pred_check_branch
          %1089 = sbr.rel (%p1087) target = $region88
        $region87: #{tpu_custom_call.1} parent=11 // pred_region
          _
        $region88: #{tpu_custom_call.1} parent=11 // pred_fallthru
          _
        // Predicated region
        $region89: #{tpu_custom_call.1} parent=11 // pred_check
          %p1090 = pneg %p538
        $region90: #{tpu_custom_call.1} parent=11 // pred_check_branch
          %1092 = sbr.rel (%p1090) target = $region92
        $region91: #{tpu_custom_call.1} parent=11 // pred_region
          %s1094 = ssub.s32 16, 16
          %1095 = vsyncadd [#allocation17], %s1094
          %s1097 = sshll.u32 [#allocation16], 4
          %s1098 = int_to_ptr.vmem [resolvable:$true] %s1097
          %1100 = dma.hbm_to_vmem [thread:$0]  %s41, 16, %s1098, [#allocation17]
        $region92: #{tpu_custom_call.1} parent=11 // pred_fallthru
          _
        // Predicated region
        $region93: #{tpu_custom_call.1} parent=11 // pred_check
          %p1101 = pneg %p559
        $region94: #{tpu_custom_call.1} parent=11 // pred_check_branch
          %1103 = sbr.rel (%p1101) target = $region96
        $region95: #{tpu_custom_call.1} parent=11 // pred_region
          %s1105 = ssub.s32 16, 16
          %1106 = vsyncadd [#allocation17], %s1105
          %s1108 = sshll.u32 [#allocation18], 4
          %s1109 = int_to_ptr.vmem [resolvable:$true] %s1108
          %1111 = dma.hbm_to_vmem [thread:$0]  %s43, 16, %s1109, [#allocation17]
        $region96: #{tpu_custom_call.1} parent=11 // pred_fallthru
          _
        // Predicated region
        $region97: #{tpu_custom_call.1} parent=11 // pred_check
          %p1112 = pneg %p580
        $region98: #{tpu_custom_call.1} parent=11 // pred_check_branch
          %1114 = sbr.rel (%p1112) target = $region100
        $region99: #{tpu_custom_call.1} parent=11 // pred_region
          %s1116 = ssub.s32 16, 16
          %1117 = vsyncadd [#allocation20], %s1116
          %s1119 = sshll.u32 [#allocation19], 4
          %s1120 = int_to_ptr.vmem [resolvable:$true] %s1119
          %1122 = dma.hbm_to_vmem [thread:$0]  %s45, 16, %s1120, [#allocation20]
        $region100: #{tpu_custom_call.1} parent=11 // pred_fallthru
          _
        // Predicated region
        $region101: #{tpu_custom_call.1} parent=11 // pred_check
          %p1123 = pneg %p601
        $region102: #{tpu_custom_call.1} parent=11 // pred_check_branch
          %1125 = sbr.rel (%p1123) target = $region104
        $region103: #{tpu_custom_call.1} parent=11 // pred_region
          _
        $region104: #{tpu_custom_call.1} parent=11 // pred_fallthru
          _
        // Predicated region
        $region105: #{tpu_custom_call.1} parent=11 // pred_check
          %p1126 = pneg %p622
        $region106: #{tpu_custom_call.1} parent=11 // pred_check_branch
          %1128 = sbr.rel (%p1126) target = $region108
        $region107: #{tpu_custom_call.1} parent=11 // pred_region
          _
        $region108: #{tpu_custom_call.1} parent=11 // pred_fallthru
          _
        // Predicated region
        $region109: #{tpu_custom_call.1} parent=11 // pred_check
          %p1129 = pneg %p643
        $region110: #{tpu_custom_call.1} parent=11 // pred_check_branch
          %1131 = sbr.rel (%p1129) target = $region112
        $region111: #{tpu_custom_call.1} parent=11 // pred_region
          _
        $region112: #{tpu_custom_call.1} parent=11 // pred_fallthru
          _
        // Predicated region
        $region113: #{tpu_custom_call.1} parent=11 // pred_check
          %p1132 = pneg %p664
        $region114: #{tpu_custom_call.1} parent=11 // pred_check_branch
          %1134 = sbr.rel (%p1132) target = $region116
        $region115: #{tpu_custom_call.1} parent=11 // pred_region
          _
        $region116: #{tpu_custom_call.1} parent=11 // pred_fallthru
          _
        // Predicated region
        $region117: #{tpu_custom_call.1} parent=11 // pred_check
          %p1135 = pneg %p685
        $region118: #{tpu_custom_call.1} parent=11 // pred_check_branch
          %1137 = sbr.rel (%p1135) target = $region120
        $region119: #{tpu_custom_call.1} parent=11 // pred_region
          %s1139 = ssub.s32 1024, 1024
          %1140 = vsyncadd [#allocation20], %s1139
          %s1141 = sshll.u32 [#allocation21], 4
          %s1142 = int_to_ptr.vmem [resolvable:$true] %s1141
          %1147 = dma.hbm_to_vmem [thread:$0]  %s55, 1024, %s1142, [#allocation20], 128, 128, 8
        $region120: #{tpu_custom_call.1} parent=11 // pred_fallthru
          _
        // Predicated region
        $region121: #{tpu_custom_call.1} parent=11 // pred_check
          %p1148 = pneg %p706
        $region122: #{tpu_custom_call.1} parent=11 // pred_check_branch
          %1150 = sbr.rel (%p1148) target = $region124
        $region123: #{tpu_custom_call.1} parent=11 // pred_region
          _
        $region124: #{tpu_custom_call.1} parent=11 // pred_fallthru
          _
        // Predicated region
        $region125: #{tpu_custom_call.1} parent=11 // pred_check
          %p1151 = pneg %p727
        $region126: #{tpu_custom_call.1} parent=11 // pred_check_branch
          %1153 = sbr.rel (%p1151) target = $region128
        $region127: #{tpu_custom_call.1} parent=11 // pred_region
          _
        $region128: #{tpu_custom_call.1} parent=11 // pred_fallthru
          _
        // Predicated region
        $region129: #{tpu_custom_call.1} parent=11 // pred_check
          %p1154 = pneg %p748
        $region130: #{tpu_custom_call.1} parent=11 // pred_check_branch
          %1156 = sbr.rel (%p1154) target = $region132
        $region131: #{tpu_custom_call.1} parent=11 // pred_region
          _
        $region132: #{tpu_custom_call.1} parent=11 // pred_fallthru
          _
        // Predicated region
        $region133: #{tpu_custom_call.1} parent=11 // pred_check
          %p1157 = pneg %p769
        $region134: #{tpu_custom_call.1} parent=11 // pred_check_branch
          %1159 = sbr.rel (%p1157) target = $region136
        $region135: #{tpu_custom_call.1} parent=11 // pred_region
          _
        $region136: #{tpu_custom_call.1} parent=11 // pred_fallthru
          _
        // Predicated region
        $region137: #{tpu_custom_call.1} parent=11 // pred_check
          %p1160 = pneg %p790
        $region138: #{tpu_custom_call.1} parent=11 // pred_check_branch
          %1162 = sbr.rel (%p1160) target = $region140
        $region139: #{tpu_custom_call.1} parent=11 // pred_region
          _
        $region140: #{tpu_custom_call.1} parent=11 // pred_fallthru
          _
        // Predicated region
        $region141: #{tpu_custom_call.1} parent=11 // pred_check
          %p1163 = pneg %p811
        $region142: #{tpu_custom_call.1} parent=11 // pred_check_branch
          %1165 = sbr.rel (%p1163) target = $region144
        $region143: #{tpu_custom_call.1} parent=11 // pred_region
          _
        $region144: #{tpu_custom_call.1} parent=11 // pred_fallthru
          _
        // Predicated region
        $region145: #{tpu_custom_call.1} parent=11 // pred_check
          %p1166 = pneg %p832
        $region146: #{tpu_custom_call.1} parent=11 // pred_check_branch
          %1168 = sbr.rel (%p1166) target = $region148
        $region147: #{tpu_custom_call.1} parent=11 // pred_region
          _
        $region148: #{tpu_custom_call.1} parent=11 // pred_fallthru
          _
        // Predicated region
        $region149: #{tpu_custom_call.1} parent=11 // pred_check
          %p1169 = pneg %p853
        $region150: #{tpu_custom_call.1} parent=11 // pred_check_branch
          %1171 = sbr.rel (%p1169) target = $region152
        $region151: #{tpu_custom_call.1} parent=11 // pred_region
          _
        $region152: #{tpu_custom_call.1} parent=11 // pred_fallthru
          _
        // Predicated region
        $region153: #{tpu_custom_call.1} parent=11 // pred_check
          %p1172 = pneg %p874
        $region154: #{tpu_custom_call.1} parent=11 // pred_check_branch
          %1174 = sbr.rel (%p1172) target = $region156
        $region155: #{tpu_custom_call.1} parent=11 // pred_region
          _
        $region156: #{tpu_custom_call.1} parent=11 // pred_fallthru
          _
        // Predicated region
        $region157: #{tpu_custom_call.1} parent=11 // pred_check
          %p1175 = pneg %p895
        $region158: #{tpu_custom_call.1} parent=11 // pred_check_branch
          %1177 = sbr.rel (%p1175) target = $region160
        $region159: #{tpu_custom_call.1} parent=11 // pred_region
          _
        $region160: #{tpu_custom_call.1} parent=11 // pred_fallthru
          _
        // Predicated region
        $region161: #{tpu_custom_call.1} parent=11 // pred_check
          %p1178 = pneg %p916
        $region162: #{tpu_custom_call.1} parent=11 // pred_check_branch
          %1180 = sbr.rel (%p1178) target = $region164
        $region163: #{tpu_custom_call.1} parent=11 // pred_region
          _
        $region164: #{tpu_custom_call.1} parent=11 // pred_fallthru
          _
      $region12: #{tpu_custom_call.1} parent=5 // pred_fallthru
        _
      %p1181 = scmp.lt.s32.totalorder %s92, 2
      // Predicated region
      $region165: #{tpu_custom_call.1} parent=5 // pred_check
        %p1182 = pneg %p1181
      $region166: #{tpu_custom_call.1} parent=5 // pred_check_branch
        %1184 = sbr.rel (%p1182) target = $region168
      $region167: #{tpu_custom_call.1} parent=5 // pred_region
        // Predicated region
        $region169: #{tpu_custom_call.1} parent=167 // pred_check
          %p1185 = pneg %p112
        $region170: #{tpu_custom_call.1} parent=167 // pred_check_branch
          %1187 = sbr.rel (%p1185) target = $region172
        $region171: #{tpu_custom_call.1} parent=167 // pred_region
          %p1188 = scmp.lt.s32.totalorder %s92, 1
          %s1189 = scalar_select %p1188, %s92, 1
          %s1190 = smul.addr %s1189, 2
          %s1191 = smul.addr %s1190, 8
          %s1192 = scalar_lea.vmem %s1, %s1191
        $region172: #{tpu_custom_call.1} parent=167 // pred_fallthru
          _
      $region168: #{tpu_custom_call.1} parent=5 // pred_fallthru
        _
      %p1193 = scmp.le.s32.totalorder 1, %s92
      %p1194 = scmp.lt.s32.totalorder %s92, 3
      %p1195 = pnand %p1193, %p1194
      %p1196 = pneg %p1195
      // Predicated region
      $region173: #{tpu_custom_call.1} parent=5 // pred_check
        _
      $region174: #{tpu_custom_call.1} parent=5 // pred_check_branch
        %1198 = sbr.rel (%p1195) target = $region176
      $region175: #{tpu_custom_call.1} parent=5 // pred_region
        %s1199 = ssub.s32 %s92, 1
        // Predicated region
        $region177: #{tpu_custom_call.1} parent=175 // pred_check
          %p1200 = pneg %p139
        $region178: #{tpu_custom_call.1} parent=175 // pred_check_branch
          %1202 = sbr.rel (%p1200) target = $region180
        $region179: #{tpu_custom_call.1} parent=175 // pred_region
          %1203 = dma.done [#allocation3], 256
        $region180: #{tpu_custom_call.1} parent=175 // pred_fallthru
          _
        // Predicated region
        $region181: #{tpu_custom_call.1} parent=175 // pred_check
          %p1204 = pneg %p160
        $region182: #{tpu_custom_call.1} parent=175 // pred_check_branch
          %1206 = sbr.rel (%p1204) target = $region184
        $region183: #{tpu_custom_call.1} parent=175 // pred_region
          %1207 = dma.done [#allocation5], 256
        $region184: #{tpu_custom_call.1} parent=175 // pred_fallthru
          _
        // Predicated region
        $region185: #{tpu_custom_call.1} parent=175 // pred_check
          %p1208 = pneg %p265
        $region186: #{tpu_custom_call.1} parent=175 // pred_check_branch
          %1210 = sbr.rel (%p1208) target = $region188
        $region187: #{tpu_custom_call.1} parent=175 // pred_region
          %1211 = dma.done [#allocation5], 16
        $region188: #{tpu_custom_call.1} parent=175 // pred_fallthru
          _
        // Predicated region
        $region189: #{tpu_custom_call.1} parent=175 // pred_check
          %p1212 = pneg %p286
        $region190: #{tpu_custom_call.1} parent=175 // pred_check_branch
          %1214 = sbr.rel (%p1212) target = $region192
        $region191: #{tpu_custom_call.1} parent=175 // pred_region
          %1215 = dma.done [#allocation8], 16
        $region192: #{tpu_custom_call.1} parent=175 // pred_fallthru
          _
        // Predicated region
        $region193: #{tpu_custom_call.1} parent=175 // pred_check
          %p1216 = pneg %p370
        $region194: #{tpu_custom_call.1} parent=175 // pred_check_branch
          %1218 = sbr.rel (%p1216) target = $region196
        $region195: #{tpu_custom_call.1} parent=175 // pred_region
          %1219 = dma.done [#allocation8], 16
        $region196: #{tpu_custom_call.1} parent=175 // pred_fallthru
          _
        // Predicated region
        $region197: #{tpu_custom_call.1} parent=175 // pred_check
          %p1220 = pneg %p391
        $region198: #{tpu_custom_call.1} parent=175 // pred_check_branch
          %1222 = sbr.rel (%p1220) target = $region200
        $region199: #{tpu_custom_call.1} parent=175 // pred_region
          %1223 = dma.done [#allocation11], 16
        $region200: #{tpu_custom_call.1} parent=175 // pred_fallthru
          _
        // Predicated region
        $region201: #{tpu_custom_call.1} parent=175 // pred_check
          %p1224 = pneg %p412
        $region202: #{tpu_custom_call.1} parent=175 // pred_check_branch
          %1226 = sbr.rel (%p1224) target = $region204
        $region203: #{tpu_custom_call.1} parent=175 // pred_region
          %1227 = dma.done [#allocation11], 16
        $region204: #{tpu_custom_call.1} parent=175 // pred_fallthru
          _
        // Predicated region
        $region205: #{tpu_custom_call.1} parent=175 // pred_check
          %p1228 = pneg %p433
        $region206: #{tpu_custom_call.1} parent=175 // pred_check_branch
          %1230 = sbr.rel (%p1228) target = $region208
        $region207: #{tpu_custom_call.1} parent=175 // pred_region
          %1231 = dma.done [#allocation14], 16
        $region208: #{tpu_custom_call.1} parent=175 // pred_fallthru
          _
        // Predicated region
        $region209: #{tpu_custom_call.1} parent=175 // pred_check
          %p1232 = pneg %p454
        $region210: #{tpu_custom_call.1} parent=175 // pred_check_branch
          %1234 = sbr.rel (%p1232) target = $region212
        $region211: #{tpu_custom_call.1} parent=175 // pred_region
          %1235 = dma.done [#allocation14], 16
        $region212: #{tpu_custom_call.1} parent=175 // pred_fallthru
          _
        // Predicated region
        $region213: #{tpu_custom_call.1} parent=175 // pred_check
          %p1236 = pneg %p538
        $region214: #{tpu_custom_call.1} parent=175 // pred_check_branch
          %1238 = sbr.rel (%p1236) target = $region216
        $region215: #{tpu_custom_call.1} parent=175 // pred_region
          %1239 = dma.done [#allocation17], 16
        $region216: #{tpu_custom_call.1} parent=175 // pred_fallthru
          _
        // Predicated region
        $region217: #{tpu_custom_call.1} parent=175 // pred_check
          %p1240 = pneg %p559
        $region218: #{tpu_custom_call.1} parent=175 // pred_check_branch
          %1242 = sbr.rel (%p1240) target = $region220
        $region219: #{tpu_custom_call.1} parent=175 // pred_region
          %1243 = dma.done [#allocation17], 16
        $region220: #{tpu_custom_call.1} parent=175 // pred_fallthru
          _
        // Predicated region
        $region221: #{tpu_custom_call.1} parent=175 // pred_check
          %p1244 = pneg %p580
        $region222: #{tpu_custom_call.1} parent=175 // pred_check_branch
          %1246 = sbr.rel (%p1244) target = $region224
        $region223: #{tpu_custom_call.1} parent=175 // pred_region
          %1247 = dma.done [#allocation20], 16
        $region224: #{tpu_custom_call.1} parent=175 // pred_fallthru
          _
        // Predicated region
        $region225: #{tpu_custom_call.1} parent=175 // pred_check
          %p1248 = pneg %p685
        $region226: #{tpu_custom_call.1} parent=175 // pred_check_branch
          %1250 = sbr.rel (%p1248) target = $region228
        $region227: #{tpu_custom_call.1} parent=175 // pred_region
          %1251 = dma.done [#allocation20], 1024
        $region228: #{tpu_custom_call.1} parent=175 // pred_fallthru
          _
        %p1252 = scmp.lt.s32.totalorder %s97, 1
        %s1253 = scalar_select %p1252, %s97, 1
        %s1254 = smul.addr %s1253, 2
        %s1255 = smul.addr %s1254, 8
        %s1256 = scalar_lea.vmem %s1, %s1255
        %p1257 = pneg %p118
        %p1258 = pneg %p115
        %p1259 = pneg %p139
        %p1260 = pneg %p136
        %p1261 = pneg %p160
        %p1262 = pneg %p157
        %p1263 = pneg %p181
        %p1264 = pneg %p178
        %p1265 = pneg %p202
        %p1266 = pneg %p199
        %p1267 = pneg %p223
        %p1268 = pneg %p220
        %p1269 = pneg %p244
        %p1270 = pneg %p241
        %p1271 = pneg %p265
        %p1272 = pneg %p262
        %p1273 = pneg %p286
        %p1274 = pneg %p283
        %p1275 = pneg %p307
        %p1276 = pneg %p304
        %p1277 = pneg %p328
        %p1278 = pneg %p325
        %p1279 = pneg %p349
        %p1280 = pneg %p346
        %p1281 = pneg %p370
        %p1282 = pneg %p367
        %p1283 = pneg %p391
        %p1284 = pneg %p388
        %p1285 = pneg %p412
        %p1286 = pneg %p409
        %p1287 = pneg %p433
        %p1288 = pneg %p430
        %p1289 = pneg %p454
        %p1290 = pneg %p451
        %p1291 = pneg %p475
        %p1292 = pneg %p472
        %p1293 = pneg %p496
        %p1294 = pneg %p493
        %p1295 = pneg %p517
        %p1296 = pneg %p514
        %p1297 = pneg %p538
        %p1298 = pneg %p535
        %p1299 = pneg %p559
        %p1300 = pneg %p556
        %p1301 = pneg %p580
        %p1302 = pneg %p577
        %p1303 = pneg %p601
        %p1304 = pneg %p598
        %p1305 = pneg %p622
        %p1306 = pneg %p619
        %p1307 = pneg %p643
        %p1308 = pneg %p640
        %p1309 = pneg %p664
        %p1310 = pneg %p661
        %p1311 = pneg %p685
        %p1312 = pneg %p682
        %p1313 = pneg %p706
        %p1314 = pneg %p703
        %p1315 = pneg %p727
        %p1316 = pneg %p724
        %p1317 = pneg %p748
        %p1318 = pneg %p745
        %p1319 = pneg %p769
        %p1320 = pneg %p766
        %p1321 = pneg %p790
        %p1322 = pneg %p787
        %p1323 = pneg %p811
        %p1324 = pneg %p808
        %p1325 = pneg %p832
        %p1326 = pneg %p829
        %p1327 = pneg %p853
        %p1328 = pneg %p850
        %p1329 = pneg %p874
        %p1330 = pneg %p871
        %p1331 = pneg %p895
        %p1332 = pneg %p892
        %p1333 = pneg %p916
        %p1334 = pneg %p913
        %p1335 = pneg %p942
        %p1336 = pneg %p939
        %p1337 = scmp.lt.s32.totalorder %s97, 1
        %s1338 = scalar_select %p1337, %s97, 1
        %s1339 = smul.addr %s1338, 2
        %s1340 = smul.addr %s1339, 8
        %s1341 = scalar_lea.vmem %s79, %s1340
        %p1342 = scmp.lt.s32.totalorder %s97, 1
        %s1343 = scalar_select %p1342, %s97, 1
        %s1344 = smul.addr %s1343, 2
        %s1345 = smul.addr %s1344, 8
        %s1346 = scalar_lea.vmem %s1, %s1345
        %p1347 = scmp.lt.s32.totalorder %s97, 1
        %s1348 = scalar_select %p1347, %s97, 1
        %s1349 = smul.addr %s1348, 2
        %s1350 = smul.addr %s1349, 8
        %s1351 = scalar_lea.vmem %s79, %s1350
        %v1352 = vld [vmem:[%s1346] sm:$0xff]
        %v1353 = vld [vmem:[%s1346 + $0x8] sm:$0xf]
        %v1354 = vld [vmem:[#allocation2] sm:$0xff]
        %v1355 = vld [vmem:[#allocation2 + $0x8] sm:$0xf]
        %v1356 = vadd.f32 %v1352, %v1354
        %v1357 = vadd.f32 %v1353, %v1355
        %v1358 = vld [vmem:[#allocation4] sm:$0xff]
        %v1359 = vld [vmem:[#allocation4 + $0x8] sm:$0xf]
        %v1360 = vld [vmem:[%s7] sm:$0xff]
        %v1361 = vld [vmem:[%s7 + $0x8] sm:$0xff]
        %v1362 = vld [vmem:[%s7 + $0x10] sm:$0xff]
        %v1363 = vld [vmem:[%s7 + $0x18] sm:$0xff]
        %v1364 = vld [vmem:[%s7 + $0x20] sm:$0xff]
        %v1365 = vld [vmem:[%s7 + $0x28] sm:$0xff]
        %v1366 = vld [vmem:[%s7 + $0x30] sm:$0xff]
        %v1367 = vld [vmem:[%s7 + $0x38] sm:$0xff]
        %v1368 = vld [vmem:[%s7 + $0x40] sm:$0xff]
        %v1369 = vld [vmem:[%s7 + $0x48] sm:$0xff]
        %v1370 = vld [vmem:[%s7 + $0x50] sm:$0xff]
        %v1371 = vld [vmem:[%s7 + $0x58] sm:$0xff]
        %v1372 = vld [vmem:[%s7 + $0x60] sm:$0xff]
        %v1373 = vld [vmem:[%s7 + $0x68] sm:$0xff]
        %v1374 = vld [vmem:[%s7 + $0x70] sm:$0xff]
        %v1375 = vld [vmem:[%s7 + $0x78] sm:$0xff]
        %v1376 = vld [vmem:[%s9] sm:$0x3]
        %v1378 = vlaneseq
        %v1379 = vshrl.u32 %v1378, 7
        %v1380 = vsub.s32 0, %v1379
        %v1381 = vrot.slane %v1376, %v1380
        %v1382 = vlaneseq
        %v1383 = vshrl.u32 %v1382, 7
        %v1384 = vsub.s32 1, %v1383
        %v1385 = vrot.slane %v1376, %v1384
        %vm1388 = vcmask 523264
        %v1390 = vsel %vm1388, %v1356, 0
        %v1393 = vsel %vm1388, %v1357, 0
        %1395 = vmatprep.subr.mxu0 %v1361
        %1396 = vmatpush1.msra.mxu0 %v1360
        %1397 = vmatprep.subr.mxu0 %v1363
        %1398 = vmatpush1.msra.mxu0 %v1362
        %1399 = vmatprep.subr.mxu0 %v1365
        %1400 = vmatpush1.msra.mxu0 %v1364
        %1401 = vmatprep.subr.mxu0 %v1367
        %1402 = vmatpush1.msra.mxu0 %v1366
        %1403 = vmatprep.subr.mxu0 %v1369
        %1404 = vmatpush1.msra.mxu0 %v1368
        %1405 = vmatprep.subr.mxu0 %v1371
        %1406 = vmatpush1.msra.mxu0 %v1370
        %1407 = vmatprep.subr.mxu0 %v1373
        %1408 = vmatpush1.msra.mxu0 %v1372
        %1409 = vmatprep.subr.mxu0 %v1375
        %1410 = vmatpush1.msra.mxu0 %v1374
        %1411 = vmatprep.subr.mxu0 0.0
        %1412 = vmatpush1.msra.mxu0 0.0
        %1413 = vmatprep.subr.mxu0 0.0
        %1414 = vmatpush1.msra.mxu0 0.0
        %1415 = vmatprep.subr.mxu0 0.0
        %1416 = vmatpush1.msra.mxu0 0.0
        %1417 = vmatprep.subr.mxu0 0.0
        %1418 = vmatpush1.msra.mxu0 0.0
        %1419 = vmatprep.subr.mxu0 0.0
        %1420 = vmatpush1.msra.mxu0 0.0
        %1421 = vmatprep.subr.mxu0 0.0
        %1422 = vmatpush1.msra.mxu0 0.0
        %1423 = vmatprep.subr.mxu0 0.0
        %1424 = vmatpush1.msra.mxu0 0.0
        %1425 = vmatprep.subr.mxu0 0.0
        %1426 = vmatpush1.msra.mxu0 0.0
        %1427 = vmatprep.subr.mxu0 0.0
        %1428 = vmatpush1.msra.mxu0 0.0
        %1429 = vmatprep.subr.mxu0 0.0
        %1430 = vmatpush1.msra.mxu0 0.0
        %1431 = vmatprep.subr.mxu0 0.0
        %1432 = vmatpush1.msra.mxu0 0.0
        %1433 = vmatprep.subr.mxu0 0.0
        %1434 = vmatpush1.msra.mxu0 0.0
        %1435 = vmatprep.subr.mxu0 0.0
        %1436 = vmatpush1.msra.mxu0 0.0
        %1437 = vmatprep.subr.mxu0 0.0
        %1438 = vmatpush1.msra.mxu0 0.0
        %1439 = vmatprep.subr.mxu0 0.0
        %1440 = vmatpush1.msra.mxu0 0.0
        %1441 = vmatprep.subr.mxu0 0.0
        %1442 = vmatpush1.msra.mxu0 0.0
        %1443 = vmatprep.subr.mxu0 0.0
        %1444 = vmatpush1.msra.mxu0 0.0
        %1445 = vmatprep.subr.mxu0 0.0
        %1446 = vmatpush1.msra.mxu0 0.0
        %1447 = vmatprep.subr.mxu0 0.0
        %1448 = vmatpush1.msra.mxu0 0.0
        %1449 = vmatprep.subr.mxu0 0.0
        %1450 = vmatpush1.msra.mxu0 0.0
        %1451 = vmatprep.subr.mxu0 0.0
        %1452 = vmatpush1.msra.mxu0 0.0
        %1453 = vmatprep.subr.mxu0 0.0
        %1454 = vmatpush1.msra.mxu0 0.0
        %1455 = vmatprep.subr.mxu0 0.0
        %1456 = vmatpush1.msra.mxu0 0.0
        %1457 = vmatprep.subr.mxu0 0.0
        %1458 = vmatpush1.msra.mxu0 0.0
        %1459 = vmatprep.mubr.f32.mxu0 0.0
        %1460 = vmatmul.mubr.f32.gmra.mrb[0].mxu0 %v1390
        %v1461 = vpop.f32.mrb[0].mxu0
        %v1462 = vadd.f32 %v1381, %v1461
        %v1463 = vpop.f32.mrb[0].mxu0
        %v1464 = vadd.f32 %v1385, %v1463
        %1465 = vmatprep.mubr.f32.mxu0 0.0
        %1466 = vmatmul.mubr.f32.gmra.mrb[0].mxu0 %v1393
        %v1467 = vpop.f32.mrb[0].mxu0
        %v1468 = vadd.f32 %v1381, %v1467
        %v1469 = vpop.f32.mrb[0].mxu0
        %v1470 = vadd.f32 %v1385, %v1469
        %1471 = vdwg.mxu0
        %1474 = vrot.lane.b32.xlu0 %v1462, 64
        %v1475 = vpop.permute.xlu0 %1474
        %1476 = vrot.lane.b32.xlu0 %v1468, 64
        %v1477 = vpop.permute.xlu0 %1476
        %vm1478 = vcmask 64512
        %v1479 = vsel %vm1478, %v1462, 0
        %v1481 = vsel %vm1478, %v1468, 0
        %v1483 = vsel %vm1478, %v1475, 0
        %v1485 = vsel %vm1478, %v1477, 0
        %1487 = vmatprep.subr.mxu0 0.0
        %1488 = vmatpush1.xpose.msra.mxu0 %v1483
        %1489 = vmatprep.subr.mxu0 0.0
        %1490 = vmatpush1.xpose.msra.mxu0 %v1485
        %1491 = vmatprep.subr.mxu0 0.0
        %1492 = vmatpush1.xpose.msra.mxu0 0.0
        %1493 = vmatprep.subr.mxu0 0.0
        %1494 = vmatpush1.xpose.msra.mxu0 0.0
        %1495 = vmatprep.subr.mxu0 0.0
        %1496 = vmatpush1.xpose.msra.mxu0 0.0
        %1497 = vmatprep.subr.mxu0 0.0
        %1498 = vmatpush1.xpose.msra.mxu0 0.0
        %1499 = vmatprep.subr.mxu0 0.0
        %1500 = vmatpush1.xpose.msra.mxu0 0.0
        %1501 = vmatprep.subr.mxu0 0.0
        %1502 = vmatpush1.xpose.msra.mxu0 0.0
        %1503 = vmatprep.subr.mxu0 0.0
        %1504 = vmatpush1.xpose.msra.mxu0 0.0
        %1505 = vmatprep.subr.mxu0 0.0
        %1506 = vmatpush1.xpose.msra.mxu0 0.0
        %1507 = vmatprep.subr.mxu0 0.0
        %1508 = vmatpush1.xpose.msra.mxu0 0.0
        %1509 = vmatprep.subr.mxu0 0.0
        %1510 = vmatpush1.xpose.msra.mxu0 0.0
        %1511 = vmatprep.subr.mxu0 0.0
        %1512 = vmatpush1.xpose.msra.mxu0 0.0
        %1513 = vmatprep.subr.mxu0 0.0
        %1514 = vmatpush1.xpose.msra.mxu0 0.0
        %1515 = vmatprep.subr.mxu0 0.0
        %1516 = vmatpush1.xpose.msra.mxu0 0.0
        %1517 = vmatprep.subr.mxu0 0.0
        %1518 = vmatpush1.xpose.msra.mxu0 0.0
        %1519 = vmatprep.subr.mxu0 0.0
        %1520 = vmatpush1.xpose.msra.mxu0 0.0
        %1521 = vmatprep.subr.mxu0 0.0
        %1522 = vmatpush1.xpose.msra.mxu0 0.0
        %1523 = vmatprep.subr.mxu0 0.0
        %1524 = vmatpush1.xpose.msra.mxu0 0.0
        %1525 = vmatprep.subr.mxu0 0.0
        %1526 = vmatpush1.xpose.msra.mxu0 0.0
        %1527 = vmatprep.subr.mxu0 0.0
        %1528 = vmatpush1.xpose.msra.mxu0 0.0
        %1529 = vmatprep.subr.mxu0 0.0
        %1530 = vmatpush1.xpose.msra.mxu0 0.0
        %1531 = vmatprep.subr.mxu0 0.0
        %1532 = vmatpush1.xpose.msra.mxu0 0.0
        %1533 = vmatprep.subr.mxu0 0.0
        %1534 = vmatpush1.xpose.msra.mxu0 0.0
        %1535 = vmatprep.subr.mxu0 0.0
        %1536 = vmatpush1.xpose.msra.mxu0 0.0
        %1537 = vmatprep.subr.mxu0 0.0
        %1538 = vmatpush1.xpose.msra.mxu0 0.0
        %1539 = vmatprep.subr.mxu0 0.0
        %1540 = vmatpush1.xpose.msra.mxu0 0.0
        %1541 = vmatprep.subr.mxu0 0.0
        %1542 = vmatpush1.xpose.msra.mxu0 0.0
        %1543 = vmatprep.subr.mxu0 0.0
        %1544 = vmatpush1.xpose.msra.mxu0 0.0
        %1545 = vmatprep.subr.mxu0 0.0
        %1546 = vmatpush1.xpose.msra.mxu0 0.0
        %1547 = vmatprep.subr.mxu0 0.0
        %1548 = vmatpush1.xpose.msra.mxu0 0.0
        %1549 = vmatprep.subr.mxu0 0.0
        %1550 = vmatpush1.xpose.msra.mxu0 0.0
        %1551 = vmatprep.mubr.f32.mxu0 0.0
        %1552 = vmatmul.mubr.f32.gmra.mrb[0].mxu0 %v1479
        %v1553 = vpop.f32.mrb[0].mxu0
        %v1554 = vadd.f32 0.0, %v1553
        %v1555 = vpop.f32.mrb[0].mxu0
        %1556 = vmatprep.mubr.f32.mxu0 0.0
        %1557 = vmatmul.mubr.f32.gmra.mrb[0].mxu0 %v1481
        %v1558 = vpop.f32.mrb[0].mxu0
        %v1559 = vadd.f32 0.0, %v1558
        %v1560 = vpop.f32.mrb[0].mxu0
        %1561 = vdwg.mxu0
        %vm1562 = vcmask 97280
        %v1563 = vsel %vm1562, %v1554, -inf
        %1564 = vmax.xlane.f32.xlu0 %v1563
        %v1565 = vpop.xlane.xlu0 %1564
        %vm1566 = vcmask 93184
        %v1567 = vsel %vm1566, %v1559, -inf
        %1568 = vmax.xlane.f32.xlu0 %v1567
        %v1569 = vpop.xlane.xlu0 %1568
        %v1570 = vsub.f32 %v1554, %v1565
        %v1571 = vsub.f32 %v1559, %v1569
        %v1572 = vmul.f32 %v1570, 1.442695
        %v1573 = vpow.pop %v1572
        %v1574 = vmul.f32 %v1571, 1.442695
        %v1575 = vpow.pop %v1574
        %v1576 = vsel %vm1562, %v1573, 0.0
        %1577 = vadd.xlane.f32.xlu0 %v1576
        %v1578 = vpop.xlane.xlu0 %1577
        %v1579 = vsel %vm1566, %v1575, 0.0
        %1580 = vadd.xlane.f32.xlu0 %v1579
        %v1581 = vpop.xlane.xlu0 %1580
        %v1582 = vrcp.pop %v1578
        %v1583 = vrcp.pop %v1581
        %v1584 = vmul.f32 %v1573, %v1582
        %v1585 = vmul.f32 %v1575, %v1583
        %v1587 = vsel %vm1562, %v1584, 0
        %v1590 = vsel %vm1562, %v1585, 0
        %vm1592 = vcmask 1043456
        %v1594 = vsel %vm1592, %v1470, 0
        %1596 = vmatprep.subr.mxu0 0.0
        %1597 = vmatpush1.msra.mxu0 %v1464
        %1598 = vmatprep.subr.mxu0 0.0
        %1599 = vmatpush1.msra.mxu0 %v1594
        %1600 = vmatprep.subr.mxu0 0.0
        %1601 = vmatpush1.msra.mxu0 0.0
        %1602 = vmatprep.subr.mxu0 0.0
        %1603 = vmatpush1.msra.mxu0 0.0
        %1604 = vmatprep.subr.mxu0 0.0
        %1605 = vmatpush1.msra.mxu0 0.0
        %1606 = vmatprep.subr.mxu0 0.0
        %1607 = vmatpush1.msra.mxu0 0.0
        %1608 = vmatprep.subr.mxu0 0.0
        %1609 = vmatpush1.msra.mxu0 0.0
        %1610 = vmatprep.subr.mxu0 0.0
        %1611 = vmatpush1.msra.mxu0 0.0
        %1612 = vmatprep.subr.mxu0 0.0
        %1613 = vmatpush1.msra.mxu0 0.0
        %1614 = vmatprep.subr.mxu0 0.0
        %1615 = vmatpush1.msra.mxu0 0.0
        %1616 = vmatprep.subr.mxu0 0.0
        %1617 = vmatpush1.msra.mxu0 0.0
        %1618 = vmatprep.subr.mxu0 0.0
        %1619 = vmatpush1.msra.mxu0 0.0
        %1620 = vmatprep.subr.mxu0 0.0
        %1621 = vmatpush1.msra.mxu0 0.0
        %1622 = vmatprep.subr.mxu0 0.0
        %1623 = vmatpush1.msra.mxu0 0.0
        %1624 = vmatprep.subr.mxu0 0.0
        %1625 = vmatpush1.msra.mxu0 0.0
        %1626 = vmatprep.subr.mxu0 0.0
        %1627 = vmatpush1.msra.mxu0 0.0
        %1628 = vmatprep.subr.mxu0 0.0
        %1629 = vmatpush1.msra.mxu0 0.0
        %1630 = vmatprep.subr.mxu0 0.0
        %1631 = vmatpush1.msra.mxu0 0.0
        %1632 = vmatprep.subr.mxu0 0.0
        %1633 = vmatpush1.msra.mxu0 0.0
        %1634 = vmatprep.subr.mxu0 0.0
        %1635 = vmatpush1.msra.mxu0 0.0
        %1636 = vmatprep.subr.mxu0 0.0
        %1637 = vmatpush1.msra.mxu0 0.0
        %1638 = vmatprep.subr.mxu0 0.0
        %1639 = vmatpush1.msra.mxu0 0.0
        %1640 = vmatprep.subr.mxu0 0.0
        %1641 = vmatpush1.msra.mxu0 0.0
        %1642 = vmatprep.subr.mxu0 0.0
        %1643 = vmatpush1.msra.mxu0 0.0
        %1644 = vmatprep.subr.mxu0 0.0
        %1645 = vmatpush1.msra.mxu0 0.0
        %1646 = vmatprep.subr.mxu0 0.0
        %1647 = vmatpush1.msra.mxu0 0.0
        %1648 = vmatprep.subr.mxu0 0.0
        %1649 = vmatpush1.msra.mxu0 0.0
        %1650 = vmatprep.subr.mxu0 0.0
        %1651 = vmatpush1.msra.mxu0 0.0
        %1652 = vmatprep.subr.mxu0 0.0
        %1653 = vmatpush1.msra.mxu0 0.0
        %1654 = vmatprep.subr.mxu0 0.0
        %1655 = vmatpush1.msra.mxu0 0.0
        %1656 = vmatprep.subr.mxu0 0.0
        %1657 = vmatpush1.msra.mxu0 0.0
        %1658 = vmatprep.subr.mxu0 0.0
        %1659 = vmatpush1.msra.mxu0 0.0
        %1660 = vmatprep.mubr.f32.mxu0 0.0
        %1661 = vmatmul.mubr.f32.gmra.mrb[0].mxu0 %v1587
        %v1662 = vpop.f32.mrb[0].mxu0
        %v1663 = vadd.f32 0.0, %v1662
        %v1664 = vpop.f32.mrb[0].mxu0
        %1665 = vmatprep.mubr.f32.mxu0 0.0
        %1666 = vmatmul.mubr.f32.gmra.mrb[0].mxu0 %v1590
        %v1667 = vpop.f32.mrb[0].mxu0
        %v1668 = vadd.f32 0.0, %v1667
        %v1669 = vpop.f32.mrb[0].mxu0
        %1670 = vdwg.mxu0
        %1671 = vrot.lane.b32.xlu0 %v1462, 120
        %v1672 = vpop.permute.xlu0 %1671
        %1673 = vrot.lane.b32.xlu0 %v1468, 120
        %v1674 = vpop.permute.xlu0 %1673
        %1675 = vrot.lane.b32.xlu0 %v1462, 56
        %v1676 = vpop.permute.xlu0 %1675
        %1677 = vrot.lane.b32.xlu0 %v1468, 56
        %v1678 = vpop.permute.xlu0 %1677
        %v1679 = vsel %vm1478, %v1672, 0
        %v1681 = vsel %vm1478, %v1674, 0
        %v1683 = vsel %vm1478, %v1676, 0
        %v1685 = vsel %vm1478, %v1678, 0
        %1687 = vmatprep.subr.mxu0 0.0
        %1688 = vmatpush1.xpose.msra.mxu0 %v1683
        %1689 = vmatprep.subr.mxu0 0.0
        %1690 = vmatpush1.xpose.msra.mxu0 %v1685
        %1691 = vmatprep.subr.mxu0 0.0
        %1692 = vmatpush1.xpose.msra.mxu0 0.0
        %1693 = vmatprep.subr.mxu0 0.0
        %1694 = vmatpush1.xpose.msra.mxu0 0.0
        %1695 = vmatprep.subr.mxu0 0.0
        %1696 = vmatpush1.xpose.msra.mxu0 0.0
        %1697 = vmatprep.subr.mxu0 0.0
        %1698 = vmatpush1.xpose.msra.mxu0 0.0
        %1699 = vmatprep.subr.mxu0 0.0
        %1700 = vmatpush1.xpose.msra.mxu0 0.0
        %1701 = vmatprep.subr.mxu0 0.0
        %1702 = vmatpush1.xpose.msra.mxu0 0.0
        %1703 = vmatprep.subr.mxu0 0.0
        %1704 = vmatpush1.xpose.msra.mxu0 0.0
        %1705 = vmatprep.subr.mxu0 0.0
        %1706 = vmatpush1.xpose.msra.mxu0 0.0
        %1707 = vmatprep.subr.mxu0 0.0
        %1708 = vmatpush1.xpose.msra.mxu0 0.0
        %1709 = vmatprep.subr.mxu0 0.0
        %1710 = vmatpush1.xpose.msra.mxu0 0.0
        %1711 = vmatprep.subr.mxu0 0.0
        %1712 = vmatpush1.xpose.msra.mxu0 0.0
        %1713 = vmatprep.subr.mxu0 0.0
        %1714 = vmatpush1.xpose.msra.mxu0 0.0
        %1715 = vmatprep.subr.mxu0 0.0
        %1716 = vmatpush1.xpose.msra.mxu0 0.0
        %1717 = vmatprep.subr.mxu0 0.0
        %1718 = vmatpush1.xpose.msra.mxu0 0.0
        %1719 = vmatprep.subr.mxu0 0.0
        %1720 = vmatpush1.xpose.msra.mxu0 0.0
        %1721 = vmatprep.subr.mxu0 0.0
        %1722 = vmatpush1.xpose.msra.mxu0 0.0
        %1723 = vmatprep.subr.mxu0 0.0
        %1724 = vmatpush1.xpose.msra.mxu0 0.0
        %1725 = vmatprep.subr.mxu0 0.0
        %1726 = vmatpush1.xpose.msra.mxu0 0.0
        %1727 = vmatprep.subr.mxu0 0.0
        %1728 = vmatpush1.xpose.msra.mxu0 0.0
        %1729 = vmatprep.subr.mxu0 0.0
        %1730 = vmatpush1.xpose.msra.mxu0 0.0
        %1731 = vmatprep.subr.mxu0 0.0
        %1732 = vmatpush1.xpose.msra.mxu0 0.0
        %1733 = vmatprep.subr.mxu0 0.0
        %1734 = vmatpush1.xpose.msra.mxu0 0.0
        %1735 = vmatprep.subr.mxu0 0.0
        %1736 = vmatpush1.xpose.msra.mxu0 0.0
        %1737 = vmatprep.subr.mxu0 0.0
        %1738 = vmatpush1.xpose.msra.mxu0 0.0
        %1739 = vmatprep.subr.mxu0 0.0
        %1740 = vmatpush1.xpose.msra.mxu0 0.0
        %1741 = vmatprep.subr.mxu0 0.0
        %1742 = vmatpush1.xpose.msra.mxu0 0.0
        %1743 = vmatprep.subr.mxu0 0.0
        %1744 = vmatpush1.xpose.msra.mxu0 0.0
        %1745 = vmatprep.subr.mxu0 0.0
        %1746 = vmatpush1.xpose.msra.mxu0 0.0
        %1747 = vmatprep.subr.mxu0 0.0
        %1748 = vmatpush1.xpose.msra.mxu0 0.0
        %1749 = vmatprep.subr.mxu0 0.0
        %1750 = vmatpush1.xpose.msra.mxu0 0.0
        %1751 = vmatprep.mubr.f32.mxu0 0.0
        %1752 = vmatmul.mubr.f32.gmra.mrb[0].mxu0 %v1679
        %v1753 = vpop.f32.mrb[0].mxu0
        %v1754 = vadd.f32 0.0, %v1753
        %v1755 = vpop.f32.mrb[0].mxu0
        %1756 = vmatprep.mubr.f32.mxu0 0.0
        %1757 = vmatmul.mubr.f32.gmra.mrb[0].mxu0 %v1681
        %v1758 = vpop.f32.mrb[0].mxu0
        %v1759 = vadd.f32 0.0, %v1758
        %v1760 = vpop.f32.mrb[0].mxu0
        %1761 = vdwg.mxu0
        %v1762 = vsel %vm1562, %v1754, -inf
        %1763 = vmax.xlane.f32.xlu0 %v1762
        %v1764 = vpop.xlane.xlu0 %1763
        %v1765 = vsel %vm1566, %v1759, -inf
        %1766 = vmax.xlane.f32.xlu0 %v1765
        %v1767 = vpop.xlane.xlu0 %1766
        %v1768 = vsub.f32 %v1754, %v1764
        %v1769 = vsub.f32 %v1759, %v1767
        %v1770 = vmul.f32 %v1768, 1.442695
        %v1771 = vpow.pop %v1770
        %v1772 = vmul.f32 %v1769, 1.442695
        %v1773 = vpow.pop %v1772
        %v1774 = vsel %vm1562, %v1771, 0.0
        %1775 = vadd.xlane.f32.xlu0 %v1774
        %v1776 = vpop.xlane.xlu0 %1775
        %v1777 = vsel %vm1566, %v1773, 0.0
        %1778 = vadd.xlane.f32.xlu0 %v1777
        %v1779 = vpop.xlane.xlu0 %1778
        %v1780 = vrcp.pop %v1776
        %v1781 = vrcp.pop %v1779
        %v1782 = vmul.f32 %v1771, %v1780
        %v1783 = vmul.f32 %v1773, %v1781
        %1785 = vrot.lane.b32.xlu0 %v1464, 120
        %v1786 = vpop.permute.xlu0 %1785
        %1787 = vrot.lane.b32.xlu0 %v1470, 120
        %v1788 = vpop.permute.xlu0 %1787
        %v1791 = vsel %vm1562, %v1782, 0
        %v1794 = vsel %vm1562, %v1783, 0
        %v1796 = vsel %vm1592, %v1788, 0
        %1798 = vmatprep.subr.mxu0 0.0
        %1799 = vmatpush1.msra.mxu0 %v1786
        %1800 = vmatprep.subr.mxu0 0.0
        %1801 = vmatpush1.msra.mxu0 %v1796
        %1802 = vmatprep.subr.mxu0 0.0
        %1803 = vmatpush1.msra.mxu0 0.0
        %1804 = vmatprep.subr.mxu0 0.0
        %1805 = vmatpush1.msra.mxu0 0.0
        %1806 = vmatprep.subr.mxu0 0.0
        %1807 = vmatpush1.msra.mxu0 0.0
        %1808 = vmatprep.subr.mxu0 0.0
        %1809 = vmatpush1.msra.mxu0 0.0
        %1810 = vmatprep.subr.mxu0 0.0
        %1811 = vmatpush1.msra.mxu0 0.0
        %1812 = vmatprep.subr.mxu0 0.0
        %1813 = vmatpush1.msra.mxu0 0.0
        %1814 = vmatprep.subr.mxu0 0.0
        %1815 = vmatpush1.msra.mxu0 0.0
        %1816 = vmatprep.subr.mxu0 0.0
        %1817 = vmatpush1.msra.mxu0 0.0
        %1818 = vmatprep.subr.mxu0 0.0
        %1819 = vmatpush1.msra.mxu0 0.0
        %1820 = vmatprep.subr.mxu0 0.0
        %1821 = vmatpush1.msra.mxu0 0.0
        %1822 = vmatprep.subr.mxu0 0.0
        %1823 = vmatpush1.msra.mxu0 0.0
        %1824 = vmatprep.subr.mxu0 0.0
        %1825 = vmatpush1.msra.mxu0 0.0
        %1826 = vmatprep.subr.mxu0 0.0
        %1827 = vmatpush1.msra.mxu0 0.0
        %1828 = vmatprep.subr.mxu0 0.0
        %1829 = vmatpush1.msra.mxu0 0.0
        %1830 = vmatprep.subr.mxu0 0.0
        %1831 = vmatpush1.msra.mxu0 0.0
        %1832 = vmatprep.subr.mxu0 0.0
        %1833 = vmatpush1.msra.mxu0 0.0
        %1834 = vmatprep.subr.mxu0 0.0
        %1835 = vmatpush1.msra.mxu0 0.0
        %1836 = vmatprep.subr.mxu0 0.0
        %1837 = vmatpush1.msra.mxu0 0.0
        %1838 = vmatprep.subr.mxu0 0.0
        %1839 = vmatpush1.msra.mxu0 0.0
        %1840 = vmatprep.subr.mxu0 0.0
        %1841 = vmatpush1.msra.mxu0 0.0
        %1842 = vmatprep.subr.mxu0 0.0
        %1843 = vmatpush1.msra.mxu0 0.0
        %1844 = vmatprep.subr.mxu0 0.0
        %1845 = vmatpush1.msra.mxu0 0.0
        %1846 = vmatprep.subr.mxu0 0.0
        %1847 = vmatpush1.msra.mxu0 0.0
        %1848 = vmatprep.subr.mxu0 0.0
        %1849 = vmatpush1.msra.mxu0 0.0
        %1850 = vmatprep.subr.mxu0 0.0
        %1851 = vmatpush1.msra.mxu0 0.0
        %1852 = vmatprep.subr.mxu0 0.0
        %1853 = vmatpush1.msra.mxu0 0.0
        %1854 = vmatprep.subr.mxu0 0.0
        %1855 = vmatpush1.msra.mxu0 0.0
        %1856 = vmatprep.subr.mxu0 0.0
        %1857 = vmatpush1.msra.mxu0 0.0
        %1858 = vmatprep.subr.mxu0 0.0
        %1859 = vmatpush1.msra.mxu0 0.0
        %1860 = vmatprep.subr.mxu0 0.0
        %1861 = vmatpush1.msra.mxu0 0.0
        %1862 = vmatprep.mubr.f32.mxu0 0.0
        %1863 = vmatmul.mubr.f32.gmra.mrb[0].mxu0 %v1791
        %v1864 = vpop.f32.mrb[0].mxu0
        %v1865 = vadd.f32 0.0, %v1864
        %v1866 = vpop.f32.mrb[0].mxu0
        %1867 = vmatprep.mubr.f32.mxu0 0.0
        %1868 = vmatmul.mubr.f32.gmra.mrb[0].mxu0 %v1794
        %v1869 = vpop.f32.mrb[0].mxu0
        %v1870 = vadd.f32 0.0, %v1869
        %v1871 = vpop.f32.mrb[0].mxu0
        %1872 = vdwg.mxu0
        %1873 = vrot.lane.b32.xlu0 %v1462, 112
        %v1874 = vpop.permute.xlu0 %1873
        %1875 = vrot.lane.b32.xlu0 %v1468, 112
        %v1876 = vpop.permute.xlu0 %1875
        %1877 = vrot.lane.b32.xlu0 %v1462, 48
        %v1878 = vpop.permute.xlu0 %1877
        %1879 = vrot.lane.b32.xlu0 %v1468, 48
        %v1880 = vpop.permute.xlu0 %1879
        %v1881 = vsel %vm1478, %v1874, 0
        %v1883 = vsel %vm1478, %v1876, 0
        %v1885 = vsel %vm1478, %v1878, 0
        %v1887 = vsel %vm1478, %v1880, 0
        %1889 = vmatprep.subr.mxu0 0.0
        %1890 = vmatpush1.xpose.msra.mxu0 %v1885
        %1891 = vmatprep.subr.mxu0 0.0
        %1892 = vmatpush1.xpose.msra.mxu0 %v1887
        %1893 = vmatprep.subr.mxu0 0.0
        %1894 = vmatpush1.xpose.msra.mxu0 0.0
        %1895 = vmatprep.subr.mxu0 0.0
        %1896 = vmatpush1.xpose.msra.mxu0 0.0
        %1897 = vmatprep.subr.mxu0 0.0
        %1898 = vmatpush1.xpose.msra.mxu0 0.0
        %1899 = vmatprep.subr.mxu0 0.0
        %1900 = vmatpush1.xpose.msra.mxu0 0.0
        %1901 = vmatprep.subr.mxu0 0.0
        %1902 = vmatpush1.xpose.msra.mxu0 0.0
        %1903 = vmatprep.subr.mxu0 0.0
        %1904 = vmatpush1.xpose.msra.mxu0 0.0
        %1905 = vmatprep.subr.mxu0 0.0
        %1906 = vmatpush1.xpose.msra.mxu0 0.0
        %1907 = vmatprep.subr.mxu0 0.0
        %1908 = vmatpush1.xpose.msra.mxu0 0.0
        %1909 = vmatprep.subr.mxu0 0.0
        %1910 = vmatpush1.xpose.msra.mxu0 0.0
        %1911 = vmatprep.subr.mxu0 0.0
        %1912 = vmatpush1.xpose.msra.mxu0 0.0
        %1913 = vmatprep.subr.mxu0 0.0
        %1914 = vmatpush1.xpose.msra.mxu0 0.0
        %1915 = vmatprep.subr.mxu0 0.0
        %1916 = vmatpush1.xpose.msra.mxu0 0.0
        %1917 = vmatprep.subr.mxu0 0.0
        %1918 = vmatpush1.xpose.msra.mxu0 0.0
        %1919 = vmatprep.subr.mxu0 0.0
        %1920 = vmatpush1.xpose.msra.mxu0 0.0
        %1921 = vmatprep.subr.mxu0 0.0
        %1922 = vmatpush1.xpose.msra.mxu0 0.0
        %1923 = vmatprep.subr.mxu0 0.0
        %1924 = vmatpush1.xpose.msra.mxu0 0.0
        %1925 = vmatprep.subr.mxu0 0.0
        %1926 = vmatpush1.xpose.msra.mxu0 0.0
        %1927 = vmatprep.subr.mxu0 0.0
        %1928 = vmatpush1.xpose.msra.mxu0 0.0
        %1929 = vmatprep.subr.mxu0 0.0
        %1930 = vmatpush1.xpose.msra.mxu0 0.0
        %1931 = vmatprep.subr.mxu0 0.0
        %1932 = vmatpush1.xpose.msra.mxu0 0.0
        %1933 = vmatprep.subr.mxu0 0.0
        %1934 = vmatpush1.xpose.msra.mxu0 0.0
        %1935 = vmatprep.subr.mxu0 0.0
        %1936 = vmatpush1.xpose.msra.mxu0 0.0
        %1937 = vmatprep.subr.mxu0 0.0
        %1938 = vmatpush1.xpose.msra.mxu0 0.0
        %1939 = vmatprep.subr.mxu0 0.0
        %1940 = vmatpush1.xpose.msra.mxu0 0.0
        %1941 = vmatprep.subr.mxu0 0.0
        %1942 = vmatpush1.xpose.msra.mxu0 0.0
        %1943 = vmatprep.subr.mxu0 0.0
        %1944 = vmatpush1.xpose.msra.mxu0 0.0
        %1945 = vmatprep.subr.mxu0 0.0
        %1946 = vmatpush1.xpose.msra.mxu0 0.0
        %1947 = vmatprep.subr.mxu0 0.0
        %1948 = vmatpush1.xpose.msra.mxu0 0.0
        %1949 = vmatprep.subr.mxu0 0.0
        %1950 = vmatpush1.xpose.msra.mxu0 0.0
        %1951 = vmatprep.subr.mxu0 0.0
        %1952 = vmatpush1.xpose.msra.mxu0 0.0
        %1953 = vmatprep.mubr.f32.mxu0 0.0
        %1954 = vmatmul.mubr.f32.gmra.mrb[0].mxu0 %v1881
        %v1955 = vpop.f32.mrb[0].mxu0
        %v1956 = vadd.f32 0.0, %v1955
        %v1957 = vpop.f32.mrb[0].mxu0
        %1958 = vmatprep.mubr.f32.mxu0 0.0
        %1959 = vmatmul.mubr.f32.gmra.mrb[0].mxu0 %v1883
        %v1960 = vpop.f32.mrb[0].mxu0
        %v1961 = vadd.f32 0.0, %v1960
        %v1962 = vpop.f32.mrb[0].mxu0
        %1963 = vdwg.mxu0
        %v1964 = vsel %vm1562, %v1956, -inf
        %1965 = vmax.xlane.f32.xlu0 %v1964
        %v1966 = vpop.xlane.xlu0 %1965
        %v1967 = vsel %vm1566, %v1961, -inf
        %1968 = vmax.xlane.f32.xlu0 %v1967
        %v1969 = vpop.xlane.xlu0 %1968
        %v1970 = vsub.f32 %v1956, %v1966
        %v1971 = vsub.f32 %v1961, %v1969
        %v1972 = vmul.f32 %v1970, 1.442695
        %v1973 = vpow.pop %v1972
        %v1974 = vmul.f32 %v1971, 1.442695
        %v1975 = vpow.pop %v1974
        %v1976 = vsel %vm1562, %v1973, 0.0
        %1977 = vadd.xlane.f32.xlu0 %v1976
        %v1978 = vpop.xlane.xlu0 %1977
        %v1979 = vsel %vm1566, %v1975, 0.0
        %1980 = vadd.xlane.f32.xlu0 %v1979
        %v1981 = vpop.xlane.xlu0 %1980
        %v1982 = vrcp.pop %v1978
        %v1983 = vrcp.pop %v1981
        %v1984 = vmul.f32 %v1973, %v1982
        %v1985 = vmul.f32 %v1975, %v1983
        %1986 = vrot.lane.b32.xlu0 %v1464, 112
        %v1987 = vpop.permute.xlu0 %1986
        %1988 = vrot.lane.b32.xlu0 %v1470, 112
        %v1989 = vpop.permute.xlu0 %1988
        %v1992 = vsel %vm1562, %v1984, 0
        %v1995 = vsel %vm1562, %v1985, 0
        %v1997 = vsel %vm1592, %v1989, 0
        %1999 = vmatprep.subr.mxu0 0.0
        %2000 = vmatpush1.msra.mxu0 %v1987
        %2001 = vmatprep.subr.mxu0 0.0
        %2002 = vmatpush1.msra.mxu0 %v1997
        %2003 = vmatprep.subr.mxu0 0.0
        %2004 = vmatpush1.msra.mxu0 0.0
        %2005 = vmatprep.subr.mxu0 0.0
        %2006 = vmatpush1.msra.mxu0 0.0
        %2007 = vmatprep.subr.mxu0 0.0
        %2008 = vmatpush1.msra.mxu0 0.0
        %2009 = vmatprep.subr.mxu0 0.0
        %2010 = vmatpush1.msra.mxu0 0.0
        %2011 = vmatprep.subr.mxu0 0.0
        %2012 = vmatpush1.msra.mxu0 0.0
        %2013 = vmatprep.subr.mxu0 0.0
        %2014 = vmatpush1.msra.mxu0 0.0
        %2015 = vmatprep.subr.mxu0 0.0
        %2016 = vmatpush1.msra.mxu0 0.0
        %2017 = vmatprep.subr.mxu0 0.0
        %2018 = vmatpush1.msra.mxu0 0.0
        %2019 = vmatprep.subr.mxu0 0.0
        %2020 = vmatpush1.msra.mxu0 0.0
        %2021 = vmatprep.subr.mxu0 0.0
        %2022 = vmatpush1.msra.mxu0 0.0
        %2023 = vmatprep.subr.mxu0 0.0
        %2024 = vmatpush1.msra.mxu0 0.0
        %2025 = vmatprep.subr.mxu0 0.0
        %2026 = vmatpush1.msra.mxu0 0.0
        %2027 = vmatprep.subr.mxu0 0.0
        %2028 = vmatpush1.msra.mxu0 0.0
        %2029 = vmatprep.subr.mxu0 0.0
        %2030 = vmatpush1.msra.mxu0 0.0
        %2031 = vmatprep.subr.mxu0 0.0
        %2032 = vmatpush1.msra.mxu0 0.0
        %2033 = vmatprep.subr.mxu0 0.0
        %2034 = vmatpush1.msra.mxu0 0.0
        %2035 = vmatprep.subr.mxu0 0.0
        %2036 = vmatpush1.msra.mxu0 0.0
        %2037 = vmatprep.subr.mxu0 0.0
        %2038 = vmatpush1.msra.mxu0 0.0
        %2039 = vmatprep.subr.mxu0 0.0
        %2040 = vmatpush1.msra.mxu0 0.0
        %2041 = vmatprep.subr.mxu0 0.0
        %2042 = vmatpush1.msra.mxu0 0.0
        %2043 = vmatprep.subr.mxu0 0.0
        %2044 = vmatpush1.msra.mxu0 0.0
        %2045 = vmatprep.subr.mxu0 0.0
        %2046 = vmatpush1.msra.mxu0 0.0
        %2047 = vmatprep.subr.mxu0 0.0
        %2048 = vmatpush1.msra.mxu0 0.0
        %2049 = vmatprep.subr.mxu0 0.0
        %2050 = vmatpush1.msra.mxu0 0.0
        %2051 = vmatprep.subr.mxu0 0.0
        %2052 = vmatpush1.msra.mxu0 0.0
        %2053 = vmatprep.subr.mxu0 0.0
        %2054 = vmatpush1.msra.mxu0 0.0
        %2055 = vmatprep.subr.mxu0 0.0
        %2056 = vmatpush1.msra.mxu0 0.0
        %2057 = vmatprep.subr.mxu0 0.0
        %2058 = vmatpush1.msra.mxu0 0.0
        %2059 = vmatprep.subr.mxu0 0.0
        %2060 = vmatpush1.msra.mxu0 0.0
        %2061 = vmatprep.subr.mxu0 0.0
        %2062 = vmatpush1.msra.mxu0 0.0
        %2063 = vmatprep.mubr.f32.mxu0 0.0
        %2064 = vmatmul.mubr.f32.gmra.mrb[0].mxu0 %v1992
        %v2065 = vpop.f32.mrb[0].mxu0
        %v2066 = vadd.f32 0.0, %v2065
        %v2067 = vpop.f32.mrb[0].mxu0
        %2068 = vmatprep.mubr.f32.mxu0 0.0
        %2069 = vmatmul.mubr.f32.gmra.mrb[0].mxu0 %v1995
        %v2070 = vpop.f32.mrb[0].mxu0
        %v2071 = vadd.f32 0.0, %v2070
        %v2072 = vpop.f32.mrb[0].mxu0
        %2073 = vdwg.mxu0
        %2074 = vrot.lane.b32.xlu0 %v1462, 104
        %v2075 = vpop.permute.xlu0 %2074
        %2076 = vrot.lane.b32.xlu0 %v1468, 104
        %v2077 = vpop.permute.xlu0 %2076
        %2078 = vrot.lane.b32.xlu0 %v1462, 40
        %v2079 = vpop.permute.xlu0 %2078
        %2080 = vrot.lane.b32.xlu0 %v1468, 40
        %v2081 = vpop.permute.xlu0 %2080
        %v2082 = vsel %vm1478, %v2075, 0
        %v2084 = vsel %vm1478, %v2077, 0
        %v2086 = vsel %vm1478, %v2079, 0
        %v2088 = vsel %vm1478, %v2081, 0
        %2090 = vmatprep.subr.mxu0 0.0
        %2091 = vmatpush1.xpose.msra.mxu0 %v2086
        %2092 = vmatprep.subr.mxu0 0.0
        %2093 = vmatpush1.xpose.msra.mxu0 %v2088
        %2094 = vmatprep.subr.mxu0 0.0
        %2095 = vmatpush1.xpose.msra.mxu0 0.0
        %2096 = vmatprep.subr.mxu0 0.0
        %2097 = vmatpush1.xpose.msra.mxu0 0.0
        %2098 = vmatprep.subr.mxu0 0.0
        %2099 = vmatpush1.xpose.msra.mxu0 0.0
        %2100 = vmatprep.subr.mxu0 0.0
        %2101 = vmatpush1.xpose.msra.mxu0 0.0
        %2102 = vmatprep.subr.mxu0 0.0
        %2103 = vmatpush1.xpose.msra.mxu0 0.0
        %2104 = vmatprep.subr.mxu0 0.0
        %2105 = vmatpush1.xpose.msra.mxu0 0.0
        %2106 = vmatprep.subr.mxu0 0.0
        %2107 = vmatpush1.xpose.msra.mxu0 0.0
        %2108 = vmatprep.subr.mxu0 0.0
        %2109 = vmatpush1.xpose.msra.mxu0 0.0
        %2110 = vmatprep.subr.mxu0 0.0
        %2111 = vmatpush1.xpose.msra.mxu0 0.0
        %2112 = vmatprep.subr.mxu0 0.0
        %2113 = vmatpush1.xpose.msra.mxu0 0.0
        %2114 = vmatprep.subr.mxu0 0.0
        %2115 = vmatpush1.xpose.msra.mxu0 0.0
        %2116 = vmatprep.subr.mxu0 0.0
        %2117 = vmatpush1.xpose.msra.mxu0 0.0
        %2118 = vmatprep.subr.mxu0 0.0
        %2119 = vmatpush1.xpose.msra.mxu0 0.0
        %2120 = vmatprep.subr.mxu0 0.0
        %2121 = vmatpush1.xpose.msra.mxu0 0.0
        %2122 = vmatprep.subr.mxu0 0.0
        %2123 = vmatpush1.xpose.msra.mxu0 0.0
        %2124 = vmatprep.subr.mxu0 0.0
        %2125 = vmatpush1.xpose.msra.mxu0 0.0
        %2126 = vmatprep.subr.mxu0 0.0
        %2127 = vmatpush1.xpose.msra.mxu0 0.0
        %2128 = vmatprep.subr.mxu0 0.0
        %2129 = vmatpush1.xpose.msra.mxu0 0.0
        %2130 = vmatprep.subr.mxu0 0.0
        %2131 = vmatpush1.xpose.msra.mxu0 0.0
        %2132 = vmatprep.subr.mxu0 0.0
        %2133 = vmatpush1.xpose.msra.mxu0 0.0
        %2134 = vmatprep.subr.mxu0 0.0
        %2135 = vmatpush1.xpose.msra.mxu0 0.0
        %2136 = vmatprep.subr.mxu0 0.0
        %2137 = vmatpush1.xpose.msra.mxu0 0.0
        %2138 = vmatprep.subr.mxu0 0.0
        %2139 = vmatpush1.xpose.msra.mxu0 0.0
        %2140 = vmatprep.subr.mxu0 0.0
        %2141 = vmatpush1.xpose.msra.mxu0 0.0
        %2142 = vmatprep.subr.mxu0 0.0
        %2143 = vmatpush1.xpose.msra.mxu0 0.0
        %2144 = vmatprep.subr.mxu0 0.0
        %2145 = vmatpush1.xpose.msra.mxu0 0.0
        %2146 = vmatprep.subr.mxu0 0.0
        %2147 = vmatpush1.xpose.msra.mxu0 0.0
        %2148 = vmatprep.subr.mxu0 0.0
        %2149 = vmatpush1.xpose.msra.mxu0 0.0
        %2150 = vmatprep.subr.mxu0 0.0
        %2151 = vmatpush1.xpose.msra.mxu0 0.0
        %2152 = vmatprep.subr.mxu0 0.0
        %2153 = vmatpush1.xpose.msra.mxu0 0.0
        %2154 = vmatprep.mubr.f32.mxu0 0.0
        %2155 = vmatmul.mubr.f32.gmra.mrb[0].mxu0 %v2082
        %v2156 = vpop.f32.mrb[0].mxu0
        %v2157 = vadd.f32 0.0, %v2156
        %v2158 = vpop.f32.mrb[0].mxu0
        %2159 = vmatprep.mubr.f32.mxu0 0.0
        %2160 = vmatmul.mubr.f32.gmra.mrb[0].mxu0 %v2084
        %v2161 = vpop.f32.mrb[0].mxu0
        %v2162 = vadd.f32 0.0, %v2161
        %v2163 = vpop.f32.mrb[0].mxu0
        %2164 = vdwg.mxu0
        %v2165 = vsel %vm1562, %v2157, -inf
        %2166 = vmax.xlane.f32.xlu0 %v2165
        %v2167 = vpop.xlane.xlu0 %2166
        %v2168 = vsel %vm1566, %v2162, -inf
        %2169 = vmax.xlane.f32.xlu0 %v2168
        %v2170 = vpop.xlane.xlu0 %2169
        %v2171 = vsub.f32 %v2157, %v2167
        %v2172 = vsub.f32 %v2162, %v2170
        %v2173 = vmul.f32 %v2171, 1.442695
        %v2174 = vpow.pop %v2173
        %v2175 = vmul.f32 %v2172, 1.442695
        %v2176 = vpow.pop %v2175
        %v2177 = vsel %vm1562, %v2174, 0.0
        %2178 = vadd.xlane.f32.xlu0 %v2177
        %v2179 = vpop.xlane.xlu0 %2178
        %v2180 = vsel %vm1566, %v2176, 0.0
        %2181 = vadd.xlane.f32.xlu0 %v2180
        %v2182 = vpop.xlane.xlu0 %2181
        %v2183 = vrcp.pop %v2179
        %v2184 = vrcp.pop %v2182
        %v2185 = vmul.f32 %v2174, %v2183
        %v2186 = vmul.f32 %v2176, %v2184
        %2187 = vrot.lane.b32.xlu0 %v1464, 104
        %v2188 = vpop.permute.xlu0 %2187
        %2189 = vrot.lane.b32.xlu0 %v1470, 104
        %v2190 = vpop.permute.xlu0 %2189
        %v2193 = vsel %vm1562, %v2185, 0
        %v2196 = vsel %vm1562, %v2186, 0
        %v2198 = vsel %vm1592, %v2190, 0
        %2200 = vmatprep.subr.mxu0 0.0
        %2201 = vmatpush1.msra.mxu0 %v2188
        %2202 = vmatprep.subr.mxu0 0.0
        %2203 = vmatpush1.msra.mxu0 %v2198
        %2204 = vmatprep.subr.mxu0 0.0
        %2205 = vmatpush1.msra.mxu0 0.0
        %2206 = vmatprep.subr.mxu0 0.0
        %2207 = vmatpush1.msra.mxu0 0.0
        %2208 = vmatprep.subr.mxu0 0.0
        %2209 = vmatpush1.msra.mxu0 0.0
        %2210 = vmatprep.subr.mxu0 0.0
        %2211 = vmatpush1.msra.mxu0 0.0
        %2212 = vmatprep.subr.mxu0 0.0
        %2213 = vmatpush1.msra.mxu0 0.0
        %2214 = vmatprep.subr.mxu0 0.0
        %2215 = vmatpush1.msra.mxu0 0.0
        %2216 = vmatprep.subr.mxu0 0.0
        %2217 = vmatpush1.msra.mxu0 0.0
        %2218 = vmatprep.subr.mxu0 0.0
        %2219 = vmatpush1.msra.mxu0 0.0
        %2220 = vmatprep.subr.mxu0 0.0
        %2221 = vmatpush1.msra.mxu0 0.0
        %2222 = vmatprep.subr.mxu0 0.0
        %2223 = vmatpush1.msra.mxu0 0.0
        %2224 = vmatprep.subr.mxu0 0.0
        %2225 = vmatpush1.msra.mxu0 0.0
        %2226 = vmatprep.subr.mxu0 0.0
        %2227 = vmatpush1.msra.mxu0 0.0
        %2228 = vmatprep.subr.mxu0 0.0
        %2229 = vmatpush1.msra.mxu0 0.0
        %2230 = vmatprep.subr.mxu0 0.0
        %2231 = vmatpush1.msra.mxu0 0.0
        %2232 = vmatprep.subr.mxu0 0.0
        %2233 = vmatpush1.msra.mxu0 0.0
        %2234 = vmatprep.subr.mxu0 0.0
        %2235 = vmatpush1.msra.mxu0 0.0
        %2236 = vmatprep.subr.mxu0 0.0
        %2237 = vmatpush1.msra.mxu0 0.0
        %2238 = vmatprep.subr.mxu0 0.0
        %2239 = vmatpush1.msra.mxu0 0.0
        %2240 = vmatprep.subr.mxu0 0.0
        %2241 = vmatpush1.msra.mxu0 0.0
        %2242 = vmatprep.subr.mxu0 0.0
        %2243 = vmatpush1.msra.mxu0 0.0
        %2244 = vmatprep.subr.mxu0 0.0
        %2245 = vmatpush1.msra.mxu0 0.0
        %2246 = vmatprep.subr.mxu0 0.0
        %2247 = vmatpush1.msra.mxu0 0.0
        %2248 = vmatprep.subr.mxu0 0.0
        %2249 = vmatpush1.msra.mxu0 0.0
        %2250 = vmatprep.subr.mxu0 0.0
        %2251 = vmatpush1.msra.mxu0 0.0
        %2252 = vmatprep.subr.mxu0 0.0
        %2253 = vmatpush1.msra.mxu0 0.0
        %2254 = vmatprep.subr.mxu0 0.0
        %2255 = vmatpush1.msra.mxu0 0.0
        %2256 = vmatprep.subr.mxu0 0.0
        %2257 = vmatpush1.msra.mxu0 0.0
        %2258 = vmatprep.subr.mxu0 0.0
        %2259 = vmatpush1.msra.mxu0 0.0
        %2260 = vmatprep.subr.mxu0 0.0
        %2261 = vmatpush1.msra.mxu0 0.0
        %2262 = vmatprep.subr.mxu0 0.0
        %2263 = vmatpush1.msra.mxu0 0.0
        %2264 = vmatprep.mubr.f32.mxu0 0.0
        %2265 = vmatmul.mubr.f32.gmra.mrb[0].mxu0 %v2193
        %v2266 = vpop.f32.mrb[0].mxu0
        %v2267 = vadd.f32 0.0, %v2266
        %v2268 = vpop.f32.mrb[0].mxu0
        %2269 = vmatprep.mubr.f32.mxu0 0.0
        %2270 = vmatmul.mubr.f32.gmra.mrb[0].mxu0 %v2196
        %v2271 = vpop.f32.mrb[0].mxu0
        %v2272 = vadd.f32 0.0, %v2271
        %v2273 = vpop.f32.mrb[0].mxu0
        %2274 = vdwg.mxu0
        %2275 = vrot.lane.b32.xlu0 %v1462, 96
        %v2276 = vpop.permute.xlu0 %2275
        %2277 = vrot.lane.b32.xlu0 %v1468, 96
        %v2278 = vpop.permute.xlu0 %2277
        %2279 = vrot.lane.b32.xlu0 %v1462, 32
        %v2280 = vpop.permute.xlu0 %2279
        %2281 = vrot.lane.b32.xlu0 %v1468, 32
        %v2282 = vpop.permute.xlu0 %2281
        %v2283 = vsel %vm1478, %v2276, 0
        %v2285 = vsel %vm1478, %v2278, 0
        %v2287 = vsel %vm1478, %v2280, 0
        %v2289 = vsel %vm1478, %v2282, 0
        %2291 = vmatprep.subr.mxu0 0.0
        %2292 = vmatpush1.xpose.msra.mxu0 %v2287
        %2293 = vmatprep.subr.mxu0 0.0
        %2294 = vmatpush1.xpose.msra.mxu0 %v2289
        %2295 = vmatprep.subr.mxu0 0.0
        %2296 = vmatpush1.xpose.msra.mxu0 0.0
        %2297 = vmatprep.subr.mxu0 0.0
        %2298 = vmatpush1.xpose.msra.mxu0 0.0
        %2299 = vmatprep.subr.mxu0 0.0
        %2300 = vmatpush1.xpose.msra.mxu0 0.0
        %2301 = vmatprep.subr.mxu0 0.0
        %2302 = vmatpush1.xpose.msra.mxu0 0.0
        %2303 = vmatprep.subr.mxu0 0.0
        %2304 = vmatpush1.xpose.msra.mxu0 0.0
        %2305 = vmatprep.subr.mxu0 0.0
        %2306 = vmatpush1.xpose.msra.mxu0 0.0
        %2307 = vmatprep.subr.mxu0 0.0
        %2308 = vmatpush1.xpose.msra.mxu0 0.0
        %2309 = vmatprep.subr.mxu0 0.0
        %2310 = vmatpush1.xpose.msra.mxu0 0.0
        %2311 = vmatprep.subr.mxu0 0.0
        %2312 = vmatpush1.xpose.msra.mxu0 0.0
        %2313 = vmatprep.subr.mxu0 0.0
        %2314 = vmatpush1.xpose.msra.mxu0 0.0
        %2315 = vmatprep.subr.mxu0 0.0
        %2316 = vmatpush1.xpose.msra.mxu0 0.0
        %2317 = vmatprep.subr.mxu0 0.0
        %2318 = vmatpush1.xpose.msra.mxu0 0.0
        %2319 = vmatprep.subr.mxu0 0.0
        %2320 = vmatpush1.xpose.msra.mxu0 0.0
        %2321 = vmatprep.subr.mxu0 0.0
        %2322 = vmatpush1.xpose.msra.mxu0 0.0
        %2323 = vmatprep.subr.mxu0 0.0
        %2324 = vmatpush1.xpose.msra.mxu0 0.0
        %2325 = vmatprep.subr.mxu0 0.0
        %2326 = vmatpush1.xpose.msra.mxu0 0.0
        %2327 = vmatprep.subr.mxu0 0.0
        %2328 = vmatpush1.xpose.msra.mxu0 0.0
        %2329 = vmatprep.subr.mxu0 0.0
        %2330 = vmatpush1.xpose.msra.mxu0 0.0
        %2331 = vmatprep.subr.mxu0 0.0
        %2332 = vmatpush1.xpose.msra.mxu0 0.0
        %2333 = vmatprep.subr.mxu0 0.0
        %2334 = vmatpush1.xpose.msra.mxu0 0.0
        %2335 = vmatprep.subr.mxu0 0.0
        %2336 = vmatpush1.xpose.msra.mxu0 0.0
        %2337 = vmatprep.subr.mxu0 0.0
        %2338 = vmatpush1.xpose.msra.mxu0 0.0
        %2339 = vmatprep.subr.mxu0 0.0
        %2340 = vmatpush1.xpose.msra.mxu0 0.0
        %2341 = vmatprep.subr.mxu0 0.0
        %2342 = vmatpush1.xpose.msra.mxu0 0.0
        %2343 = vmatprep.subr.mxu0 0.0
        %2344 = vmatpush1.xpose.msra.mxu0 0.0
        %2345 = vmatprep.subr.mxu0 0.0
        %2346 = vmatpush1.xpose.msra.mxu0 0.0
        %2347 = vmatprep.subr.mxu0 0.0
        %2348 = vmatpush1.xpose.msra.mxu0 0.0
        %2349 = vmatprep.subr.mxu0 0.0
        %2350 = vmatpush1.xpose.msra.mxu0 0.0
        %2351 = vmatprep.subr.mxu0 0.0
        %2352 = vmatpush1.xpose.msra.mxu0 0.0
        %2353 = vmatprep.subr.mxu0 0.0
        %2354 = vmatpush1.xpose.msra.mxu0 0.0
        %2355 = vmatprep.mubr.f32.mxu0 0.0
        %2356 = vmatmul.mubr.f32.gmra.mrb[0].mxu0 %v2283
        %v2357 = vpop.f32.mrb[0].mxu0
        %v2358 = vadd.f32 0.0, %v2357
        %v2359 = vpop.f32.mrb[0].mxu0
        %2360 = vmatprep.mubr.f32.mxu0 0.0
        %2361 = vmatmul.mubr.f32.gmra.mrb[0].mxu0 %v2285
        %v2362 = vpop.f32.mrb[0].mxu0
        %v2363 = vadd.f32 0.0, %v2362
        %v2364 = vpop.f32.mrb[0].mxu0
        %2365 = vdwg.mxu0
        %v2366 = vsel %vm1562, %v2358, -inf
        %2367 = vmax.xlane.f32.xlu0 %v2366
        %v2368 = vpop.xlane.xlu0 %2367
        %v2369 = vsel %vm1566, %v2363, -inf
        %2370 = vmax.xlane.f32.xlu0 %v2369
        %v2371 = vpop.xlane.xlu0 %2370
        %v2372 = vsub.f32 %v2358, %v2368
        %v2373 = vsub.f32 %v2363, %v2371
        %v2374 = vmul.f32 %v2372, 1.442695
        %v2375 = vpow.pop %v2374
        %v2376 = vmul.f32 %v2373, 1.442695
        %v2377 = vpow.pop %v2376
        %v2378 = vsel %vm1562, %v2375, 0.0
        %2379 = vadd.xlane.f32.xlu0 %v2378
        %v2380 = vpop.xlane.xlu0 %2379
        %v2381 = vsel %vm1566, %v2377, 0.0
        %2382 = vadd.xlane.f32.xlu0 %v2381
        %v2383 = vpop.xlane.xlu0 %2382
        %v2384 = vrcp.pop %v2380
        %v2385 = vrcp.pop %v2383
        %v2386 = vmul.f32 %v2375, %v2384
        %v2387 = vmul.f32 %v2377, %v2385
        %2388 = vrot.lane.b32.xlu0 %v1464, 96
        %v2389 = vpop.permute.xlu0 %2388
        %2390 = vrot.lane.b32.xlu0 %v1470, 96
        %v2391 = vpop.permute.xlu0 %2390
        %v2394 = vsel %vm1562, %v2386, 0
        %v2397 = vsel %vm1562, %v2387, 0
        %v2399 = vsel %vm1592, %v2391, 0
        %2401 = vmatprep.subr.mxu0 0.0
        %2402 = vmatpush1.msra.mxu0 %v2389
        %2403 = vmatprep.subr.mxu0 0.0
        %2404 = vmatpush1.msra.mxu0 %v2399
        %2405 = vmatprep.subr.mxu0 0.0
        %2406 = vmatpush1.msra.mxu0 0.0
        %2407 = vmatprep.subr.mxu0 0.0
        %2408 = vmatpush1.msra.mxu0 0.0
        %2409 = vmatprep.subr.mxu0 0.0
        %2410 = vmatpush1.msra.mxu0 0.0
        %2411 = vmatprep.subr.mxu0 0.0
        %2412 = vmatpush1.msra.mxu0 0.0
        %2413 = vmatprep.subr.mxu0 0.0
        %2414 = vmatpush1.msra.mxu0 0.0
        %2415 = vmatprep.subr.mxu0 0.0
        %2416 = vmatpush1.msra.mxu0 0.0
        %2417 = vmatprep.subr.mxu0 0.0
        %2418 = vmatpush1.msra.mxu0 0.0
        %2419 = vmatprep.subr.mxu0 0.0
        %2420 = vmatpush1.msra.mxu0 0.0
        %2421 = vmatprep.subr.mxu0 0.0
        %2422 = vmatpush1.msra.mxu0 0.0
        %2423 = vmatprep.subr.mxu0 0.0
        %2424 = vmatpush1.msra.mxu0 0.0
        %2425 = vmatprep.subr.mxu0 0.0
        %2426 = vmatpush1.msra.mxu0 0.0
        %2427 = vmatprep.subr.mxu0 0.0
        %2428 = vmatpush1.msra.mxu0 0.0
        %2429 = vmatprep.subr.mxu0 0.0
        %2430 = vmatpush1.msra.mxu0 0.0
        %2431 = vmatprep.subr.mxu0 0.0
        %2432 = vmatpush1.msra.mxu0 0.0
        %2433 = vmatprep.subr.mxu0 0.0
        %2434 = vmatpush1.msra.mxu0 0.0
        %2435 = vmatprep.subr.mxu0 0.0
        %2436 = vmatpush1.msra.mxu0 0.0
        %2437 = vmatprep.subr.mxu0 0.0
        %2438 = vmatpush1.msra.mxu0 0.0
        %2439 = vmatprep.subr.mxu0 0.0
        %2440 = vmatpush1.msra.mxu0 0.0
        %2441 = vmatprep.subr.mxu0 0.0
        %2442 = vmatpush1.msra.mxu0 0.0
        %2443 = vmatprep.subr.mxu0 0.0
        %2444 = vmatpush1.msra.mxu0 0.0
        %2445 = vmatprep.subr.mxu0 0.0
        %2446 = vmatpush1.msra.mxu0 0.0
        %2447 = vmatprep.subr.mxu0 0.0
        %2448 = vmatpush1.msra.mxu0 0.0
        %2449 = vmatprep.subr.mxu0 0.0
        %2450 = vmatpush1.msra.mxu0 0.0
        %2451 = vmatprep.subr.mxu0 0.0
        %2452 = vmatpush1.msra.mxu0 0.0
        %2453 = vmatprep.subr.mxu0 0.0
        %2454 = vmatpush1.msra.mxu0 0.0
        %2455 = vmatprep.subr.mxu0 0.0
        %2456 = vmatpush1.msra.mxu0 0.0
        %2457 = vmatprep.subr.mxu0 0.0
        %2458 = vmatpush1.msra.mxu0 0.0
        %2459 = vmatprep.subr.mxu0 0.0
        %2460 = vmatpush1.msra.mxu0 0.0
        %2461 = vmatprep.subr.mxu0 0.0
        %2462 = vmatpush1.msra.mxu0 0.0
        %2463 = vmatprep.subr.mxu0 0.0
        %2464 = vmatpush1.msra.mxu0 0.0
        %2465 = vmatprep.mubr.f32.mxu0 0.0
        %2466 = vmatmul.mubr.f32.gmra.mrb[0].mxu0 %v2394
        %v2467 = vpop.f32.mrb[0].mxu0
        %v2468 = vadd.f32 0.0, %v2467
        %v2469 = vpop.f32.mrb[0].mxu0
        %2470 = vmatprep.mubr.f32.mxu0 0.0
        %2471 = vmatmul.mubr.f32.gmra.mrb[0].mxu0 %v2397
        %v2472 = vpop.f32.mrb[0].mxu0
        %v2473 = vadd.f32 0.0, %v2472
        %v2474 = vpop.f32.mrb[0].mxu0
        %2475 = vdwg.mxu0
        %2476 = vrot.lane.b32.xlu0 %v1462, 88
        %v2477 = vpop.permute.xlu0 %2476
        %2478 = vrot.lane.b32.xlu0 %v1468, 88
        %v2479 = vpop.permute.xlu0 %2478
        %2480 = vrot.lane.b32.xlu0 %v1462, 24
        %v2481 = vpop.permute.xlu0 %2480
        %2482 = vrot.lane.b32.xlu0 %v1468, 24
        %v2483 = vpop.permute.xlu0 %2482
        %v2484 = vsel %vm1478, %v2477, 0
        %v2486 = vsel %vm1478, %v2479, 0
        %v2488 = vsel %vm1478, %v2481, 0
        %v2490 = vsel %vm1478, %v2483, 0
        %2492 = vmatprep.subr.mxu0 0.0
        %2493 = vmatpush1.xpose.msra.mxu0 %v2488
        %2494 = vmatprep.subr.mxu0 0.0
        %2495 = vmatpush1.xpose.msra.mxu0 %v2490
        %2496 = vmatprep.subr.mxu0 0.0
        %2497 = vmatpush1.xpose.msra.mxu0 0.0
        %2498 = vmatprep.subr.mxu0 0.0
        %2499 = vmatpush1.xpose.msra.mxu0 0.0
        %2500 = vmatprep.subr.mxu0 0.0
        %2501 = vmatpush1.xpose.msra.mxu0 0.0
        %2502 = vmatprep.subr.mxu0 0.0
        %2503 = vmatpush1.xpose.msra.mxu0 0.0
        %2504 = vmatprep.subr.mxu0 0.0
        %2505 = vmatpush1.xpose.msra.mxu0 0.0
        %2506 = vmatprep.subr.mxu0 0.0
        %2507 = vmatpush1.xpose.msra.mxu0 0.0
        %2508 = vmatprep.subr.mxu0 0.0
        %2509 = vmatpush1.xpose.msra.mxu0 0.0
        %2510 = vmatprep.subr.mxu0 0.0
        %2511 = vmatpush1.xpose.msra.mxu0 0.0
        %2512 = vmatprep.subr.mxu0 0.0
        %2513 = vmatpush1.xpose.msra.mxu0 0.0
        %2514 = vmatprep.subr.mxu0 0.0
        %2515 = vmatpush1.xpose.msra.mxu0 0.0
        %2516 = vmatprep.subr.mxu0 0.0
        %2517 = vmatpush1.xpose.msra.mxu0 0.0
        %2518 = vmatprep.subr.mxu0 0.0
        %2519 = vmatpush1.xpose.msra.mxu0 0.0
        %2520 = vmatprep.subr.mxu0 0.0
        %2521 = vmatpush1.xpose.msra.mxu0 0.0
        %2522 = vmatprep.subr.mxu0 0.0
        %2523 = vmatpush1.xpose.msra.mxu0 0.0
        %2524 = vmatprep.subr.mxu0 0.0
        %2525 = vmatpush1.xpose.msra.mxu0 0.0
        %2526 = vmatprep.subr.mxu0 0.0
        %2527 = vmatpush1.xpose.msra.mxu0 0.0
        %2528 = vmatprep.subr.mxu0 0.0
        %2529 = vmatpush1.xpose.msra.mxu0 0.0
        %2530 = vmatprep.subr.mxu0 0.0
        %2531 = vmatpush1.xpose.msra.mxu0 0.0
        %2532 = vmatprep.subr.mxu0 0.0
        %2533 = vmatpush1.xpose.msra.mxu0 0.0
        %2534 = vmatprep.subr.mxu0 0.0
        %2535 = vmatpush1.xpose.msra.mxu0 0.0
        %2536 = vmatprep.subr.mxu0 0.0
        %2537 = vmatpush1.xpose.msra.mxu0 0.0
        %2538 = vmatprep.subr.mxu0 0.0
        %2539 = vmatpush1.xpose.msra.mxu0 0.0
        %2540 = vmatprep.subr.mxu0 0.0
        %2541 = vmatpush1.xpose.msra.mxu0 0.0
        %2542 = vmatprep.subr.mxu0 0.0
        %2543 = vmatpush1.xpose.msra.mxu0 0.0
        %2544 = vmatprep.subr.mxu0 0.0
        %2545 = vmatpush1.xpose.msra.mxu0 0.0
        %2546 = vmatprep.subr.mxu0 0.0
        %2547 = vmatpush1.xpose.msra.mxu0 0.0
        %2548 = vmatprep.subr.mxu0 0.0
        %2549 = vmatpush1.xpose.msra.mxu0 0.0
        %2550 = vmatprep.subr.mxu0 0.0
        %2551 = vmatpush1.xpose.msra.mxu0 0.0
        %2552 = vmatprep.subr.mxu0 0.0
        %2553 = vmatpush1.xpose.msra.mxu0 0.0
        %2554 = vmatprep.subr.mxu0 0.0
        %2555 = vmatpush1.xpose.msra.mxu0 0.0
        %2556 = vmatprep.mubr.f32.mxu0 0.0
        %2557 = vmatmul.mubr.f32.gmra.mrb[0].mxu0 %v2484
        %v2558 = vpop.f32.mrb[0].mxu0
        %v2559 = vadd.f32 0.0, %v2558
        %v2560 = vpop.f32.mrb[0].mxu0
        %2561 = vmatprep.mubr.f32.mxu0 0.0
        %2562 = vmatmul.mubr.f32.gmra.mrb[0].mxu0 %v2486
        %v2563 = vpop.f32.mrb[0].mxu0
        %v2564 = vadd.f32 0.0, %v2563
        %v2565 = vpop.f32.mrb[0].mxu0
        %2566 = vdwg.mxu0
        %v2567 = vsel %vm1562, %v2559, -inf
        %2568 = vmax.xlane.f32.xlu0 %v2567
        %v2569 = vpop.xlane.xlu0 %2568
        %v2570 = vsel %vm1566, %v2564, -inf
        %2571 = vmax.xlane.f32.xlu0 %v2570
        %v2572 = vpop.xlane.xlu0 %2571
        %v2573 = vsub.f32 %v2559, %v2569
        %v2574 = vsub.f32 %v2564, %v2572
        %v2575 = vmul.f32 %v2573, 1.442695
        %v2576 = vpow.pop %v2575
        %v2577 = vmul.f32 %v2574, 1.442695
        %v2578 = vpow.pop %v2577
        %v2579 = vsel %vm1562, %v2576, 0.0
        %2580 = vadd.xlane.f32.xlu0 %v2579
        %v2581 = vpop.xlane.xlu0 %2580
        %v2582 = vsel %vm1566, %v2578, 0.0
        %2583 = vadd.xlane.f32.xlu0 %v2582
        %v2584 = vpop.xlane.xlu0 %2583
        %v2585 = vrcp.pop %v2581
        %v2586 = vrcp.pop %v2584
        %v2587 = vmul.f32 %v2576, %v2585
        %v2588 = vmul.f32 %v2578, %v2586
        %2589 = vrot.lane.b32.xlu0 %v1464, 88
        %v2590 = vpop.permute.xlu0 %2589
        %2591 = vrot.lane.b32.xlu0 %v1470, 88
        %v2592 = vpop.permute.xlu0 %2591
        %v2595 = vsel %vm1562, %v2587, 0
        %v2598 = vsel %vm1562, %v2588, 0
        %v2600 = vsel %vm1592, %v2592, 0
        %2602 = vmatprep.subr.mxu0 0.0
        %2603 = vmatpush1.msra.mxu0 %v2590
        %2604 = vmatprep.subr.mxu0 0.0
        %2605 = vmatpush1.msra.mxu0 %v2600
        %2606 = vmatprep.subr.mxu0 0.0
        %2607 = vmatpush1.msra.mxu0 0.0
        %2608 = vmatprep.subr.mxu0 0.0
        %2609 = vmatpush1.msra.mxu0 0.0
        %2610 = vmatprep.subr.mxu0 0.0
        %2611 = vmatpush1.msra.mxu0 0.0
        %2612 = vmatprep.subr.mxu0 0.0
        %2613 = vmatpush1.msra.mxu0 0.0
        %2614 = vmatprep.subr.mxu0 0.0
        %2615 = vmatpush1.msra.mxu0 0.0
        %2616 = vmatprep.subr.mxu0 0.0
        %2617 = vmatpush1.msra.mxu0 0.0
        %2618 = vmatprep.subr.mxu0 0.0
        %2619 = vmatpush1.msra.mxu0 0.0
        %2620 = vmatprep.subr.mxu0 0.0
        %2621 = vmatpush1.msra.mxu0 0.0
        %2622 = vmatprep.subr.mxu0 0.0
        %2623 = vmatpush1.msra.mxu0 0.0
        %2624 = vmatprep.subr.mxu0 0.0
        %2625 = vmatpush1.msra.mxu0 0.0
        %2626 = vmatprep.subr.mxu0 0.0
        %2627 = vmatpush1.msra.mxu0 0.0
        %2628 = vmatprep.subr.mxu0 0.0
        %2629 = vmatpush1.msra.mxu0 0.0
        %2630 = vmatprep.subr.mxu0 0.0
        %2631 = vmatpush1.msra.mxu0 0.0
        %2632 = vmatprep.subr.mxu0 0.0
        %2633 = vmatpush1.msra.mxu0 0.0
        %2634 = vmatprep.subr.mxu0 0.0
        %2635 = vmatpush1.msra.mxu0 0.0
        %2636 = vmatprep.subr.mxu0 0.0
        %2637 = vmatpush1.msra.mxu0 0.0
        %2638 = vmatprep.subr.mxu0 0.0
        %2639 = vmatpush1.msra.mxu0 0.0
        %2640 = vmatprep.subr.mxu0 0.0
        %2641 = vmatpush1.msra.mxu0 0.0
        %2642 = vmatprep.subr.mxu0 0.0
        %2643 = vmatpush1.msra.mxu0 0.0
        %2644 = vmatprep.subr.mxu0 0.0
        %2645 = vmatpush1.msra.mxu0 0.0
        %2646 = vmatprep.subr.mxu0 0.0
        %2647 = vmatpush1.msra.mxu0 0.0
        %2648 = vmatprep.subr.mxu0 0.0
        %2649 = vmatpush1.msra.mxu0 0.0
        %2650 = vmatprep.subr.mxu0 0.0
        %2651 = vmatpush1.msra.mxu0 0.0
        %2652 = vmatprep.subr.mxu0 0.0
        %2653 = vmatpush1.msra.mxu0 0.0
        %2654 = vmatprep.subr.mxu0 0.0
        %2655 = vmatpush1.msra.mxu0 0.0
        %2656 = vmatprep.subr.mxu0 0.0
        %2657 = vmatpush1.msra.mxu0 0.0
        %2658 = vmatprep.subr.mxu0 0.0
        %2659 = vmatpush1.msra.mxu0 0.0
        %2660 = vmatprep.subr.mxu0 0.0
        %2661 = vmatpush1.msra.mxu0 0.0
        %2662 = vmatprep.subr.mxu0 0.0
        %2663 = vmatpush1.msra.mxu0 0.0
        %2664 = vmatprep.subr.mxu0 0.0
        %2665 = vmatpush1.msra.mxu0 0.0
        %2666 = vmatprep.mubr.f32.mxu0 0.0
        %2667 = vmatmul.mubr.f32.gmra.mrb[0].mxu0 %v2595
        %v2668 = vpop.f32.mrb[0].mxu0
        %v2669 = vadd.f32 0.0, %v2668
        %v2670 = vpop.f32.mrb[0].mxu0
        %2671 = vmatprep.mubr.f32.mxu0 0.0
        %2672 = vmatmul.mubr.f32.gmra.mrb[0].mxu0 %v2598
        %v2673 = vpop.f32.mrb[0].mxu0
        %v2674 = vadd.f32 0.0, %v2673
        %v2675 = vpop.f32.mrb[0].mxu0
        %2676 = vdwg.mxu0
        %2677 = vrot.lane.b32.xlu0 %v1462, 80
        %v2678 = vpop.permute.xlu0 %2677
        %2679 = vrot.lane.b32.xlu0 %v1468, 80
        %v2680 = vpop.permute.xlu0 %2679
        %2681 = vrot.lane.b32.xlu0 %v1462, 16
        %v2682 = vpop.permute.xlu0 %2681
        %2683 = vrot.lane.b32.xlu0 %v1468, 16
        %v2684 = vpop.permute.xlu0 %2683
        %v2685 = vsel %vm1478, %v2678, 0
        %v2687 = vsel %vm1478, %v2680, 0
        %v2689 = vsel %vm1478, %v2682, 0
        %v2691 = vsel %vm1478, %v2684, 0
        %2693 = vmatprep.subr.mxu0 0.0
        %2694 = vmatpush1.xpose.msra.mxu0 %v2689
        %2695 = vmatprep.subr.mxu0 0.0
        %2696 = vmatpush1.xpose.msra.mxu0 %v2691
        %2697 = vmatprep.subr.mxu0 0.0
        %2698 = vmatpush1.xpose.msra.mxu0 0.0
        %2699 = vmatprep.subr.mxu0 0.0
        %2700 = vmatpush1.xpose.msra.mxu0 0.0
        %2701 = vmatprep.subr.mxu0 0.0
        %2702 = vmatpush1.xpose.msra.mxu0 0.0
        %2703 = vmatprep.subr.mxu0 0.0
        %2704 = vmatpush1.xpose.msra.mxu0 0.0
        %2705 = vmatprep.subr.mxu0 0.0
        %2706 = vmatpush1.xpose.msra.mxu0 0.0
        %2707 = vmatprep.subr.mxu0 0.0
        %2708 = vmatpush1.xpose.msra.mxu0 0.0
        %2709 = vmatprep.subr.mxu0 0.0
        %2710 = vmatpush1.xpose.msra.mxu0 0.0
        %2711 = vmatprep.subr.mxu0 0.0
        %2712 = vmatpush1.xpose.msra.mxu0 0.0
        %2713 = vmatprep.subr.mxu0 0.0
        %2714 = vmatpush1.xpose.msra.mxu0 0.0
        %2715 = vmatprep.subr.mxu0 0.0
        %2716 = vmatpush1.xpose.msra.mxu0 0.0
        %2717 = vmatprep.subr.mxu0 0.0
        %2718 = vmatpush1.xpose.msra.mxu0 0.0
        %2719 = vmatprep.subr.mxu0 0.0
        %2720 = vmatpush1.xpose.msra.mxu0 0.0
        %2721 = vmatprep.subr.mxu0 0.0
        %2722 = vmatpush1.xpose.msra.mxu0 0.0
        %2723 = vmatprep.subr.mxu0 0.0
        %2724 = vmatpush1.xpose.msra.mxu0 0.0
        %2725 = vmatprep.subr.mxu0 0.0
        %2726 = vmatpush1.xpose.msra.mxu0 0.0
        %2727 = vmatprep.subr.mxu0 0.0
        %2728 = vmatpush1.xpose.msra.mxu0 0.0
        %2729 = vmatprep.subr.mxu0 0.0
        %2730 = vmatpush1.xpose.msra.mxu0 0.0
        %2731 = vmatprep.subr.mxu0 0.0
        %2732 = vmatpush1.xpose.msra.mxu0 0.0
        %2733 = vmatprep.subr.mxu0 0.0
        %2734 = vmatpush1.xpose.msra.mxu0 0.0
        %2735 = vmatprep.subr.mxu0 0.0
        %2736 = vmatpush1.xpose.msra.mxu0 0.0
        %2737 = vmatprep.subr.mxu0 0.0
        %2738 = vmatpush1.xpose.msra.mxu0 0.0
        %2739 = vmatprep.subr.mxu0 0.0
        %2740 = vmatpush1.xpose.msra.mxu0 0.0
        %2741 = vmatprep.subr.mxu0 0.0
        %2742 = vmatpush1.xpose.msra.mxu0 0.0
        %2743 = vmatprep.subr.mxu0 0.0
        %2744 = vmatpush1.xpose.msra.mxu0 0.0
        %2745 = vmatprep.subr.mxu0 0.0
        %2746 = vmatpush1.xpose.msra.mxu0 0.0
        %2747 = vmatprep.subr.mxu0 0.0
        %2748 = vmatpush1.xpose.msra.mxu0 0.0
        %2749 = vmatprep.subr.mxu0 0.0
        %2750 = vmatpush1.xpose.msra.mxu0 0.0
        %2751 = vmatprep.subr.mxu0 0.0
        %2752 = vmatpush1.xpose.msra.mxu0 0.0
        %2753 = vmatprep.subr.mxu0 0.0
        %2754 = vmatpush1.xpose.msra.mxu0 0.0
        %2755 = vmatprep.subr.mxu0 0.0
        %2756 = vmatpush1.xpose.msra.mxu0 0.0
        %2757 = vmatprep.mubr.f32.mxu0 0.0
        %2758 = vmatmul.mubr.f32.gmra.mrb[0].mxu0 %v2685
        %v2759 = vpop.f32.mrb[0].mxu0
        %v2760 = vadd.f32 0.0, %v2759
        %v2761 = vpop.f32.mrb[0].mxu0
        %2762 = vmatprep.mubr.f32.mxu0 0.0
        %2763 = vmatmul.mubr.f32.gmra.mrb[0].mxu0 %v2687
        %v2764 = vpop.f32.mrb[0].mxu0
        %v2765 = vadd.f32 0.0, %v2764
        %v2766 = vpop.f32.mrb[0].mxu0
        %2767 = vdwg.mxu0
        %v2768 = vsel %vm1562, %v2760, -inf
        %2769 = vmax.xlane.f32.xlu0 %v2768
        %v2770 = vpop.xlane.xlu0 %2769
        %v2771 = vsel %vm1566, %v2765, -inf
        %2772 = vmax.xlane.f32.xlu0 %v2771
        %v2773 = vpop.xlane.xlu0 %2772
        %v2774 = vsub.f32 %v2760, %v2770
        %v2775 = vsub.f32 %v2765, %v2773
        %v2776 = vmul.f32 %v2774, 1.442695
        %v2777 = vpow.pop %v2776
        %v2778 = vmul.f32 %v2775, 1.442695
        %v2779 = vpow.pop %v2778
        %v2780 = vsel %vm1562, %v2777, 0.0
        %2781 = vadd.xlane.f32.xlu0 %v2780
        %v2782 = vpop.xlane.xlu0 %2781
        %v2783 = vsel %vm1566, %v2779, 0.0
        %2784 = vadd.xlane.f32.xlu0 %v2783
        %v2785 = vpop.xlane.xlu0 %2784
        %v2786 = vrcp.pop %v2782
        %v2787 = vrcp.pop %v2785
        %v2788 = vmul.f32 %v2777, %v2786
        %v2789 = vmul.f32 %v2779, %v2787
        %2790 = vrot.lane.b32.xlu0 %v1464, 80
        %v2791 = vpop.permute.xlu0 %2790
        %2792 = vrot.lane.b32.xlu0 %v1470, 80
        %v2793 = vpop.permute.xlu0 %2792
        %v2796 = vsel %vm1562, %v2788, 0
        %v2799 = vsel %vm1562, %v2789, 0
        %v2801 = vsel %vm1592, %v2793, 0
        %2803 = vmatprep.subr.mxu0 0.0
        %2804 = vmatpush1.msra.mxu0 %v2791
        %2805 = vmatprep.subr.mxu0 0.0
        %2806 = vmatpush1.msra.mxu0 %v2801
        %2807 = vmatprep.subr.mxu0 0.0
        %2808 = vmatpush1.msra.mxu0 0.0
        %2809 = vmatprep.subr.mxu0 0.0
        %2810 = vmatpush1.msra.mxu0 0.0
        %2811 = vmatprep.subr.mxu0 0.0
        %2812 = vmatpush1.msra.mxu0 0.0
        %2813 = vmatprep.subr.mxu0 0.0
        %2814 = vmatpush1.msra.mxu0 0.0
        %2815 = vmatprep.subr.mxu0 0.0
        %2816 = vmatpush1.msra.mxu0 0.0
        %2817 = vmatprep.subr.mxu0 0.0
        %2818 = vmatpush1.msra.mxu0 0.0
        %2819 = vmatprep.subr.mxu0 0.0
        %2820 = vmatpush1.msra.mxu0 0.0
        %2821 = vmatprep.subr.mxu0 0.0
        %2822 = vmatpush1.msra.mxu0 0.0
        %2823 = vmatprep.subr.mxu0 0.0
        %2824 = vmatpush1.msra.mxu0 0.0
        %2825 = vmatprep.subr.mxu0 0.0
        %2826 = vmatpush1.msra.mxu0 0.0
        %2827 = vmatprep.subr.mxu0 0.0
        %2828 = vmatpush1.msra.mxu0 0.0
        %2829 = vmatprep.subr.mxu0 0.0
        %2830 = vmatpush1.msra.mxu0 0.0
        %2831 = vmatprep.subr.mxu0 0.0
        %2832 = vmatpush1.msra.mxu0 0.0
        %2833 = vmatprep.subr.mxu0 0.0
        %2834 = vmatpush1.msra.mxu0 0.0
        %2835 = vmatprep.subr.mxu0 0.0
        %2836 = vmatpush1.msra.mxu0 0.0
        %2837 = vmatprep.subr.mxu0 0.0
        %2838 = vmatpush1.msra.mxu0 0.0
        %2839 = vmatprep.subr.mxu0 0.0
        %2840 = vmatpush1.msra.mxu0 0.0
        %2841 = vmatprep.subr.mxu0 0.0
        %2842 = vmatpush1.msra.mxu0 0.0
        %2843 = vmatprep.subr.mxu0 0.0
        %2844 = vmatpush1.msra.mxu0 0.0
        %2845 = vmatprep.subr.mxu0 0.0
        %2846 = vmatpush1.msra.mxu0 0.0
        %2847 = vmatprep.subr.mxu0 0.0
        %2848 = vmatpush1.msra.mxu0 0.0
        %2849 = vmatprep.subr.mxu0 0.0
        %2850 = vmatpush1.msra.mxu0 0.0
        %2851 = vmatprep.subr.mxu0 0.0
        %2852 = vmatpush1.msra.mxu0 0.0
        %2853 = vmatprep.subr.mxu0 0.0
        %2854 = vmatpush1.msra.mxu0 0.0
        %2855 = vmatprep.subr.mxu0 0.0
        %2856 = vmatpush1.msra.mxu0 0.0
        %2857 = vmatprep.subr.mxu0 0.0
        %2858 = vmatpush1.msra.mxu0 0.0
        %2859 = vmatprep.subr.mxu0 0.0
        %2860 = vmatpush1.msra.mxu0 0.0
        %2861 = vmatprep.subr.mxu0 0.0
        %2862 = vmatpush1.msra.mxu0 0.0
        %2863 = vmatprep.subr.mxu0 0.0
        %2864 = vmatpush1.msra.mxu0 0.0
        %2865 = vmatprep.subr.mxu0 0.0
        %2866 = vmatpush1.msra.mxu0 0.0
        %2867 = vmatprep.mubr.f32.mxu0 0.0
        %2868 = vmatmul.mubr.f32.gmra.mrb[0].mxu0 %v2796
        %v2869 = vpop.f32.mrb[0].mxu0
        %v2870 = vadd.f32 0.0, %v2869
        %v2871 = vpop.f32.mrb[0].mxu0
        %2872 = vmatprep.mubr.f32.mxu0 0.0
        %2873 = vmatmul.mubr.f32.gmra.mrb[0].mxu0 %v2799
        %v2874 = vpop.f32.mrb[0].mxu0
        %v2875 = vadd.f32 0.0, %v2874
        %v2876 = vpop.f32.mrb[0].mxu0
        %2877 = vdwg.mxu0
        %2878 = vrot.lane.b32.xlu0 %v1462, 72
        %v2879 = vpop.permute.xlu0 %2878
        %2880 = vrot.lane.b32.xlu0 %v1468, 72
        %v2881 = vpop.permute.xlu0 %2880
        %2882 = vrot.lane.b32.xlu0 %v1462, 8
        %v2883 = vpop.permute.xlu0 %2882
        %2884 = vrot.lane.b32.xlu0 %v1468, 8
        %v2885 = vpop.permute.xlu0 %2884
        %v2886 = vsel %vm1478, %v2879, 0
        %v2888 = vsel %vm1478, %v2881, 0
        %v2890 = vsel %vm1478, %v2883, 0
        %v2892 = vsel %vm1478, %v2885, 0
        %2894 = vmatprep.subr.mxu0 0.0
        %2895 = vmatpush1.xpose.msra.mxu0 %v2890
        %2896 = vmatprep.subr.mxu0 0.0
        %2897 = vmatpush1.xpose.msra.mxu0 %v2892
        %2898 = vmatprep.subr.mxu0 0.0
        %2899 = vmatpush1.xpose.msra.mxu0 0.0
        %2900 = vmatprep.subr.mxu0 0.0
        %2901 = vmatpush1.xpose.msra.mxu0 0.0
        %2902 = vmatprep.subr.mxu0 0.0
        %2903 = vmatpush1.xpose.msra.mxu0 0.0
        %2904 = vmatprep.subr.mxu0 0.0
        %2905 = vmatpush1.xpose.msra.mxu0 0.0
        %2906 = vmatprep.subr.mxu0 0.0
        %2907 = vmatpush1.xpose.msra.mxu0 0.0
        %2908 = vmatprep.subr.mxu0 0.0
        %2909 = vmatpush1.xpose.msra.mxu0 0.0
        %2910 = vmatprep.subr.mxu0 0.0
        %2911 = vmatpush1.xpose.msra.mxu0 0.0
        %2912 = vmatprep.subr.mxu0 0.0
        %2913 = vmatpush1.xpose.msra.mxu0 0.0
        %2914 = vmatprep.subr.mxu0 0.0
        %2915 = vmatpush1.xpose.msra.mxu0 0.0
        %2916 = vmatprep.subr.mxu0 0.0
        %2917 = vmatpush1.xpose.msra.mxu0 0.0
        %2918 = vmatprep.subr.mxu0 0.0
        %2919 = vmatpush1.xpose.msra.mxu0 0.0
        %2920 = vmatprep.subr.mxu0 0.0
        %2921 = vmatpush1.xpose.msra.mxu0 0.0
        %2922 = vmatprep.subr.mxu0 0.0
        %2923 = vmatpush1.xpose.msra.mxu0 0.0
        %2924 = vmatprep.subr.mxu0 0.0
        %2925 = vmatpush1.xpose.msra.mxu0 0.0
        %2926 = vmatprep.subr.mxu0 0.0
        %2927 = vmatpush1.xpose.msra.mxu0 0.0
        %2928 = vmatprep.subr.mxu0 0.0
        %2929 = vmatpush1.xpose.msra.mxu0 0.0
        %2930 = vmatprep.subr.mxu0 0.0
        %2931 = vmatpush1.xpose.msra.mxu0 0.0
        %2932 = vmatprep.subr.mxu0 0.0
        %2933 = vmatpush1.xpose.msra.mxu0 0.0
        %2934 = vmatprep.subr.mxu0 0.0
        %2935 = vmatpush1.xpose.msra.mxu0 0.0
        %2936 = vmatprep.subr.mxu0 0.0
        %2937 = vmatpush1.xpose.msra.mxu0 0.0
        %2938 = vmatprep.subr.mxu0 0.0
        %2939 = vmatpush1.xpose.msra.mxu0 0.0
        %2940 = vmatprep.subr.mxu0 0.0
        %2941 = vmatpush1.xpose.msra.mxu0 0.0
        %2942 = vmatprep.subr.mxu0 0.0
        %2943 = vmatpush1.xpose.msra.mxu0 0.0
        %2944 = vmatprep.subr.mxu0 0.0
        %2945 = vmatpush1.xpose.msra.mxu0 0.0
        %2946 = vmatprep.subr.mxu0 0.0
        %2947 = vmatpush1.xpose.msra.mxu0 0.0
        %2948 = vmatprep.subr.mxu0 0.0
        %2949 = vmatpush1.xpose.msra.mxu0 0.0
        %2950 = vmatprep.subr.mxu0 0.0
        %2951 = vmatpush1.xpose.msra.mxu0 0.0
        %2952 = vmatprep.subr.mxu0 0.0
        %2953 = vmatpush1.xpose.msra.mxu0 0.0
        %2954 = vmatprep.subr.mxu0 0.0
        %2955 = vmatpush1.xpose.msra.mxu0 0.0
        %2956 = vmatprep.subr.mxu0 0.0
        %2957 = vmatpush1.xpose.msra.mxu0 0.0
        %2958 = vmatprep.mubr.f32.mxu0 0.0
        %2959 = vmatmul.mubr.f32.gmra.mrb[0].mxu0 %v2886
        %v2960 = vpop.f32.mrb[0].mxu0
        %v2961 = vadd.f32 0.0, %v2960
        %v2962 = vpop.f32.mrb[0].mxu0
        %2963 = vmatprep.mubr.f32.mxu0 0.0
        %2964 = vmatmul.mubr.f32.gmra.mrb[0].mxu0 %v2888
        %v2965 = vpop.f32.mrb[0].mxu0
        %v2966 = vadd.f32 0.0, %v2965
        %v2967 = vpop.f32.mrb[0].mxu0
        %2968 = vdwg.mxu0
        %v2969 = vsel %vm1562, %v2961, -inf
        %2970 = vmax.xlane.f32.xlu0 %v2969
        %v2971 = vpop.xlane.xlu0 %2970
        %v2972 = vsel %vm1566, %v2966, -inf
        %2973 = vmax.xlane.f32.xlu0 %v2972
        %v2974 = vpop.xlane.xlu0 %2973
        %v2975 = vsub.f32 %v2961, %v2971
        %v2976 = vsub.f32 %v2966, %v2974
        %v2977 = vmul.f32 %v2975, 1.442695
        %v2978 = vpow.pop %v2977
        %v2979 = vmul.f32 %v2976, 1.442695
        %v2980 = vpow.pop %v2979
        %v2981 = vsel %vm1562, %v2978, 0.0
        %2982 = vadd.xlane.f32.xlu0 %v2981
        %v2983 = vpop.xlane.xlu0 %2982
        %v2984 = vsel %vm1566, %v2980, 0.0
        %2985 = vadd.xlane.f32.xlu0 %v2984
        %v2986 = vpop.xlane.xlu0 %2985
        %v2987 = vrcp.pop %v2983
        %v2988 = vrcp.pop %v2986
        %v2989 = vmul.f32 %v2978, %v2987
        %v2990 = vmul.f32 %v2980, %v2988
        %2991 = vrot.lane.b32.xlu0 %v1464, 72
        %v2992 = vpop.permute.xlu0 %2991
        %2993 = vrot.lane.b32.xlu0 %v1470, 72
        %v2994 = vpop.permute.xlu0 %2993
        %v2997 = vsel %vm1562, %v2989, 0
        %v3000 = vsel %vm1562, %v2990, 0
        %v3002 = vsel %vm1592, %v2994, 0
        %3004 = vmatprep.subr.mxu0 0.0
        %3005 = vmatpush1.msra.mxu0 %v2992
        %3006 = vmatprep.subr.mxu0 0.0
        %3007 = vmatpush1.msra.mxu0 %v3002
        %3008 = vmatprep.subr.mxu0 0.0
        %3009 = vmatpush1.msra.mxu0 0.0
        %3010 = vmatprep.subr.mxu0 0.0
        %3011 = vmatpush1.msra.mxu0 0.0
        %3012 = vmatprep.subr.mxu0 0.0
        %3013 = vmatpush1.msra.mxu0 0.0
        %3014 = vmatprep.subr.mxu0 0.0
        %3015 = vmatpush1.msra.mxu0 0.0
        %3016 = vmatprep.subr.mxu0 0.0
        %3017 = vmatpush1.msra.mxu0 0.0
        %3018 = vmatprep.subr.mxu0 0.0
        %3019 = vmatpush1.msra.mxu0 0.0
        %3020 = vmatprep.subr.mxu0 0.0
        %3021 = vmatpush1.msra.mxu0 0.0
        %3022 = vmatprep.subr.mxu0 0.0
        %3023 = vmatpush1.msra.mxu0 0.0
        %3024 = vmatprep.subr.mxu0 0.0
        %3025 = vmatpush1.msra.mxu0 0.0
        %3026 = vmatprep.subr.mxu0 0.0
        %3027 = vmatpush1.msra.mxu0 0.0
        %3028 = vmatprep.subr.mxu0 0.0
        %3029 = vmatpush1.msra.mxu0 0.0
        %3030 = vmatprep.subr.mxu0 0.0
        %3031 = vmatpush1.msra.mxu0 0.0
        %3032 = vmatprep.subr.mxu0 0.0
        %3033 = vmatpush1.msra.mxu0 0.0
        %3034 = vmatprep.subr.mxu0 0.0
        %3035 = vmatpush1.msra.mxu0 0.0
        %3036 = vmatprep.subr.mxu0 0.0
        %3037 = vmatpush1.msra.mxu0 0.0
        %3038 = vmatprep.subr.mxu0 0.0
        %3039 = vmatpush1.msra.mxu0 0.0
        %3040 = vmatprep.subr.mxu0 0.0
        %3041 = vmatpush1.msra.mxu0 0.0
        %3042 = vmatprep.subr.mxu0 0.0
        %3043 = vmatpush1.msra.mxu0 0.0
        %3044 = vmatprep.subr.mxu0 0.0
        %3045 = vmatpush1.msra.mxu0 0.0
        %3046 = vmatprep.subr.mxu0 0.0
        %3047 = vmatpush1.msra.mxu0 0.0
        %3048 = vmatprep.subr.mxu0 0.0
        %3049 = vmatpush1.msra.mxu0 0.0
        %3050 = vmatprep.subr.mxu0 0.0
        %3051 = vmatpush1.msra.mxu0 0.0
        %3052 = vmatprep.subr.mxu0 0.0
        %3053 = vmatpush1.msra.mxu0 0.0
        %3054 = vmatprep.subr.mxu0 0.0
        %3055 = vmatpush1.msra.mxu0 0.0
        %3056 = vmatprep.subr.mxu0 0.0
        %3057 = vmatpush1.msra.mxu0 0.0
        %3058 = vmatprep.subr.mxu0 0.0
        %3059 = vmatpush1.msra.mxu0 0.0
        %3060 = vmatprep.subr.mxu0 0.0
        %3061 = vmatpush1.msra.mxu0 0.0
        %3062 = vmatprep.subr.mxu0 0.0
        %3063 = vmatpush1.msra.mxu0 0.0
        %3064 = vmatprep.subr.mxu0 0.0
        %3065 = vmatpush1.msra.mxu0 0.0
        %3066 = vmatprep.subr.mxu0 0.0
        %3067 = vmatpush1.msra.mxu0 0.0
        %3068 = vmatprep.mubr.f32.mxu0 0.0
        %3069 = vmatmul.mubr.f32.gmra.mrb[0].mxu0 %v2997
        %v3070 = vpop.f32.mrb[0].mxu0
        %v3071 = vadd.f32 0.0, %v3070
        %v3072 = vpop.f32.mrb[0].mxu0
        %3073 = vmatprep.mubr.f32.mxu0 0.0
        %3074 = vmatmul.mubr.f32.gmra.mrb[0].mxu0 %v3000
        %v3075 = vpop.f32.mrb[0].mxu0
        %v3076 = vadd.f32 0.0, %v3075
        %v3077 = vpop.f32.mrb[0].mxu0
        %3078 = vdwg.mxu0
        %3081 = vrot.lane.b32.xlu0 %v1865, 8
        %v3082 = vpop.permute.xlu0 %3081
        %3083 = vrot.lane.b32.xlu0 %v1870, 8
        %v3084 = vpop.permute.xlu0 %3083
        %3089 = vrot.lane.b32.xlu0 %v2066, 16
        %v3090 = vpop.permute.xlu0 %3089
        %3091 = vrot.lane.b32.xlu0 %v2071, 16
        %v3092 = vpop.permute.xlu0 %3091
        %3097 = vrot.lane.b32.xlu0 %v2267, 24
        %v3098 = vpop.permute.xlu0 %3097
        %3099 = vrot.lane.b32.xlu0 %v2272, 24
        %v3100 = vpop.permute.xlu0 %3099
        %3105 = vrot.lane.b32.xlu0 %v2468, 32
        %v3106 = vpop.permute.xlu0 %3105
        %3107 = vrot.lane.b32.xlu0 %v2473, 32
        %v3108 = vpop.permute.xlu0 %3107
        %3113 = vrot.lane.b32.xlu0 %v2669, 40
        %v3114 = vpop.permute.xlu0 %3113
        %3115 = vrot.lane.b32.xlu0 %v2674, 40
        %v3116 = vpop.permute.xlu0 %3115
        %3121 = vrot.lane.b32.xlu0 %v2870, 48
        %v3122 = vpop.permute.xlu0 %3121
        %3123 = vrot.lane.b32.xlu0 %v2875, 48
        %v3124 = vpop.permute.xlu0 %3123
        %3129 = vrot.lane.b32.xlu0 %v3071, 56
        %v3130 = vpop.permute.xlu0 %3129
        %3131 = vrot.lane.b32.xlu0 %v3076, 56
        %v3132 = vpop.permute.xlu0 %3131
        %v3135 = vsel %vm1478, %v1663, %v3082
        %v3136 = vsel %vm1478, %v1668, %v3084
        %vm3137 = vcmask 130048
        %v3138 = vsel %vm3137, %v3135, %v3090
        %v3139 = vsel %vm3137, %v3136, %v3092
        %vm3140 = vcmask 195584
        %v3141 = vsel %vm3140, %v3138, %v3098
        %v3142 = vsel %vm3140, %v3139, %v3100
        %vm3143 = vcmask 261120
        %v3144 = vsel %vm3143, %v3141, %v3106
        %v3145 = vsel %vm3143, %v3142, %v3108
        %vm3146 = vcmask 326656
        %v3147 = vsel %vm3146, %v3144, %v3114
        %v3148 = vsel %vm3146, %v3145, %v3116
        %vm3149 = vcmask 392192
        %v3150 = vsel %vm3149, %v3147, %v3122
        %v3151 = vsel %vm3149, %v3148, %v3124
        %vm3152 = vcmask 457728
        %v3153 = vsel %vm3152, %v3150, %v3130
        %v3154 = vsel %vm3152, %v3151, %v3132
        %v3155 = vld [vmem:[%s11] sm:$0xff]
        %v3156 = vld [vmem:[%s11 + $0x8] sm:$0xff]
        %v3157 = vld [vmem:[%s11 + $0x10] sm:$0xff]
        %v3158 = vld [vmem:[%s11 + $0x18] sm:$0xff]
        %v3159 = vld [vmem:[%s11 + $0x20] sm:$0xff]
        %v3160 = vld [vmem:[%s11 + $0x28] sm:$0xff]
        %v3161 = vld [vmem:[%s11 + $0x30] sm:$0xff]
        %v3162 = vld [vmem:[%s11 + $0x38] sm:$0xff]
        %v3163 = vld [vmem:[%s13] sm:$0x1]
        %v3165 = vlaneseq
        %v3166 = vshrl.u32 %v3165, 7
        %v3167 = vsub.s32 0, %v3166
        %v3168 = vrot.slane %v3163, %v3167
        %v3171 = vsel %vm1388, %v3153, 0
        %v3174 = vsel %vm1388, %v3154, 0
        %3176 = vmatprep.subr.mxu0 0.0
        %3177 = vmatpush1.msra.mxu0 %v3155
        %3178 = vmatprep.subr.mxu0 0.0
        %3179 = vmatpush1.msra.mxu0 %v3156
        %3180 = vmatprep.subr.mxu0 0.0
        %3181 = vmatpush1.msra.mxu0 %v3157
        %3182 = vmatprep.subr.mxu0 0.0
        %3183 = vmatpush1.msra.mxu0 %v3158
        %3184 = vmatprep.subr.mxu0 0.0
        %3185 = vmatpush1.msra.mxu0 %v3159
        %3186 = vmatprep.subr.mxu0 0.0
        %3187 = vmatpush1.msra.mxu0 %v3160
        %3188 = vmatprep.subr.mxu0 0.0
        %3189 = vmatpush1.msra.mxu0 %v3161
        %3190 = vmatprep.subr.mxu0 0.0
        %3191 = vmatpush1.msra.mxu0 %v3162
        %3192 = vmatprep.subr.mxu0 0.0
        %3193 = vmatpush1.msra.mxu0 0.0
        %3194 = vmatprep.subr.mxu0 0.0
        %3195 = vmatpush1.msra.mxu0 0.0
        %3196 = vmatprep.subr.mxu0 0.0
        %3197 = vmatpush1.msra.mxu0 0.0
        %3198 = vmatprep.subr.mxu0 0.0
        %3199 = vmatpush1.msra.mxu0 0.0
        %3200 = vmatprep.subr.mxu0 0.0
        %3201 = vmatpush1.msra.mxu0 0.0
        %3202 = vmatprep.subr.mxu0 0.0
        %3203 = vmatpush1.msra.mxu0 0.0
        %3204 = vmatprep.subr.mxu0 0.0
        %3205 = vmatpush1.msra.mxu0 0.0
        %3206 = vmatprep.subr.mxu0 0.0
        %3207 = vmatpush1.msra.mxu0 0.0
        %3208 = vmatprep.subr.mxu0 0.0
        %3209 = vmatpush1.msra.mxu0 0.0
        %3210 = vmatprep.subr.mxu0 0.0
        %3211 = vmatpush1.msra.mxu0 0.0
        %3212 = vmatprep.subr.mxu0 0.0
        %3213 = vmatpush1.msra.mxu0 0.0
        %3214 = vmatprep.subr.mxu0 0.0
        %3215 = vmatpush1.msra.mxu0 0.0
        %3216 = vmatprep.subr.mxu0 0.0
        %3217 = vmatpush1.msra.mxu0 0.0
        %3218 = vmatprep.subr.mxu0 0.0
        %3219 = vmatpush1.msra.mxu0 0.0
        %3220 = vmatprep.subr.mxu0 0.0
        %3221 = vmatpush1.msra.mxu0 0.0
        %3222 = vmatprep.subr.mxu0 0.0
        %3223 = vmatpush1.msra.mxu0 0.0
        %3224 = vmatprep.subr.mxu0 0.0
        %3225 = vmatpush1.msra.mxu0 0.0
        %3226 = vmatprep.subr.mxu0 0.0
        %3227 = vmatpush1.msra.mxu0 0.0
        %3228 = vmatprep.subr.mxu0 0.0
        %3229 = vmatpush1.msra.mxu0 0.0
        %3230 = vmatprep.subr.mxu0 0.0
        %3231 = vmatpush1.msra.mxu0 0.0
        %3232 = vmatprep.subr.mxu0 0.0
        %3233 = vmatpush1.msra.mxu0 0.0
        %3234 = vmatprep.subr.mxu0 0.0
        %3235 = vmatpush1.msra.mxu0 0.0
        %3236 = vmatprep.subr.mxu0 0.0
        %3237 = vmatpush1.msra.mxu0 0.0
        %3238 = vmatprep.subr.mxu0 0.0
        %3239 = vmatpush1.msra.mxu0 0.0
        %3240 = vmatprep.mubr.f32.mxu0 0.0
        %3241 = vmatmul.mubr.f32.gmra.mrb[0].mxu0 %v3171
        %v3242 = vpop.f32.mrb[0].mxu0
        %v3243 = vadd.f32 %v3168, %v3242
        %v3244 = vpop.f32.mrb[0].mxu0
        %3245 = vmatprep.mubr.f32.mxu0 0.0
        %3246 = vmatmul.mubr.f32.gmra.mrb[0].mxu0 %v3174
        %v3247 = vpop.f32.mrb[0].mxu0
        %v3248 = vadd.f32 %v3168, %v3247
        %v3249 = vpop.f32.mrb[0].mxu0
        %3250 = vdwg.mxu0
        %v3251 = vadd.f32 %v1356, %v3243
        %v3252 = vadd.f32 %v1357, %v3248
        %v3253 = vsel %vm1388, %v3251, 0.0
        %3254 = vadd.xlane.f32.xlu0 %v3253
        %v3255 = vpop.xlane.xlu0 %3254
        %vm3256 = vcmask 519168
        %v3257 = vsel %vm3256, %v3252, 0.0
        %3258 = vadd.xlane.f32.xlu0 %v3257
        %v3259 = vpop.xlane.xlu0 %3258
        %v3260 = vrcp.pop 64.0
        %v3261 = vmul.f32 %v3255, %v3260
        %v3262 = vmul.f32 %v3259, %v3260
        %v3263 = vsub.f32 %v3251, %v3261
        %v3264 = vsub.f32 %v3252, %v3262
        %v3265 = vmul.f32 %v3263, %v3263
        %v3266 = vmul.f32 %v3264, %v3264
        %v3267 = vsel %vm1388, %v3265, 0.0
        %3268 = vadd.xlane.f32.xlu0 %v3267
        %v3269 = vpop.xlane.xlu0 %3268
        %v3270 = vsel %vm3256, %v3266, 0.0
        %3271 = vadd.xlane.f32.xlu0 %v3270
        %v3272 = vpop.xlane.xlu0 %3271
        %v3273 = vmul.f32 %v3269, %v3260
        %v3274 = vmul.f32 %v3272, %v3260
        %v3275 = vadd.f32 %v3273, 1e-05
        %v3276 = vadd.f32 %v3274, 1e-05
        %v3277 = vrsqrt.pop %v3275
        %v3278 = vrsqrt.pop %v3276
        %v3279 = vmul.f32 %v3263, %v3277
        %v3280 = vmul.f32 %v3264, %v3278
        %v3281 = vld [vmem:[#allocation6] sm:$0x1]
        %v3283 = vlaneseq
        %v3284 = vshrl.u32 %v3283, 7
        %v3285 = vsub.s32 0, %v3284
        %v3286 = vrot.slane %v3281, %v3285
        %v3288 = vmul.f32 %v3279, %v3286
        %v3289 = vmul.f32 %v3280, %v3286
        %v3290 = vld [vmem:[#allocation7] sm:$0x1]
        %v3292 = vlaneseq
        %v3293 = vshrl.u32 %v3292, 7
        %v3294 = vsub.s32 0, %v3293
        %v3295 = vrot.slane %v3290, %v3294
        %v3297 = vadd.f32 %v3288, %v3295
        %v3298 = vadd.f32 %v3289, %v3295
        %v3299 = vld [vmem:[%s19] sm:$0xff]
        %v3300 = vld [vmem:[%s19 + $0x8] sm:$0xff]
        %v3301 = vld [vmem:[%s19 + $0x10] sm:$0xff]
        %v3302 = vld [vmem:[%s19 + $0x18] sm:$0xff]
        %v3303 = vld [vmem:[%s19 + $0x20] sm:$0xff]
        %v3304 = vld [vmem:[%s19 + $0x28] sm:$0xff]
        %v3305 = vld [vmem:[%s19 + $0x30] sm:$0xff]
        %v3306 = vld [vmem:[%s19 + $0x38] sm:$0xff]
        %v3307 = vld [vmem:[%s19 + $0x40] sm:$0xff]
        %v3308 = vld [vmem:[%s19 + $0x48] sm:$0xff]
        %v3309 = vld [vmem:[%s19 + $0x50] sm:$0xff]
        %v3310 = vld [vmem:[%s19 + $0x58] sm:$0xff]
        %v3311 = vld [vmem:[%s19 + $0x60] sm:$0xff]
        %v3312 = vld [vmem:[%s19 + $0x68] sm:$0xff]
        %v3313 = vld [vmem:[%s19 + $0x70] sm:$0xff]
        %v3314 = vld [vmem:[%s19 + $0x78] sm:$0xff]
        %v3315 = vld [vmem:[%s21] sm:$0x3]
        %v3317 = vlaneseq
        %v3318 = vshrl.u32 %v3317, 7
        %v3319 = vsub.s32 0, %v3318
        %v3320 = vrot.slane %v3315, %v3319
        %v3321 = vlaneseq
        %v3322 = vshrl.u32 %v3321, 7
        %v3323 = vsub.s32 1, %v3322
        %v3324 = vrot.slane %v3315, %v3323
        %v3328 = vsel %vm1388, %v3297, 0
        %v3331 = vsel %vm1388, %v3298, 0
        %3333 = vmatprep.subr.mxu0 %v3300
        %3334 = vmatpush1.msra.mxu0 %v3299
        %3335 = vmatprep.subr.mxu0 %v3302
        %3336 = vmatpush1.msra.mxu0 %v3301
        %3337 = vmatprep.subr.mxu0 %v3304
        %3338 = vmatpush1.msra.mxu0 %v3303
        %3339 = vmatprep.subr.mxu0 %v3306
        %3340 = vmatpush1.msra.mxu0 %v3305
        %3341 = vmatprep.subr.mxu0 %v3308
        %3342 = vmatpush1.msra.mxu0 %v3307
        %3343 = vmatprep.subr.mxu0 %v3310
        %3344 = vmatpush1.msra.mxu0 %v3309
        %3345 = vmatprep.subr.mxu0 %v3312
        %3346 = vmatpush1.msra.mxu0 %v3311
        %3347 = vmatprep.subr.mxu0 %v3314
        %3348 = vmatpush1.msra.mxu0 %v3313
        %3349 = vmatprep.subr.mxu0 0.0
        %3350 = vmatpush1.msra.mxu0 0.0
        %3351 = vmatprep.subr.mxu0 0.0
        %3352 = vmatpush1.msra.mxu0 0.0
        %3353 = vmatprep.subr.mxu0 0.0
        %3354 = vmatpush1.msra.mxu0 0.0
        %3355 = vmatprep.subr.mxu0 0.0
        %3356 = vmatpush1.msra.mxu0 0.0
        %3357 = vmatprep.subr.mxu0 0.0
        %3358 = vmatpush1.msra.mxu0 0.0
        %3359 = vmatprep.subr.mxu0 0.0
        %3360 = vmatpush1.msra.mxu0 0.0
        %3361 = vmatprep.subr.mxu0 0.0
        %3362 = vmatpush1.msra.mxu0 0.0
        %3363 = vmatprep.subr.mxu0 0.0
        %3364 = vmatpush1.msra.mxu0 0.0
        %3365 = vmatprep.subr.mxu0 0.0
        %3366 = vmatpush1.msra.mxu0 0.0
        %3367 = vmatprep.subr.mxu0 0.0
        %3368 = vmatpush1.msra.mxu0 0.0
        %3369 = vmatprep.subr.mxu0 0.0
        %3370 = vmatpush1.msra.mxu0 0.0
        %3371 = vmatprep.subr.mxu0 0.0
        %3372 = vmatpush1.msra.mxu0 0.0
        %3373 = vmatprep.subr.mxu0 0.0
        %3374 = vmatpush1.msra.mxu0 0.0
        %3375 = vmatprep.subr.mxu0 0.0
        %3376 = vmatpush1.msra.mxu0 0.0
        %3377 = vmatprep.subr.mxu0 0.0
        %3378 = vmatpush1.msra.mxu0 0.0
        %3379 = vmatprep.subr.mxu0 0.0
        %3380 = vmatpush1.msra.mxu0 0.0
        %3381 = vmatprep.subr.mxu0 0.0
        %3382 = vmatpush1.msra.mxu0 0.0
        %3383 = vmatprep.subr.mxu0 0.0
        %3384 = vmatpush1.msra.mxu0 0.0
        %3385 = vmatprep.subr.mxu0 0.0
        %3386 = vmatpush1.msra.mxu0 0.0
        %3387 = vmatprep.subr.mxu0 0.0
        %3388 = vmatpush1.msra.mxu0 0.0
        %3389 = vmatprep.subr.mxu0 0.0
        %3390 = vmatpush1.msra.mxu0 0.0
        %3391 = vmatprep.subr.mxu0 0.0
        %3392 = vmatpush1.msra.mxu0 0.0
        %3393 = vmatprep.subr.mxu0 0.0
        %3394 = vmatpush1.msra.mxu0 0.0
        %3395 = vmatprep.subr.mxu0 0.0
        %3396 = vmatpush1.msra.mxu0 0.0
        %3397 = vmatprep.mubr.f32.mxu0 0.0
        %3398 = vmatmul.mubr.f32.gmra.mrb[0].mxu0 %v3328
        %v3399 = vpop.f32.mrb[0].mxu0
        %v3400 = vadd.f32 %v3320, %v3399
        %v3401 = vpop.f32.mrb[0].mxu0
        %v3402 = vadd.f32 %v3324, %v3401
        %3403 = vmatprep.mubr.f32.mxu0 0.0
        %3404 = vmatmul.mubr.f32.gmra.mrb[0].mxu0 %v3331
        %v3405 = vpop.f32.mrb[0].mxu0
        %v3406 = vadd.f32 %v3320, %v3405
        %v3407 = vpop.f32.mrb[0].mxu0
        %v3408 = vadd.f32 %v3324, %v3407
        %3409 = vdwg.mxu0
        %v3410 = vmax.f32 %v3400, 0.0
        %v3411 = vmax.f32 %v3402, 0.0
        %v3412 = vmax.f32 %v3406, 0.0
        %v3413 = vmax.f32 %v3408, 0.0
        %v3414 = vld [vmem:[%s23] sm:$0xff]
        %v3415 = vld [vmem:[%s23 + $0x8] sm:$0xff]
        %v3416 = vld [vmem:[%s23 + $0x10] sm:$0xff]
        %v3417 = vld [vmem:[%s23 + $0x18] sm:$0xff]
        %v3418 = vld [vmem:[%s23 + $0x20] sm:$0xff]
        %v3419 = vld [vmem:[%s23 + $0x28] sm:$0xff]
        %v3420 = vld [vmem:[%s23 + $0x30] sm:$0xff]
        %v3421 = vld [vmem:[%s23 + $0x38] sm:$0xff]
        %v3422 = vld [vmem:[%s23 + $0x40] sm:$0xff]
        %v3423 = vld [vmem:[%s23 + $0x48] sm:$0xff]
        %v3424 = vld [vmem:[%s23 + $0x50] sm:$0xff]
        %v3425 = vld [vmem:[%s23 + $0x58] sm:$0xff]
        %v3426 = vld [vmem:[%s23 + $0x60] sm:$0xff]
        %v3427 = vld [vmem:[%s23 + $0x68] sm:$0xff]
        %v3428 = vld [vmem:[%s23 + $0x70] sm:$0xff]
        %v3429 = vld [vmem:[%s23 + $0x78] sm:$0xff]
        %v3430 = vld [vmem:[%s23 + $0x80] sm:$0xff]
        %v3431 = vld [vmem:[%s23 + $0x88] sm:$0xff]
        %v3432 = vld [vmem:[%s23 + $0x90] sm:$0xff]
        %v3433 = vld [vmem:[%s23 + $0x98] sm:$0xff]
        %v3434 = vld [vmem:[%s23 + $0xa0] sm:$0xff]
        %v3435 = vld [vmem:[%s23 + $0xa8] sm:$0xff]
        %v3436 = vld [vmem:[%s23 + $0xb0] sm:$0xff]
        %v3437 = vld [vmem:[%s23 + $0xb8] sm:$0xff]
        %v3438 = vld [vmem:[%s23 + $0xc0] sm:$0xff]
        %v3439 = vld [vmem:[%s23 + $0xc8] sm:$0xff]
        %v3440 = vld [vmem:[%s23 + $0xd0] sm:$0xff]
        %v3441 = vld [vmem:[%s23 + $0xd8] sm:$0xff]
        %v3442 = vld [vmem:[%s23 + $0xe0] sm:$0xff]
        %v3443 = vld [vmem:[%s23 + $0xe8] sm:$0xff]
        %v3444 = vld [vmem:[%s23 + $0xf0] sm:$0xff]
        %v3445 = vld [vmem:[%s23 + $0xf8] sm:$0xff]
        %v3446 = vld [vmem:[#allocation9] sm:$0x1]
        %v3448 = vlaneseq
        %v3449 = vshrl.u32 %v3448, 7
        %v3450 = vsub.s32 0, %v3449
        %v3451 = vrot.slane %v3446, %v3450
        %3453 = vmatprep.subr.mxu0 0.0
        %3454 = vmatpush1.msra.mxu0 %v3414
        %3455 = vmatprep.subr.mxu0 0.0
        %3456 = vmatpush1.msra.mxu0 %v3415
        %3457 = vmatprep.subr.mxu0 0.0
        %3458 = vmatpush1.msra.mxu0 %v3416
        %3459 = vmatprep.subr.mxu0 0.0
        %3460 = vmatpush1.msra.mxu0 %v3417
        %3461 = vmatprep.subr.mxu0 0.0
        %3462 = vmatpush1.msra.mxu0 %v3418
        %3463 = vmatprep.subr.mxu0 0.0
        %3464 = vmatpush1.msra.mxu0 %v3419
        %3465 = vmatprep.subr.mxu0 0.0
        %3466 = vmatpush1.msra.mxu0 %v3420
        %3467 = vmatprep.subr.mxu0 0.0
        %3468 = vmatpush1.msra.mxu0 %v3421
        %3469 = vmatprep.subr.mxu0 0.0
        %3470 = vmatpush1.msra.mxu0 %v3422
        %3471 = vmatprep.subr.mxu0 0.0
        %3472 = vmatpush1.msra.mxu0 %v3423
        %3473 = vmatprep.subr.mxu0 0.0
        %3474 = vmatpush1.msra.mxu0 %v3424
        %3475 = vmatprep.subr.mxu0 0.0
        %3476 = vmatpush1.msra.mxu0 %v3425
        %3477 = vmatprep.subr.mxu0 0.0
        %3478 = vmatpush1.msra.mxu0 %v3426
        %3479 = vmatprep.subr.mxu0 0.0
        %3480 = vmatpush1.msra.mxu0 %v3427
        %3481 = vmatprep.subr.mxu0 0.0
        %3482 = vmatpush1.msra.mxu0 %v3428
        %3483 = vmatprep.subr.mxu0 0.0
        %3484 = vmatpush1.msra.mxu0 %v3429
        %3485 = vmatprep.subr.mxu0 0.0
        %3486 = vmatpush1.msra.mxu0 %v3430
        %3487 = vmatprep.subr.mxu0 0.0
        %3488 = vmatpush1.msra.mxu0 %v3431
        %3489 = vmatprep.subr.mxu0 0.0
        %3490 = vmatpush1.msra.mxu0 %v3432
        %3491 = vmatprep.subr.mxu0 0.0
        %3492 = vmatpush1.msra.mxu0 %v3433
        %3493 = vmatprep.subr.mxu0 0.0
        %3494 = vmatpush1.msra.mxu0 %v3434
        %3495 = vmatprep.subr.mxu0 0.0
        %3496 = vmatpush1.msra.mxu0 %v3435
        %3497 = vmatprep.subr.mxu0 0.0
        %3498 = vmatpush1.msra.mxu0 %v3436
        %3499 = vmatprep.subr.mxu0 0.0
        %3500 = vmatpush1.msra.mxu0 %v3437
        %3501 = vmatprep.subr.mxu0 0.0
        %3502 = vmatpush1.msra.mxu0 %v3438
        %3503 = vmatprep.subr.mxu0 0.0
        %3504 = vmatpush1.msra.mxu0 %v3439
        %3505 = vmatprep.subr.mxu0 0.0
        %3506 = vmatpush1.msra.mxu0 %v3440
        %3507 = vmatprep.subr.mxu0 0.0
        %3508 = vmatpush1.msra.mxu0 %v3441
        %3509 = vmatprep.subr.mxu0 0.0
        %3510 = vmatpush1.msra.mxu0 %v3442
        %3511 = vmatprep.subr.mxu0 0.0
        %3512 = vmatpush1.msra.mxu0 %v3443
        %3513 = vmatprep.subr.mxu0 0.0
        %3514 = vmatpush1.msra.mxu0 %v3444
        %3515 = vmatprep.subr.mxu0 0.0
        %3516 = vmatpush1.msra.mxu0 %v3445
        %3517 = vmatprep.mubr.f32.mxu0 %v3411
        %3518 = vmatmul.mubr.f32.gmra.mrb[0].mxu0 %v3410
        %v3519 = vpop.f32.mrb[0].mxu0
        %v3520 = vadd.f32 %v3451, %v3519
        %v3521 = vpop.f32.mrb[0].mxu0
        %3522 = vmatprep.mubr.f32.mxu0 %v3413
        %3523 = vmatmul.mubr.f32.gmra.mrb[0].mxu0 %v3412
        %v3524 = vpop.f32.mrb[0].mxu0
        %v3525 = vadd.f32 %v3451, %v3524
        %v3526 = vpop.f32.mrb[0].mxu0
        %3527 = vdwg.mxu0
        %v3528 = vadd.f32 %v3297, %v3520
        %v3529 = vadd.f32 %v3298, %v3525
        %v3530 = vsel %vm1388, %v3528, 0.0
        %3531 = vadd.xlane.f32.xlu0 %v3530
        %v3532 = vpop.xlane.xlu0 %3531
        %v3533 = vsel %vm3256, %v3529, 0.0
        %3534 = vadd.xlane.f32.xlu0 %v3533
        %v3535 = vpop.xlane.xlu0 %3534
        %v3536 = vmul.f32 %v3532, %v3260
        %v3537 = vmul.f32 %v3535, %v3260
        %v3538 = vsub.f32 %v3528, %v3536
        %v3539 = vsub.f32 %v3529, %v3537
        %v3540 = vmul.f32 %v3538, %v3538
        %v3541 = vmul.f32 %v3539, %v3539
        %v3542 = vsel %vm1388, %v3540, 0.0
        %3543 = vadd.xlane.f32.xlu0 %v3542
        %v3544 = vpop.xlane.xlu0 %3543
        %v3545 = vsel %vm3256, %v3541, 0.0
        %3546 = vadd.xlane.f32.xlu0 %v3545
        %v3547 = vpop.xlane.xlu0 %3546
        %v3548 = vmul.f32 %v3544, %v3260
        %v3549 = vmul.f32 %v3547, %v3260
        %v3550 = vadd.f32 %v3548, 1e-05
        %v3551 = vadd.f32 %v3549, 1e-05
        %v3552 = vrsqrt.pop %v3550
        %v3553 = vrsqrt.pop %v3551
        %v3554 = vmul.f32 %v3538, %v3552
        %v3555 = vmul.f32 %v3539, %v3553
        %v3556 = vld [vmem:[#allocation10] sm:$0x1]
        %v3558 = vlaneseq
        %v3559 = vshrl.u32 %v3558, 7
        %v3560 = vsub.s32 0, %v3559
        %v3561 = vrot.slane %v3556, %v3560
        %v3563 = vmul.f32 %v3554, %v3561
        %v3564 = vmul.f32 %v3555, %v3561
        %v3565 = vld [vmem:[#allocation12] sm:$0x1]
        %v3567 = vlaneseq
        %v3568 = vshrl.u32 %v3567, 7
        %v3569 = vsub.s32 0, %v3568
        %v3570 = vrot.slane %v3565, %v3569
        %v3572 = vadd.f32 %v3563, %v3570
        %v3573 = vadd.f32 %v3564, %v3570
        %v3574 = vsel %vm1388, %v3572, 0.0
        %3575 = vadd.xlane.f32.xlu0 %v3574
        %v3576 = vpop.xlane.xlu0 %3575
        %v3577 = vsel %vm3256, %v3573, 0.0
        %3578 = vadd.xlane.f32.xlu0 %v3577
        %v3579 = vpop.xlane.xlu0 %3578
        %v3580 = vmul.f32 %v3576, %v3260
        %v3581 = vmul.f32 %v3579, %v3260
        %v3582 = vsub.f32 %v3572, %v3580
        %v3583 = vsub.f32 %v3573, %v3581
        %v3584 = vmul.f32 %v3582, %v3582
        %v3585 = vmul.f32 %v3583, %v3583
        %v3586 = vsel %vm1388, %v3584, 0.0
        %3587 = vadd.xlane.f32.xlu0 %v3586
        %v3588 = vpop.xlane.xlu0 %3587
        %v3589 = vsel %vm3256, %v3585, 0.0
        %3590 = vadd.xlane.f32.xlu0 %v3589
        %v3591 = vpop.xlane.xlu0 %3590
        %v3592 = vmul.f32 %v3588, %v3260
        %v3593 = vmul.f32 %v3591, %v3260
        %v3594 = vadd.f32 %v3592, 1e-05
        %v3595 = vadd.f32 %v3593, 1e-05
        %v3596 = vrsqrt.pop %v3594
        %v3597 = vrsqrt.pop %v3595
        %v3598 = vmul.f32 %v3582, %v3596
        %v3599 = vmul.f32 %v3583, %v3597
        %v3600 = vld [vmem:[#allocation13] sm:$0x1]
        %v3602 = vlaneseq
        %v3603 = vshrl.u32 %v3602, 7
        %v3604 = vsub.s32 0, %v3603
        %v3605 = vrot.slane %v3600, %v3604
        %v3607 = vmul.f32 %v3598, %v3605
        %v3608 = vmul.f32 %v3599, %v3605
        %v3609 = vld [vmem:[#allocation15] sm:$0x1]
        %v3611 = vlaneseq
        %v3612 = vshrl.u32 %v3611, 7
        %v3613 = vsub.s32 0, %v3612
        %v3614 = vrot.slane %v3609, %v3613
        %v3616 = vadd.f32 %v3607, %v3614
        %v3617 = vadd.f32 %v3608, %v3614
        %v3618 = vld [vmem:[%s35] sm:$0xff]
        %v3619 = vld [vmem:[%s35 + $0x8] sm:$0xff]
        %v3620 = vld [vmem:[%s35 + $0x10] sm:$0xff]
        %v3621 = vld [vmem:[%s35 + $0x18] sm:$0xff]
        %v3622 = vld [vmem:[%s35 + $0x20] sm:$0xff]
        %v3623 = vld [vmem:[%s35 + $0x28] sm:$0xff]
        %v3624 = vld [vmem:[%s35 + $0x30] sm:$0xff]
        %v3625 = vld [vmem:[%s35 + $0x38] sm:$0xff]
        %v3626 = vld [vmem:[%s35 + $0x40] sm:$0xff]
        %v3627 = vld [vmem:[%s35 + $0x48] sm:$0xff]
        %v3628 = vld [vmem:[%s35 + $0x50] sm:$0xff]
        %v3629 = vld [vmem:[%s35 + $0x58] sm:$0xff]
        %v3630 = vld [vmem:[%s35 + $0x60] sm:$0xff]
        %v3631 = vld [vmem:[%s35 + $0x68] sm:$0xff]
        %v3632 = vld [vmem:[%s35 + $0x70] sm:$0xff]
        %v3633 = vld [vmem:[%s35 + $0x78] sm:$0xff]
        %v3634 = vld [vmem:[%s37] sm:$0x3]
        %v3636 = vlaneseq
        %v3637 = vshrl.u32 %v3636, 7
        %v3638 = vsub.s32 0, %v3637
        %v3639 = vrot.slane %v3634, %v3638
        %v3640 = vlaneseq
        %v3641 = vshrl.u32 %v3640, 7
        %v3642 = vsub.s32 1, %v3641
        %v3643 = vrot.slane %v3634, %v3642
        %3646 = vmatprep.subr.mxu0 %v3619
        %3647 = vmatpush1.msra.mxu0 %v3618
        %3648 = vmatprep.subr.mxu0 %v3621
        %3649 = vmatpush1.msra.mxu0 %v3620
        %3650 = vmatprep.subr.mxu0 %v3623
        %3651 = vmatpush1.msra.mxu0 %v3622
        %3652 = vmatprep.subr.mxu0 %v3625
        %3653 = vmatpush1.msra.mxu0 %v3624
        %3654 = vmatprep.subr.mxu0 %v3627
        %3655 = vmatpush1.msra.mxu0 %v3626
        %3656 = vmatprep.subr.mxu0 %v3629
        %3657 = vmatpush1.msra.mxu0 %v3628
        %3658 = vmatprep.subr.mxu0 %v3631
        %3659 = vmatpush1.msra.mxu0 %v3630
        %3660 = vmatprep.subr.mxu0 %v3633
        %3661 = vmatpush1.msra.mxu0 %v3632
        %3662 = vmatprep.subr.mxu0 0.0
        %3663 = vmatpush1.msra.mxu0 0.0
        %3664 = vmatprep.subr.mxu0 0.0
        %3665 = vmatpush1.msra.mxu0 0.0
        %3666 = vmatprep.subr.mxu0 0.0
        %3667 = vmatpush1.msra.mxu0 0.0
        %3668 = vmatprep.subr.mxu0 0.0
        %3669 = vmatpush1.msra.mxu0 0.0
        %3670 = vmatprep.subr.mxu0 0.0
        %3671 = vmatpush1.msra.mxu0 0.0
        %3672 = vmatprep.subr.mxu0 0.0
        %3673 = vmatpush1.msra.mxu0 0.0
        %3674 = vmatprep.subr.mxu0 0.0
        %3675 = vmatpush1.msra.mxu0 0.0
        %3676 = vmatprep.subr.mxu0 0.0
        %3677 = vmatpush1.msra.mxu0 0.0
        %3678 = vmatprep.subr.mxu0 0.0
        %3679 = vmatpush1.msra.mxu0 0.0
        %3680 = vmatprep.subr.mxu0 0.0
        %3681 = vmatpush1.msra.mxu0 0.0
        %3682 = vmatprep.subr.mxu0 0.0
        %3683 = vmatpush1.msra.mxu0 0.0
        %3684 = vmatprep.subr.mxu0 0.0
        %3685 = vmatpush1.msra.mxu0 0.0
        %3686 = vmatprep.subr.mxu0 0.0
        %3687 = vmatpush1.msra.mxu0 0.0
        %3688 = vmatprep.subr.mxu0 0.0
        %3689 = vmatpush1.msra.mxu0 0.0
        %3690 = vmatprep.subr.mxu0 0.0
        %3691 = vmatpush1.msra.mxu0 0.0
        %3692 = vmatprep.subr.mxu0 0.0
        %3693 = vmatpush1.msra.mxu0 0.0
        %3694 = vmatprep.subr.mxu0 0.0
        %3695 = vmatpush1.msra.mxu0 0.0
        %3696 = vmatprep.subr.mxu0 0.0
        %3697 = vmatpush1.msra.mxu0 0.0
        %3698 = vmatprep.subr.mxu0 0.0
        %3699 = vmatpush1.msra.mxu0 0.0
        %3700 = vmatprep.subr.mxu0 0.0
        %3701 = vmatpush1.msra.mxu0 0.0
        %3702 = vmatprep.subr.mxu0 0.0
        %3703 = vmatpush1.msra.mxu0 0.0
        %3704 = vmatprep.subr.mxu0 0.0
        %3705 = vmatpush1.msra.mxu0 0.0
        %3706 = vmatprep.subr.mxu0 0.0
        %3707 = vmatpush1.msra.mxu0 0.0
        %3708 = vmatprep.subr.mxu0 0.0
        %3709 = vmatpush1.msra.mxu0 0.0
        %3710 = vmatprep.mubr.f32.mxu0 0.0
        %3711 = vmatmul.mubr.f32.gmra.mrb[0].mxu0 %v1390
        %v3712 = vpop.f32.mrb[0].mxu0
        %v3713 = vadd.f32 %v3639, %v3712
        %v3714 = vpop.f32.mrb[0].mxu0
        %v3715 = vadd.f32 %v3643, %v3714
        %3716 = vmatprep.mubr.f32.mxu0 0.0
        %3717 = vmatmul.mubr.f32.gmra.mrb[0].mxu0 %v1393
        %v3718 = vpop.f32.mrb[0].mxu0
        %v3719 = vadd.f32 %v3639, %v3718
        %v3720 = vpop.f32.mrb[0].mxu0
        %v3721 = vadd.f32 %v3643, %v3720
        %3722 = vdwg.mxu0
        %3725 = vrot.lane.b32.xlu0 %v3713, 64
        %v3726 = vpop.permute.xlu0 %3725
        %3727 = vrot.lane.b32.xlu0 %v3719, 64
        %v3728 = vpop.permute.xlu0 %3727
        %v3729 = vsel %vm1478, %v3713, 0
        %v3731 = vsel %vm1478, %v3719, 0
        %v3733 = vsel %vm1478, %v3726, 0
        %v3735 = vsel %vm1478, %v3728, 0
        %3737 = vmatprep.subr.mxu0 0.0
        %3738 = vmatpush1.xpose.msra.mxu0 %v3733
        %3739 = vmatprep.subr.mxu0 0.0
        %3740 = vmatpush1.xpose.msra.mxu0 %v3735
        %3741 = vmatprep.subr.mxu0 0.0
        %3742 = vmatpush1.xpose.msra.mxu0 0.0
        %3743 = vmatprep.subr.mxu0 0.0
        %3744 = vmatpush1.xpose.msra.mxu0 0.0
        %3745 = vmatprep.subr.mxu0 0.0
        %3746 = vmatpush1.xpose.msra.mxu0 0.0
        %3747 = vmatprep.subr.mxu0 0.0
        %3748 = vmatpush1.xpose.msra.mxu0 0.0
        %3749 = vmatprep.subr.mxu0 0.0
        %3750 = vmatpush1.xpose.msra.mxu0 0.0
        %3751 = vmatprep.subr.mxu0 0.0
        %3752 = vmatpush1.xpose.msra.mxu0 0.0
        %3753 = vmatprep.subr.mxu0 0.0
        %3754 = vmatpush1.xpose.msra.mxu0 0.0
        %3755 = vmatprep.subr.mxu0 0.0
        %3756 = vmatpush1.xpose.msra.mxu0 0.0
        %3757 = vmatprep.subr.mxu0 0.0
        %3758 = vmatpush1.xpose.msra.mxu0 0.0
        %3759 = vmatprep.subr.mxu0 0.0
        %3760 = vmatpush1.xpose.msra.mxu0 0.0
        %3761 = vmatprep.subr.mxu0 0.0
        %3762 = vmatpush1.xpose.msra.mxu0 0.0
        %3763 = vmatprep.subr.mxu0 0.0
        %3764 = vmatpush1.xpose.msra.mxu0 0.0
        %3765 = vmatprep.subr.mxu0 0.0
        %3766 = vmatpush1.xpose.msra.mxu0 0.0
        %3767 = vmatprep.subr.mxu0 0.0
        %3768 = vmatpush1.xpose.msra.mxu0 0.0
        %3769 = vmatprep.subr.mxu0 0.0
        %3770 = vmatpush1.xpose.msra.mxu0 0.0
        %3771 = vmatprep.subr.mxu0 0.0
        %3772 = vmatpush1.xpose.msra.mxu0 0.0
        %3773 = vmatprep.subr.mxu0 0.0
        %3774 = vmatpush1.xpose.msra.mxu0 0.0
        %3775 = vmatprep.subr.mxu0 0.0
        %3776 = vmatpush1.xpose.msra.mxu0 0.0
        %3777 = vmatprep.subr.mxu0 0.0
        %3778 = vmatpush1.xpose.msra.mxu0 0.0
        %3779 = vmatprep.subr.mxu0 0.0
        %3780 = vmatpush1.xpose.msra.mxu0 0.0
        %3781 = vmatprep.subr.mxu0 0.0
        %3782 = vmatpush1.xpose.msra.mxu0 0.0
        %3783 = vmatprep.subr.mxu0 0.0
        %3784 = vmatpush1.xpose.msra.mxu0 0.0
        %3785 = vmatprep.subr.mxu0 0.0
        %3786 = vmatpush1.xpose.msra.mxu0 0.0
        %3787 = vmatprep.subr.mxu0 0.0
        %3788 = vmatpush1.xpose.msra.mxu0 0.0
        %3789 = vmatprep.subr.mxu0 0.0
        %3790 = vmatpush1.xpose.msra.mxu0 0.0
        %3791 = vmatprep.subr.mxu0 0.0
        %3792 = vmatpush1.xpose.msra.mxu0 0.0
        %3793 = vmatprep.subr.mxu0 0.0
        %3794 = vmatpush1.xpose.msra.mxu0 0.0
        %3795 = vmatprep.subr.mxu0 0.0
        %3796 = vmatpush1.xpose.msra.mxu0 0.0
        %3797 = vmatprep.subr.mxu0 0.0
        %3798 = vmatpush1.xpose.msra.mxu0 0.0
        %3799 = vmatprep.subr.mxu0 0.0
        %3800 = vmatpush1.xpose.msra.mxu0 0.0
        %3801 = vmatprep.mubr.f32.mxu0 0.0
        %3802 = vmatmul.mubr.f32.gmra.mrb[0].mxu0 %v3729
        %v3803 = vpop.f32.mrb[0].mxu0
        %v3804 = vadd.f32 %v1358, %v3803
        %v3805 = vpop.f32.mrb[0].mxu0
        %3806 = vmatprep.mubr.f32.mxu0 0.0
        %3807 = vmatmul.mubr.f32.gmra.mrb[0].mxu0 %v3731
        %v3808 = vpop.f32.mrb[0].mxu0
        %v3809 = vadd.f32 %v1359, %v3808
        %v3810 = vpop.f32.mrb[0].mxu0
        %3811 = vdwg.mxu0
        %v3812 = vsel %vm1562, %v3804, -inf
        %3813 = vmax.xlane.f32.xlu0 %v3812
        %v3814 = vpop.xlane.xlu0 %3813
        %v3815 = vsel %vm1566, %v3809, -inf
        %3816 = vmax.xlane.f32.xlu0 %v3815
        %v3817 = vpop.xlane.xlu0 %3816
        %v3818 = vsub.f32 %v3804, %v3814
        %v3819 = vsub.f32 %v3809, %v3817
        %v3820 = vmul.f32 %v3818, 1.442695
        %v3821 = vpow.pop %v3820
        %v3822 = vmul.f32 %v3819, 1.442695
        %v3823 = vpow.pop %v3822
        %v3824 = vsel %vm1562, %v3821, 0.0
        %3825 = vadd.xlane.f32.xlu0 %v3824
        %v3826 = vpop.xlane.xlu0 %3825
        %v3827 = vsel %vm1566, %v3823, 0.0
        %3828 = vadd.xlane.f32.xlu0 %v3827
        %v3829 = vpop.xlane.xlu0 %3828
        %v3830 = vrcp.pop %v3826
        %v3831 = vrcp.pop %v3829
        %v3832 = vmul.f32 %v3821, %v3830
        %v3833 = vmul.f32 %v3823, %v3831
        %v3835 = vsel %vm1562, %v3832, 0
        %v3838 = vsel %vm1562, %v3833, 0
        %v3841 = vsel %vm1592, %v3721, 0
        %3843 = vmatprep.subr.mxu0 0.0
        %3844 = vmatpush1.msra.mxu0 %v3715
        %3845 = vmatprep.subr.mxu0 0.0
        %3846 = vmatpush1.msra.mxu0 %v3841
        %3847 = vmatprep.subr.mxu0 0.0
        %3848 = vmatpush1.msra.mxu0 0.0
        %3849 = vmatprep.subr.mxu0 0.0
        %3850 = vmatpush1.msra.mxu0 0.0
        %3851 = vmatprep.subr.mxu0 0.0
        %3852 = vmatpush1.msra.mxu0 0.0
        %3853 = vmatprep.subr.mxu0 0.0
        %3854 = vmatpush1.msra.mxu0 0.0
        %3855 = vmatprep.subr.mxu0 0.0
        %3856 = vmatpush1.msra.mxu0 0.0
        %3857 = vmatprep.subr.mxu0 0.0
        %3858 = vmatpush1.msra.mxu0 0.0
        %3859 = vmatprep.subr.mxu0 0.0
        %3860 = vmatpush1.msra.mxu0 0.0
        %3861 = vmatprep.subr.mxu0 0.0
        %3862 = vmatpush1.msra.mxu0 0.0
        %3863 = vmatprep.subr.mxu0 0.0
        %3864 = vmatpush1.msra.mxu0 0.0
        %3865 = vmatprep.subr.mxu0 0.0
        %3866 = vmatpush1.msra.mxu0 0.0
        %3867 = vmatprep.subr.mxu0 0.0
        %3868 = vmatpush1.msra.mxu0 0.0
        %3869 = vmatprep.subr.mxu0 0.0
        %3870 = vmatpush1.msra.mxu0 0.0
        %3871 = vmatprep.subr.mxu0 0.0
        %3872 = vmatpush1.msra.mxu0 0.0
        %3873 = vmatprep.subr.mxu0 0.0
        %3874 = vmatpush1.msra.mxu0 0.0
        %3875 = vmatprep.subr.mxu0 0.0
        %3876 = vmatpush1.msra.mxu0 0.0
        %3877 = vmatprep.subr.mxu0 0.0
        %3878 = vmatpush1.msra.mxu0 0.0
        %3879 = vmatprep.subr.mxu0 0.0
        %3880 = vmatpush1.msra.mxu0 0.0
        %3881 = vmatprep.subr.mxu0 0.0
        %3882 = vmatpush1.msra.mxu0 0.0
        %3883 = vmatprep.subr.mxu0 0.0
        %3884 = vmatpush1.msra.mxu0 0.0
        %3885 = vmatprep.subr.mxu0 0.0
        %3886 = vmatpush1.msra.mxu0 0.0
        %3887 = vmatprep.subr.mxu0 0.0
        %3888 = vmatpush1.msra.mxu0 0.0
        %3889 = vmatprep.subr.mxu0 0.0
        %3890 = vmatpush1.msra.mxu0 0.0
        %3891 = vmatprep.subr.mxu0 0.0
        %3892 = vmatpush1.msra.mxu0 0.0
        %3893 = vmatprep.subr.mxu0 0.0
        %3894 = vmatpush1.msra.mxu0 0.0
        %3895 = vmatprep.subr.mxu0 0.0
        %3896 = vmatpush1.msra.mxu0 0.0
        %3897 = vmatprep.subr.mxu0 0.0
        %3898 = vmatpush1.msra.mxu0 0.0
        %3899 = vmatprep.subr.mxu0 0.0
        %3900 = vmatpush1.msra.mxu0 0.0
        %3901 = vmatprep.subr.mxu0 0.0
        %3902 = vmatpush1.msra.mxu0 0.0
        %3903 = vmatprep.subr.mxu0 0.0
        %3904 = vmatpush1.msra.mxu0 0.0
        %3905 = vmatprep.subr.mxu0 0.0
        %3906 = vmatpush1.msra.mxu0 0.0
        %3907 = vmatprep.mubr.f32.mxu0 0.0
        %3908 = vmatmul.mubr.f32.gmra.mrb[0].mxu0 %v3835
        %v3909 = vpop.f32.mrb[0].mxu0
        %v3910 = vadd.f32 0.0, %v3909
        %v3911 = vpop.f32.mrb[0].mxu0
        %3912 = vmatprep.mubr.f32.mxu0 0.0
        %3913 = vmatmul.mubr.f32.gmra.mrb[0].mxu0 %v3838
        %v3914 = vpop.f32.mrb[0].mxu0
        %v3915 = vadd.f32 0.0, %v3914
        %v3916 = vpop.f32.mrb[0].mxu0
        %3917 = vdwg.mxu0
        %3918 = vrot.lane.b32.xlu0 %v3713, 120
        %v3919 = vpop.permute.xlu0 %3918
        %3920 = vrot.lane.b32.xlu0 %v3719, 120
        %v3921 = vpop.permute.xlu0 %3920
        %3922 = vrot.lane.b32.xlu0 %v3713, 56
        %v3923 = vpop.permute.xlu0 %3922
        %3924 = vrot.lane.b32.xlu0 %v3719, 56
        %v3925 = vpop.permute.xlu0 %3924
        %v3926 = vsel %vm1478, %v3919, 0
        %v3928 = vsel %vm1478, %v3921, 0
        %v3930 = vsel %vm1478, %v3923, 0
        %v3932 = vsel %vm1478, %v3925, 0
        %3934 = vmatprep.subr.mxu0 0.0
        %3935 = vmatpush1.xpose.msra.mxu0 %v3930
        %3936 = vmatprep.subr.mxu0 0.0
        %3937 = vmatpush1.xpose.msra.mxu0 %v3932
        %3938 = vmatprep.subr.mxu0 0.0
        %3939 = vmatpush1.xpose.msra.mxu0 0.0
        %3940 = vmatprep.subr.mxu0 0.0
        %3941 = vmatpush1.xpose.msra.mxu0 0.0
        %3942 = vmatprep.subr.mxu0 0.0
        %3943 = vmatpush1.xpose.msra.mxu0 0.0
        %3944 = vmatprep.subr.mxu0 0.0
        %3945 = vmatpush1.xpose.msra.mxu0 0.0
        %3946 = vmatprep.subr.mxu0 0.0
        %3947 = vmatpush1.xpose.msra.mxu0 0.0
        %3948 = vmatprep.subr.mxu0 0.0
        %3949 = vmatpush1.xpose.msra.mxu0 0.0
        %3950 = vmatprep.subr.mxu0 0.0
        %3951 = vmatpush1.xpose.msra.mxu0 0.0
        %3952 = vmatprep.subr.mxu0 0.0
        %3953 = vmatpush1.xpose.msra.mxu0 0.0
        %3954 = vmatprep.subr.mxu0 0.0
        %3955 = vmatpush1.xpose.msra.mxu0 0.0
        %3956 = vmatprep.subr.mxu0 0.0
        %3957 = vmatpush1.xpose.msra.mxu0 0.0
        %3958 = vmatprep.subr.mxu0 0.0
        %3959 = vmatpush1.xpose.msra.mxu0 0.0
        %3960 = vmatprep.subr.mxu0 0.0
        %3961 = vmatpush1.xpose.msra.mxu0 0.0
        %3962 = vmatprep.subr.mxu0 0.0
        %3963 = vmatpush1.xpose.msra.mxu0 0.0
        %3964 = vmatprep.subr.mxu0 0.0
        %3965 = vmatpush1.xpose.msra.mxu0 0.0
        %3966 = vmatprep.subr.mxu0 0.0
        %3967 = vmatpush1.xpose.msra.mxu0 0.0
        %3968 = vmatprep.subr.mxu0 0.0
        %3969 = vmatpush1.xpose.msra.mxu0 0.0
        %3970 = vmatprep.subr.mxu0 0.0
        %3971 = vmatpush1.xpose.msra.mxu0 0.0
        %3972 = vmatprep.subr.mxu0 0.0
        %3973 = vmatpush1.xpose.msra.mxu0 0.0
        %3974 = vmatprep.subr.mxu0 0.0
        %3975 = vmatpush1.xpose.msra.mxu0 0.0
        %3976 = vmatprep.subr.mxu0 0.0
        %3977 = vmatpush1.xpose.msra.mxu0 0.0
        %3978 = vmatprep.subr.mxu0 0.0
        %3979 = vmatpush1.xpose.msra.mxu0 0.0
        %3980 = vmatprep.subr.mxu0 0.0
        %3981 = vmatpush1.xpose.msra.mxu0 0.0
        %3982 = vmatprep.subr.mxu0 0.0
        %3983 = vmatpush1.xpose.msra.mxu0 0.0
        %3984 = vmatprep.subr.mxu0 0.0
        %3985 = vmatpush1.xpose.msra.mxu0 0.0
        %3986 = vmatprep.subr.mxu0 0.0
        %3987 = vmatpush1.xpose.msra.mxu0 0.0
        %3988 = vmatprep.subr.mxu0 0.0
        %3989 = vmatpush1.xpose.msra.mxu0 0.0
        %3990 = vmatprep.subr.mxu0 0.0
        %3991 = vmatpush1.xpose.msra.mxu0 0.0
        %3992 = vmatprep.subr.mxu0 0.0
        %3993 = vmatpush1.xpose.msra.mxu0 0.0
        %3994 = vmatprep.subr.mxu0 0.0
        %3995 = vmatpush1.xpose.msra.mxu0 0.0
        %3996 = vmatprep.subr.mxu0 0.0
        %3997 = vmatpush1.xpose.msra.mxu0 0.0
        %3998 = vmatprep.mubr.f32.mxu0 0.0
        %3999 = vmatmul.mubr.f32.gmra.mrb[0].mxu0 %v3926
        %v4000 = vpop.f32.mrb[0].mxu0
        %v4001 = vadd.f32 %v1358, %v4000
        %v4002 = vpop.f32.mrb[0].mxu0
        %4003 = vmatprep.mubr.f32.mxu0 0.0
        %4004 = vmatmul.mubr.f32.gmra.mrb[0].mxu0 %v3928
        %v4005 = vpop.f32.mrb[0].mxu0
        %v4006 = vadd.f32 %v1359, %v4005
        %v4007 = vpop.f32.mrb[0].mxu0
        %4008 = vdwg.mxu0
        %v4009 = vsel %vm1562, %v4001, -inf
        %4010 = vmax.xlane.f32.xlu0 %v4009
        %v4011 = vpop.xlane.xlu0 %4010
        %v4012 = vsel %vm1566, %v4006, -inf
        %4013 = vmax.xlane.f32.xlu0 %v4012
        %v4014 = vpop.xlane.xlu0 %4013
        %v4015 = vsub.f32 %v4001, %v4011
        %v4016 = vsub.f32 %v4006, %v4014
        %v4017 = vmul.f32 %v4015, 1.442695
        %v4018 = vpow.pop %v4017
        %v4019 = vmul.f32 %v4016, 1.442695
        %v4020 = vpow.pop %v4019
        %v4021 = vsel %vm1562, %v4018, 0.0
        %4022 = vadd.xlane.f32.xlu0 %v4021
        %v4023 = vpop.xlane.xlu0 %4022
        %v4024 = vsel %vm1566, %v4020, 0.0
        %4025 = vadd.xlane.f32.xlu0 %v4024
        %v4026 = vpop.xlane.xlu0 %4025
        %v4027 = vrcp.pop %v4023
        %v4028 = vrcp.pop %v4026
        %v4029 = vmul.f32 %v4018, %v4027
        %v4030 = vmul.f32 %v4020, %v4028
        %4032 = vrot.lane.b32.xlu0 %v3715, 120
        %v4033 = vpop.permute.xlu0 %4032
        %4034 = vrot.lane.b32.xlu0 %v3721, 120
        %v4035 = vpop.permute.xlu0 %4034
        %v4038 = vsel %vm1562, %v4029, 0
        %v4041 = vsel %vm1562, %v4030, 0
        %v4043 = vsel %vm1592, %v4035, 0
        %4045 = vmatprep.subr.mxu0 0.0
        %4046 = vmatpush1.msra.mxu0 %v4033
        %4047 = vmatprep.subr.mxu0 0.0
        %4048 = vmatpush1.msra.mxu0 %v4043
        %4049 = vmatprep.subr.mxu0 0.0
        %4050 = vmatpush1.msra.mxu0 0.0
        %4051 = vmatprep.subr.mxu0 0.0
        %4052 = vmatpush1.msra.mxu0 0.0
        %4053 = vmatprep.subr.mxu0 0.0
        %4054 = vmatpush1.msra.mxu0 0.0
        %4055 = vmatprep.subr.mxu0 0.0
        %4056 = vmatpush1.msra.mxu0 0.0
        %4057 = vmatprep.subr.mxu0 0.0
        %4058 = vmatpush1.msra.mxu0 0.0
        %4059 = vmatprep.subr.mxu0 0.0
        %4060 = vmatpush1.msra.mxu0 0.0
        %4061 = vmatprep.subr.mxu0 0.0
        %4062 = vmatpush1.msra.mxu0 0.0
        %4063 = vmatprep.subr.mxu0 0.0
        %4064 = vmatpush1.msra.mxu0 0.0
        %4065 = vmatprep.subr.mxu0 0.0
        %4066 = vmatpush1.msra.mxu0 0.0
        %4067 = vmatprep.subr.mxu0 0.0
        %4068 = vmatpush1.msra.mxu0 0.0
        %4069 = vmatprep.subr.mxu0 0.0
        %4070 = vmatpush1.msra.mxu0 0.0
        %4071 = vmatprep.subr.mxu0 0.0
        %4072 = vmatpush1.msra.mxu0 0.0
        %4073 = vmatprep.subr.mxu0 0.0
        %4074 = vmatpush1.msra.mxu0 0.0
        %4075 = vmatprep.subr.mxu0 0.0
        %4076 = vmatpush1.msra.mxu0 0.0
        %4077 = vmatprep.subr.mxu0 0.0
        %4078 = vmatpush1.msra.mxu0 0.0
        %4079 = vmatprep.subr.mxu0 0.0
        %4080 = vmatpush1.msra.mxu0 0.0
        %4081 = vmatprep.subr.mxu0 0.0
        %4082 = vmatpush1.msra.mxu0 0.0
        %4083 = vmatprep.subr.mxu0 0.0
        %4084 = vmatpush1.msra.mxu0 0.0
        %4085 = vmatprep.subr.mxu0 0.0
        %4086 = vmatpush1.msra.mxu0 0.0
        %4087 = vmatprep.subr.mxu0 0.0
        %4088 = vmatpush1.msra.mxu0 0.0
        %4089 = vmatprep.subr.mxu0 0.0
        %4090 = vmatpush1.msra.mxu0 0.0
        %4091 = vmatprep.subr.mxu0 0.0
        %4092 = vmatpush1.msra.mxu0 0.0
        %4093 = vmatprep.subr.mxu0 0.0
        %4094 = vmatpush1.msra.mxu0 0.0
        %4095 = vmatprep.subr.mxu0 0.0
        %4096 = vmatpush1.msra.mxu0 0.0
        %4097 = vmatprep.subr.mxu0 0.0
        %4098 = vmatpush1.msra.mxu0 0.0
        %4099 = vmatprep.subr.mxu0 0.0
        %4100 = vmatpush1.msra.mxu0 0.0
        %4101 = vmatprep.subr.mxu0 0.0
        %4102 = vmatpush1.msra.mxu0 0.0
        %4103 = vmatprep.subr.mxu0 0.0
        %4104 = vmatpush1.msra.mxu0 0.0
        %4105 = vmatprep.subr.mxu0 0.0
        %4106 = vmatpush1.msra.mxu0 0.0
        %4107 = vmatprep.subr.mxu0 0.0
        %4108 = vmatpush1.msra.mxu0 0.0
        %4109 = vmatprep.mubr.f32.mxu0 0.0
        %4110 = vmatmul.mubr.f32.gmra.mrb[0].mxu0 %v4038
        %v4111 = vpop.f32.mrb[0].mxu0
        %v4112 = vadd.f32 0.0, %v4111
        %v4113 = vpop.f32.mrb[0].mxu0
        %4114 = vmatprep.mubr.f32.mxu0 0.0
        %4115 = vmatmul.mubr.f32.gmra.mrb[0].mxu0 %v4041
        %v4116 = vpop.f32.mrb[0].mxu0
        %v4117 = vadd.f32 0.0, %v4116
        %v4118 = vpop.f32.mrb[0].mxu0
        %4119 = vdwg.mxu0
        %4120 = vrot.lane.b32.xlu0 %v3713, 112
        %v4121 = vpop.permute.xlu0 %4120
        %4122 = vrot.lane.b32.xlu0 %v3719, 112
        %v4123 = vpop.permute.xlu0 %4122
        %4124 = vrot.lane.b32.xlu0 %v3713, 48
        %v4125 = vpop.permute.xlu0 %4124
        %4126 = vrot.lane.b32.xlu0 %v3719, 48
        %v4127 = vpop.permute.xlu0 %4126
        %v4128 = vsel %vm1478, %v4121, 0
        %v4130 = vsel %vm1478, %v4123, 0
        %v4132 = vsel %vm1478, %v4125, 0
        %v4134 = vsel %vm1478, %v4127, 0
        %4136 = vmatprep.subr.mxu0 0.0
        %4137 = vmatpush1.xpose.msra.mxu0 %v4132
        %4138 = vmatprep.subr.mxu0 0.0
        %4139 = vmatpush1.xpose.msra.mxu0 %v4134
        %4140 = vmatprep.subr.mxu0 0.0
        %4141 = vmatpush1.xpose.msra.mxu0 0.0
        %4142 = vmatprep.subr.mxu0 0.0
        %4143 = vmatpush1.xpose.msra.mxu0 0.0
        %4144 = vmatprep.subr.mxu0 0.0
        %4145 = vmatpush1.xpose.msra.mxu0 0.0
        %4146 = vmatprep.subr.mxu0 0.0
        %4147 = vmatpush1.xpose.msra.mxu0 0.0
        %4148 = vmatprep.subr.mxu0 0.0
        %4149 = vmatpush1.xpose.msra.mxu0 0.0
        %4150 = vmatprep.subr.mxu0 0.0
        %4151 = vmatpush1.xpose.msra.mxu0 0.0
        %4152 = vmatprep.subr.mxu0 0.0
        %4153 = vmatpush1.xpose.msra.mxu0 0.0
        %4154 = vmatprep.subr.mxu0 0.0
        %4155 = vmatpush1.xpose.msra.mxu0 0.0
        %4156 = vmatprep.subr.mxu0 0.0
        %4157 = vmatpush1.xpose.msra.mxu0 0.0
        %4158 = vmatprep.subr.mxu0 0.0
        %4159 = vmatpush1.xpose.msra.mxu0 0.0
        %4160 = vmatprep.subr.mxu0 0.0
        %4161 = vmatpush1.xpose.msra.mxu0 0.0
        %4162 = vmatprep.subr.mxu0 0.0
        %4163 = vmatpush1.xpose.msra.mxu0 0.0
        %4164 = vmatprep.subr.mxu0 0.0
        %4165 = vmatpush1.xpose.msra.mxu0 0.0
        %4166 = vmatprep.subr.mxu0 0.0
        %4167 = vmatpush1.xpose.msra.mxu0 0.0
        %4168 = vmatprep.subr.mxu0 0.0
        %4169 = vmatpush1.xpose.msra.mxu0 0.0
        %4170 = vmatprep.subr.mxu0 0.0
        %4171 = vmatpush1.xpose.msra.mxu0 0.0
        %4172 = vmatprep.subr.mxu0 0.0
        %4173 = vmatpush1.xpose.msra.mxu0 0.0
        %4174 = vmatprep.subr.mxu0 0.0
        %4175 = vmatpush1.xpose.msra.mxu0 0.0
        %4176 = vmatprep.subr.mxu0 0.0
        %4177 = vmatpush1.xpose.msra.mxu0 0.0
        %4178 = vmatprep.subr.mxu0 0.0
        %4179 = vmatpush1.xpose.msra.mxu0 0.0
        %4180 = vmatprep.subr.mxu0 0.0
        %4181 = vmatpush1.xpose.msra.mxu0 0.0
        %4182 = vmatprep.subr.mxu0 0.0
        %4183 = vmatpush1.xpose.msra.mxu0 0.0
        %4184 = vmatprep.subr.mxu0 0.0
        %4185 = vmatpush1.xpose.msra.mxu0 0.0
        %4186 = vmatprep.subr.mxu0 0.0
        %4187 = vmatpush1.xpose.msra.mxu0 0.0
        %4188 = vmatprep.subr.mxu0 0.0
        %4189 = vmatpush1.xpose.msra.mxu0 0.0
        %4190 = vmatprep.subr.mxu0 0.0
        %4191 = vmatpush1.xpose.msra.mxu0 0.0
        %4192 = vmatprep.subr.mxu0 0.0
        %4193 = vmatpush1.xpose.msra.mxu0 0.0
        %4194 = vmatprep.subr.mxu0 0.0
        %4195 = vmatpush1.xpose.msra.mxu0 0.0
        %4196 = vmatprep.subr.mxu0 0.0
        %4197 = vmatpush1.xpose.msra.mxu0 0.0
        %4198 = vmatprep.subr.mxu0 0.0
        %4199 = vmatpush1.xpose.msra.mxu0 0.0
        %4200 = vmatprep.mubr.f32.mxu0 0.0
        %4201 = vmatmul.mubr.f32.gmra.mrb[0].mxu0 %v4128
        %v4202 = vpop.f32.mrb[0].mxu0
        %v4203 = vadd.f32 %v1358, %v4202
        %v4204 = vpop.f32.mrb[0].mxu0
        %4205 = vmatprep.mubr.f32.mxu0 0.0
        %4206 = vmatmul.mubr.f32.gmra.mrb[0].mxu0 %v4130
        %v4207 = vpop.f32.mrb[0].mxu0
        %v4208 = vadd.f32 %v1359, %v4207
        %v4209 = vpop.f32.mrb[0].mxu0
        %4210 = vdwg.mxu0
        %v4211 = vsel %vm1562, %v4203, -inf
        %4212 = vmax.xlane.f32.xlu0 %v4211
        %v4213 = vpop.xlane.xlu0 %4212
        %v4214 = vsel %vm1566, %v4208, -inf
        %4215 = vmax.xlane.f32.xlu0 %v4214
        %v4216 = vpop.xlane.xlu0 %4215
        %v4217 = vsub.f32 %v4203, %v4213
        %v4218 = vsub.f32 %v4208, %v4216
        %v4219 = vmul.f32 %v4217, 1.442695
        %v4220 = vpow.pop %v4219
        %v4221 = vmul.f32 %v4218, 1.442695
        %v4222 = vpow.pop %v4221
        %v4223 = vsel %vm1562, %v4220, 0.0
        %4224 = vadd.xlane.f32.xlu0 %v4223
        %v4225 = vpop.xlane.xlu0 %4224
        %v4226 = vsel %vm1566, %v4222, 0.0
        %4227 = vadd.xlane.f32.xlu0 %v4226
        %v4228 = vpop.xlane.xlu0 %4227
        %v4229 = vrcp.pop %v4225
        %v4230 = vrcp.pop %v4228
        %v4231 = vmul.f32 %v4220, %v4229
        %v4232 = vmul.f32 %v4222, %v4230
        %4233 = vrot.lane.b32.xlu0 %v3715, 112
        %v4234 = vpop.permute.xlu0 %4233
        %4235 = vrot.lane.b32.xlu0 %v3721, 112
        %v4236 = vpop.permute.xlu0 %4235
        %v4239 = vsel %vm1562, %v4231, 0
        %v4242 = vsel %vm1562, %v4232, 0
        %v4244 = vsel %vm1592, %v4236, 0
        %4246 = vmatprep.subr.mxu0 0.0
        %4247 = vmatpush1.msra.mxu0 %v4234
        %4248 = vmatprep.subr.mxu0 0.0
        %4249 = vmatpush1.msra.mxu0 %v4244
        %4250 = vmatprep.subr.mxu0 0.0
        %4251 = vmatpush1.msra.mxu0 0.0
        %4252 = vmatprep.subr.mxu0 0.0
        %4253 = vmatpush1.msra.mxu0 0.0
        %4254 = vmatprep.subr.mxu0 0.0
        %4255 = vmatpush1.msra.mxu0 0.0
        %4256 = vmatprep.subr.mxu0 0.0
        %4257 = vmatpush1.msra.mxu0 0.0
        %4258 = vmatprep.subr.mxu0 0.0
        %4259 = vmatpush1.msra.mxu0 0.0
        %4260 = vmatprep.subr.mxu0 0.0
        %4261 = vmatpush1.msra.mxu0 0.0
        %4262 = vmatprep.subr.mxu0 0.0
        %4263 = vmatpush1.msra.mxu0 0.0
        %4264 = vmatprep.subr.mxu0 0.0
        %4265 = vmatpush1.msra.mxu0 0.0
        %4266 = vmatprep.subr.mxu0 0.0
        %4267 = vmatpush1.msra.mxu0 0.0
        %4268 = vmatprep.subr.mxu0 0.0
        %4269 = vmatpush1.msra.mxu0 0.0
        %4270 = vmatprep.subr.mxu0 0.0
        %4271 = vmatpush1.msra.mxu0 0.0
        %4272 = vmatprep.subr.mxu0 0.0
        %4273 = vmatpush1.msra.mxu0 0.0
        %4274 = vmatprep.subr.mxu0 0.0
        %4275 = vmatpush1.msra.mxu0 0.0
        %4276 = vmatprep.subr.mxu0 0.0
        %4277 = vmatpush1.msra.mxu0 0.0
        %4278 = vmatprep.subr.mxu0 0.0
        %4279 = vmatpush1.msra.mxu0 0.0
        %4280 = vmatprep.subr.mxu0 0.0
        %4281 = vmatpush1.msra.mxu0 0.0
        %4282 = vmatprep.subr.mxu0 0.0
        %4283 = vmatpush1.msra.mxu0 0.0
        %4284 = vmatprep.subr.mxu0 0.0
        %4285 = vmatpush1.msra.mxu0 0.0
        %4286 = vmatprep.subr.mxu0 0.0
        %4287 = vmatpush1.msra.mxu0 0.0
        %4288 = vmatprep.subr.mxu0 0.0
        %4289 = vmatpush1.msra.mxu0 0.0
        %4290 = vmatprep.subr.mxu0 0.0
        %4291 = vmatpush1.msra.mxu0 0.0
        %4292 = vmatprep.subr.mxu0 0.0
        %4293 = vmatpush1.msra.mxu0 0.0
        %4294 = vmatprep.subr.mxu0 0.0
        %4295 = vmatpush1.msra.mxu0 0.0
        %4296 = vmatprep.subr.mxu0 0.0
        %4297 = vmatpush1.msra.mxu0 0.0
        %4298 = vmatprep.subr.mxu0 0.0
        %4299 = vmatpush1.msra.mxu0 0.0
        %4300 = vmatprep.subr.mxu0 0.0
        %4301 = vmatpush1.msra.mxu0 0.0
        %4302 = vmatprep.subr.mxu0 0.0
        %4303 = vmatpush1.msra.mxu0 0.0
        %4304 = vmatprep.subr.mxu0 0.0
        %4305 = vmatpush1.msra.mxu0 0.0
        %4306 = vmatprep.subr.mxu0 0.0
        %4307 = vmatpush1.msra.mxu0 0.0
        %4308 = vmatprep.subr.mxu0 0.0
        %4309 = vmatpush1.msra.mxu0 0.0
        %4310 = vmatprep.mubr.f32.mxu0 0.0
        %4311 = vmatmul.mubr.f32.gmra.mrb[0].mxu0 %v4239
        %v4312 = vpop.f32.mrb[0].mxu0
        %v4313 = vadd.f32 0.0, %v4312
        %v4314 = vpop.f32.mrb[0].mxu0
        %4315 = vmatprep.mubr.f32.mxu0 0.0
        %4316 = vmatmul.mubr.f32.gmra.mrb[0].mxu0 %v4242
        %v4317 = vpop.f32.mrb[0].mxu0
        %v4318 = vadd.f32 0.0, %v4317
        %v4319 = vpop.f32.mrb[0].mxu0
        %4320 = vdwg.mxu0
        %4321 = vrot.lane.b32.xlu0 %v3713, 104
        %v4322 = vpop.permute.xlu0 %4321
        %4323 = vrot.lane.b32.xlu0 %v3719, 104
        %v4324 = vpop.permute.xlu0 %4323
        %4325 = vrot.lane.b32.xlu0 %v3713, 40
        %v4326 = vpop.permute.xlu0 %4325
        %4327 = vrot.lane.b32.xlu0 %v3719, 40
        %v4328 = vpop.permute.xlu0 %4327
        %v4329 = vsel %vm1478, %v4322, 0
        %v4331 = vsel %vm1478, %v4324, 0
        %v4333 = vsel %vm1478, %v4326, 0
        %v4335 = vsel %vm1478, %v4328, 0
        %4337 = vmatprep.subr.mxu0 0.0
        %4338 = vmatpush1.xpose.msra.mxu0 %v4333
        %4339 = vmatprep.subr.mxu0 0.0
        %4340 = vmatpush1.xpose.msra.mxu0 %v4335
        %4341 = vmatprep.subr.mxu0 0.0
        %4342 = vmatpush1.xpose.msra.mxu0 0.0
        %4343 = vmatprep.subr.mxu0 0.0
        %4344 = vmatpush1.xpose.msra.mxu0 0.0
        %4345 = vmatprep.subr.mxu0 0.0
        %4346 = vmatpush1.xpose.msra.mxu0 0.0
        %4347 = vmatprep.subr.mxu0 0.0
        %4348 = vmatpush1.xpose.msra.mxu0 0.0
        %4349 = vmatprep.subr.mxu0 0.0
        %4350 = vmatpush1.xpose.msra.mxu0 0.0
        %4351 = vmatprep.subr.mxu0 0.0
        %4352 = vmatpush1.xpose.msra.mxu0 0.0
        %4353 = vmatprep.subr.mxu0 0.0
        %4354 = vmatpush1.xpose.msra.mxu0 0.0
        %4355 = vmatprep.subr.mxu0 0.0
        %4356 = vmatpush1.xpose.msra.mxu0 0.0
        %4357 = vmatprep.subr.mxu0 0.0
        %4358 = vmatpush1.xpose.msra.mxu0 0.0
        %4359 = vmatprep.subr.mxu0 0.0
        %4360 = vmatpush1.xpose.msra.mxu0 0.0
        %4361 = vmatprep.subr.mxu0 0.0
        %4362 = vmatpush1.xpose.msra.mxu0 0.0
        %4363 = vmatprep.subr.mxu0 0.0
        %4364 = vmatpush1.xpose.msra.mxu0 0.0
        %4365 = vmatprep.subr.mxu0 0.0
        %4366 = vmatpush1.xpose.msra.mxu0 0.0
        %4367 = vmatprep.subr.mxu0 0.0
        %4368 = vmatpush1.xpose.msra.mxu0 0.0
        %4369 = vmatprep.subr.mxu0 0.0
        %4370 = vmatpush1.xpose.msra.mxu0 0.0
        %4371 = vmatprep.subr.mxu0 0.0
        %4372 = vmatpush1.xpose.msra.mxu0 0.0
        %4373 = vmatprep.subr.mxu0 0.0
        %4374 = vmatpush1.xpose.msra.mxu0 0.0
        %4375 = vmatprep.subr.mxu0 0.0
        %4376 = vmatpush1.xpose.msra.mxu0 0.0
        %4377 = vmatprep.subr.mxu0 0.0
        %4378 = vmatpush1.xpose.msra.mxu0 0.0
        %4379 = vmatprep.subr.mxu0 0.0
        %4380 = vmatpush1.xpose.msra.mxu0 0.0
        %4381 = vmatprep.subr.mxu0 0.0
        %4382 = vmatpush1.xpose.msra.mxu0 0.0
        %4383 = vmatprep.subr.mxu0 0.0
        %4384 = vmatpush1.xpose.msra.mxu0 0.0
        %4385 = vmatprep.subr.mxu0 0.0
        %4386 = vmatpush1.xpose.msra.mxu0 0.0
        %4387 = vmatprep.subr.mxu0 0.0
        %4388 = vmatpush1.xpose.msra.mxu0 0.0
        %4389 = vmatprep.subr.mxu0 0.0
        %4390 = vmatpush1.xpose.msra.mxu0 0.0
        %4391 = vmatprep.subr.mxu0 0.0
        %4392 = vmatpush1.xpose.msra.mxu0 0.0
        %4393 = vmatprep.subr.mxu0 0.0
        %4394 = vmatpush1.xpose.msra.mxu0 0.0
        %4395 = vmatprep.subr.mxu0 0.0
        %4396 = vmatpush1.xpose.msra.mxu0 0.0
        %4397 = vmatprep.subr.mxu0 0.0
        %4398 = vmatpush1.xpose.msra.mxu0 0.0
        %4399 = vmatprep.subr.mxu0 0.0
        %4400 = vmatpush1.xpose.msra.mxu0 0.0
        %4401 = vmatprep.mubr.f32.mxu0 0.0
        %4402 = vmatmul.mubr.f32.gmra.mrb[0].mxu0 %v4329
        %v4403 = vpop.f32.mrb[0].mxu0
        %v4404 = vadd.f32 %v1358, %v4403
        %v4405 = vpop.f32.mrb[0].mxu0
        %4406 = vmatprep.mubr.f32.mxu0 0.0
        %4407 = vmatmul.mubr.f32.gmra.mrb[0].mxu0 %v4331
        %v4408 = vpop.f32.mrb[0].mxu0
        %v4409 = vadd.f32 %v1359, %v4408
        %v4410 = vpop.f32.mrb[0].mxu0
        %4411 = vdwg.mxu0
        %v4412 = vsel %vm1562, %v4404, -inf
        %4413 = vmax.xlane.f32.xlu0 %v4412
        %v4414 = vpop.xlane.xlu0 %4413
        %v4415 = vsel %vm1566, %v4409, -inf
        %4416 = vmax.xlane.f32.xlu0 %v4415
        %v4417 = vpop.xlane.xlu0 %4416
        %v4418 = vsub.f32 %v4404, %v4414
        %v4419 = vsub.f32 %v4409, %v4417
        %v4420 = vmul.f32 %v4418, 1.442695
        %v4421 = vpow.pop %v4420
        %v4422 = vmul.f32 %v4419, 1.442695
        %v4423 = vpow.pop %v4422
        %v4424 = vsel %vm1562, %v4421, 0.0
        %4425 = vadd.xlane.f32.xlu0 %v4424
        %v4426 = vpop.xlane.xlu0 %4425
        %v4427 = vsel %vm1566, %v4423, 0.0
        %4428 = vadd.xlane.f32.xlu0 %v4427
        %v4429 = vpop.xlane.xlu0 %4428
        %v4430 = vrcp.pop %v4426
        %v4431 = vrcp.pop %v4429
        %v4432 = vmul.f32 %v4421, %v4430
        %v4433 = vmul.f32 %v4423, %v4431
        %4434 = vrot.lane.b32.xlu0 %v3715, 104
        %v4435 = vpop.permute.xlu0 %4434
        %4436 = vrot.lane.b32.xlu0 %v3721, 104
        %v4437 = vpop.permute.xlu0 %4436
        %v4440 = vsel %vm1562, %v4432, 0
        %v4443 = vsel %vm1562, %v4433, 0
        %v4445 = vsel %vm1592, %v4437, 0
        %4447 = vmatprep.subr.mxu0 0.0
        %4448 = vmatpush1.msra.mxu0 %v4435
        %4449 = vmatprep.subr.mxu0 0.0
        %4450 = vmatpush1.msra.mxu0 %v4445
        %4451 = vmatprep.subr.mxu0 0.0
        %4452 = vmatpush1.msra.mxu0 0.0
        %4453 = vmatprep.subr.mxu0 0.0
        %4454 = vmatpush1.msra.mxu0 0.0
        %4455 = vmatprep.subr.mxu0 0.0
        %4456 = vmatpush1.msra.mxu0 0.0
        %4457 = vmatprep.subr.mxu0 0.0
        %4458 = vmatpush1.msra.mxu0 0.0
        %4459 = vmatprep.subr.mxu0 0.0
        %4460 = vmatpush1.msra.mxu0 0.0
        %4461 = vmatprep.subr.mxu0 0.0
        %4462 = vmatpush1.msra.mxu0 0.0
        %4463 = vmatprep.subr.mxu0 0.0
        %4464 = vmatpush1.msra.mxu0 0.0
        %4465 = vmatprep.subr.mxu0 0.0
        %4466 = vmatpush1.msra.mxu0 0.0
        %4467 = vmatprep.subr.mxu0 0.0
        %4468 = vmatpush1.msra.mxu0 0.0
        %4469 = vmatprep.subr.mxu0 0.0
        %4470 = vmatpush1.msra.mxu0 0.0
        %4471 = vmatprep.subr.mxu0 0.0
        %4472 = vmatpush1.msra.mxu0 0.0
        %4473 = vmatprep.subr.mxu0 0.0
        %4474 = vmatpush1.msra.mxu0 0.0
        %4475 = vmatprep.subr.mxu0 0.0
        %4476 = vmatpush1.msra.mxu0 0.0
        %4477 = vmatprep.subr.mxu0 0.0
        %4478 = vmatpush1.msra.mxu0 0.0
        %4479 = vmatprep.subr.mxu0 0.0
        %4480 = vmatpush1.msra.mxu0 0.0
        %4481 = vmatprep.subr.mxu0 0.0
        %4482 = vmatpush1.msra.mxu0 0.0
        %4483 = vmatprep.subr.mxu0 0.0
        %4484 = vmatpush1.msra.mxu0 0.0
        %4485 = vmatprep.subr.mxu0 0.0
        %4486 = vmatpush1.msra.mxu0 0.0
        %4487 = vmatprep.subr.mxu0 0.0
        %4488 = vmatpush1.msra.mxu0 0.0
        %4489 = vmatprep.subr.mxu0 0.0
        %4490 = vmatpush1.msra.mxu0 0.0
        %4491 = vmatprep.subr.mxu0 0.0
        %4492 = vmatpush1.msra.mxu0 0.0
        %4493 = vmatprep.subr.mxu0 0.0
        %4494 = vmatpush1.msra.mxu0 0.0
        %4495 = vmatprep.subr.mxu0 0.0
        %4496 = vmatpush1.msra.mxu0 0.0
        %4497 = vmatprep.subr.mxu0 0.0
        %4498 = vmatpush1.msra.mxu0 0.0
        %4499 = vmatprep.subr.mxu0 0.0
        %4500 = vmatpush1.msra.mxu0 0.0
        %4501 = vmatprep.subr.mxu0 0.0
        %4502 = vmatpush1.msra.mxu0 0.0
        %4503 = vmatprep.subr.mxu0 0.0
        %4504 = vmatpush1.msra.mxu0 0.0
        %4505 = vmatprep.subr.mxu0 0.0
        %4506 = vmatpush1.msra.mxu0 0.0
        %4507 = vmatprep.subr.mxu0 0.0
        %4508 = vmatpush1.msra.mxu0 0.0
        %4509 = vmatprep.subr.mxu0 0.0
        %4510 = vmatpush1.msra.mxu0 0.0
        %4511 = vmatprep.mubr.f32.mxu0 0.0
        %4512 = vmatmul.mubr.f32.gmra.mrb[0].mxu0 %v4440
        %v4513 = vpop.f32.mrb[0].mxu0
        %v4514 = vadd.f32 0.0, %v4513
        %v4515 = vpop.f32.mrb[0].mxu0
        %4516 = vmatprep.mubr.f32.mxu0 0.0
        %4517 = vmatmul.mubr.f32.gmra.mrb[0].mxu0 %v4443
        %v4518 = vpop.f32.mrb[0].mxu0
        %v4519 = vadd.f32 0.0, %v4518
        %v4520 = vpop.f32.mrb[0].mxu0
        %4521 = vdwg.mxu0
        %4522 = vrot.lane.b32.xlu0 %v3713, 96
        %v4523 = vpop.permute.xlu0 %4522
        %4524 = vrot.lane.b32.xlu0 %v3719, 96
        %v4525 = vpop.permute.xlu0 %4524
        %4526 = vrot.lane.b32.xlu0 %v3713, 32
        %v4527 = vpop.permute.xlu0 %4526
        %4528 = vrot.lane.b32.xlu0 %v3719, 32
        %v4529 = vpop.permute.xlu0 %4528
        %v4530 = vsel %vm1478, %v4523, 0
        %v4532 = vsel %vm1478, %v4525, 0
        %v4534 = vsel %vm1478, %v4527, 0
        %v4536 = vsel %vm1478, %v4529, 0
        %4538 = vmatprep.subr.mxu0 0.0
        %4539 = vmatpush1.xpose.msra.mxu0 %v4534
        %4540 = vmatprep.subr.mxu0 0.0
        %4541 = vmatpush1.xpose.msra.mxu0 %v4536
        %4542 = vmatprep.subr.mxu0 0.0
        %4543 = vmatpush1.xpose.msra.mxu0 0.0
        %4544 = vmatprep.subr.mxu0 0.0
        %4545 = vmatpush1.xpose.msra.mxu0 0.0
        %4546 = vmatprep.subr.mxu0 0.0
        %4547 = vmatpush1.xpose.msra.mxu0 0.0
        %4548 = vmatprep.subr.mxu0 0.0
        %4549 = vmatpush1.xpose.msra.mxu0 0.0
        %4550 = vmatprep.subr.mxu0 0.0
        %4551 = vmatpush1.xpose.msra.mxu0 0.0
        %4552 = vmatprep.subr.mxu0 0.0
        %4553 = vmatpush1.xpose.msra.mxu0 0.0
        %4554 = vmatprep.subr.mxu0 0.0
        %4555 = vmatpush1.xpose.msra.mxu0 0.0
        %4556 = vmatprep.subr.mxu0 0.0
        %4557 = vmatpush1.xpose.msra.mxu0 0.0
        %4558 = vmatprep.subr.mxu0 0.0
        %4559 = vmatpush1.xpose.msra.mxu0 0.0
        %4560 = vmatprep.subr.mxu0 0.0
        %4561 = vmatpush1.xpose.msra.mxu0 0.0
        %4562 = vmatprep.subr.mxu0 0.0
        %4563 = vmatpush1.xpose.msra.mxu0 0.0
        %4564 = vmatprep.subr.mxu0 0.0
        %4565 = vmatpush1.xpose.msra.mxu0 0.0
        %4566 = vmatprep.subr.mxu0 0.0
        %4567 = vmatpush1.xpose.msra.mxu0 0.0
        %4568 = vmatprep.subr.mxu0 0.0
        %4569 = vmatpush1.xpose.msra.mxu0 0.0
        %4570 = vmatprep.subr.mxu0 0.0
        %4571 = vmatpush1.xpose.msra.mxu0 0.0
        %4572 = vmatprep.subr.mxu0 0.0
        %4573 = vmatpush1.xpose.msra.mxu0 0.0
        %4574 = vmatprep.subr.mxu0 0.0
        %4575 = vmatpush1.xpose.msra.mxu0 0.0
        %4576 = vmatprep.subr.mxu0 0.0
        %4577 = vmatpush1.xpose.msra.mxu0 0.0
        %4578 = vmatprep.subr.mxu0 0.0
        %4579 = vmatpush1.xpose.msra.mxu0 0.0
        %4580 = vmatprep.subr.mxu0 0.0
        %4581 = vmatpush1.xpose.msra.mxu0 0.0
        %4582 = vmatprep.subr.mxu0 0.0
        %4583 = vmatpush1.xpose.msra.mxu0 0.0
        %4584 = vmatprep.subr.mxu0 0.0
        %4585 = vmatpush1.xpose.msra.mxu0 0.0
        %4586 = vmatprep.subr.mxu0 0.0
        %4587 = vmatpush1.xpose.msra.mxu0 0.0
        %4588 = vmatprep.subr.mxu0 0.0
        %4589 = vmatpush1.xpose.msra.mxu0 0.0
        %4590 = vmatprep.subr.mxu0 0.0
        %4591 = vmatpush1.xpose.msra.mxu0 0.0
        %4592 = vmatprep.subr.mxu0 0.0
        %4593 = vmatpush1.xpose.msra.mxu0 0.0
        %4594 = vmatprep.subr.mxu0 0.0
        %4595 = vmatpush1.xpose.msra.mxu0 0.0
        %4596 = vmatprep.subr.mxu0 0.0
        %4597 = vmatpush1.xpose.msra.mxu0 0.0
        %4598 = vmatprep.subr.mxu0 0.0
        %4599 = vmatpush1.xpose.msra.mxu0 0.0
        %4600 = vmatprep.subr.mxu0 0.0
        %4601 = vmatpush1.xpose.msra.mxu0 0.0
        %4602 = vmatprep.mubr.f32.mxu0 0.0
        %4603 = vmatmul.mubr.f32.gmra.mrb[0].mxu0 %v4530
        %v4604 = vpop.f32.mrb[0].mxu0
        %v4605 = vadd.f32 %v1358, %v4604
        %v4606 = vpop.f32.mrb[0].mxu0
        %4607 = vmatprep.mubr.f32.mxu0 0.0
        %4608 = vmatmul.mubr.f32.gmra.mrb[0].mxu0 %v4532
        %v4609 = vpop.f32.mrb[0].mxu0
        %v4610 = vadd.f32 %v1359, %v4609
        %v4611 = vpop.f32.mrb[0].mxu0
        %4612 = vdwg.mxu0
        %v4613 = vsel %vm1562, %v4605, -inf
        %4614 = vmax.xlane.f32.xlu0 %v4613
        %v4615 = vpop.xlane.xlu0 %4614
        %v4616 = vsel %vm1566, %v4610, -inf
        %4617 = vmax.xlane.f32.xlu0 %v4616
        %v4618 = vpop.xlane.xlu0 %4617
        %v4619 = vsub.f32 %v4605, %v4615
        %v4620 = vsub.f32 %v4610, %v4618
        %v4621 = vmul.f32 %v4619, 1.442695
        %v4622 = vpow.pop %v4621
        %v4623 = vmul.f32 %v4620, 1.442695
        %v4624 = vpow.pop %v4623
        %v4625 = vsel %vm1562, %v4622, 0.0
        %4626 = vadd.xlane.f32.xlu0 %v4625
        %v4627 = vpop.xlane.xlu0 %4626
        %v4628 = vsel %vm1566, %v4624, 0.0
        %4629 = vadd.xlane.f32.xlu0 %v4628
        %v4630 = vpop.xlane.xlu0 %4629
        %v4631 = vrcp.pop %v4627
        %v4632 = vrcp.pop %v4630
        %v4633 = vmul.f32 %v4622, %v4631
        %v4634 = vmul.f32 %v4624, %v4632
        %4635 = vrot.lane.b32.xlu0 %v3715, 96
        %v4636 = vpop.permute.xlu0 %4635
        %4637 = vrot.lane.b32.xlu0 %v3721, 96
        %v4638 = vpop.permute.xlu0 %4637
        %v4641 = vsel %vm1562, %v4633, 0
        %v4644 = vsel %vm1562, %v4634, 0
        %v4646 = vsel %vm1592, %v4638, 0
        %4648 = vmatprep.subr.mxu0 0.0
        %4649 = vmatpush1.msra.mxu0 %v4636
        %4650 = vmatprep.subr.mxu0 0.0
        %4651 = vmatpush1.msra.mxu0 %v4646
        %4652 = vmatprep.subr.mxu0 0.0
        %4653 = vmatpush1.msra.mxu0 0.0
        %4654 = vmatprep.subr.mxu0 0.0
        %4655 = vmatpush1.msra.mxu0 0.0
        %4656 = vmatprep.subr.mxu0 0.0
        %4657 = vmatpush1.msra.mxu0 0.0
        %4658 = vmatprep.subr.mxu0 0.0
        %4659 = vmatpush1.msra.mxu0 0.0
        %4660 = vmatprep.subr.mxu0 0.0
        %4661 = vmatpush1.msra.mxu0 0.0
        %4662 = vmatprep.subr.mxu0 0.0
        %4663 = vmatpush1.msra.mxu0 0.0
        %4664 = vmatprep.subr.mxu0 0.0
        %4665 = vmatpush1.msra.mxu0 0.0
        %4666 = vmatprep.subr.mxu0 0.0
        %4667 = vmatpush1.msra.mxu0 0.0
        %4668 = vmatprep.subr.mxu0 0.0
        %4669 = vmatpush1.msra.mxu0 0.0
        %4670 = vmatprep.subr.mxu0 0.0
        %4671 = vmatpush1.msra.mxu0 0.0
        %4672 = vmatprep.subr.mxu0 0.0
        %4673 = vmatpush1.msra.mxu0 0.0
        %4674 = vmatprep.subr.mxu0 0.0
        %4675 = vmatpush1.msra.mxu0 0.0
        %4676 = vmatprep.subr.mxu0 0.0
        %4677 = vmatpush1.msra.mxu0 0.0
        %4678 = vmatprep.subr.mxu0 0.0
        %4679 = vmatpush1.msra.mxu0 0.0
        %4680 = vmatprep.subr.mxu0 0.0
        %4681 = vmatpush1.msra.mxu0 0.0
        %4682 = vmatprep.subr.mxu0 0.0
        %4683 = vmatpush1.msra.mxu0 0.0
        %4684 = vmatprep.subr.mxu0 0.0
        %4685 = vmatpush1.msra.mxu0 0.0
        %4686 = vmatprep.subr.mxu0 0.0
        %4687 = vmatpush1.msra.mxu0 0.0
        %4688 = vmatprep.subr.mxu0 0.0
        %4689 = vmatpush1.msra.mxu0 0.0
        %4690 = vmatprep.subr.mxu0 0.0
        %4691 = vmatpush1.msra.mxu0 0.0
        %4692 = vmatprep.subr.mxu0 0.0
        %4693 = vmatpush1.msra.mxu0 0.0
        %4694 = vmatprep.subr.mxu0 0.0
        %4695 = vmatpush1.msra.mxu0 0.0
        %4696 = vmatprep.subr.mxu0 0.0
        %4697 = vmatpush1.msra.mxu0 0.0
        %4698 = vmatprep.subr.mxu0 0.0
        %4699 = vmatpush1.msra.mxu0 0.0
        %4700 = vmatprep.subr.mxu0 0.0
        %4701 = vmatpush1.msra.mxu0 0.0
        %4702 = vmatprep.subr.mxu0 0.0
        %4703 = vmatpush1.msra.mxu0 0.0
        %4704 = vmatprep.subr.mxu0 0.0
        %4705 = vmatpush1.msra.mxu0 0.0
        %4706 = vmatprep.subr.mxu0 0.0
        %4707 = vmatpush1.msra.mxu0 0.0
        %4708 = vmatprep.subr.mxu0 0.0
        %4709 = vmatpush1.msra.mxu0 0.0
        %4710 = vmatprep.subr.mxu0 0.0
        %4711 = vmatpush1.msra.mxu0 0.0
        %4712 = vmatprep.mubr.f32.mxu0 0.0
        %4713 = vmatmul.mubr.f32.gmra.mrb[0].mxu0 %v4641
        %v4714 = vpop.f32.mrb[0].mxu0
        %v4715 = vadd.f32 0.0, %v4714
        %v4716 = vpop.f32.mrb[0].mxu0
        %4717 = vmatprep.mubr.f32.mxu0 0.0
        %4718 = vmatmul.mubr.f32.gmra.mrb[0].mxu0 %v4644
        %v4719 = vpop.f32.mrb[0].mxu0
        %v4720 = vadd.f32 0.0, %v4719
        %v4721 = vpop.f32.mrb[0].mxu0
        %4722 = vdwg.mxu0
        %4723 = vrot.lane.b32.xlu0 %v3713, 88
        %v4724 = vpop.permute.xlu0 %4723
        %4725 = vrot.lane.b32.xlu0 %v3719, 88
        %v4726 = vpop.permute.xlu0 %4725
        %4727 = vrot.lane.b32.xlu0 %v3713, 24
        %v4728 = vpop.permute.xlu0 %4727
        %4729 = vrot.lane.b32.xlu0 %v3719, 24
        %v4730 = vpop.permute.xlu0 %4729
        %v4731 = vsel %vm1478, %v4724, 0
        %v4733 = vsel %vm1478, %v4726, 0
        %v4735 = vsel %vm1478, %v4728, 0
        %v4737 = vsel %vm1478, %v4730, 0
        %4739 = vmatprep.subr.mxu0 0.0
        %4740 = vmatpush1.xpose.msra.mxu0 %v4735
        %4741 = vmatprep.subr.mxu0 0.0
        %4742 = vmatpush1.xpose.msra.mxu0 %v4737
        %4743 = vmatprep.subr.mxu0 0.0
        %4744 = vmatpush1.xpose.msra.mxu0 0.0
        %4745 = vmatprep.subr.mxu0 0.0
        %4746 = vmatpush1.xpose.msra.mxu0 0.0
        %4747 = vmatprep.subr.mxu0 0.0
        %4748 = vmatpush1.xpose.msra.mxu0 0.0
        %4749 = vmatprep.subr.mxu0 0.0
        %4750 = vmatpush1.xpose.msra.mxu0 0.0
        %4751 = vmatprep.subr.mxu0 0.0
        %4752 = vmatpush1.xpose.msra.mxu0 0.0
        %4753 = vmatprep.subr.mxu0 0.0
        %4754 = vmatpush1.xpose.msra.mxu0 0.0
        %4755 = vmatprep.subr.mxu0 0.0
        %4756 = vmatpush1.xpose.msra.mxu0 0.0
        %4757 = vmatprep.subr.mxu0 0.0
        %4758 = vmatpush1.xpose.msra.mxu0 0.0
        %4759 = vmatprep.subr.mxu0 0.0
        %4760 = vmatpush1.xpose.msra.mxu0 0.0
        %4761 = vmatprep.subr.mxu0 0.0
        %4762 = vmatpush1.xpose.msra.mxu0 0.0
        %4763 = vmatprep.subr.mxu0 0.0
        %4764 = vmatpush1.xpose.msra.mxu0 0.0
        %4765 = vmatprep.subr.mxu0 0.0
        %4766 = vmatpush1.xpose.msra.mxu0 0.0
        %4767 = vmatprep.subr.mxu0 0.0
        %4768 = vmatpush1.xpose.msra.mxu0 0.0
        %4769 = vmatprep.subr.mxu0 0.0
        %4770 = vmatpush1.xpose.msra.mxu0 0.0
        %4771 = vmatprep.subr.mxu0 0.0
        %4772 = vmatpush1.xpose.msra.mxu0 0.0
        %4773 = vmatprep.subr.mxu0 0.0
        %4774 = vmatpush1.xpose.msra.mxu0 0.0
        %4775 = vmatprep.subr.mxu0 0.0
        %4776 = vmatpush1.xpose.msra.mxu0 0.0
        %4777 = vmatprep.subr.mxu0 0.0
        %4778 = vmatpush1.xpose.msra.mxu0 0.0
        %4779 = vmatprep.subr.mxu0 0.0
        %4780 = vmatpush1.xpose.msra.mxu0 0.0
        %4781 = vmatprep.subr.mxu0 0.0
        %4782 = vmatpush1.xpose.msra.mxu0 0.0
        %4783 = vmatprep.subr.mxu0 0.0
        %4784 = vmatpush1.xpose.msra.mxu0 0.0
        %4785 = vmatprep.subr.mxu0 0.0
        %4786 = vmatpush1.xpose.msra.mxu0 0.0
        %4787 = vmatprep.subr.mxu0 0.0
        %4788 = vmatpush1.xpose.msra.mxu0 0.0
        %4789 = vmatprep.subr.mxu0 0.0
        %4790 = vmatpush1.xpose.msra.mxu0 0.0
        %4791 = vmatprep.subr.mxu0 0.0
        %4792 = vmatpush1.xpose.msra.mxu0 0.0
        %4793 = vmatprep.subr.mxu0 0.0
        %4794 = vmatpush1.xpose.msra.mxu0 0.0
        %4795 = vmatprep.subr.mxu0 0.0
        %4796 = vmatpush1.xpose.msra.mxu0 0.0
        %4797 = vmatprep.subr.mxu0 0.0
        %4798 = vmatpush1.xpose.msra.mxu0 0.0
        %4799 = vmatprep.subr.mxu0 0.0
        %4800 = vmatpush1.xpose.msra.mxu0 0.0
        %4801 = vmatprep.subr.mxu0 0.0
        %4802 = vmatpush1.xpose.msra.mxu0 0.0
        %4803 = vmatprep.mubr.f32.mxu0 0.0
        %4804 = vmatmul.mubr.f32.gmra.mrb[0].mxu0 %v4731
        %v4805 = vpop.f32.mrb[0].mxu0
        %v4806 = vadd.f32 %v1358, %v4805
        %v4807 = vpop.f32.mrb[0].mxu0
        %4808 = vmatprep.mubr.f32.mxu0 0.0
        %4809 = vmatmul.mubr.f32.gmra.mrb[0].mxu0 %v4733
        %v4810 = vpop.f32.mrb[0].mxu0
        %v4811 = vadd.f32 %v1359, %v4810
        %v4812 = vpop.f32.mrb[0].mxu0
        %4813 = vdwg.mxu0
        %v4814 = vsel %vm1562, %v4806, -inf
        %4815 = vmax.xlane.f32.xlu0 %v4814
        %v4816 = vpop.xlane.xlu0 %4815
        %v4817 = vsel %vm1566, %v4811, -inf
        %4818 = vmax.xlane.f32.xlu0 %v4817
        %v4819 = vpop.xlane.xlu0 %4818
        %v4820 = vsub.f32 %v4806, %v4816
        %v4821 = vsub.f32 %v4811, %v4819
        %v4822 = vmul.f32 %v4820, 1.442695
        %v4823 = vpow.pop %v4822
        %v4824 = vmul.f32 %v4821, 1.442695
        %v4825 = vpow.pop %v4824
        %v4826 = vsel %vm1562, %v4823, 0.0
        %4827 = vadd.xlane.f32.xlu0 %v4826
        %v4828 = vpop.xlane.xlu0 %4827
        %v4829 = vsel %vm1566, %v4825, 0.0
        %4830 = vadd.xlane.f32.xlu0 %v4829
        %v4831 = vpop.xlane.xlu0 %4830
        %v4832 = vrcp.pop %v4828
        %v4833 = vrcp.pop %v4831
        %v4834 = vmul.f32 %v4823, %v4832
        %v4835 = vmul.f32 %v4825, %v4833
        %4836 = vrot.lane.b32.xlu0 %v3715, 88
        %v4837 = vpop.permute.xlu0 %4836
        %4838 = vrot.lane.b32.xlu0 %v3721, 88
        %v4839 = vpop.permute.xlu0 %4838
        %v4842 = vsel %vm1562, %v4834, 0
        %v4845 = vsel %vm1562, %v4835, 0
        %v4847 = vsel %vm1592, %v4839, 0
        %4849 = vmatprep.subr.mxu0 0.0
        %4850 = vmatpush1.msra.mxu0 %v4837
        %4851 = vmatprep.subr.mxu0 0.0
        %4852 = vmatpush1.msra.mxu0 %v4847
        %4853 = vmatprep.subr.mxu0 0.0
        %4854 = vmatpush1.msra.mxu0 0.0
        %4855 = vmatprep.subr.mxu0 0.0
        %4856 = vmatpush1.msra.mxu0 0.0
        %4857 = vmatprep.subr.mxu0 0.0
        %4858 = vmatpush1.msra.mxu0 0.0
        %4859 = vmatprep.subr.mxu0 0.0
        %4860 = vmatpush1.msra.mxu0 0.0
        %4861 = vmatprep.subr.mxu0 0.0
        %4862 = vmatpush1.msra.mxu0 0.0
        %4863 = vmatprep.subr.mxu0 0.0
        %4864 = vmatpush1.msra.mxu0 0.0
        %4865 = vmatprep.subr.mxu0 0.0
        %4866 = vmatpush1.msra.mxu0 0.0
        %4867 = vmatprep.subr.mxu0 0.0
        %4868 = vmatpush1.msra.mxu0 0.0
        %4869 = vmatprep.subr.mxu0 0.0
        %4870 = vmatpush1.msra.mxu0 0.0
        %4871 = vmatprep.subr.mxu0 0.0
        %4872 = vmatpush1.msra.mxu0 0.0
        %4873 = vmatprep.subr.mxu0 0.0
        %4874 = vmatpush1.msra.mxu0 0.0
        %4875 = vmatprep.subr.mxu0 0.0
        %4876 = vmatpush1.msra.mxu0 0.0
        %4877 = vmatprep.subr.mxu0 0.0
        %4878 = vmatpush1.msra.mxu0 0.0
        %4879 = vmatprep.subr.mxu0 0.0
        %4880 = vmatpush1.msra.mxu0 0.0
        %4881 = vmatprep.subr.mxu0 0.0
        %4882 = vmatpush1.msra.mxu0 0.0
        %4883 = vmatprep.subr.mxu0 0.0
        %4884 = vmatpush1.msra.mxu0 0.0
        %4885 = vmatprep.subr.mxu0 0.0
        %4886 = vmatpush1.msra.mxu0 0.0
        %4887 = vmatprep.subr.mxu0 0.0
        %4888 = vmatpush1.msra.mxu0 0.0
        %4889 = vmatprep.subr.mxu0 0.0
        %4890 = vmatpush1.msra.mxu0 0.0
        %4891 = vmatprep.subr.mxu0 0.0
        %4892 = vmatpush1.msra.mxu0 0.0
        %4893 = vmatprep.subr.mxu0 0.0
        %4894 = vmatpush1.msra.mxu0 0.0
        %4895 = vmatprep.subr.mxu0 0.0
        %4896 = vmatpush1.msra.mxu0 0.0
        %4897 = vmatprep.subr.mxu0 0.0
        %4898 = vmatpush1.msra.mxu0 0.0
        %4899 = vmatprep.subr.mxu0 0.0
        %4900 = vmatpush1.msra.mxu0 0.0
        %4901 = vmatprep.subr.mxu0 0.0
        %4902 = vmatpush1.msra.mxu0 0.0
        %4903 = vmatprep.subr.mxu0 0.0
        %4904 = vmatpush1.msra.mxu0 0.0
        %4905 = vmatprep.subr.mxu0 0.0
        %4906 = vmatpush1.msra.mxu0 0.0
        %4907 = vmatprep.subr.mxu0 0.0
        %4908 = vmatpush1.msra.mxu0 0.0
        %4909 = vmatprep.subr.mxu0 0.0
        %4910 = vmatpush1.msra.mxu0 0.0
        %4911 = vmatprep.subr.mxu0 0.0
        %4912 = vmatpush1.msra.mxu0 0.0
        %4913 = vmatprep.mubr.f32.mxu0 0.0
        %4914 = vmatmul.mubr.f32.gmra.mrb[0].mxu0 %v4842
        %v4915 = vpop.f32.mrb[0].mxu0
        %v4916 = vadd.f32 0.0, %v4915
        %v4917 = vpop.f32.mrb[0].mxu0
        %4918 = vmatprep.mubr.f32.mxu0 0.0
        %4919 = vmatmul.mubr.f32.gmra.mrb[0].mxu0 %v4845
        %v4920 = vpop.f32.mrb[0].mxu0
        %v4921 = vadd.f32 0.0, %v4920
        %v4922 = vpop.f32.mrb[0].mxu0
        %4923 = vdwg.mxu0
        %4924 = vrot.lane.b32.xlu0 %v3713, 80
        %v4925 = vpop.permute.xlu0 %4924
        %4926 = vrot.lane.b32.xlu0 %v3719, 80
        %v4927 = vpop.permute.xlu0 %4926
        %4928 = vrot.lane.b32.xlu0 %v3713, 16
        %v4929 = vpop.permute.xlu0 %4928
        %4930 = vrot.lane.b32.xlu0 %v3719, 16
        %v4931 = vpop.permute.xlu0 %4930
        %v4932 = vsel %vm1478, %v4925, 0
        %v4934 = vsel %vm1478, %v4927, 0
        %v4936 = vsel %vm1478, %v4929, 0
        %v4938 = vsel %vm1478, %v4931, 0
        %4940 = vmatprep.subr.mxu0 0.0
        %4941 = vmatpush1.xpose.msra.mxu0 %v4936
        %4942 = vmatprep.subr.mxu0 0.0
        %4943 = vmatpush1.xpose.msra.mxu0 %v4938
        %4944 = vmatprep.subr.mxu0 0.0
        %4945 = vmatpush1.xpose.msra.mxu0 0.0
        %4946 = vmatprep.subr.mxu0 0.0
        %4947 = vmatpush1.xpose.msra.mxu0 0.0
        %4948 = vmatprep.subr.mxu0 0.0
        %4949 = vmatpush1.xpose.msra.mxu0 0.0
        %4950 = vmatprep.subr.mxu0 0.0
        %4951 = vmatpush1.xpose.msra.mxu0 0.0
        %4952 = vmatprep.subr.mxu0 0.0
        %4953 = vmatpush1.xpose.msra.mxu0 0.0
        %4954 = vmatprep.subr.mxu0 0.0
        %4955 = vmatpush1.xpose.msra.mxu0 0.0
        %4956 = vmatprep.subr.mxu0 0.0
        %4957 = vmatpush1.xpose.msra.mxu0 0.0
        %4958 = vmatprep.subr.mxu0 0.0
        %4959 = vmatpush1.xpose.msra.mxu0 0.0
        %4960 = vmatprep.subr.mxu0 0.0
        %4961 = vmatpush1.xpose.msra.mxu0 0.0
        %4962 = vmatprep.subr.mxu0 0.0
        %4963 = vmatpush1.xpose.msra.mxu0 0.0
        %4964 = vmatprep.subr.mxu0 0.0
        %4965 = vmatpush1.xpose.msra.mxu0 0.0
        %4966 = vmatprep.subr.mxu0 0.0
        %4967 = vmatpush1.xpose.msra.mxu0 0.0
        %4968 = vmatprep.subr.mxu0 0.0
        %4969 = vmatpush1.xpose.msra.mxu0 0.0
        %4970 = vmatprep.subr.mxu0 0.0
        %4971 = vmatpush1.xpose.msra.mxu0 0.0
        %4972 = vmatprep.subr.mxu0 0.0
        %4973 = vmatpush1.xpose.msra.mxu0 0.0
        %4974 = vmatprep.subr.mxu0 0.0
        %4975 = vmatpush1.xpose.msra.mxu0 0.0
        %4976 = vmatprep.subr.mxu0 0.0
        %4977 = vmatpush1.xpose.msra.mxu0 0.0
        %4978 = vmatprep.subr.mxu0 0.0
        %4979 = vmatpush1.xpose.msra.mxu0 0.0
        %4980 = vmatprep.subr.mxu0 0.0
        %4981 = vmatpush1.xpose.msra.mxu0 0.0
        %4982 = vmatprep.subr.mxu0 0.0
        %4983 = vmatpush1.xpose.msra.mxu0 0.0
        %4984 = vmatprep.subr.mxu0 0.0
        %4985 = vmatpush1.xpose.msra.mxu0 0.0
        %4986 = vmatprep.subr.mxu0 0.0
        %4987 = vmatpush1.xpose.msra.mxu0 0.0
        %4988 = vmatprep.subr.mxu0 0.0
        %4989 = vmatpush1.xpose.msra.mxu0 0.0
        %4990 = vmatprep.subr.mxu0 0.0
        %4991 = vmatpush1.xpose.msra.mxu0 0.0
        %4992 = vmatprep.subr.mxu0 0.0
        %4993 = vmatpush1.xpose.msra.mxu0 0.0
        %4994 = vmatprep.subr.mxu0 0.0
        %4995 = vmatpush1.xpose.msra.mxu0 0.0
        %4996 = vmatprep.subr.mxu0 0.0
        %4997 = vmatpush1.xpose.msra.mxu0 0.0
        %4998 = vmatprep.subr.mxu0 0.0
        %4999 = vmatpush1.xpose.msra.mxu0 0.0
        %5000 = vmatprep.subr.mxu0 0.0
        %5001 = vmatpush1.xpose.msra.mxu0 0.0
        %5002 = vmatprep.subr.mxu0 0.0
        %5003 = vmatpush1.xpose.msra.mxu0 0.0
        %5004 = vmatprep.mubr.f32.mxu0 0.0
        %5005 = vmatmul.mubr.f32.gmra.mrb[0].mxu0 %v4932
        %v5006 = vpop.f32.mrb[0].mxu0
        %v5007 = vadd.f32 %v1358, %v5006
        %v5008 = vpop.f32.mrb[0].mxu0
        %5009 = vmatprep.mubr.f32.mxu0 0.0
        %5010 = vmatmul.mubr.f32.gmra.mrb[0].mxu0 %v4934
        %v5011 = vpop.f32.mrb[0].mxu0
        %v5012 = vadd.f32 %v1359, %v5011
        %v5013 = vpop.f32.mrb[0].mxu0
        %5014 = vdwg.mxu0
        %v5015 = vsel %vm1562, %v5007, -inf
        %5016 = vmax.xlane.f32.xlu0 %v5015
        %v5017 = vpop.xlane.xlu0 %5016
        %v5018 = vsel %vm1566, %v5012, -inf
        %5019 = vmax.xlane.f32.xlu0 %v5018
        %v5020 = vpop.xlane.xlu0 %5019
        %v5021 = vsub.f32 %v5007, %v5017
        %v5022 = vsub.f32 %v5012, %v5020
        %v5023 = vmul.f32 %v5021, 1.442695
        %v5024 = vpow.pop %v5023
        %v5025 = vmul.f32 %v5022, 1.442695
        %v5026 = vpow.pop %v5025
        %v5027 = vsel %vm1562, %v5024, 0.0
        %5028 = vadd.xlane.f32.xlu0 %v5027
        %v5029 = vpop.xlane.xlu0 %5028
        %v5030 = vsel %vm1566, %v5026, 0.0
        %5031 = vadd.xlane.f32.xlu0 %v5030
        %v5032 = vpop.xlane.xlu0 %5031
        %v5033 = vrcp.pop %v5029
        %v5034 = vrcp.pop %v5032
        %v5035 = vmul.f32 %v5024, %v5033
        %v5036 = vmul.f32 %v5026, %v5034
        %5037 = vrot.lane.b32.xlu0 %v3715, 80
        %v5038 = vpop.permute.xlu0 %5037
        %5039 = vrot.lane.b32.xlu0 %v3721, 80
        %v5040 = vpop.permute.xlu0 %5039
        %v5043 = vsel %vm1562, %v5035, 0
        %v5046 = vsel %vm1562, %v5036, 0
        %v5048 = vsel %vm1592, %v5040, 0
        %5050 = vmatprep.subr.mxu0 0.0
        %5051 = vmatpush1.msra.mxu0 %v5038
        %5052 = vmatprep.subr.mxu0 0.0
        %5053 = vmatpush1.msra.mxu0 %v5048
        %5054 = vmatprep.subr.mxu0 0.0
        %5055 = vmatpush1.msra.mxu0 0.0
        %5056 = vmatprep.subr.mxu0 0.0
        %5057 = vmatpush1.msra.mxu0 0.0
        %5058 = vmatprep.subr.mxu0 0.0
        %5059 = vmatpush1.msra.mxu0 0.0
        %5060 = vmatprep.subr.mxu0 0.0
        %5061 = vmatpush1.msra.mxu0 0.0
        %5062 = vmatprep.subr.mxu0 0.0
        %5063 = vmatpush1.msra.mxu0 0.0
        %5064 = vmatprep.subr.mxu0 0.0
        %5065 = vmatpush1.msra.mxu0 0.0
        %5066 = vmatprep.subr.mxu0 0.0
        %5067 = vmatpush1.msra.mxu0 0.0
        %5068 = vmatprep.subr.mxu0 0.0
        %5069 = vmatpush1.msra.mxu0 0.0
        %5070 = vmatprep.subr.mxu0 0.0
        %5071 = vmatpush1.msra.mxu0 0.0
        %5072 = vmatprep.subr.mxu0 0.0
        %5073 = vmatpush1.msra.mxu0 0.0
        %5074 = vmatprep.subr.mxu0 0.0
        %5075 = vmatpush1.msra.mxu0 0.0
        %5076 = vmatprep.subr.mxu0 0.0
        %5077 = vmatpush1.msra.mxu0 0.0
        %5078 = vmatprep.subr.mxu0 0.0
        %5079 = vmatpush1.msra.mxu0 0.0
        %5080 = vmatprep.subr.mxu0 0.0
        %5081 = vmatpush1.msra.mxu0 0.0
        %5082 = vmatprep.subr.mxu0 0.0
        %5083 = vmatpush1.msra.mxu0 0.0
        %5084 = vmatprep.subr.mxu0 0.0
        %5085 = vmatpush1.msra.mxu0 0.0
        %5086 = vmatprep.subr.mxu0 0.0
        %5087 = vmatpush1.msra.mxu0 0.0
        %5088 = vmatprep.subr.mxu0 0.0
        %5089 = vmatpush1.msra.mxu0 0.0
        %5090 = vmatprep.subr.mxu0 0.0
        %5091 = vmatpush1.msra.mxu0 0.0
        %5092 = vmatprep.subr.mxu0 0.0
        %5093 = vmatpush1.msra.mxu0 0.0
        %5094 = vmatprep.subr.mxu0 0.0
        %5095 = vmatpush1.msra.mxu0 0.0
        %5096 = vmatprep.subr.mxu0 0.0
        %5097 = vmatpush1.msra.mxu0 0.0
        %5098 = vmatprep.subr.mxu0 0.0
        %5099 = vmatpush1.msra.mxu0 0.0
        %5100 = vmatprep.subr.mxu0 0.0
        %5101 = vmatpush1.msra.mxu0 0.0
        %5102 = vmatprep.subr.mxu0 0.0
        %5103 = vmatpush1.msra.mxu0 0.0
        %5104 = vmatprep.subr.mxu0 0.0
        %5105 = vmatpush1.msra.mxu0 0.0
        %5106 = vmatprep.subr.mxu0 0.0
        %5107 = vmatpush1.msra.mxu0 0.0
        %5108 = vmatprep.subr.mxu0 0.0
        %5109 = vmatpush1.msra.mxu0 0.0
        %5110 = vmatprep.subr.mxu0 0.0
        %5111 = vmatpush1.msra.mxu0 0.0
        %5112 = vmatprep.subr.mxu0 0.0
        %5113 = vmatpush1.msra.mxu0 0.0
        %5114 = vmatprep.mubr.f32.mxu0 0.0
        %5115 = vmatmul.mubr.f32.gmra.mrb[0].mxu0 %v5043
        %v5116 = vpop.f32.mrb[0].mxu0
        %v5117 = vadd.f32 0.0, %v5116
        %v5118 = vpop.f32.mrb[0].mxu0
        %5119 = vmatprep.mubr.f32.mxu0 0.0
        %5120 = vmatmul.mubr.f32.gmra.mrb[0].mxu0 %v5046
        %v5121 = vpop.f32.mrb[0].mxu0
        %v5122 = vadd.f32 0.0, %v5121
        %v5123 = vpop.f32.mrb[0].mxu0
        %5124 = vdwg.mxu0
        %5125 = vrot.lane.b32.xlu0 %v3713, 72
        %v5126 = vpop.permute.xlu0 %5125
        %5127 = vrot.lane.b32.xlu0 %v3719, 72
        %v5128 = vpop.permute.xlu0 %5127
        %5129 = vrot.lane.b32.xlu0 %v3713, 8
        %v5130 = vpop.permute.xlu0 %5129
        %5131 = vrot.lane.b32.xlu0 %v3719, 8
        %v5132 = vpop.permute.xlu0 %5131
        %v5133 = vsel %vm1478, %v5126, 0
        %v5135 = vsel %vm1478, %v5128, 0
        %v5137 = vsel %vm1478, %v5130, 0
        %v5139 = vsel %vm1478, %v5132, 0
        %5141 = vmatprep.subr.mxu0 0.0
        %5142 = vmatpush1.xpose.msra.mxu0 %v5137
        %5143 = vmatprep.subr.mxu0 0.0
        %5144 = vmatpush1.xpose.msra.mxu0 %v5139
        %5145 = vmatprep.subr.mxu0 0.0
        %5146 = vmatpush1.xpose.msra.mxu0 0.0
        %5147 = vmatprep.subr.mxu0 0.0
        %5148 = vmatpush1.xpose.msra.mxu0 0.0
        %5149 = vmatprep.subr.mxu0 0.0
        %5150 = vmatpush1.xpose.msra.mxu0 0.0
        %5151 = vmatprep.subr.mxu0 0.0
        %5152 = vmatpush1.xpose.msra.mxu0 0.0
        %5153 = vmatprep.subr.mxu0 0.0
        %5154 = vmatpush1.xpose.msra.mxu0 0.0
        %5155 = vmatprep.subr.mxu0 0.0
        %5156 = vmatpush1.xpose.msra.mxu0 0.0
        %5157 = vmatprep.subr.mxu0 0.0
        %5158 = vmatpush1.xpose.msra.mxu0 0.0
        %5159 = vmatprep.subr.mxu0 0.0
        %5160 = vmatpush1.xpose.msra.mxu0 0.0
        %5161 = vmatprep.subr.mxu0 0.0
        %5162 = vmatpush1.xpose.msra.mxu0 0.0
        %5163 = vmatprep.subr.mxu0 0.0
        %5164 = vmatpush1.xpose.msra.mxu0 0.0
        %5165 = vmatprep.subr.mxu0 0.0
        %5166 = vmatpush1.xpose.msra.mxu0 0.0
        %5167 = vmatprep.subr.mxu0 0.0
        %5168 = vmatpush1.xpose.msra.mxu0 0.0
        %5169 = vmatprep.subr.mxu0 0.0
        %5170 = vmatpush1.xpose.msra.mxu0 0.0
        %5171 = vmatprep.subr.mxu0 0.0
        %5172 = vmatpush1.xpose.msra.mxu0 0.0
        %5173 = vmatprep.subr.mxu0 0.0
        %5174 = vmatpush1.xpose.msra.mxu0 0.0
        %5175 = vmatprep.subr.mxu0 0.0
        %5176 = vmatpush1.xpose.msra.mxu0 0.0
        %5177 = vmatprep.subr.mxu0 0.0
        %5178 = vmatpush1.xpose.msra.mxu0 0.0
        %5179 = vmatprep.subr.mxu0 0.0
        %5180 = vmatpush1.xpose.msra.mxu0 0.0
        %5181 = vmatprep.subr.mxu0 0.0
        %5182 = vmatpush1.xpose.msra.mxu0 0.0
        %5183 = vmatprep.subr.mxu0 0.0
        %5184 = vmatpush1.xpose.msra.mxu0 0.0
        %5185 = vmatprep.subr.mxu0 0.0
        %5186 = vmatpush1.xpose.msra.mxu0 0.0
        %5187 = vmatprep.subr.mxu0 0.0
        %5188 = vmatpush1.xpose.msra.mxu0 0.0
        %5189 = vmatprep.subr.mxu0 0.0
        %5190 = vmatpush1.xpose.msra.mxu0 0.0
        %5191 = vmatprep.subr.mxu0 0.0
        %5192 = vmatpush1.xpose.msra.mxu0 0.0
        %5193 = vmatprep.subr.mxu0 0.0
        %5194 = vmatpush1.xpose.msra.mxu0 0.0
        %5195 = vmatprep.subr.mxu0 0.0
        %5196 = vmatpush1.xpose.msra.mxu0 0.0
        %5197 = vmatprep.subr.mxu0 0.0
        %5198 = vmatpush1.xpose.msra.mxu0 0.0
        %5199 = vmatprep.subr.mxu0 0.0
        %5200 = vmatpush1.xpose.msra.mxu0 0.0
        %5201 = vmatprep.subr.mxu0 0.0
        %5202 = vmatpush1.xpose.msra.mxu0 0.0
        %5203 = vmatprep.subr.mxu0 0.0
        %5204 = vmatpush1.xpose.msra.mxu0 0.0
        %5205 = vmatprep.mubr.f32.mxu0 0.0
        %5206 = vmatmul.mubr.f32.gmra.mrb[0].mxu0 %v5133
        %v5207 = vpop.f32.mrb[0].mxu0
        %v5208 = vadd.f32 %v1358, %v5207
        %v5209 = vpop.f32.mrb[0].mxu0
        %5210 = vmatprep.mubr.f32.mxu0 0.0
        %5211 = vmatmul.mubr.f32.gmra.mrb[0].mxu0 %v5135
        %v5212 = vpop.f32.mrb[0].mxu0
        %v5213 = vadd.f32 %v1359, %v5212
        %v5214 = vpop.f32.mrb[0].mxu0
        %5215 = vdwg.mxu0
        %v5216 = vsel %vm1562, %v5208, -inf
        %5217 = vmax.xlane.f32.xlu0 %v5216
        %v5218 = vpop.xlane.xlu0 %5217
        %v5219 = vsel %vm1566, %v5213, -inf
        %5220 = vmax.xlane.f32.xlu0 %v5219
        %v5221 = vpop.xlane.xlu0 %5220
        %v5222 = vsub.f32 %v5208, %v5218
        %v5223 = vsub.f32 %v5213, %v5221
        %v5224 = vmul.f32 %v5222, 1.442695
        %v5225 = vpow.pop %v5224
        %v5226 = vmul.f32 %v5223, 1.442695
        %v5227 = vpow.pop %v5226
        %v5228 = vsel %vm1562, %v5225, 0.0
        %5229 = vadd.xlane.f32.xlu0 %v5228
        %v5230 = vpop.xlane.xlu0 %5229
        %v5231 = vsel %vm1566, %v5227, 0.0
        %5232 = vadd.xlane.f32.xlu0 %v5231
        %v5233 = vpop.xlane.xlu0 %5232
        %v5234 = vrcp.pop %v5230
        %v5235 = vrcp.pop %v5233
        %v5236 = vmul.f32 %v5225, %v5234
        %v5237 = vmul.f32 %v5227, %v5235
        %5238 = vrot.lane.b32.xlu0 %v3715, 72
        %v5239 = vpop.permute.xlu0 %5238
        %5240 = vrot.lane.b32.xlu0 %v3721, 72
        %v5241 = vpop.permute.xlu0 %5240
        %v5244 = vsel %vm1562, %v5236, 0
        %v5247 = vsel %vm1562, %v5237, 0
        %v5249 = vsel %vm1592, %v5241, 0
        %5251 = vmatprep.subr.mxu0 0.0
        %5252 = vmatpush1.msra.mxu0 %v5239
        %5253 = vmatprep.subr.mxu0 0.0
        %5254 = vmatpush1.msra.mxu0 %v5249
        %5255 = vmatprep.subr.mxu0 0.0
        %5256 = vmatpush1.msra.mxu0 0.0
        %5257 = vmatprep.subr.mxu0 0.0
        %5258 = vmatpush1.msra.mxu0 0.0
        %5259 = vmatprep.subr.mxu0 0.0
        %5260 = vmatpush1.msra.mxu0 0.0
        %5261 = vmatprep.subr.mxu0 0.0
        %5262 = vmatpush1.msra.mxu0 0.0
        %5263 = vmatprep.subr.mxu0 0.0
        %5264 = vmatpush1.msra.mxu0 0.0
        %5265 = vmatprep.subr.mxu0 0.0
        %5266 = vmatpush1.msra.mxu0 0.0
        %5267 = vmatprep.subr.mxu0 0.0
        %5268 = vmatpush1.msra.mxu0 0.0
        %5269 = vmatprep.subr.mxu0 0.0
        %5270 = vmatpush1.msra.mxu0 0.0
        %5271 = vmatprep.subr.mxu0 0.0
        %5272 = vmatpush1.msra.mxu0 0.0
        %5273 = vmatprep.subr.mxu0 0.0
        %5274 = vmatpush1.msra.mxu0 0.0
        %5275 = vmatprep.subr.mxu0 0.0
        %5276 = vmatpush1.msra.mxu0 0.0
        %5277 = vmatprep.subr.mxu0 0.0
        %5278 = vmatpush1.msra.mxu0 0.0
        %5279 = vmatprep.subr.mxu0 0.0
        %5280 = vmatpush1.msra.mxu0 0.0
        %5281 = vmatprep.subr.mxu0 0.0
        %5282 = vmatpush1.msra.mxu0 0.0
        %5283 = vmatprep.subr.mxu0 0.0
        %5284 = vmatpush1.msra.mxu0 0.0
        %5285 = vmatprep.subr.mxu0 0.0
        %5286 = vmatpush1.msra.mxu0 0.0
        %5287 = vmatprep.subr.mxu0 0.0
        %5288 = vmatpush1.msra.mxu0 0.0
        %5289 = vmatprep.subr.mxu0 0.0
        %5290 = vmatpush1.msra.mxu0 0.0
        %5291 = vmatprep.subr.mxu0 0.0
        %5292 = vmatpush1.msra.mxu0 0.0
        %5293 = vmatprep.subr.mxu0 0.0
        %5294 = vmatpush1.msra.mxu0 0.0
        %5295 = vmatprep.subr.mxu0 0.0
        %5296 = vmatpush1.msra.mxu0 0.0
        %5297 = vmatprep.subr.mxu0 0.0
        %5298 = vmatpush1.msra.mxu0 0.0
        %5299 = vmatprep.subr.mxu0 0.0
        %5300 = vmatpush1.msra.mxu0 0.0
        %5301 = vmatprep.subr.mxu0 0.0
        %5302 = vmatpush1.msra.mxu0 0.0
        %5303 = vmatprep.subr.mxu0 0.0
        %5304 = vmatpush1.msra.mxu0 0.0
        %5305 = vmatprep.subr.mxu0 0.0
        %5306 = vmatpush1.msra.mxu0 0.0
        %5307 = vmatprep.subr.mxu0 0.0
        %5308 = vmatpush1.msra.mxu0 0.0
        %5309 = vmatprep.subr.mxu0 0.0
        %5310 = vmatpush1.msra.mxu0 0.0
        %5311 = vmatprep.subr.mxu0 0.0
        %5312 = vmatpush1.msra.mxu0 0.0
        %5313 = vmatprep.subr.mxu0 0.0
        %5314 = vmatpush1.msra.mxu0 0.0
        %5315 = vmatprep.mubr.f32.mxu0 0.0
        %5316 = vmatmul.mubr.f32.gmra.mrb[0].mxu0 %v5244
        %v5317 = vpop.f32.mrb[0].mxu0
        %v5318 = vadd.f32 0.0, %v5317
        %v5319 = vpop.f32.mrb[0].mxu0
        %5320 = vmatprep.mubr.f32.mxu0 0.0
        %5321 = vmatmul.mubr.f32.gmra.mrb[0].mxu0 %v5247
        %v5322 = vpop.f32.mrb[0].mxu0
        %v5323 = vadd.f32 0.0, %v5322
        %v5324 = vpop.f32.mrb[0].mxu0
        %5325 = vdwg.mxu0
        %5328 = vrot.lane.b32.xlu0 %v4112, 8
        %v5329 = vpop.permute.xlu0 %5328
        %5330 = vrot.lane.b32.xlu0 %v4117, 8
        %v5331 = vpop.permute.xlu0 %5330
        %5336 = vrot.lane.b32.xlu0 %v4313, 16
        %v5337 = vpop.permute.xlu0 %5336
        %5338 = vrot.lane.b32.xlu0 %v4318, 16
        %v5339 = vpop.permute.xlu0 %5338
        %5344 = vrot.lane.b32.xlu0 %v4514, 24
        %v5345 = vpop.permute.xlu0 %5344
        %5346 = vrot.lane.b32.xlu0 %v4519, 24
        %v5347 = vpop.permute.xlu0 %5346
        %5352 = vrot.lane.b32.xlu0 %v4715, 32
        %v5353 = vpop.permute.xlu0 %5352
        %5354 = vrot.lane.b32.xlu0 %v4720, 32
        %v5355 = vpop.permute.xlu0 %5354
        %5360 = vrot.lane.b32.xlu0 %v4916, 40
        %v5361 = vpop.permute.xlu0 %5360
        %5362 = vrot.lane.b32.xlu0 %v4921, 40
        %v5363 = vpop.permute.xlu0 %5362
        %5368 = vrot.lane.b32.xlu0 %v5117, 48
        %v5369 = vpop.permute.xlu0 %5368
        %5370 = vrot.lane.b32.xlu0 %v5122, 48
        %v5371 = vpop.permute.xlu0 %5370
        %5376 = vrot.lane.b32.xlu0 %v5318, 56
        %v5377 = vpop.permute.xlu0 %5376
        %5378 = vrot.lane.b32.xlu0 %v5323, 56
        %v5379 = vpop.permute.xlu0 %5378
        %v5382 = vsel %vm1478, %v3910, %v5329
        %v5383 = vsel %vm1478, %v3915, %v5331
        %v5384 = vsel %vm3137, %v5382, %v5337
        %v5385 = vsel %vm3137, %v5383, %v5339
        %v5386 = vsel %vm3140, %v5384, %v5345
        %v5387 = vsel %vm3140, %v5385, %v5347
        %v5388 = vsel %vm3143, %v5386, %v5353
        %v5389 = vsel %vm3143, %v5387, %v5355
        %v5390 = vsel %vm3146, %v5388, %v5361
        %v5391 = vsel %vm3146, %v5389, %v5363
        %v5392 = vsel %vm3149, %v5390, %v5369
        %v5393 = vsel %vm3149, %v5391, %v5371
        %v5394 = vsel %vm3152, %v5392, %v5377
        %v5395 = vsel %vm3152, %v5393, %v5379
        %v5396 = vld [vmem:[%s39] sm:$0xff]
        %v5397 = vld [vmem:[%s39 + $0x8] sm:$0xff]
        %v5398 = vld [vmem:[%s39 + $0x10] sm:$0xff]
        %v5399 = vld [vmem:[%s39 + $0x18] sm:$0xff]
        %v5400 = vld [vmem:[%s39 + $0x20] sm:$0xff]
        %v5401 = vld [vmem:[%s39 + $0x28] sm:$0xff]
        %v5402 = vld [vmem:[%s39 + $0x30] sm:$0xff]
        %v5403 = vld [vmem:[%s39 + $0x38] sm:$0xff]
        %v5404 = vld [vmem:[#allocation16] sm:$0x1]
        %v5406 = vlaneseq
        %v5407 = vshrl.u32 %v5406, 7
        %v5408 = vsub.s32 0, %v5407
        %v5409 = vrot.slane %v5404, %v5408
        %v5412 = vsel %vm1388, %v5394, 0
        %v5415 = vsel %vm1388, %v5395, 0
        %5417 = vmatprep.subr.mxu0 0.0
        %5418 = vmatpush1.msra.mxu0 %v5396
        %5419 = vmatprep.subr.mxu0 0.0
        %5420 = vmatpush1.msra.mxu0 %v5397
        %5421 = vmatprep.subr.mxu0 0.0
        %5422 = vmatpush1.msra.mxu0 %v5398
        %5423 = vmatprep.subr.mxu0 0.0
        %5424 = vmatpush1.msra.mxu0 %v5399
        %5425 = vmatprep.subr.mxu0 0.0
        %5426 = vmatpush1.msra.mxu0 %v5400
        %5427 = vmatprep.subr.mxu0 0.0
        %5428 = vmatpush1.msra.mxu0 %v5401
        %5429 = vmatprep.subr.mxu0 0.0
        %5430 = vmatpush1.msra.mxu0 %v5402
        %5431 = vmatprep.subr.mxu0 0.0
        %5432 = vmatpush1.msra.mxu0 %v5403
        %5433 = vmatprep.subr.mxu0 0.0
        %5434 = vmatpush1.msra.mxu0 0.0
        %5435 = vmatprep.subr.mxu0 0.0
        %5436 = vmatpush1.msra.mxu0 0.0
        %5437 = vmatprep.subr.mxu0 0.0
        %5438 = vmatpush1.msra.mxu0 0.0
        %5439 = vmatprep.subr.mxu0 0.0
        %5440 = vmatpush1.msra.mxu0 0.0
        %5441 = vmatprep.subr.mxu0 0.0
        %5442 = vmatpush1.msra.mxu0 0.0
        %5443 = vmatprep.subr.mxu0 0.0
        %5444 = vmatpush1.msra.mxu0 0.0
        %5445 = vmatprep.subr.mxu0 0.0
        %5446 = vmatpush1.msra.mxu0 0.0
        %5447 = vmatprep.subr.mxu0 0.0
        %5448 = vmatpush1.msra.mxu0 0.0
        %5449 = vmatprep.subr.mxu0 0.0
        %5450 = vmatpush1.msra.mxu0 0.0
        %5451 = vmatprep.subr.mxu0 0.0
        %5452 = vmatpush1.msra.mxu0 0.0
        %5453 = vmatprep.subr.mxu0 0.0
        %5454 = vmatpush1.msra.mxu0 0.0
        %5455 = vmatprep.subr.mxu0 0.0
        %5456 = vmatpush1.msra.mxu0 0.0
        %5457 = vmatprep.subr.mxu0 0.0
        %5458 = vmatpush1.msra.mxu0 0.0
        %5459 = vmatprep.subr.mxu0 0.0
        %5460 = vmatpush1.msra.mxu0 0.0
        %5461 = vmatprep.subr.mxu0 0.0
        %5462 = vmatpush1.msra.mxu0 0.0
        %5463 = vmatprep.subr.mxu0 0.0
        %5464 = vmatpush1.msra.mxu0 0.0
        %5465 = vmatprep.subr.mxu0 0.0
        %5466 = vmatpush1.msra.mxu0 0.0
        %5467 = vmatprep.subr.mxu0 0.0
        %5468 = vmatpush1.msra.mxu0 0.0
        %5469 = vmatprep.subr.mxu0 0.0
        %5470 = vmatpush1.msra.mxu0 0.0
        %5471 = vmatprep.subr.mxu0 0.0
        %5472 = vmatpush1.msra.mxu0 0.0
        %5473 = vmatprep.subr.mxu0 0.0
        %5474 = vmatpush1.msra.mxu0 0.0
        %5475 = vmatprep.subr.mxu0 0.0
        %5476 = vmatpush1.msra.mxu0 0.0
        %5477 = vmatprep.subr.mxu0 0.0
        %5478 = vmatpush1.msra.mxu0 0.0
        %5479 = vmatprep.subr.mxu0 0.0
        %5480 = vmatpush1.msra.mxu0 0.0
        %5481 = vmatprep.mubr.f32.mxu0 0.0
        %5482 = vmatmul.mubr.f32.gmra.mrb[0].mxu0 %v5412
        %v5483 = vpop.f32.mrb[0].mxu0
        %v5484 = vadd.f32 %v5409, %v5483
        %v5485 = vpop.f32.mrb[0].mxu0
        %5486 = vmatprep.mubr.f32.mxu0 0.0
        %5487 = vmatmul.mubr.f32.gmra.mrb[0].mxu0 %v5415
        %v5488 = vpop.f32.mrb[0].mxu0
        %v5489 = vadd.f32 %v5409, %v5488
        %v5490 = vpop.f32.mrb[0].mxu0
        %5491 = vdwg.mxu0
        %v5492 = vadd.f32 %v1356, %v5484
        %v5493 = vadd.f32 %v1357, %v5489
        %v5494 = vsel %vm1388, %v5492, 0.0
        %5495 = vadd.xlane.f32.xlu0 %v5494
        %v5496 = vpop.xlane.xlu0 %5495
        %v5497 = vsel %vm3256, %v5493, 0.0
        %5498 = vadd.xlane.f32.xlu0 %v5497
        %v5499 = vpop.xlane.xlu0 %5498
        %v5500 = vmul.f32 %v5496, %v3260
        %v5501 = vmul.f32 %v5499, %v3260
        %v5502 = vsub.f32 %v5492, %v5500
        %v5503 = vsub.f32 %v5493, %v5501
        %v5504 = vmul.f32 %v5502, %v5502
        %v5505 = vmul.f32 %v5503, %v5503
        %v5506 = vsel %vm1388, %v5504, 0.0
        %5507 = vadd.xlane.f32.xlu0 %v5506
        %v5508 = vpop.xlane.xlu0 %5507
        %v5509 = vsel %vm3256, %v5505, 0.0
        %5510 = vadd.xlane.f32.xlu0 %v5509
        %v5511 = vpop.xlane.xlu0 %5510
        %v5512 = vmul.f32 %v5508, %v3260
        %v5513 = vmul.f32 %v5511, %v3260
        %v5514 = vadd.f32 %v5512, 1e-05
        %v5515 = vadd.f32 %v5513, 1e-05
        %v5516 = vrsqrt.pop %v5514
        %v5517 = vrsqrt.pop %v5515
        %v5518 = vmul.f32 %v5502, %v5516
        %v5519 = vmul.f32 %v5503, %v5517
        %v5520 = vld [vmem:[#allocation18] sm:$0x1]
        %v5522 = vlaneseq
        %v5523 = vshrl.u32 %v5522, 7
        %v5524 = vsub.s32 0, %v5523
        %v5525 = vrot.slane %v5520, %v5524
        %v5527 = vmul.f32 %v5518, %v5525
        %v5528 = vmul.f32 %v5519, %v5525
        %v5529 = vld [vmem:[#allocation19] sm:$0x1]
        %v5531 = vlaneseq
        %v5532 = vshrl.u32 %v5531, 7
        %v5533 = vsub.s32 0, %v5532
        %v5534 = vrot.slane %v5529, %v5533
        %v5536 = vadd.f32 %v5527, %v5534
        %v5537 = vadd.f32 %v5528, %v5534
        %v5538 = vld [vmem:[%s47] sm:$0xff]
        %v5539 = vld [vmem:[%s47 + $0x8] sm:$0xff]
        %v5540 = vld [vmem:[%s47 + $0x10] sm:$0xff]
        %v5541 = vld [vmem:[%s47 + $0x18] sm:$0xff]
        %v5542 = vld [vmem:[%s47 + $0x20] sm:$0xff]
        %v5543 = vld [vmem:[%s47 + $0x28] sm:$0xff]
        %v5544 = vld [vmem:[%s47 + $0x30] sm:$0xff]
        %v5545 = vld [vmem:[%s47 + $0x38] sm:$0xff]
        %v5546 = vld [vmem:[%s49] sm:$0x1]
        %v5548 = vlaneseq
        %v5549 = vshrl.u32 %v5548, 7
        %v5550 = vsub.s32 0, %v5549
        %v5551 = vrot.slane %v5546, %v5550
        %v5554 = vsel %vm1388, %v5536, 0
        %v5557 = vsel %vm1388, %v5537, 0
        %5559 = vmatprep.subr.mxu0 0.0
        %5560 = vmatpush1.msra.mxu0 %v5538
        %5561 = vmatprep.subr.mxu0 0.0
        %5562 = vmatpush1.msra.mxu0 %v5539
        %5563 = vmatprep.subr.mxu0 0.0
        %5564 = vmatpush1.msra.mxu0 %v5540
        %5565 = vmatprep.subr.mxu0 0.0
        %5566 = vmatpush1.msra.mxu0 %v5541
        %5567 = vmatprep.subr.mxu0 0.0
        %5568 = vmatpush1.msra.mxu0 %v5542
        %5569 = vmatprep.subr.mxu0 0.0
        %5570 = vmatpush1.msra.mxu0 %v5543
        %5571 = vmatprep.subr.mxu0 0.0
        %5572 = vmatpush1.msra.mxu0 %v5544
        %5573 = vmatprep.subr.mxu0 0.0
        %5574 = vmatpush1.msra.mxu0 %v5545
        %5575 = vmatprep.subr.mxu0 0.0
        %5576 = vmatpush1.msra.mxu0 0.0
        %5577 = vmatprep.subr.mxu0 0.0
        %5578 = vmatpush1.msra.mxu0 0.0
        %5579 = vmatprep.subr.mxu0 0.0
        %5580 = vmatpush1.msra.mxu0 0.0
        %5581 = vmatprep.subr.mxu0 0.0
        %5582 = vmatpush1.msra.mxu0 0.0
        %5583 = vmatprep.subr.mxu0 0.0
        %5584 = vmatpush1.msra.mxu0 0.0
        %5585 = vmatprep.subr.mxu0 0.0
        %5586 = vmatpush1.msra.mxu0 0.0
        %5587 = vmatprep.subr.mxu0 0.0
        %5588 = vmatpush1.msra.mxu0 0.0
        %5589 = vmatprep.subr.mxu0 0.0
        %5590 = vmatpush1.msra.mxu0 0.0
        %5591 = vmatprep.subr.mxu0 0.0
        %5592 = vmatpush1.msra.mxu0 0.0
        %5593 = vmatprep.subr.mxu0 0.0
        %5594 = vmatpush1.msra.mxu0 0.0
        %5595 = vmatprep.subr.mxu0 0.0
        %5596 = vmatpush1.msra.mxu0 0.0
        %5597 = vmatprep.subr.mxu0 0.0
        %5598 = vmatpush1.msra.mxu0 0.0
        %5599 = vmatprep.subr.mxu0 0.0
        %5600 = vmatpush1.msra.mxu0 0.0
        %5601 = vmatprep.subr.mxu0 0.0
        %5602 = vmatpush1.msra.mxu0 0.0
        %5603 = vmatprep.subr.mxu0 0.0
        %5604 = vmatpush1.msra.mxu0 0.0
        %5605 = vmatprep.subr.mxu0 0.0
        %5606 = vmatpush1.msra.mxu0 0.0
        %5607 = vmatprep.subr.mxu0 0.0
        %5608 = vmatpush1.msra.mxu0 0.0
        %5609 = vmatprep.subr.mxu0 0.0
        %5610 = vmatpush1.msra.mxu0 0.0
        %5611 = vmatprep.subr.mxu0 0.0
        %5612 = vmatpush1.msra.mxu0 0.0
        %5613 = vmatprep.subr.mxu0 0.0
        %5614 = vmatpush1.msra.mxu0 0.0
        %5615 = vmatprep.subr.mxu0 0.0
        %5616 = vmatpush1.msra.mxu0 0.0
        %5617 = vmatprep.subr.mxu0 0.0
        %5618 = vmatpush1.msra.mxu0 0.0
        %5619 = vmatprep.subr.mxu0 0.0
        %5620 = vmatpush1.msra.mxu0 0.0
        %5621 = vmatprep.subr.mxu0 0.0
        %5622 = vmatpush1.msra.mxu0 0.0
        %5623 = vmatprep.mubr.f32.mxu0 0.0
        %5624 = vmatmul.mubr.f32.gmra.mrb[0].mxu0 %v5554
        %v5625 = vpop.f32.mrb[0].mxu0
        %v5626 = vadd.f32 %v5551, %v5625
        %v5627 = vpop.f32.mrb[0].mxu0
        %5628 = vmatprep.mubr.f32.mxu0 0.0
        %5629 = vmatmul.mubr.f32.gmra.mrb[0].mxu0 %v5557
        %v5630 = vpop.f32.mrb[0].mxu0
        %v5631 = vadd.f32 %v5551, %v5630
        %v5632 = vpop.f32.mrb[0].mxu0
        %5633 = vdwg.mxu0
        %v5634 = vld [vmem:[%s51] sm:$0xff]
        %v5635 = vld [vmem:[%s51 + $0x8] sm:$0xff]
        %v5636 = vld [vmem:[%s51 + $0x10] sm:$0xff]
        %v5637 = vld [vmem:[%s51 + $0x18] sm:$0xff]
        %v5638 = vld [vmem:[%s51 + $0x20] sm:$0xff]
        %v5639 = vld [vmem:[%s51 + $0x28] sm:$0xff]
        %v5640 = vld [vmem:[%s51 + $0x30] sm:$0xff]
        %v5641 = vld [vmem:[%s51 + $0x38] sm:$0xff]
        %v5642 = vld [vmem:[%s53] sm:$0x1]
        %v5644 = vlaneseq
        %v5645 = vshrl.u32 %v5644, 7
        %v5646 = vsub.s32 0, %v5645
        %v5647 = vrot.slane %v5642, %v5646
        %v5650 = vsel %vm1388, %v3616, 0
        %v5653 = vsel %vm1388, %v3617, 0
        %5655 = vmatprep.subr.mxu0 0.0
        %5656 = vmatpush1.msra.mxu0 %v5634
        %5657 = vmatprep.subr.mxu0 0.0
        %5658 = vmatpush1.msra.mxu0 %v5635
        %5659 = vmatprep.subr.mxu0 0.0
        %5660 = vmatpush1.msra.mxu0 %v5636
        %5661 = vmatprep.subr.mxu0 0.0
        %5662 = vmatpush1.msra.mxu0 %v5637
        %5663 = vmatprep.subr.mxu0 0.0
        %5664 = vmatpush1.msra.mxu0 %v5638
        %5665 = vmatprep.subr.mxu0 0.0
        %5666 = vmatpush1.msra.mxu0 %v5639
        %5667 = vmatprep.subr.mxu0 0.0
        %5668 = vmatpush1.msra.mxu0 %v5640
        %5669 = vmatprep.subr.mxu0 0.0
        %5670 = vmatpush1.msra.mxu0 %v5641
        %5671 = vmatprep.subr.mxu0 0.0
        %5672 = vmatpush1.msra.mxu0 0.0
        %5673 = vmatprep.subr.mxu0 0.0
        %5674 = vmatpush1.msra.mxu0 0.0
        %5675 = vmatprep.subr.mxu0 0.0
        %5676 = vmatpush1.msra.mxu0 0.0
        %5677 = vmatprep.subr.mxu0 0.0
        %5678 = vmatpush1.msra.mxu0 0.0
        %5679 = vmatprep.subr.mxu0 0.0
        %5680 = vmatpush1.msra.mxu0 0.0
        %5681 = vmatprep.subr.mxu0 0.0
        %5682 = vmatpush1.msra.mxu0 0.0
        %5683 = vmatprep.subr.mxu0 0.0
        %5684 = vmatpush1.msra.mxu0 0.0
        %5685 = vmatprep.subr.mxu0 0.0
        %5686 = vmatpush1.msra.mxu0 0.0
        %5687 = vmatprep.subr.mxu0 0.0
        %5688 = vmatpush1.msra.mxu0 0.0
        %5689 = vmatprep.subr.mxu0 0.0
        %5690 = vmatpush1.msra.mxu0 0.0
        %5691 = vmatprep.subr.mxu0 0.0
        %5692 = vmatpush1.msra.mxu0 0.0
        %5693 = vmatprep.subr.mxu0 0.0
        %5694 = vmatpush1.msra.mxu0 0.0
        %5695 = vmatprep.subr.mxu0 0.0
        %5696 = vmatpush1.msra.mxu0 0.0
        %5697 = vmatprep.subr.mxu0 0.0
        %5698 = vmatpush1.msra.mxu0 0.0
        %5699 = vmatprep.subr.mxu0 0.0
        %5700 = vmatpush1.msra.mxu0 0.0
        %5701 = vmatprep.subr.mxu0 0.0
        %5702 = vmatpush1.msra.mxu0 0.0
        %5703 = vmatprep.subr.mxu0 0.0
        %5704 = vmatpush1.msra.mxu0 0.0
        %5705 = vmatprep.subr.mxu0 0.0
        %5706 = vmatpush1.msra.mxu0 0.0
        %5707 = vmatprep.subr.mxu0 0.0
        %5708 = vmatpush1.msra.mxu0 0.0
        %5709 = vmatprep.subr.mxu0 0.0
        %5710 = vmatpush1.msra.mxu0 0.0
        %5711 = vmatprep.subr.mxu0 0.0
        %5712 = vmatpush1.msra.mxu0 0.0
        %5713 = vmatprep.subr.mxu0 0.0
        %5714 = vmatpush1.msra.mxu0 0.0
        %5715 = vmatprep.subr.mxu0 0.0
        %5716 = vmatpush1.msra.mxu0 0.0
        %5717 = vmatprep.subr.mxu0 0.0
        %5718 = vmatpush1.msra.mxu0 0.0
        %5719 = vmatprep.mubr.f32.mxu0 0.0
        %5720 = vmatmul.mubr.f32.gmra.mrb[0].mxu0 %v5650
        %v5721 = vpop.f32.mrb[0].mxu0
        %v5722 = vadd.f32 %v5647, %v5721
        %v5723 = vpop.f32.mrb[0].mxu0
        %5724 = vmatprep.mubr.f32.mxu0 0.0
        %5725 = vmatmul.mubr.f32.gmra.mrb[0].mxu0 %v5653
        %v5726 = vpop.f32.mrb[0].mxu0
        %v5727 = vadd.f32 %v5647, %v5726
        %v5728 = vpop.f32.mrb[0].mxu0
        %5729 = vdwg.mxu0
        %v5731 = vsel %vm1478, %v5626, 0
        %v5734 = vsel %vm1478, %v5631, 0
        %v5737 = vsel %vm1478, %v5722, 0
        %v5740 = vsel %vm1478, %v5727, 0
        %5742 = vmatprep.subr.mxu0 0.0
        %5743 = vmatpush1.xpose.msra.mxu0 %v5737
        %5744 = vmatprep.subr.mxu0 0.0
        %5745 = vmatpush1.xpose.msra.mxu0 %v5740
        %5746 = vmatprep.subr.mxu0 0.0
        %5747 = vmatpush1.xpose.msra.mxu0 0.0
        %5748 = vmatprep.subr.mxu0 0.0
        %5749 = vmatpush1.xpose.msra.mxu0 0.0
        %5750 = vmatprep.subr.mxu0 0.0
        %5751 = vmatpush1.xpose.msra.mxu0 0.0
        %5752 = vmatprep.subr.mxu0 0.0
        %5753 = vmatpush1.xpose.msra.mxu0 0.0
        %5754 = vmatprep.subr.mxu0 0.0
        %5755 = vmatpush1.xpose.msra.mxu0 0.0
        %5756 = vmatprep.subr.mxu0 0.0
        %5757 = vmatpush1.xpose.msra.mxu0 0.0
        %5758 = vmatprep.subr.mxu0 0.0
        %5759 = vmatpush1.xpose.msra.mxu0 0.0
        %5760 = vmatprep.subr.mxu0 0.0
        %5761 = vmatpush1.xpose.msra.mxu0 0.0
        %5762 = vmatprep.subr.mxu0 0.0
        %5763 = vmatpush1.xpose.msra.mxu0 0.0
        %5764 = vmatprep.subr.mxu0 0.0
        %5765 = vmatpush1.xpose.msra.mxu0 0.0
        %5766 = vmatprep.subr.mxu0 0.0
        %5767 = vmatpush1.xpose.msra.mxu0 0.0
        %5768 = vmatprep.subr.mxu0 0.0
        %5769 = vmatpush1.xpose.msra.mxu0 0.0
        %5770 = vmatprep.subr.mxu0 0.0
        %5771 = vmatpush1.xpose.msra.mxu0 0.0
        %5772 = vmatprep.subr.mxu0 0.0
        %5773 = vmatpush1.xpose.msra.mxu0 0.0
        %5774 = vmatprep.subr.mxu0 0.0
        %5775 = vmatpush1.xpose.msra.mxu0 0.0
        %5776 = vmatprep.subr.mxu0 0.0
        %5777 = vmatpush1.xpose.msra.mxu0 0.0
        %5778 = vmatprep.subr.mxu0 0.0
        %5779 = vmatpush1.xpose.msra.mxu0 0.0
        %5780 = vmatprep.subr.mxu0 0.0
        %5781 = vmatpush1.xpose.msra.mxu0 0.0
        %5782 = vmatprep.subr.mxu0 0.0
        %5783 = vmatpush1.xpose.msra.mxu0 0.0
        %5784 = vmatprep.subr.mxu0 0.0
        %5785 = vmatpush1.xpose.msra.mxu0 0.0
        %5786 = vmatprep.subr.mxu0 0.0
        %5787 = vmatpush1.xpose.msra.mxu0 0.0
        %5788 = vmatprep.subr.mxu0 0.0
        %5789 = vmatpush1.xpose.msra.mxu0 0.0
        %5790 = vmatprep.subr.mxu0 0.0
        %5791 = vmatpush1.xpose.msra.mxu0 0.0
        %5792 = vmatprep.subr.mxu0 0.0
        %5793 = vmatpush1.xpose.msra.mxu0 0.0
        %5794 = vmatprep.subr.mxu0 0.0
        %5795 = vmatpush1.xpose.msra.mxu0 0.0
        %5796 = vmatprep.subr.mxu0 0.0
        %5797 = vmatpush1.xpose.msra.mxu0 0.0
        %5798 = vmatprep.subr.mxu0 0.0
        %5799 = vmatpush1.xpose.msra.mxu0 0.0
        %5800 = vmatprep.subr.mxu0 0.0
        %5801 = vmatpush1.xpose.msra.mxu0 0.0
        %5802 = vmatprep.subr.mxu0 0.0
        %5803 = vmatpush1.xpose.msra.mxu0 0.0
        %5804 = vmatprep.subr.mxu0 0.0
        %5805 = vmatpush1.xpose.msra.mxu0 0.0
        %5806 = vmatprep.mubr.f32.mxu0 0.0
        %5807 = vmatmul.mubr.f32.gmra.mrb[0].mxu0 %v5731
        %v5808 = vpop.f32.mrb[0].mxu0
        %v5809 = vadd.f32 0.0, %v5808
        %v5810 = vpop.f32.mrb[0].mxu0
        %5811 = vmatprep.mubr.f32.mxu0 0.0
        %5812 = vmatmul.mubr.f32.gmra.mrb[0].mxu0 %v5734
        %v5813 = vpop.f32.mrb[0].mxu0
        %v5814 = vadd.f32 0.0, %v5813
        %v5815 = vpop.f32.mrb[0].mxu0
        %5816 = vdwg.mxu0
        %v5817 = vsel %vm1562, %v5809, -inf
        %5818 = vmax.xlane.f32.xlu0 %v5817
        %v5819 = vpop.xlane.xlu0 %5818
        %v5820 = vsel %vm1566, %v5814, -inf
        %5821 = vmax.xlane.f32.xlu0 %v5820
        %v5822 = vpop.xlane.xlu0 %5821
        %v5823 = vsub.f32 %v5809, %v5819
        %v5824 = vsub.f32 %v5814, %v5822
        %v5825 = vmul.f32 %v5823, 1.442695
        %v5826 = vpow.pop %v5825
        %v5827 = vmul.f32 %v5824, 1.442695
        %v5828 = vpow.pop %v5827
        %v5829 = vsel %vm1562, %v5826, 0.0
        %5830 = vadd.xlane.f32.xlu0 %v5829
        %v5831 = vpop.xlane.xlu0 %5830
        %v5832 = vsel %vm1566, %v5828, 0.0
        %5833 = vadd.xlane.f32.xlu0 %v5832
        %v5834 = vpop.xlane.xlu0 %5833
        %v5835 = vrcp.pop %v5831
        %v5836 = vrcp.pop %v5834
        %v5837 = vmul.f32 %v5826, %v5835
        %v5838 = vmul.f32 %v5828, %v5836
        %5839 = vrot.lane.b32.xlu0 %v5722, 64
        %v5840 = vpop.permute.xlu0 %5839
        %5841 = vrot.lane.b32.xlu0 %v5727, 64
        %v5842 = vpop.permute.xlu0 %5841
        %v5845 = vsel %vm1562, %v5837, 0
        %v5848 = vsel %vm1562, %v5838, 0
        %v5850 = vsel %vm1592, %v5842, 0
        %5852 = vmatprep.subr.mxu0 0.0
        %5853 = vmatpush1.msra.mxu0 %v5840
        %5854 = vmatprep.subr.mxu0 0.0
        %5855 = vmatpush1.msra.mxu0 %v5850
        %5856 = vmatprep.subr.mxu0 0.0
        %5857 = vmatpush1.msra.mxu0 0.0
        %5858 = vmatprep.subr.mxu0 0.0
        %5859 = vmatpush1.msra.mxu0 0.0
        %5860 = vmatprep.subr.mxu0 0.0
        %5861 = vmatpush1.msra.mxu0 0.0
        %5862 = vmatprep.subr.mxu0 0.0
        %5863 = vmatpush1.msra.mxu0 0.0
        %5864 = vmatprep.subr.mxu0 0.0
        %5865 = vmatpush1.msra.mxu0 0.0
        %5866 = vmatprep.subr.mxu0 0.0
        %5867 = vmatpush1.msra.mxu0 0.0
        %5868 = vmatprep.subr.mxu0 0.0
        %5869 = vmatpush1.msra.mxu0 0.0
        %5870 = vmatprep.subr.mxu0 0.0
        %5871 = vmatpush1.msra.mxu0 0.0
        %5872 = vmatprep.subr.mxu0 0.0
        %5873 = vmatpush1.msra.mxu0 0.0
        %5874 = vmatprep.subr.mxu0 0.0
        %5875 = vmatpush1.msra.mxu0 0.0
        %5876 = vmatprep.subr.mxu0 0.0
        %5877 = vmatpush1.msra.mxu0 0.0
        %5878 = vmatprep.subr.mxu0 0.0
        %5879 = vmatpush1.msra.mxu0 0.0
        %5880 = vmatprep.subr.mxu0 0.0
        %5881 = vmatpush1.msra.mxu0 0.0
        %5882 = vmatprep.subr.mxu0 0.0
        %5883 = vmatpush1.msra.mxu0 0.0
        %5884 = vmatprep.subr.mxu0 0.0
        %5885 = vmatpush1.msra.mxu0 0.0
        %5886 = vmatprep.subr.mxu0 0.0
        %5887 = vmatpush1.msra.mxu0 0.0
        %5888 = vmatprep.subr.mxu0 0.0
        %5889 = vmatpush1.msra.mxu0 0.0
        %5890 = vmatprep.subr.mxu0 0.0
        %5891 = vmatpush1.msra.mxu0 0.0
        %5892 = vmatprep.subr.mxu0 0.0
        %5893 = vmatpush1.msra.mxu0 0.0
        %5894 = vmatprep.subr.mxu0 0.0
        %5895 = vmatpush1.msra.mxu0 0.0
        %5896 = vmatprep.subr.mxu0 0.0
        %5897 = vmatpush1.msra.mxu0 0.0
        %5898 = vmatprep.subr.mxu0 0.0
        %5899 = vmatpush1.msra.mxu0 0.0
        %5900 = vmatprep.subr.mxu0 0.0
        %5901 = vmatpush1.msra.mxu0 0.0
        %5902 = vmatprep.subr.mxu0 0.0
        %5903 = vmatpush1.msra.mxu0 0.0
        %5904 = vmatprep.subr.mxu0 0.0
        %5905 = vmatpush1.msra.mxu0 0.0
        %5906 = vmatprep.subr.mxu0 0.0
        %5907 = vmatpush1.msra.mxu0 0.0
        %5908 = vmatprep.subr.mxu0 0.0
        %5909 = vmatpush1.msra.mxu0 0.0
        %5910 = vmatprep.subr.mxu0 0.0
        %5911 = vmatpush1.msra.mxu0 0.0
        %5912 = vmatprep.subr.mxu0 0.0
        %5913 = vmatpush1.msra.mxu0 0.0
        %5914 = vmatprep.subr.mxu0 0.0
        %5915 = vmatpush1.msra.mxu0 0.0
        %5916 = vmatprep.mubr.f32.mxu0 0.0
        %5917 = vmatmul.mubr.f32.gmra.mrb[0].mxu0 %v5845
        %v5918 = vpop.f32.mrb[0].mxu0
        %v5919 = vadd.f32 0.0, %v5918
        %v5920 = vpop.f32.mrb[0].mxu0
        %5921 = vmatprep.mubr.f32.mxu0 0.0
        %5922 = vmatmul.mubr.f32.gmra.mrb[0].mxu0 %v5848
        %v5923 = vpop.f32.mrb[0].mxu0
        %v5924 = vadd.f32 0.0, %v5923
        %v5925 = vpop.f32.mrb[0].mxu0
        %5926 = vdwg.mxu0
        %5927 = vrot.lane.b32.xlu0 %v5626, 120
        %v5928 = vpop.permute.xlu0 %5927
        %5929 = vrot.lane.b32.xlu0 %v5631, 120
        %v5930 = vpop.permute.xlu0 %5929
        %5931 = vrot.lane.b32.xlu0 %v5722, 120
        %v5932 = vpop.permute.xlu0 %5931
        %5933 = vrot.lane.b32.xlu0 %v5727, 120
        %v5934 = vpop.permute.xlu0 %5933
        %v5935 = vsel %vm1478, %v5928, 0
        %v5937 = vsel %vm1478, %v5930, 0
        %v5939 = vsel %vm1478, %v5932, 0
        %v5941 = vsel %vm1478, %v5934, 0
        %5943 = vmatprep.subr.mxu0 0.0
        %5944 = vmatpush1.xpose.msra.mxu0 %v5939
        %5945 = vmatprep.subr.mxu0 0.0
        %5946 = vmatpush1.xpose.msra.mxu0 %v5941
        %5947 = vmatprep.subr.mxu0 0.0
        %5948 = vmatpush1.xpose.msra.mxu0 0.0
        %5949 = vmatprep.subr.mxu0 0.0
        %5950 = vmatpush1.xpose.msra.mxu0 0.0
        %5951 = vmatprep.subr.mxu0 0.0
        %5952 = vmatpush1.xpose.msra.mxu0 0.0
        %5953 = vmatprep.subr.mxu0 0.0
        %5954 = vmatpush1.xpose.msra.mxu0 0.0
        %5955 = vmatprep.subr.mxu0 0.0
        %5956 = vmatpush1.xpose.msra.mxu0 0.0
        %5957 = vmatprep.subr.mxu0 0.0
        %5958 = vmatpush1.xpose.msra.mxu0 0.0
        %5959 = vmatprep.subr.mxu0 0.0
        %5960 = vmatpush1.xpose.msra.mxu0 0.0
        %5961 = vmatprep.subr.mxu0 0.0
        %5962 = vmatpush1.xpose.msra.mxu0 0.0
        %5963 = vmatprep.subr.mxu0 0.0
        %5964 = vmatpush1.xpose.msra.mxu0 0.0
        %5965 = vmatprep.subr.mxu0 0.0
        %5966 = vmatpush1.xpose.msra.mxu0 0.0
        %5967 = vmatprep.subr.mxu0 0.0
        %5968 = vmatpush1.xpose.msra.mxu0 0.0
        %5969 = vmatprep.subr.mxu0 0.0
        %5970 = vmatpush1.xpose.msra.mxu0 0.0
        %5971 = vmatprep.subr.mxu0 0.0
        %5972 = vmatpush1.xpose.msra.mxu0 0.0
        %5973 = vmatprep.subr.mxu0 0.0
        %5974 = vmatpush1.xpose.msra.mxu0 0.0
        %5975 = vmatprep.subr.mxu0 0.0
        %5976 = vmatpush1.xpose.msra.mxu0 0.0
        %5977 = vmatprep.subr.mxu0 0.0
        %5978 = vmatpush1.xpose.msra.mxu0 0.0
        %5979 = vmatprep.subr.mxu0 0.0
        %5980 = vmatpush1.xpose.msra.mxu0 0.0
        %5981 = vmatprep.subr.mxu0 0.0
        %5982 = vmatpush1.xpose.msra.mxu0 0.0
        %5983 = vmatprep.subr.mxu0 0.0
        %5984 = vmatpush1.xpose.msra.mxu0 0.0
        %5985 = vmatprep.subr.mxu0 0.0
        %5986 = vmatpush1.xpose.msra.mxu0 0.0
        %5987 = vmatprep.subr.mxu0 0.0
        %5988 = vmatpush1.xpose.msra.mxu0 0.0
        %5989 = vmatprep.subr.mxu0 0.0
        %5990 = vmatpush1.xpose.msra.mxu0 0.0
        %5991 = vmatprep.subr.mxu0 0.0
        %5992 = vmatpush1.xpose.msra.mxu0 0.0
        %5993 = vmatprep.subr.mxu0 0.0
        %5994 = vmatpush1.xpose.msra.mxu0 0.0
        %5995 = vmatprep.subr.mxu0 0.0
        %5996 = vmatpush1.xpose.msra.mxu0 0.0
        %5997 = vmatprep.subr.mxu0 0.0
        %5998 = vmatpush1.xpose.msra.mxu0 0.0
        %5999 = vmatprep.subr.mxu0 0.0
        %6000 = vmatpush1.xpose.msra.mxu0 0.0
        %6001 = vmatprep.subr.mxu0 0.0
        %6002 = vmatpush1.xpose.msra.mxu0 0.0
        %6003 = vmatprep.subr.mxu0 0.0
        %6004 = vmatpush1.xpose.msra.mxu0 0.0
        %6005 = vmatprep.subr.mxu0 0.0
        %6006 = vmatpush1.xpose.msra.mxu0 0.0
        %6007 = vmatprep.mubr.f32.mxu0 0.0
        %6008 = vmatmul.mubr.f32.gmra.mrb[0].mxu0 %v5935
        %v6009 = vpop.f32.mrb[0].mxu0
        %v6010 = vadd.f32 0.0, %v6009
        %v6011 = vpop.f32.mrb[0].mxu0
        %6012 = vmatprep.mubr.f32.mxu0 0.0
        %6013 = vmatmul.mubr.f32.gmra.mrb[0].mxu0 %v5937
        %v6014 = vpop.f32.mrb[0].mxu0
        %v6015 = vadd.f32 0.0, %v6014
        %v6016 = vpop.f32.mrb[0].mxu0
        %6017 = vdwg.mxu0
        %v6018 = vsel %vm1562, %v6010, -inf
        %6019 = vmax.xlane.f32.xlu0 %v6018
        %v6020 = vpop.xlane.xlu0 %6019
        %v6021 = vsel %vm1566, %v6015, -inf
        %6022 = vmax.xlane.f32.xlu0 %v6021
        %v6023 = vpop.xlane.xlu0 %6022
        %v6024 = vsub.f32 %v6010, %v6020
        %v6025 = vsub.f32 %v6015, %v6023
        %v6026 = vmul.f32 %v6024, 1.442695
        %v6027 = vpow.pop %v6026
        %v6028 = vmul.f32 %v6025, 1.442695
        %v6029 = vpow.pop %v6028
        %v6030 = vsel %vm1562, %v6027, 0.0
        %6031 = vadd.xlane.f32.xlu0 %v6030
        %v6032 = vpop.xlane.xlu0 %6031
        %v6033 = vsel %vm1566, %v6029, 0.0
        %6034 = vadd.xlane.f32.xlu0 %v6033
        %v6035 = vpop.xlane.xlu0 %6034
        %v6036 = vrcp.pop %v6032
        %v6037 = vrcp.pop %v6035
        %v6038 = vmul.f32 %v6027, %v6036
        %v6039 = vmul.f32 %v6029, %v6037
        %6040 = vrot.lane.b32.xlu0 %v5722, 56
        %v6041 = vpop.permute.xlu0 %6040
        %6042 = vrot.lane.b32.xlu0 %v5727, 56
        %v6043 = vpop.permute.xlu0 %6042
        %v6046 = vsel %vm1562, %v6038, 0
        %v6049 = vsel %vm1562, %v6039, 0
        %v6051 = vsel %vm1592, %v6043, 0
        %6053 = vmatprep.subr.mxu0 0.0
        %6054 = vmatpush1.msra.mxu0 %v6041
        %6055 = vmatprep.subr.mxu0 0.0
        %6056 = vmatpush1.msra.mxu0 %v6051
        %6057 = vmatprep.subr.mxu0 0.0
        %6058 = vmatpush1.msra.mxu0 0.0
        %6059 = vmatprep.subr.mxu0 0.0
        %6060 = vmatpush1.msra.mxu0 0.0
        %6061 = vmatprep.subr.mxu0 0.0
        %6062 = vmatpush1.msra.mxu0 0.0
        %6063 = vmatprep.subr.mxu0 0.0
        %6064 = vmatpush1.msra.mxu0 0.0
        %6065 = vmatprep.subr.mxu0 0.0
        %6066 = vmatpush1.msra.mxu0 0.0
        %6067 = vmatprep.subr.mxu0 0.0
        %6068 = vmatpush1.msra.mxu0 0.0
        %6069 = vmatprep.subr.mxu0 0.0
        %6070 = vmatpush1.msra.mxu0 0.0
        %6071 = vmatprep.subr.mxu0 0.0
        %6072 = vmatpush1.msra.mxu0 0.0
        %6073 = vmatprep.subr.mxu0 0.0
        %6074 = vmatpush1.msra.mxu0 0.0
        %6075 = vmatprep.subr.mxu0 0.0
        %6076 = vmatpush1.msra.mxu0 0.0
        %6077 = vmatprep.subr.mxu0 0.0
        %6078 = vmatpush1.msra.mxu0 0.0
        %6079 = vmatprep.subr.mxu0 0.0
        %6080 = vmatpush1.msra.mxu0 0.0
        %6081 = vmatprep.subr.mxu0 0.0
        %6082 = vmatpush1.msra.mxu0 0.0
        %6083 = vmatprep.subr.mxu0 0.0
        %6084 = vmatpush1.msra.mxu0 0.0
        %6085 = vmatprep.subr.mxu0 0.0
        %6086 = vmatpush1.msra.mxu0 0.0
        %6087 = vmatprep.subr.mxu0 0.0
        %6088 = vmatpush1.msra.mxu0 0.0
        %6089 = vmatprep.subr.mxu0 0.0
        %6090 = vmatpush1.msra.mxu0 0.0
        %6091 = vmatprep.subr.mxu0 0.0
        %6092 = vmatpush1.msra.mxu0 0.0
        %6093 = vmatprep.subr.mxu0 0.0
        %6094 = vmatpush1.msra.mxu0 0.0
        %6095 = vmatprep.subr.mxu0 0.0
        %6096 = vmatpush1.msra.mxu0 0.0
        %6097 = vmatprep.subr.mxu0 0.0
        %6098 = vmatpush1.msra.mxu0 0.0
        %6099 = vmatprep.subr.mxu0 0.0
        %6100 = vmatpush1.msra.mxu0 0.0
        %6101 = vmatprep.subr.mxu0 0.0
        %6102 = vmatpush1.msra.mxu0 0.0
        %6103 = vmatprep.subr.mxu0 0.0
        %6104 = vmatpush1.msra.mxu0 0.0
        %6105 = vmatprep.subr.mxu0 0.0
        %6106 = vmatpush1.msra.mxu0 0.0
        %6107 = vmatprep.subr.mxu0 0.0
        %6108 = vmatpush1.msra.mxu0 0.0
        %6109 = vmatprep.subr.mxu0 0.0
        %6110 = vmatpush1.msra.mxu0 0.0
        %6111 = vmatprep.subr.mxu0 0.0
        %6112 = vmatpush1.msra.mxu0 0.0
        %6113 = vmatprep.subr.mxu0 0.0
        %6114 = vmatpush1.msra.mxu0 0.0
        %6115 = vmatprep.subr.mxu0 0.0
        %6116 = vmatpush1.msra.mxu0 0.0
        %6117 = vmatprep.mubr.f32.mxu0 0.0
        %6118 = vmatmul.mubr.f32.gmra.mrb[0].mxu0 %v6046
        %v6119 = vpop.f32.mrb[0].mxu0
        %v6120 = vadd.f32 0.0, %v6119
        %v6121 = vpop.f32.mrb[0].mxu0
        %6122 = vmatprep.mubr.f32.mxu0 0.0
        %6123 = vmatmul.mubr.f32.gmra.mrb[0].mxu0 %v6049
        %v6124 = vpop.f32.mrb[0].mxu0
        %v6125 = vadd.f32 0.0, %v6124
        %v6126 = vpop.f32.mrb[0].mxu0
        %6127 = vdwg.mxu0
        %6128 = vrot.lane.b32.xlu0 %v5626, 112
        %v6129 = vpop.permute.xlu0 %6128
        %6130 = vrot.lane.b32.xlu0 %v5631, 112
        %v6131 = vpop.permute.xlu0 %6130
        %6132 = vrot.lane.b32.xlu0 %v5722, 112
        %v6133 = vpop.permute.xlu0 %6132
        %6134 = vrot.lane.b32.xlu0 %v5727, 112
        %v6135 = vpop.permute.xlu0 %6134
        %v6136 = vsel %vm1478, %v6129, 0
        %v6138 = vsel %vm1478, %v6131, 0
        %v6140 = vsel %vm1478, %v6133, 0
        %v6142 = vsel %vm1478, %v6135, 0
        %6144 = vmatprep.subr.mxu0 0.0
        %6145 = vmatpush1.xpose.msra.mxu0 %v6140
        %6146 = vmatprep.subr.mxu0 0.0
        %6147 = vmatpush1.xpose.msra.mxu0 %v6142
        %6148 = vmatprep.subr.mxu0 0.0
        %6149 = vmatpush1.xpose.msra.mxu0 0.0
        %6150 = vmatprep.subr.mxu0 0.0
        %6151 = vmatpush1.xpose.msra.mxu0 0.0
        %6152 = vmatprep.subr.mxu0 0.0
        %6153 = vmatpush1.xpose.msra.mxu0 0.0
        %6154 = vmatprep.subr.mxu0 0.0
        %6155 = vmatpush1.xpose.msra.mxu0 0.0
        %6156 = vmatprep.subr.mxu0 0.0
        %6157 = vmatpush1.xpose.msra.mxu0 0.0
        %6158 = vmatprep.subr.mxu0 0.0
        %6159 = vmatpush1.xpose.msra.mxu0 0.0
        %6160 = vmatprep.subr.mxu0 0.0
        %6161 = vmatpush1.xpose.msra.mxu0 0.0
        %6162 = vmatprep.subr.mxu0 0.0
        %6163 = vmatpush1.xpose.msra.mxu0 0.0
        %6164 = vmatprep.subr.mxu0 0.0
        %6165 = vmatpush1.xpose.msra.mxu0 0.0
        %6166 = vmatprep.subr.mxu0 0.0
        %6167 = vmatpush1.xpose.msra.mxu0 0.0
        %6168 = vmatprep.subr.mxu0 0.0
        %6169 = vmatpush1.xpose.msra.mxu0 0.0
        %6170 = vmatprep.subr.mxu0 0.0
        %6171 = vmatpush1.xpose.msra.mxu0 0.0
        %6172 = vmatprep.subr.mxu0 0.0
        %6173 = vmatpush1.xpose.msra.mxu0 0.0
        %6174 = vmatprep.subr.mxu0 0.0
        %6175 = vmatpush1.xpose.msra.mxu0 0.0
        %6176 = vmatprep.subr.mxu0 0.0
        %6177 = vmatpush1.xpose.msra.mxu0 0.0
        %6178 = vmatprep.subr.mxu0 0.0
        %6179 = vmatpush1.xpose.msra.mxu0 0.0
        %6180 = vmatprep.subr.mxu0 0.0
        %6181 = vmatpush1.xpose.msra.mxu0 0.0
        %6182 = vmatprep.subr.mxu0 0.0
        %6183 = vmatpush1.xpose.msra.mxu0 0.0
        %6184 = vmatprep.subr.mxu0 0.0
        %6185 = vmatpush1.xpose.msra.mxu0 0.0
        %6186 = vmatprep.subr.mxu0 0.0
        %6187 = vmatpush1.xpose.msra.mxu0 0.0
        %6188 = vmatprep.subr.mxu0 0.0
        %6189 = vmatpush1.xpose.msra.mxu0 0.0
        %6190 = vmatprep.subr.mxu0 0.0
        %6191 = vmatpush1.xpose.msra.mxu0 0.0
        %6192 = vmatprep.subr.mxu0 0.0
        %6193 = vmatpush1.xpose.msra.mxu0 0.0
        %6194 = vmatprep.subr.mxu0 0.0
        %6195 = vmatpush1.xpose.msra.mxu0 0.0
        %6196 = vmatprep.subr.mxu0 0.0
        %6197 = vmatpush1.xpose.msra.mxu0 0.0
        %6198 = vmatprep.subr.mxu0 0.0
        %6199 = vmatpush1.xpose.msra.mxu0 0.0
        %6200 = vmatprep.subr.mxu0 0.0
        %6201 = vmatpush1.xpose.msra.mxu0 0.0
        %6202 = vmatprep.subr.mxu0 0.0
        %6203 = vmatpush1.xpose.msra.mxu0 0.0
        %6204 = vmatprep.subr.mxu0 0.0
        %6205 = vmatpush1.xpose.msra.mxu0 0.0
        %6206 = vmatprep.subr.mxu0 0.0
        %6207 = vmatpush1.xpose.msra.mxu0 0.0
        %6208 = vmatprep.mubr.f32.mxu0 0.0
        %6209 = vmatmul.mubr.f32.gmra.mrb[0].mxu0 %v6136
        %v6210 = vpop.f32.mrb[0].mxu0
        %v6211 = vadd.f32 0.0, %v6210
        %v6212 = vpop.f32.mrb[0].mxu0
        %6213 = vmatprep.mubr.f32.mxu0 0.0
        %6214 = vmatmul.mubr.f32.gmra.mrb[0].mxu0 %v6138
        %v6215 = vpop.f32.mrb[0].mxu0
        %v6216 = vadd.f32 0.0, %v6215
        %v6217 = vpop.f32.mrb[0].mxu0
        %6218 = vdwg.mxu0
        %v6219 = vsel %vm1562, %v6211, -inf
        %6220 = vmax.xlane.f32.xlu0 %v6219
        %v6221 = vpop.xlane.xlu0 %6220
        %v6222 = vsel %vm1566, %v6216, -inf
        %6223 = vmax.xlane.f32.xlu0 %v6222
        %v6224 = vpop.xlane.xlu0 %6223
        %v6225 = vsub.f32 %v6211, %v6221
        %v6226 = vsub.f32 %v6216, %v6224
        %v6227 = vmul.f32 %v6225, 1.442695
        %v6228 = vpow.pop %v6227
        %v6229 = vmul.f32 %v6226, 1.442695
        %v6230 = vpow.pop %v6229
        %v6231 = vsel %vm1562, %v6228, 0.0
        %6232 = vadd.xlane.f32.xlu0 %v6231
        %v6233 = vpop.xlane.xlu0 %6232
        %v6234 = vsel %vm1566, %v6230, 0.0
        %6235 = vadd.xlane.f32.xlu0 %v6234
        %v6236 = vpop.xlane.xlu0 %6235
        %v6237 = vrcp.pop %v6233
        %v6238 = vrcp.pop %v6236
        %v6239 = vmul.f32 %v6228, %v6237
        %v6240 = vmul.f32 %v6230, %v6238
        %6241 = vrot.lane.b32.xlu0 %v5722, 48
        %v6242 = vpop.permute.xlu0 %6241
        %6243 = vrot.lane.b32.xlu0 %v5727, 48
        %v6244 = vpop.permute.xlu0 %6243
        %v6247 = vsel %vm1562, %v6239, 0
        %v6250 = vsel %vm1562, %v6240, 0
        %v6252 = vsel %vm1592, %v6244, 0
        %6254 = vmatprep.subr.mxu0 0.0
        %6255 = vmatpush1.msra.mxu0 %v6242
        %6256 = vmatprep.subr.mxu0 0.0
        %6257 = vmatpush1.msra.mxu0 %v6252
        %6258 = vmatprep.subr.mxu0 0.0
        %6259 = vmatpush1.msra.mxu0 0.0
        %6260 = vmatprep.subr.mxu0 0.0
        %6261 = vmatpush1.msra.mxu0 0.0
        %6262 = vmatprep.subr.mxu0 0.0
        %6263 = vmatpush1.msra.mxu0 0.0
        %6264 = vmatprep.subr.mxu0 0.0
        %6265 = vmatpush1.msra.mxu0 0.0
        %6266 = vmatprep.subr.mxu0 0.0
        %6267 = vmatpush1.msra.mxu0 0.0
        %6268 = vmatprep.subr.mxu0 0.0
        %6269 = vmatpush1.msra.mxu0 0.0
        %6270 = vmatprep.subr.mxu0 0.0
        %6271 = vmatpush1.msra.mxu0 0.0
        %6272 = vmatprep.subr.mxu0 0.0
        %6273 = vmatpush1.msra.mxu0 0.0
        %6274 = vmatprep.subr.mxu0 0.0
        %6275 = vmatpush1.msra.mxu0 0.0
        %6276 = vmatprep.subr.mxu0 0.0
        %6277 = vmatpush1.msra.mxu0 0.0
        %6278 = vmatprep.subr.mxu0 0.0
        %6279 = vmatpush1.msra.mxu0 0.0
        %6280 = vmatprep.subr.mxu0 0.0
        %6281 = vmatpush1.msra.mxu0 0.0
        %6282 = vmatprep.subr.mxu0 0.0
        %6283 = vmatpush1.msra.mxu0 0.0
        %6284 = vmatprep.subr.mxu0 0.0
        %6285 = vmatpush1.msra.mxu0 0.0
        %6286 = vmatprep.subr.mxu0 0.0
        %6287 = vmatpush1.msra.mxu0 0.0
        %6288 = vmatprep.subr.mxu0 0.0
        %6289 = vmatpush1.msra.mxu0 0.0
        %6290 = vmatprep.subr.mxu0 0.0
        %6291 = vmatpush1.msra.mxu0 0.0
        %6292 = vmatprep.subr.mxu0 0.0
        %6293 = vmatpush1.msra.mxu0 0.0
        %6294 = vmatprep.subr.mxu0 0.0
        %6295 = vmatpush1.msra.mxu0 0.0
        %6296 = vmatprep.subr.mxu0 0.0
        %6297 = vmatpush1.msra.mxu0 0.0
        %6298 = vmatprep.subr.mxu0 0.0
        %6299 = vmatpush1.msra.mxu0 0.0
        %6300 = vmatprep.subr.mxu0 0.0
        %6301 = vmatpush1.msra.mxu0 0.0
        %6302 = vmatprep.subr.mxu0 0.0
        %6303 = vmatpush1.msra.mxu0 0.0
        %6304 = vmatprep.subr.mxu0 0.0
        %6305 = vmatpush1.msra.mxu0 0.0
        %6306 = vmatprep.subr.mxu0 0.0
        %6307 = vmatpush1.msra.mxu0 0.0
        %6308 = vmatprep.subr.mxu0 0.0
        %6309 = vmatpush1.msra.mxu0 0.0
        %6310 = vmatprep.subr.mxu0 0.0
        %6311 = vmatpush1.msra.mxu0 0.0
        %6312 = vmatprep.subr.mxu0 0.0
        %6313 = vmatpush1.msra.mxu0 0.0
        %6314 = vmatprep.subr.mxu0 0.0
        %6315 = vmatpush1.msra.mxu0 0.0
        %6316 = vmatprep.subr.mxu0 0.0
        %6317 = vmatpush1.msra.mxu0 0.0
        %6318 = vmatprep.mubr.f32.mxu0 0.0
        %6319 = vmatmul.mubr.f32.gmra.mrb[0].mxu0 %v6247
        %v6320 = vpop.f32.mrb[0].mxu0
        %v6321 = vadd.f32 0.0, %v6320
        %v6322 = vpop.f32.mrb[0].mxu0
        %6323 = vmatprep.mubr.f32.mxu0 0.0
        %6324 = vmatmul.mubr.f32.gmra.mrb[0].mxu0 %v6250
        %v6325 = vpop.f32.mrb[0].mxu0
        %v6326 = vadd.f32 0.0, %v6325
        %v6327 = vpop.f32.mrb[0].mxu0
        %6328 = vdwg.mxu0
        %6329 = vrot.lane.b32.xlu0 %v5626, 104
        %v6330 = vpop.permute.xlu0 %6329
        %6331 = vrot.lane.b32.xlu0 %v5631, 104
        %v6332 = vpop.permute.xlu0 %6331
        %6333 = vrot.lane.b32.xlu0 %v5722, 104
        %v6334 = vpop.permute.xlu0 %6333
        %6335 = vrot.lane.b32.xlu0 %v5727, 104
        %v6336 = vpop.permute.xlu0 %6335
        %v6337 = vsel %vm1478, %v6330, 0
        %v6339 = vsel %vm1478, %v6332, 0
        %v6341 = vsel %vm1478, %v6334, 0
        %v6343 = vsel %vm1478, %v6336, 0
        %6345 = vmatprep.subr.mxu0 0.0
        %6346 = vmatpush1.xpose.msra.mxu0 %v6341
        %6347 = vmatprep.subr.mxu0 0.0
        %6348 = vmatpush1.xpose.msra.mxu0 %v6343
        %6349 = vmatprep.subr.mxu0 0.0
        %6350 = vmatpush1.xpose.msra.mxu0 0.0
        %6351 = vmatprep.subr.mxu0 0.0
        %6352 = vmatpush1.xpose.msra.mxu0 0.0
        %6353 = vmatprep.subr.mxu0 0.0
        %6354 = vmatpush1.xpose.msra.mxu0 0.0
        %6355 = vmatprep.subr.mxu0 0.0
        %6356 = vmatpush1.xpose.msra.mxu0 0.0
        %6357 = vmatprep.subr.mxu0 0.0
        %6358 = vmatpush1.xpose.msra.mxu0 0.0
        %6359 = vmatprep.subr.mxu0 0.0
        %6360 = vmatpush1.xpose.msra.mxu0 0.0
        %6361 = vmatprep.subr.mxu0 0.0
        %6362 = vmatpush1.xpose.msra.mxu0 0.0
        %6363 = vmatprep.subr.mxu0 0.0
        %6364 = vmatpush1.xpose.msra.mxu0 0.0
        %6365 = vmatprep.subr.mxu0 0.0
        %6366 = vmatpush1.xpose.msra.mxu0 0.0
        %6367 = vmatprep.subr.mxu0 0.0
        %6368 = vmatpush1.xpose.msra.mxu0 0.0
        %6369 = vmatprep.subr.mxu0 0.0
        %6370 = vmatpush1.xpose.msra.mxu0 0.0
        %6371 = vmatprep.subr.mxu0 0.0
        %6372 = vmatpush1.xpose.msra.mxu0 0.0
        %6373 = vmatprep.subr.mxu0 0.0
        %6374 = vmatpush1.xpose.msra.mxu0 0.0
        %6375 = vmatprep.subr.mxu0 0.0
        %6376 = vmatpush1.xpose.msra.mxu0 0.0
        %6377 = vmatprep.subr.mxu0 0.0
        %6378 = vmatpush1.xpose.msra.mxu0 0.0
        %6379 = vmatprep.subr.mxu0 0.0
        %6380 = vmatpush1.xpose.msra.mxu0 0.0
        %6381 = vmatprep.subr.mxu0 0.0
        %6382 = vmatpush1.xpose.msra.mxu0 0.0
        %6383 = vmatprep.subr.mxu0 0.0
        %6384 = vmatpush1.xpose.msra.mxu0 0.0
        %6385 = vmatprep.subr.mxu0 0.0
        %6386 = vmatpush1.xpose.msra.mxu0 0.0
        %6387 = vmatprep.subr.mxu0 0.0
        %6388 = vmatpush1.xpose.msra.mxu0 0.0
        %6389 = vmatprep.subr.mxu0 0.0
        %6390 = vmatpush1.xpose.msra.mxu0 0.0
        %6391 = vmatprep.subr.mxu0 0.0
        %6392 = vmatpush1.xpose.msra.mxu0 0.0
        %6393 = vmatprep.subr.mxu0 0.0
        %6394 = vmatpush1.xpose.msra.mxu0 0.0
        %6395 = vmatprep.subr.mxu0 0.0
        %6396 = vmatpush1.xpose.msra.mxu0 0.0
        %6397 = vmatprep.subr.mxu0 0.0
        %6398 = vmatpush1.xpose.msra.mxu0 0.0
        %6399 = vmatprep.subr.mxu0 0.0
        %6400 = vmatpush1.xpose.msra.mxu0 0.0
        %6401 = vmatprep.subr.mxu0 0.0
        %6402 = vmatpush1.xpose.msra.mxu0 0.0
        %6403 = vmatprep.subr.mxu0 0.0
        %6404 = vmatpush1.xpose.msra.mxu0 0.0
        %6405 = vmatprep.subr.mxu0 0.0
        %6406 = vmatpush1.xpose.msra.mxu0 0.0
        %6407 = vmatprep.subr.mxu0 0.0
        %6408 = vmatpush1.xpose.msra.mxu0 0.0
        %6409 = vmatprep.mubr.f32.mxu0 0.0
        %6410 = vmatmul.mubr.f32.gmra.mrb[0].mxu0 %v6337
        %v6411 = vpop.f32.mrb[0].mxu0
        %v6412 = vadd.f32 0.0, %v6411
        %v6413 = vpop.f32.mrb[0].mxu0
        %6414 = vmatprep.mubr.f32.mxu0 0.0
        %6415 = vmatmul.mubr.f32.gmra.mrb[0].mxu0 %v6339
        %v6416 = vpop.f32.mrb[0].mxu0
        %v6417 = vadd.f32 0.0, %v6416
        %v6418 = vpop.f32.mrb[0].mxu0
        %6419 = vdwg.mxu0
        %v6420 = vsel %vm1562, %v6412, -inf
        %6421 = vmax.xlane.f32.xlu0 %v6420
        %v6422 = vpop.xlane.xlu0 %6421
        %v6423 = vsel %vm1566, %v6417, -inf
        %6424 = vmax.xlane.f32.xlu0 %v6423
        %v6425 = vpop.xlane.xlu0 %6424
        %v6426 = vsub.f32 %v6412, %v6422
        %v6427 = vsub.f32 %v6417, %v6425
        %v6428 = vmul.f32 %v6426, 1.442695
        %v6429 = vpow.pop %v6428
        %v6430 = vmul.f32 %v6427, 1.442695
        %v6431 = vpow.pop %v6430
        %v6432 = vsel %vm1562, %v6429, 0.0
        %6433 = vadd.xlane.f32.xlu0 %v6432
        %v6434 = vpop.xlane.xlu0 %6433
        %v6435 = vsel %vm1566, %v6431, 0.0
        %6436 = vadd.xlane.f32.xlu0 %v6435
        %v6437 = vpop.xlane.xlu0 %6436
        %v6438 = vrcp.pop %v6434
        %v6439 = vrcp.pop %v6437
        %v6440 = vmul.f32 %v6429, %v6438
        %v6441 = vmul.f32 %v6431, %v6439
        %6442 = vrot.lane.b32.xlu0 %v5722, 40
        %v6443 = vpop.permute.xlu0 %6442
        %6444 = vrot.lane.b32.xlu0 %v5727, 40
        %v6445 = vpop.permute.xlu0 %6444
        %v6448 = vsel %vm1562, %v6440, 0
        %v6451 = vsel %vm1562, %v6441, 0
        %v6453 = vsel %vm1592, %v6445, 0
        %6455 = vmatprep.subr.mxu0 0.0
        %6456 = vmatpush1.msra.mxu0 %v6443
        %6457 = vmatprep.subr.mxu0 0.0
        %6458 = vmatpush1.msra.mxu0 %v6453
        %6459 = vmatprep.subr.mxu0 0.0
        %6460 = vmatpush1.msra.mxu0 0.0
        %6461 = vmatprep.subr.mxu0 0.0
        %6462 = vmatpush1.msra.mxu0 0.0
        %6463 = vmatprep.subr.mxu0 0.0
        %6464 = vmatpush1.msra.mxu0 0.0
        %6465 = vmatprep.subr.mxu0 0.0
        %6466 = vmatpush1.msra.mxu0 0.0
        %6467 = vmatprep.subr.mxu0 0.0
        %6468 = vmatpush1.msra.mxu0 0.0
        %6469 = vmatprep.subr.mxu0 0.0
        %6470 = vmatpush1.msra.mxu0 0.0
        %6471 = vmatprep.subr.mxu0 0.0
        %6472 = vmatpush1.msra.mxu0 0.0
        %6473 = vmatprep.subr.mxu0 0.0
        %6474 = vmatpush1.msra.mxu0 0.0
        %6475 = vmatprep.subr.mxu0 0.0
        %6476 = vmatpush1.msra.mxu0 0.0
        %6477 = vmatprep.subr.mxu0 0.0
        %6478 = vmatpush1.msra.mxu0 0.0
        %6479 = vmatprep.subr.mxu0 0.0
        %6480 = vmatpush1.msra.mxu0 0.0
        %6481 = vmatprep.subr.mxu0 0.0
        %6482 = vmatpush1.msra.mxu0 0.0
        %6483 = vmatprep.subr.mxu0 0.0
        %6484 = vmatpush1.msra.mxu0 0.0
        %6485 = vmatprep.subr.mxu0 0.0
        %6486 = vmatpush1.msra.mxu0 0.0
        %6487 = vmatprep.subr.mxu0 0.0
        %6488 = vmatpush1.msra.mxu0 0.0
        %6489 = vmatprep.subr.mxu0 0.0
        %6490 = vmatpush1.msra.mxu0 0.0
        %6491 = vmatprep.subr.mxu0 0.0
        %6492 = vmatpush1.msra.mxu0 0.0
        %6493 = vmatprep.subr.mxu0 0.0
        %6494 = vmatpush1.msra.mxu0 0.0
        %6495 = vmatprep.subr.mxu0 0.0
        %6496 = vmatpush1.msra.mxu0 0.0
        %6497 = vmatprep.subr.mxu0 0.0
        %6498 = vmatpush1.msra.mxu0 0.0
        %6499 = vmatprep.subr.mxu0 0.0
        %6500 = vmatpush1.msra.mxu0 0.0
        %6501 = vmatprep.subr.mxu0 0.0
        %6502 = vmatpush1.msra.mxu0 0.0
        %6503 = vmatprep.subr.mxu0 0.0
        %6504 = vmatpush1.msra.mxu0 0.0
        %6505 = vmatprep.subr.mxu0 0.0
        %6506 = vmatpush1.msra.mxu0 0.0
        %6507 = vmatprep.subr.mxu0 0.0
        %6508 = vmatpush1.msra.mxu0 0.0
        %6509 = vmatprep.subr.mxu0 0.0
        %6510 = vmatpush1.msra.mxu0 0.0
        %6511 = vmatprep.subr.mxu0 0.0
        %6512 = vmatpush1.msra.mxu0 0.0
        %6513 = vmatprep.subr.mxu0 0.0
        %6514 = vmatpush1.msra.mxu0 0.0
        %6515 = vmatprep.subr.mxu0 0.0
        %6516 = vmatpush1.msra.mxu0 0.0
        %6517 = vmatprep.subr.mxu0 0.0
        %6518 = vmatpush1.msra.mxu0 0.0
        %6519 = vmatprep.mubr.f32.mxu0 0.0
        %6520 = vmatmul.mubr.f32.gmra.mrb[0].mxu0 %v6448
        %v6521 = vpop.f32.mrb[0].mxu0
        %v6522 = vadd.f32 0.0, %v6521
        %v6523 = vpop.f32.mrb[0].mxu0
        %6524 = vmatprep.mubr.f32.mxu0 0.0
        %6525 = vmatmul.mubr.f32.gmra.mrb[0].mxu0 %v6451
        %v6526 = vpop.f32.mrb[0].mxu0
        %v6527 = vadd.f32 0.0, %v6526
        %v6528 = vpop.f32.mrb[0].mxu0
        %6529 = vdwg.mxu0
        %6530 = vrot.lane.b32.xlu0 %v5626, 96
        %v6531 = vpop.permute.xlu0 %6530
        %6532 = vrot.lane.b32.xlu0 %v5631, 96
        %v6533 = vpop.permute.xlu0 %6532
        %6534 = vrot.lane.b32.xlu0 %v5722, 96
        %v6535 = vpop.permute.xlu0 %6534
        %6536 = vrot.lane.b32.xlu0 %v5727, 96
        %v6537 = vpop.permute.xlu0 %6536
        %v6538 = vsel %vm1478, %v6531, 0
        %v6540 = vsel %vm1478, %v6533, 0
        %v6542 = vsel %vm1478, %v6535, 0
        %v6544 = vsel %vm1478, %v6537, 0
        %6546 = vmatprep.subr.mxu0 0.0
        %6547 = vmatpush1.xpose.msra.mxu0 %v6542
        %6548 = vmatprep.subr.mxu0 0.0
        %6549 = vmatpush1.xpose.msra.mxu0 %v6544
        %6550 = vmatprep.subr.mxu0 0.0
        %6551 = vmatpush1.xpose.msra.mxu0 0.0
        %6552 = vmatprep.subr.mxu0 0.0
        %6553 = vmatpush1.xpose.msra.mxu0 0.0
        %6554 = vmatprep.subr.mxu0 0.0
        %6555 = vmatpush1.xpose.msra.mxu0 0.0
        %6556 = vmatprep.subr.mxu0 0.0
        %6557 = vmatpush1.xpose.msra.mxu0 0.0
        %6558 = vmatprep.subr.mxu0 0.0
        %6559 = vmatpush1.xpose.msra.mxu0 0.0
        %6560 = vmatprep.subr.mxu0 0.0
        %6561 = vmatpush1.xpose.msra.mxu0 0.0
        %6562 = vmatprep.subr.mxu0 0.0
        %6563 = vmatpush1.xpose.msra.mxu0 0.0
        %6564 = vmatprep.subr.mxu0 0.0
        %6565 = vmatpush1.xpose.msra.mxu0 0.0
        %6566 = vmatprep.subr.mxu0 0.0
        %6567 = vmatpush1.xpose.msra.mxu0 0.0
        %6568 = vmatprep.subr.mxu0 0.0
        %6569 = vmatpush1.xpose.msra.mxu0 0.0
        %6570 = vmatprep.subr.mxu0 0.0
        %6571 = vmatpush1.xpose.msra.mxu0 0.0
        %6572 = vmatprep.subr.mxu0 0.0
        %6573 = vmatpush1.xpose.msra.mxu0 0.0
        %6574 = vmatprep.subr.mxu0 0.0
        %6575 = vmatpush1.xpose.msra.mxu0 0.0
        %6576 = vmatprep.subr.mxu0 0.0
        %6577 = vmatpush1.xpose.msra.mxu0 0.0
        %6578 = vmatprep.subr.mxu0 0.0
        %6579 = vmatpush1.xpose.msra.mxu0 0.0
        %6580 = vmatprep.subr.mxu0 0.0
        %6581 = vmatpush1.xpose.msra.mxu0 0.0
        %6582 = vmatprep.subr.mxu0 0.0
        %6583 = vmatpush1.xpose.msra.mxu0 0.0
        %6584 = vmatprep.subr.mxu0 0.0
        %6585 = vmatpush1.xpose.msra.mxu0 0.0
        %6586 = vmatprep.subr.mxu0 0.0
        %6587 = vmatpush1.xpose.msra.mxu0 0.0
        %6588 = vmatprep.subr.mxu0 0.0
        %6589 = vmatpush1.xpose.msra.mxu0 0.0
        %6590 = vmatprep.subr.mxu0 0.0
        %6591 = vmatpush1.xpose.msra.mxu0 0.0
        %6592 = vmatprep.subr.mxu0 0.0
        %6593 = vmatpush1.xpose.msra.mxu0 0.0
        %6594 = vmatprep.subr.mxu0 0.0
        %6595 = vmatpush1.xpose.msra.mxu0 0.0
        %6596 = vmatprep.subr.mxu0 0.0
        %6597 = vmatpush1.xpose.msra.mxu0 0.0
        %6598 = vmatprep.subr.mxu0 0.0
        %6599 = vmatpush1.xpose.msra.mxu0 0.0
        %6600 = vmatprep.subr.mxu0 0.0
        %6601 = vmatpush1.xpose.msra.mxu0 0.0
        %6602 = vmatprep.subr.mxu0 0.0
        %6603 = vmatpush1.xpose.msra.mxu0 0.0
        %6604 = vmatprep.subr.mxu0 0.0
        %6605 = vmatpush1.xpose.msra.mxu0 0.0
        %6606 = vmatprep.subr.mxu0 0.0
        %6607 = vmatpush1.xpose.msra.mxu0 0.0
        %6608 = vmatprep.subr.mxu0 0.0
        %6609 = vmatpush1.xpose.msra.mxu0 0.0
        %6610 = vmatprep.mubr.f32.mxu0 0.0
        %6611 = vmatmul.mubr.f32.gmra.mrb[0].mxu0 %v6538
        %v6612 = vpop.f32.mrb[0].mxu0
        %v6613 = vadd.f32 0.0, %v6612
        %v6614 = vpop.f32.mrb[0].mxu0
        %6615 = vmatprep.mubr.f32.mxu0 0.0
        %6616 = vmatmul.mubr.f32.gmra.mrb[0].mxu0 %v6540
        %v6617 = vpop.f32.mrb[0].mxu0
        %v6618 = vadd.f32 0.0, %v6617
        %v6619 = vpop.f32.mrb[0].mxu0
        %6620 = vdwg.mxu0
        %v6621 = vsel %vm1562, %v6613, -inf
        %6622 = vmax.xlane.f32.xlu0 %v6621
        %v6623 = vpop.xlane.xlu0 %6622
        %v6624 = vsel %vm1566, %v6618, -inf
        %6625 = vmax.xlane.f32.xlu0 %v6624
        %v6626 = vpop.xlane.xlu0 %6625
        %v6627 = vsub.f32 %v6613, %v6623
        %v6628 = vsub.f32 %v6618, %v6626
        %v6629 = vmul.f32 %v6627, 1.442695
        %v6630 = vpow.pop %v6629
        %v6631 = vmul.f32 %v6628, 1.442695
        %v6632 = vpow.pop %v6631
        %v6633 = vsel %vm1562, %v6630, 0.0
        %6634 = vadd.xlane.f32.xlu0 %v6633
        %v6635 = vpop.xlane.xlu0 %6634
        %v6636 = vsel %vm1566, %v6632, 0.0
        %6637 = vadd.xlane.f32.xlu0 %v6636
        %v6638 = vpop.xlane.xlu0 %6637
        %v6639 = vrcp.pop %v6635
        %v6640 = vrcp.pop %v6638
        %v6641 = vmul.f32 %v6630, %v6639
        %v6642 = vmul.f32 %v6632, %v6640
        %6643 = vrot.lane.b32.xlu0 %v5722, 32
        %v6644 = vpop.permute.xlu0 %6643
        %6645 = vrot.lane.b32.xlu0 %v5727, 32
        %v6646 = vpop.permute.xlu0 %6645
        %v6649 = vsel %vm1562, %v6641, 0
        %v6652 = vsel %vm1562, %v6642, 0
        %v6654 = vsel %vm1592, %v6646, 0
        %6656 = vmatprep.subr.mxu0 0.0
        %6657 = vmatpush1.msra.mxu0 %v6644
        %6658 = vmatprep.subr.mxu0 0.0
        %6659 = vmatpush1.msra.mxu0 %v6654
        %6660 = vmatprep.subr.mxu0 0.0
        %6661 = vmatpush1.msra.mxu0 0.0
        %6662 = vmatprep.subr.mxu0 0.0
        %6663 = vmatpush1.msra.mxu0 0.0
        %6664 = vmatprep.subr.mxu0 0.0
        %6665 = vmatpush1.msra.mxu0 0.0
        %6666 = vmatprep.subr.mxu0 0.0
        %6667 = vmatpush1.msra.mxu0 0.0
        %6668 = vmatprep.subr.mxu0 0.0
        %6669 = vmatpush1.msra.mxu0 0.0
        %6670 = vmatprep.subr.mxu0 0.0
        %6671 = vmatpush1.msra.mxu0 0.0
        %6672 = vmatprep.subr.mxu0 0.0
        %6673 = vmatpush1.msra.mxu0 0.0
        %6674 = vmatprep.subr.mxu0 0.0
        %6675 = vmatpush1.msra.mxu0 0.0
        %6676 = vmatprep.subr.mxu0 0.0
        %6677 = vmatpush1.msra.mxu0 0.0
        %6678 = vmatprep.subr.mxu0 0.0
        %6679 = vmatpush1.msra.mxu0 0.0
        %6680 = vmatprep.subr.mxu0 0.0
        %6681 = vmatpush1.msra.mxu0 0.0
        %6682 = vmatprep.subr.mxu0 0.0
        %6683 = vmatpush1.msra.mxu0 0.0
        %6684 = vmatprep.subr.mxu0 0.0
        %6685 = vmatpush1.msra.mxu0 0.0
        %6686 = vmatprep.subr.mxu0 0.0
        %6687 = vmatpush1.msra.mxu0 0.0
        %6688 = vmatprep.subr.mxu0 0.0
        %6689 = vmatpush1.msra.mxu0 0.0
        %6690 = vmatprep.subr.mxu0 0.0
        %6691 = vmatpush1.msra.mxu0 0.0
        %6692 = vmatprep.subr.mxu0 0.0
        %6693 = vmatpush1.msra.mxu0 0.0
        %6694 = vmatprep.subr.mxu0 0.0
        %6695 = vmatpush1.msra.mxu0 0.0
        %6696 = vmatprep.subr.mxu0 0.0
        %6697 = vmatpush1.msra.mxu0 0.0
        %6698 = vmatprep.subr.mxu0 0.0
        %6699 = vmatpush1.msra.mxu0 0.0
        %6700 = vmatprep.subr.mxu0 0.0
        %6701 = vmatpush1.msra.mxu0 0.0
        %6702 = vmatprep.subr.mxu0 0.0
        %6703 = vmatpush1.msra.mxu0 0.0
        %6704 = vmatprep.subr.mxu0 0.0
        %6705 = vmatpush1.msra.mxu0 0.0
        %6706 = vmatprep.subr.mxu0 0.0
        %6707 = vmatpush1.msra.mxu0 0.0
        %6708 = vmatprep.subr.mxu0 0.0
        %6709 = vmatpush1.msra.mxu0 0.0
        %6710 = vmatprep.subr.mxu0 0.0
        %6711 = vmatpush1.msra.mxu0 0.0
        %6712 = vmatprep.subr.mxu0 0.0
        %6713 = vmatpush1.msra.mxu0 0.0
        %6714 = vmatprep.subr.mxu0 0.0
        %6715 = vmatpush1.msra.mxu0 0.0
        %6716 = vmatprep.subr.mxu0 0.0
        %6717 = vmatpush1.msra.mxu0 0.0
        %6718 = vmatprep.subr.mxu0 0.0
        %6719 = vmatpush1.msra.mxu0 0.0
        %6720 = vmatprep.mubr.f32.mxu0 0.0
        %6721 = vmatmul.mubr.f32.gmra.mrb[0].mxu0 %v6649
        %v6722 = vpop.f32.mrb[0].mxu0
        %v6723 = vadd.f32 0.0, %v6722
        %v6724 = vpop.f32.mrb[0].mxu0
        %6725 = vmatprep.mubr.f32.mxu0 0.0
        %6726 = vmatmul.mubr.f32.gmra.mrb[0].mxu0 %v6652
        %v6727 = vpop.f32.mrb[0].mxu0
        %v6728 = vadd.f32 0.0, %v6727
        %v6729 = vpop.f32.mrb[0].mxu0
        %6730 = vdwg.mxu0
        %6731 = vrot.lane.b32.xlu0 %v5626, 88
        %v6732 = vpop.permute.xlu0 %6731
        %6733 = vrot.lane.b32.xlu0 %v5631, 88
        %v6734 = vpop.permute.xlu0 %6733
        %6735 = vrot.lane.b32.xlu0 %v5722, 88
        %v6736 = vpop.permute.xlu0 %6735
        %6737 = vrot.lane.b32.xlu0 %v5727, 88
        %v6738 = vpop.permute.xlu0 %6737
        %v6739 = vsel %vm1478, %v6732, 0
        %v6741 = vsel %vm1478, %v6734, 0
        %v6743 = vsel %vm1478, %v6736, 0
        %v6745 = vsel %vm1478, %v6738, 0
        %6747 = vmatprep.subr.mxu0 0.0
        %6748 = vmatpush1.xpose.msra.mxu0 %v6743
        %6749 = vmatprep.subr.mxu0 0.0
        %6750 = vmatpush1.xpose.msra.mxu0 %v6745
        %6751 = vmatprep.subr.mxu0 0.0
        %6752 = vmatpush1.xpose.msra.mxu0 0.0
        %6753 = vmatprep.subr.mxu0 0.0
        %6754 = vmatpush1.xpose.msra.mxu0 0.0
        %6755 = vmatprep.subr.mxu0 0.0
        %6756 = vmatpush1.xpose.msra.mxu0 0.0
        %6757 = vmatprep.subr.mxu0 0.0
        %6758 = vmatpush1.xpose.msra.mxu0 0.0
        %6759 = vmatprep.subr.mxu0 0.0
        %6760 = vmatpush1.xpose.msra.mxu0 0.0
        %6761 = vmatprep.subr.mxu0 0.0
        %6762 = vmatpush1.xpose.msra.mxu0 0.0
        %6763 = vmatprep.subr.mxu0 0.0
        %6764 = vmatpush1.xpose.msra.mxu0 0.0
        %6765 = vmatprep.subr.mxu0 0.0
        %6766 = vmatpush1.xpose.msra.mxu0 0.0
        %6767 = vmatprep.subr.mxu0 0.0
        %6768 = vmatpush1.xpose.msra.mxu0 0.0
        %6769 = vmatprep.subr.mxu0 0.0
        %6770 = vmatpush1.xpose.msra.mxu0 0.0
        %6771 = vmatprep.subr.mxu0 0.0
        %6772 = vmatpush1.xpose.msra.mxu0 0.0
        %6773 = vmatprep.subr.mxu0 0.0
        %6774 = vmatpush1.xpose.msra.mxu0 0.0
        %6775 = vmatprep.subr.mxu0 0.0
        %6776 = vmatpush1.xpose.msra.mxu0 0.0
        %6777 = vmatprep.subr.mxu0 0.0
        %6778 = vmatpush1.xpose.msra.mxu0 0.0
        %6779 = vmatprep.subr.mxu0 0.0
        %6780 = vmatpush1.xpose.msra.mxu0 0.0
        %6781 = vmatprep.subr.mxu0 0.0
        %6782 = vmatpush1.xpose.msra.mxu0 0.0
        %6783 = vmatprep.subr.mxu0 0.0
        %6784 = vmatpush1.xpose.msra.mxu0 0.0
        %6785 = vmatprep.subr.mxu0 0.0
        %6786 = vmatpush1.xpose.msra.mxu0 0.0
        %6787 = vmatprep.subr.mxu0 0.0
        %6788 = vmatpush1.xpose.msra.mxu0 0.0
        %6789 = vmatprep.subr.mxu0 0.0
        %6790 = vmatpush1.xpose.msra.mxu0 0.0
        %6791 = vmatprep.subr.mxu0 0.0
        %6792 = vmatpush1.xpose.msra.mxu0 0.0
        %6793 = vmatprep.subr.mxu0 0.0
        %6794 = vmatpush1.xpose.msra.mxu0 0.0
        %6795 = vmatprep.subr.mxu0 0.0
        %6796 = vmatpush1.xpose.msra.mxu0 0.0
        %6797 = vmatprep.subr.mxu0 0.0
        %6798 = vmatpush1.xpose.msra.mxu0 0.0
        %6799 = vmatprep.subr.mxu0 0.0
        %6800 = vmatpush1.xpose.msra.mxu0 0.0
        %6801 = vmatprep.subr.mxu0 0.0
        %6802 = vmatpush1.xpose.msra.mxu0 0.0
        %6803 = vmatprep.subr.mxu0 0.0
        %6804 = vmatpush1.xpose.msra.mxu0 0.0
        %6805 = vmatprep.subr.mxu0 0.0
        %6806 = vmatpush1.xpose.msra.mxu0 0.0
        %6807 = vmatprep.subr.mxu0 0.0
        %6808 = vmatpush1.xpose.msra.mxu0 0.0
        %6809 = vmatprep.subr.mxu0 0.0
        %6810 = vmatpush1.xpose.msra.mxu0 0.0
        %6811 = vmatprep.mubr.f32.mxu0 0.0
        %6812 = vmatmul.mubr.f32.gmra.mrb[0].mxu0 %v6739
        %v6813 = vpop.f32.mrb[0].mxu0
        %v6814 = vadd.f32 0.0, %v6813
        %v6815 = vpop.f32.mrb[0].mxu0
        %6816 = vmatprep.mubr.f32.mxu0 0.0
        %6817 = vmatmul.mubr.f32.gmra.mrb[0].mxu0 %v6741
        %v6818 = vpop.f32.mrb[0].mxu0
        %v6819 = vadd.f32 0.0, %v6818
        %v6820 = vpop.f32.mrb[0].mxu0
        %6821 = vdwg.mxu0
        %v6822 = vsel %vm1562, %v6814, -inf
        %6823 = vmax.xlane.f32.xlu0 %v6822
        %v6824 = vpop.xlane.xlu0 %6823
        %v6825 = vsel %vm1566, %v6819, -inf
        %6826 = vmax.xlane.f32.xlu0 %v6825
        %v6827 = vpop.xlane.xlu0 %6826
        %v6828 = vsub.f32 %v6814, %v6824
        %v6829 = vsub.f32 %v6819, %v6827
        %v6830 = vmul.f32 %v6828, 1.442695
        %v6831 = vpow.pop %v6830
        %v6832 = vmul.f32 %v6829, 1.442695
        %v6833 = vpow.pop %v6832
        %v6834 = vsel %vm1562, %v6831, 0.0
        %6835 = vadd.xlane.f32.xlu0 %v6834
        %v6836 = vpop.xlane.xlu0 %6835
        %v6837 = vsel %vm1566, %v6833, 0.0
        %6838 = vadd.xlane.f32.xlu0 %v6837
        %v6839 = vpop.xlane.xlu0 %6838
        %v6840 = vrcp.pop %v6836
        %v6841 = vrcp.pop %v6839
        %v6842 = vmul.f32 %v6831, %v6840
        %v6843 = vmul.f32 %v6833, %v6841
        %6844 = vrot.lane.b32.xlu0 %v5722, 24
        %v6845 = vpop.permute.xlu0 %6844
        %6846 = vrot.lane.b32.xlu0 %v5727, 24
        %v6847 = vpop.permute.xlu0 %6846
        %v6850 = vsel %vm1562, %v6842, 0
        %v6853 = vsel %vm1562, %v6843, 0
        %v6855 = vsel %vm1592, %v6847, 0
        %6857 = vmatprep.subr.mxu0 0.0
        %6858 = vmatpush1.msra.mxu0 %v6845
        %6859 = vmatprep.subr.mxu0 0.0
        %6860 = vmatpush1.msra.mxu0 %v6855
        %6861 = vmatprep.subr.mxu0 0.0
        %6862 = vmatpush1.msra.mxu0 0.0
        %6863 = vmatprep.subr.mxu0 0.0
        %6864 = vmatpush1.msra.mxu0 0.0
        %6865 = vmatprep.subr.mxu0 0.0
        %6866 = vmatpush1.msra.mxu0 0.0
        %6867 = vmatprep.subr.mxu0 0.0
        %6868 = vmatpush1.msra.mxu0 0.0
        %6869 = vmatprep.subr.mxu0 0.0
        %6870 = vmatpush1.msra.mxu0 0.0
        %6871 = vmatprep.subr.mxu0 0.0
        %6872 = vmatpush1.msra.mxu0 0.0
        %6873 = vmatprep.subr.mxu0 0.0
        %6874 = vmatpush1.msra.mxu0 0.0
        %6875 = vmatprep.subr.mxu0 0.0
        %6876 = vmatpush1.msra.mxu0 0.0
        %6877 = vmatprep.subr.mxu0 0.0
        %6878 = vmatpush1.msra.mxu0 0.0
        %6879 = vmatprep.subr.mxu0 0.0
        %6880 = vmatpush1.msra.mxu0 0.0
        %6881 = vmatprep.subr.mxu0 0.0
        %6882 = vmatpush1.msra.mxu0 0.0
        %6883 = vmatprep.subr.mxu0 0.0
        %6884 = vmatpush1.msra.mxu0 0.0
        %6885 = vmatprep.subr.mxu0 0.0
        %6886 = vmatpush1.msra.mxu0 0.0
        %6887 = vmatprep.subr.mxu0 0.0
        %6888 = vmatpush1.msra.mxu0 0.0
        %6889 = vmatprep.subr.mxu0 0.0
        %6890 = vmatpush1.msra.mxu0 0.0
        %6891 = vmatprep.subr.mxu0 0.0
        %6892 = vmatpush1.msra.mxu0 0.0
        %6893 = vmatprep.subr.mxu0 0.0
        %6894 = vmatpush1.msra.mxu0 0.0
        %6895 = vmatprep.subr.mxu0 0.0
        %6896 = vmatpush1.msra.mxu0 0.0
        %6897 = vmatprep.subr.mxu0 0.0
        %6898 = vmatpush1.msra.mxu0 0.0
        %6899 = vmatprep.subr.mxu0 0.0
        %6900 = vmatpush1.msra.mxu0 0.0
        %6901 = vmatprep.subr.mxu0 0.0
        %6902 = vmatpush1.msra.mxu0 0.0
        %6903 = vmatprep.subr.mxu0 0.0
        %6904 = vmatpush1.msra.mxu0 0.0
        %6905 = vmatprep.subr.mxu0 0.0
        %6906 = vmatpush1.msra.mxu0 0.0
        %6907 = vmatprep.subr.mxu0 0.0
        %6908 = vmatpush1.msra.mxu0 0.0
        %6909 = vmatprep.subr.mxu0 0.0
        %6910 = vmatpush1.msra.mxu0 0.0
        %6911 = vmatprep.subr.mxu0 0.0
        %6912 = vmatpush1.msra.mxu0 0.0
        %6913 = vmatprep.subr.mxu0 0.0
        %6914 = vmatpush1.msra.mxu0 0.0
        %6915 = vmatprep.subr.mxu0 0.0
        %6916 = vmatpush1.msra.mxu0 0.0
        %6917 = vmatprep.subr.mxu0 0.0
        %6918 = vmatpush1.msra.mxu0 0.0
        %6919 = vmatprep.subr.mxu0 0.0
        %6920 = vmatpush1.msra.mxu0 0.0
        %6921 = vmatprep.mubr.f32.mxu0 0.0
        %6922 = vmatmul.mubr.f32.gmra.mrb[0].mxu0 %v6850
        %v6923 = vpop.f32.mrb[0].mxu0
        %v6924 = vadd.f32 0.0, %v6923
        %v6925 = vpop.f32.mrb[0].mxu0
        %6926 = vmatprep.mubr.f32.mxu0 0.0
        %6927 = vmatmul.mubr.f32.gmra.mrb[0].mxu0 %v6853
        %v6928 = vpop.f32.mrb[0].mxu0
        %v6929 = vadd.f32 0.0, %v6928
        %v6930 = vpop.f32.mrb[0].mxu0
        %6931 = vdwg.mxu0
        %6932 = vrot.lane.b32.xlu0 %v5626, 80
        %v6933 = vpop.permute.xlu0 %6932
        %6934 = vrot.lane.b32.xlu0 %v5631, 80
        %v6935 = vpop.permute.xlu0 %6934
        %6936 = vrot.lane.b32.xlu0 %v5722, 80
        %v6937 = vpop.permute.xlu0 %6936
        %6938 = vrot.lane.b32.xlu0 %v5727, 80
        %v6939 = vpop.permute.xlu0 %6938
        %v6940 = vsel %vm1478, %v6933, 0
        %v6942 = vsel %vm1478, %v6935, 0
        %v6944 = vsel %vm1478, %v6937, 0
        %v6946 = vsel %vm1478, %v6939, 0
        %6948 = vmatprep.subr.mxu0 0.0
        %6949 = vmatpush1.xpose.msra.mxu0 %v6944
        %6950 = vmatprep.subr.mxu0 0.0
        %6951 = vmatpush1.xpose.msra.mxu0 %v6946
        %6952 = vmatprep.subr.mxu0 0.0
        %6953 = vmatpush1.xpose.msra.mxu0 0.0
        %6954 = vmatprep.subr.mxu0 0.0
        %6955 = vmatpush1.xpose.msra.mxu0 0.0
        %6956 = vmatprep.subr.mxu0 0.0
        %6957 = vmatpush1.xpose.msra.mxu0 0.0
        %6958 = vmatprep.subr.mxu0 0.0
        %6959 = vmatpush1.xpose.msra.mxu0 0.0
        %6960 = vmatprep.subr.mxu0 0.0
        %6961 = vmatpush1.xpose.msra.mxu0 0.0
        %6962 = vmatprep.subr.mxu0 0.0
        %6963 = vmatpush1.xpose.msra.mxu0 0.0
        %6964 = vmatprep.subr.mxu0 0.0
        %6965 = vmatpush1.xpose.msra.mxu0 0.0
        %6966 = vmatprep.subr.mxu0 0.0
        %6967 = vmatpush1.xpose.msra.mxu0 0.0
        %6968 = vmatprep.subr.mxu0 0.0
        %6969 = vmatpush1.xpose.msra.mxu0 0.0
        %6970 = vmatprep.subr.mxu0 0.0
        %6971 = vmatpush1.xpose.msra.mxu0 0.0
        %6972 = vmatprep.subr.mxu0 0.0
        %6973 = vmatpush1.xpose.msra.mxu0 0.0
        %6974 = vmatprep.subr.mxu0 0.0
        %6975 = vmatpush1.xpose.msra.mxu0 0.0
        %6976 = vmatprep.subr.mxu0 0.0
        %6977 = vmatpush1.xpose.msra.mxu0 0.0
        %6978 = vmatprep.subr.mxu0 0.0
        %6979 = vmatpush1.xpose.msra.mxu0 0.0
        %6980 = vmatprep.subr.mxu0 0.0
        %6981 = vmatpush1.xpose.msra.mxu0 0.0
        %6982 = vmatprep.subr.mxu0 0.0
        %6983 = vmatpush1.xpose.msra.mxu0 0.0
        %6984 = vmatprep.subr.mxu0 0.0
        %6985 = vmatpush1.xpose.msra.mxu0 0.0
        %6986 = vmatprep.subr.mxu0 0.0
        %6987 = vmatpush1.xpose.msra.mxu0 0.0
        %6988 = vmatprep.subr.mxu0 0.0
        %6989 = vmatpush1.xpose.msra.mxu0 0.0
        %6990 = vmatprep.subr.mxu0 0.0
        %6991 = vmatpush1.xpose.msra.mxu0 0.0
        %6992 = vmatprep.subr.mxu0 0.0
        %6993 = vmatpush1.xpose.msra.mxu0 0.0
        %6994 = vmatprep.subr.mxu0 0.0
        %6995 = vmatpush1.xpose.msra.mxu0 0.0
        %6996 = vmatprep.subr.mxu0 0.0
        %6997 = vmatpush1.xpose.msra.mxu0 0.0
        %6998 = vmatprep.subr.mxu0 0.0
        %6999 = vmatpush1.xpose.msra.mxu0 0.0
        %7000 = vmatprep.subr.mxu0 0.0
        %7001 = vmatpush1.xpose.msra.mxu0 0.0
        %7002 = vmatprep.subr.mxu0 0.0
        %7003 = vmatpush1.xpose.msra.mxu0 0.0
        %7004 = vmatprep.subr.mxu0 0.0
        %7005 = vmatpush1.xpose.msra.mxu0 0.0
        %7006 = vmatprep.subr.mxu0 0.0
        %7007 = vmatpush1.xpose.msra.mxu0 0.0
        %7008 = vmatprep.subr.mxu0 0.0
        %7009 = vmatpush1.xpose.msra.mxu0 0.0
        %7010 = vmatprep.subr.mxu0 0.0
        %7011 = vmatpush1.xpose.msra.mxu0 0.0
        %7012 = vmatprep.mubr.f32.mxu0 0.0
        %7013 = vmatmul.mubr.f32.gmra.mrb[0].mxu0 %v6940
        %v7014 = vpop.f32.mrb[0].mxu0
        %v7015 = vadd.f32 0.0, %v7014
        %v7016 = vpop.f32.mrb[0].mxu0
        %7017 = vmatprep.mubr.f32.mxu0 0.0
        %7018 = vmatmul.mubr.f32.gmra.mrb[0].mxu0 %v6942
        %v7019 = vpop.f32.mrb[0].mxu0
        %v7020 = vadd.f32 0.0, %v7019
        %v7021 = vpop.f32.mrb[0].mxu0
        %7022 = vdwg.mxu0
        %v7023 = vsel %vm1562, %v7015, -inf
        %7024 = vmax.xlane.f32.xlu0 %v7023
        %v7025 = vpop.xlane.xlu0 %7024
        %v7026 = vsel %vm1566, %v7020, -inf
        %7027 = vmax.xlane.f32.xlu0 %v7026
        %v7028 = vpop.xlane.xlu0 %7027
        %v7029 = vsub.f32 %v7015, %v7025
        %v7030 = vsub.f32 %v7020, %v7028
        %v7031 = vmul.f32 %v7029, 1.442695
        %v7032 = vpow.pop %v7031
        %v7033 = vmul.f32 %v7030, 1.442695
        %v7034 = vpow.pop %v7033
        %v7035 = vsel %vm1562, %v7032, 0.0
        %7036 = vadd.xlane.f32.xlu0 %v7035
        %v7037 = vpop.xlane.xlu0 %7036
        %v7038 = vsel %vm1566, %v7034, 0.0
        %7039 = vadd.xlane.f32.xlu0 %v7038
        %v7040 = vpop.xlane.xlu0 %7039
        %v7041 = vrcp.pop %v7037
        %v7042 = vrcp.pop %v7040
        %v7043 = vmul.f32 %v7032, %v7041
        %v7044 = vmul.f32 %v7034, %v7042
        %7045 = vrot.lane.b32.xlu0 %v5722, 16
        %v7046 = vpop.permute.xlu0 %7045
        %7047 = vrot.lane.b32.xlu0 %v5727, 16
        %v7048 = vpop.permute.xlu0 %7047
        %v7051 = vsel %vm1562, %v7043, 0
        %v7054 = vsel %vm1562, %v7044, 0
        %v7056 = vsel %vm1592, %v7048, 0
        %7058 = vmatprep.subr.mxu0 0.0
        %7059 = vmatpush1.msra.mxu0 %v7046
        %7060 = vmatprep.subr.mxu0 0.0
        %7061 = vmatpush1.msra.mxu0 %v7056
        %7062 = vmatprep.subr.mxu0 0.0
        %7063 = vmatpush1.msra.mxu0 0.0
        %7064 = vmatprep.subr.mxu0 0.0
        %7065 = vmatpush1.msra.mxu0 0.0
        %7066 = vmatprep.subr.mxu0 0.0
        %7067 = vmatpush1.msra.mxu0 0.0
        %7068 = vmatprep.subr.mxu0 0.0
        %7069 = vmatpush1.msra.mxu0 0.0
        %7070 = vmatprep.subr.mxu0 0.0
        %7071 = vmatpush1.msra.mxu0 0.0
        %7072 = vmatprep.subr.mxu0 0.0
        %7073 = vmatpush1.msra.mxu0 0.0
        %7074 = vmatprep.subr.mxu0 0.0
        %7075 = vmatpush1.msra.mxu0 0.0
        %7076 = vmatprep.subr.mxu0 0.0
        %7077 = vmatpush1.msra.mxu0 0.0
        %7078 = vmatprep.subr.mxu0 0.0
        %7079 = vmatpush1.msra.mxu0 0.0
        %7080 = vmatprep.subr.mxu0 0.0
        %7081 = vmatpush1.msra.mxu0 0.0
        %7082 = vmatprep.subr.mxu0 0.0
        %7083 = vmatpush1.msra.mxu0 0.0
        %7084 = vmatprep.subr.mxu0 0.0
        %7085 = vmatpush1.msra.mxu0 0.0
        %7086 = vmatprep.subr.mxu0 0.0
        %7087 = vmatpush1.msra.mxu0 0.0
        %7088 = vmatprep.subr.mxu0 0.0
        %7089 = vmatpush1.msra.mxu0 0.0
        %7090 = vmatprep.subr.mxu0 0.0
        %7091 = vmatpush1.msra.mxu0 0.0
        %7092 = vmatprep.subr.mxu0 0.0
        %7093 = vmatpush1.msra.mxu0 0.0
        %7094 = vmatprep.subr.mxu0 0.0
        %7095 = vmatpush1.msra.mxu0 0.0
        %7096 = vmatprep.subr.mxu0 0.0
        %7097 = vmatpush1.msra.mxu0 0.0
        %7098 = vmatprep.subr.mxu0 0.0
        %7099 = vmatpush1.msra.mxu0 0.0
        %7100 = vmatprep.subr.mxu0 0.0
        %7101 = vmatpush1.msra.mxu0 0.0
        %7102 = vmatprep.subr.mxu0 0.0
        %7103 = vmatpush1.msra.mxu0 0.0
        %7104 = vmatprep.subr.mxu0 0.0
        %7105 = vmatpush1.msra.mxu0 0.0
        %7106 = vmatprep.subr.mxu0 0.0
        %7107 = vmatpush1.msra.mxu0 0.0
        %7108 = vmatprep.subr.mxu0 0.0
        %7109 = vmatpush1.msra.mxu0 0.0
        %7110 = vmatprep.subr.mxu0 0.0
        %7111 = vmatpush1.msra.mxu0 0.0
        %7112 = vmatprep.subr.mxu0 0.0
        %7113 = vmatpush1.msra.mxu0 0.0
        %7114 = vmatprep.subr.mxu0 0.0
        %7115 = vmatpush1.msra.mxu0 0.0
        %7116 = vmatprep.subr.mxu0 0.0
        %7117 = vmatpush1.msra.mxu0 0.0
        %7118 = vmatprep.subr.mxu0 0.0
        %7119 = vmatpush1.msra.mxu0 0.0
        %7120 = vmatprep.subr.mxu0 0.0
        %7121 = vmatpush1.msra.mxu0 0.0
        %7122 = vmatprep.mubr.f32.mxu0 0.0
        %7123 = vmatmul.mubr.f32.gmra.mrb[0].mxu0 %v7051
        %v7124 = vpop.f32.mrb[0].mxu0
        %v7125 = vadd.f32 0.0, %v7124
        %v7126 = vpop.f32.mrb[0].mxu0
        %7127 = vmatprep.mubr.f32.mxu0 0.0
        %7128 = vmatmul.mubr.f32.gmra.mrb[0].mxu0 %v7054
        %v7129 = vpop.f32.mrb[0].mxu0
        %v7130 = vadd.f32 0.0, %v7129
        %v7131 = vpop.f32.mrb[0].mxu0
        %7132 = vdwg.mxu0
        %7133 = vrot.lane.b32.xlu0 %v5626, 72
        %v7134 = vpop.permute.xlu0 %7133
        %7135 = vrot.lane.b32.xlu0 %v5631, 72
        %v7136 = vpop.permute.xlu0 %7135
        %7137 = vrot.lane.b32.xlu0 %v5722, 72
        %v7138 = vpop.permute.xlu0 %7137
        %7139 = vrot.lane.b32.xlu0 %v5727, 72
        %v7140 = vpop.permute.xlu0 %7139
        %v7141 = vsel %vm1478, %v7134, 0
        %v7143 = vsel %vm1478, %v7136, 0
        %v7145 = vsel %vm1478, %v7138, 0
        %v7147 = vsel %vm1478, %v7140, 0
        %7149 = vmatprep.subr.mxu0 0.0
        %7150 = vmatpush1.xpose.msra.mxu0 %v7145
        %7151 = vmatprep.subr.mxu0 0.0
        %7152 = vmatpush1.xpose.msra.mxu0 %v7147
        %7153 = vmatprep.subr.mxu0 0.0
        %7154 = vmatpush1.xpose.msra.mxu0 0.0
        %7155 = vmatprep.subr.mxu0 0.0
        %7156 = vmatpush1.xpose.msra.mxu0 0.0
        %7157 = vmatprep.subr.mxu0 0.0
        %7158 = vmatpush1.xpose.msra.mxu0 0.0
        %7159 = vmatprep.subr.mxu0 0.0
        %7160 = vmatpush1.xpose.msra.mxu0 0.0
        %7161 = vmatprep.subr.mxu0 0.0
        %7162 = vmatpush1.xpose.msra.mxu0 0.0
        %7163 = vmatprep.subr.mxu0 0.0
        %7164 = vmatpush1.xpose.msra.mxu0 0.0
        %7165 = vmatprep.subr.mxu0 0.0
        %7166 = vmatpush1.xpose.msra.mxu0 0.0
        %7167 = vmatprep.subr.mxu0 0.0
        %7168 = vmatpush1.xpose.msra.mxu0 0.0
        %7169 = vmatprep.subr.mxu0 0.0
        %7170 = vmatpush1.xpose.msra.mxu0 0.0
        %7171 = vmatprep.subr.mxu0 0.0
        %7172 = vmatpush1.xpose.msra.mxu0 0.0
        %7173 = vmatprep.subr.mxu0 0.0
        %7174 = vmatpush1.xpose.msra.mxu0 0.0
        %7175 = vmatprep.subr.mxu0 0.0
        %7176 = vmatpush1.xpose.msra.mxu0 0.0
        %7177 = vmatprep.subr.mxu0 0.0
        %7178 = vmatpush1.xpose.msra.mxu0 0.0
        %7179 = vmatprep.subr.mxu0 0.0
        %7180 = vmatpush1.xpose.msra.mxu0 0.0
        %7181 = vmatprep.subr.mxu0 0.0
        %7182 = vmatpush1.xpose.msra.mxu0 0.0
        %7183 = vmatprep.subr.mxu0 0.0
        %7184 = vmatpush1.xpose.msra.mxu0 0.0
        %7185 = vmatprep.subr.mxu0 0.0
        %7186 = vmatpush1.xpose.msra.mxu0 0.0
        %7187 = vmatprep.subr.mxu0 0.0
        %7188 = vmatpush1.xpose.msra.mxu0 0.0
        %7189 = vmatprep.subr.mxu0 0.0
        %7190 = vmatpush1.xpose.msra.mxu0 0.0
        %7191 = vmatprep.subr.mxu0 0.0
        %7192 = vmatpush1.xpose.msra.mxu0 0.0
        %7193 = vmatprep.subr.mxu0 0.0
        %7194 = vmatpush1.xpose.msra.mxu0 0.0
        %7195 = vmatprep.subr.mxu0 0.0
        %7196 = vmatpush1.xpose.msra.mxu0 0.0
        %7197 = vmatprep.subr.mxu0 0.0
        %7198 = vmatpush1.xpose.msra.mxu0 0.0
        %7199 = vmatprep.subr.mxu0 0.0
        %7200 = vmatpush1.xpose.msra.mxu0 0.0
        %7201 = vmatprep.subr.mxu0 0.0
        %7202 = vmatpush1.xpose.msra.mxu0 0.0
        %7203 = vmatprep.subr.mxu0 0.0
        %7204 = vmatpush1.xpose.msra.mxu0 0.0
        %7205 = vmatprep.subr.mxu0 0.0
        %7206 = vmatpush1.xpose.msra.mxu0 0.0
        %7207 = vmatprep.subr.mxu0 0.0
        %7208 = vmatpush1.xpose.msra.mxu0 0.0
        %7209 = vmatprep.subr.mxu0 0.0
        %7210 = vmatpush1.xpose.msra.mxu0 0.0
        %7211 = vmatprep.subr.mxu0 0.0
        %7212 = vmatpush1.xpose.msra.mxu0 0.0
        %7213 = vmatprep.mubr.f32.mxu0 0.0
        %7214 = vmatmul.mubr.f32.gmra.mrb[0].mxu0 %v7141
        %v7215 = vpop.f32.mrb[0].mxu0
        %v7216 = vadd.f32 0.0, %v7215
        %v7217 = vpop.f32.mrb[0].mxu0
        %7218 = vmatprep.mubr.f32.mxu0 0.0
        %7219 = vmatmul.mubr.f32.gmra.mrb[0].mxu0 %v7143
        %v7220 = vpop.f32.mrb[0].mxu0
        %v7221 = vadd.f32 0.0, %v7220
        %v7222 = vpop.f32.mrb[0].mxu0
        %7223 = vdwg.mxu0
        %v7224 = vsel %vm1562, %v7216, -inf
        %7225 = vmax.xlane.f32.xlu0 %v7224
        %v7226 = vpop.xlane.xlu0 %7225
        %v7227 = vsel %vm1566, %v7221, -inf
        %7228 = vmax.xlane.f32.xlu0 %v7227
        %v7229 = vpop.xlane.xlu0 %7228
        %v7230 = vsub.f32 %v7216, %v7226
        %v7231 = vsub.f32 %v7221, %v7229
        %v7232 = vmul.f32 %v7230, 1.442695
        %v7233 = vpow.pop %v7232
        %v7234 = vmul.f32 %v7231, 1.442695
        %v7235 = vpow.pop %v7234
        %v7236 = vsel %vm1562, %v7233, 0.0
        %7237 = vadd.xlane.f32.xlu0 %v7236
        %v7238 = vpop.xlane.xlu0 %7237
        %v7239 = vsel %vm1566, %v7235, 0.0
        %7240 = vadd.xlane.f32.xlu0 %v7239
        %v7241 = vpop.xlane.xlu0 %7240
        %v7242 = vrcp.pop %v7238
        %v7243 = vrcp.pop %v7241
        %v7244 = vmul.f32 %v7233, %v7242
        %v7245 = vmul.f32 %v7235, %v7243
        %7246 = vrot.lane.b32.xlu0 %v5722, 8
        %v7247 = vpop.permute.xlu0 %7246
        %7248 = vrot.lane.b32.xlu0 %v5727, 8
        %v7249 = vpop.permute.xlu0 %7248
        %v7252 = vsel %vm1562, %v7244, 0
        %v7255 = vsel %vm1562, %v7245, 0
        %v7257 = vsel %vm1592, %v7249, 0
        %7259 = vmatprep.subr.mxu0 0.0
        %7260 = vmatpush1.msra.mxu0 %v7247
        %7261 = vmatprep.subr.mxu0 0.0
        %7262 = vmatpush1.msra.mxu0 %v7257
        %7263 = vmatprep.subr.mxu0 0.0
        %7264 = vmatpush1.msra.mxu0 0.0
        %7265 = vmatprep.subr.mxu0 0.0
        %7266 = vmatpush1.msra.mxu0 0.0
        %7267 = vmatprep.subr.mxu0 0.0
        %7268 = vmatpush1.msra.mxu0 0.0
        %7269 = vmatprep.subr.mxu0 0.0
        %7270 = vmatpush1.msra.mxu0 0.0
        %7271 = vmatprep.subr.mxu0 0.0
        %7272 = vmatpush1.msra.mxu0 0.0
        %7273 = vmatprep.subr.mxu0 0.0
        %7274 = vmatpush1.msra.mxu0 0.0
        %7275 = vmatprep.subr.mxu0 0.0
        %7276 = vmatpush1.msra.mxu0 0.0
        %7277 = vmatprep.subr.mxu0 0.0
        %7278 = vmatpush1.msra.mxu0 0.0
        %7279 = vmatprep.subr.mxu0 0.0
        %7280 = vmatpush1.msra.mxu0 0.0
        %7281 = vmatprep.subr.mxu0 0.0
        %7282 = vmatpush1.msra.mxu0 0.0
        %7283 = vmatprep.subr.mxu0 0.0
        %7284 = vmatpush1.msra.mxu0 0.0
        %7285 = vmatprep.subr.mxu0 0.0
        %7286 = vmatpush1.msra.mxu0 0.0
        %7287 = vmatprep.subr.mxu0 0.0
        %7288 = vmatpush1.msra.mxu0 0.0
        %7289 = vmatprep.subr.mxu0 0.0
        %7290 = vmatpush1.msra.mxu0 0.0
        %7291 = vmatprep.subr.mxu0 0.0
        %7292 = vmatpush1.msra.mxu0 0.0
        %7293 = vmatprep.subr.mxu0 0.0
        %7294 = vmatpush1.msra.mxu0 0.0
        %7295 = vmatprep.subr.mxu0 0.0
        %7296 = vmatpush1.msra.mxu0 0.0
        %7297 = vmatprep.subr.mxu0 0.0
        %7298 = vmatpush1.msra.mxu0 0.0
        %7299 = vmatprep.subr.mxu0 0.0
        %7300 = vmatpush1.msra.mxu0 0.0
        %7301 = vmatprep.subr.mxu0 0.0
        %7302 = vmatpush1.msra.mxu0 0.0
        %7303 = vmatprep.subr.mxu0 0.0
        %7304 = vmatpush1.msra.mxu0 0.0
        %7305 = vmatprep.subr.mxu0 0.0
        %7306 = vmatpush1.msra.mxu0 0.0
        %7307 = vmatprep.subr.mxu0 0.0
        %7308 = vmatpush1.msra.mxu0 0.0
        %7309 = vmatprep.subr.mxu0 0.0
        %7310 = vmatpush1.msra.mxu0 0.0
        %7311 = vmatprep.subr.mxu0 0.0
        %7312 = vmatpush1.msra.mxu0 0.0
        %7313 = vmatprep.subr.mxu0 0.0
        %7314 = vmatpush1.msra.mxu0 0.0
        %7315 = vmatprep.subr.mxu0 0.0
        %7316 = vmatpush1.msra.mxu0 0.0
        %7317 = vmatprep.subr.mxu0 0.0
        %7318 = vmatpush1.msra.mxu0 0.0
        %7319 = vmatprep.subr.mxu0 0.0
        %7320 = vmatpush1.msra.mxu0 0.0
        %7321 = vmatprep.subr.mxu0 0.0
        %7322 = vmatpush1.msra.mxu0 0.0
        %7323 = vmatprep.mubr.f32.mxu0 0.0
        %7324 = vmatmul.mubr.f32.gmra.mrb[0].mxu0 %v7252
        %v7325 = vpop.f32.mrb[0].mxu0
        %v7326 = vadd.f32 0.0, %v7325
        %v7327 = vpop.f32.mrb[0].mxu0
        %7328 = vmatprep.mubr.f32.mxu0 0.0
        %7329 = vmatmul.mubr.f32.gmra.mrb[0].mxu0 %v7255
        %v7330 = vpop.f32.mrb[0].mxu0
        %v7331 = vadd.f32 0.0, %v7330
        %v7332 = vpop.f32.mrb[0].mxu0
        %7333 = vdwg.mxu0
        %7336 = vrot.lane.b32.xlu0 %v6120, 8
        %v7337 = vpop.permute.xlu0 %7336
        %7338 = vrot.lane.b32.xlu0 %v6125, 8
        %v7339 = vpop.permute.xlu0 %7338
        %7344 = vrot.lane.b32.xlu0 %v6321, 16
        %v7345 = vpop.permute.xlu0 %7344
        %7346 = vrot.lane.b32.xlu0 %v6326, 16
        %v7347 = vpop.permute.xlu0 %7346
        %7352 = vrot.lane.b32.xlu0 %v6522, 24
        %v7353 = vpop.permute.xlu0 %7352
        %7354 = vrot.lane.b32.xlu0 %v6527, 24
        %v7355 = vpop.permute.xlu0 %7354
        %7360 = vrot.lane.b32.xlu0 %v6723, 32
        %v7361 = vpop.permute.xlu0 %7360
        %7362 = vrot.lane.b32.xlu0 %v6728, 32
        %v7363 = vpop.permute.xlu0 %7362
        %7368 = vrot.lane.b32.xlu0 %v6924, 40
        %v7369 = vpop.permute.xlu0 %7368
        %7370 = vrot.lane.b32.xlu0 %v6929, 40
        %v7371 = vpop.permute.xlu0 %7370
        %7376 = vrot.lane.b32.xlu0 %v7125, 48
        %v7377 = vpop.permute.xlu0 %7376
        %7378 = vrot.lane.b32.xlu0 %v7130, 48
        %v7379 = vpop.permute.xlu0 %7378
        %7384 = vrot.lane.b32.xlu0 %v7326, 56
        %v7385 = vpop.permute.xlu0 %7384
        %7386 = vrot.lane.b32.xlu0 %v7331, 56
        %v7387 = vpop.permute.xlu0 %7386
        %v7390 = vsel %vm1478, %v5919, %v7337
        %v7391 = vsel %vm1478, %v5924, %v7339
        %v7392 = vsel %vm3137, %v7390, %v7345
        %v7393 = vsel %vm3137, %v7391, %v7347
        %v7394 = vsel %vm3140, %v7392, %v7353
        %v7395 = vsel %vm3140, %v7393, %v7355
        %v7396 = vsel %vm3143, %v7394, %v7361
        %v7397 = vsel %vm3143, %v7395, %v7363
        %v7398 = vsel %vm3146, %v7396, %v7369
        %v7399 = vsel %vm3146, %v7397, %v7371
        %v7400 = vsel %vm3149, %v7398, %v7377
        %v7401 = vsel %vm3149, %v7399, %v7379
        %v7402 = vsel %vm3152, %v7400, %v7385
        %v7403 = vsel %vm3152, %v7401, %v7387
        %v7404 = vld [vmem:[#allocation21] sm:$0xff]
        %v7405 = vld [vmem:[#allocation21 + $0x8] sm:$0xff]
        %v7406 = vld [vmem:[#allocation21 + $0x10] sm:$0xff]
        %v7407 = vld [vmem:[#allocation21 + $0x18] sm:$0xff]
        %v7408 = vld [vmem:[#allocation21 + $0x20] sm:$0xff]
        %v7409 = vld [vmem:[#allocation21 + $0x28] sm:$0xff]
        %v7410 = vld [vmem:[#allocation21 + $0x30] sm:$0xff]
        %v7411 = vld [vmem:[#allocation21 + $0x38] sm:$0xff]
        %v7412 = vld [vmem:[%s57] sm:$0x1]
        %v7414 = vlaneseq
        %v7415 = vshrl.u32 %v7414, 7
        %v7416 = vsub.s32 0, %v7415
        %v7417 = vrot.slane %v7412, %v7416
        %v7420 = vsel %vm1388, %v7402, 0
        %v7423 = vsel %vm1388, %v7403, 0
        %7425 = vmatprep.subr.mxu0 0.0
        %7426 = vmatpush1.msra.mxu0 %v7404
        %7427 = vmatprep.subr.mxu0 0.0
        %7428 = vmatpush1.msra.mxu0 %v7405
        %7429 = vmatprep.subr.mxu0 0.0
        %7430 = vmatpush1.msra.mxu0 %v7406
        %7431 = vmatprep.subr.mxu0 0.0
        %7432 = vmatpush1.msra.mxu0 %v7407
        %7433 = vmatprep.subr.mxu0 0.0
        %7434 = vmatpush1.msra.mxu0 %v7408
        %7435 = vmatprep.subr.mxu0 0.0
        %7436 = vmatpush1.msra.mxu0 %v7409
        %7437 = vmatprep.subr.mxu0 0.0
        %7438 = vmatpush1.msra.mxu0 %v7410
        %7439 = vmatprep.subr.mxu0 0.0
        %7440 = vmatpush1.msra.mxu0 %v7411
        %7441 = vmatprep.subr.mxu0 0.0
        %7442 = vmatpush1.msra.mxu0 0.0
        %7443 = vmatprep.subr.mxu0 0.0
        %7444 = vmatpush1.msra.mxu0 0.0
        %7445 = vmatprep.subr.mxu0 0.0
        %7446 = vmatpush1.msra.mxu0 0.0
        %7447 = vmatprep.subr.mxu0 0.0
        %7448 = vmatpush1.msra.mxu0 0.0
        %7449 = vmatprep.subr.mxu0 0.0
        %7450 = vmatpush1.msra.mxu0 0.0
        %7451 = vmatprep.subr.mxu0 0.0
        %7452 = vmatpush1.msra.mxu0 0.0
        %7453 = vmatprep.subr.mxu0 0.0
        %7454 = vmatpush1.msra.mxu0 0.0
        %7455 = vmatprep.subr.mxu0 0.0
        %7456 = vmatpush1.msra.mxu0 0.0
        %7457 = vmatprep.subr.mxu0 0.0
        %7458 = vmatpush1.msra.mxu0 0.0
        %7459 = vmatprep.subr.mxu0 0.0
        %7460 = vmatpush1.msra.mxu0 0.0
        %7461 = vmatprep.subr.mxu0 0.0
        %7462 = vmatpush1.msra.mxu0 0.0
        %7463 = vmatprep.subr.mxu0 0.0
        %7464 = vmatpush1.msra.mxu0 0.0
        %7465 = vmatprep.subr.mxu0 0.0
        %7466 = vmatpush1.msra.mxu0 0.0
        %7467 = vmatprep.subr.mxu0 0.0
        %7468 = vmatpush1.msra.mxu0 0.0
        %7469 = vmatprep.subr.mxu0 0.0
        %7470 = vmatpush1.msra.mxu0 0.0
        %7471 = vmatprep.subr.mxu0 0.0
        %7472 = vmatpush1.msra.mxu0 0.0
        %7473 = vmatprep.subr.mxu0 0.0
        %7474 = vmatpush1.msra.mxu0 0.0
        %7475 = vmatprep.subr.mxu0 0.0
        %7476 = vmatpush1.msra.mxu0 0.0
        %7477 = vmatprep.subr.mxu0 0.0
        %7478 = vmatpush1.msra.mxu0 0.0
        %7479 = vmatprep.subr.mxu0 0.0
        %7480 = vmatpush1.msra.mxu0 0.0
        %7481 = vmatprep.subr.mxu0 0.0
        %7482 = vmatpush1.msra.mxu0 0.0
        %7483 = vmatprep.subr.mxu0 0.0
        %7484 = vmatpush1.msra.mxu0 0.0
        %7485 = vmatprep.subr.mxu0 0.0
        %7486 = vmatpush1.msra.mxu0 0.0
        %7487 = vmatprep.subr.mxu0 0.0
        %7488 = vmatpush1.msra.mxu0 0.0
        %7489 = vmatprep.mubr.f32.mxu0 0.0
        %7490 = vmatmul.mubr.f32.gmra.mrb[0].mxu0 %v7420
        %v7491 = vpop.f32.mrb[0].mxu0
        %v7492 = vadd.f32 %v7417, %v7491
        %v7493 = vpop.f32.mrb[0].mxu0
        %7494 = vmatprep.mubr.f32.mxu0 0.0
        %7495 = vmatmul.mubr.f32.gmra.mrb[0].mxu0 %v7423
        %v7496 = vpop.f32.mrb[0].mxu0
        %v7497 = vadd.f32 %v7417, %v7496
        %v7498 = vpop.f32.mrb[0].mxu0
        %7499 = vdwg.mxu0
        %v7500 = vadd.f32 %v5536, %v7492
        %v7501 = vadd.f32 %v5537, %v7497
        %v7502 = vsel %vm1388, %v7500, 0.0
        %7503 = vadd.xlane.f32.xlu0 %v7502
        %v7504 = vpop.xlane.xlu0 %7503
        %v7505 = vsel %vm3256, %v7501, 0.0
        %7506 = vadd.xlane.f32.xlu0 %v7505
        %v7507 = vpop.xlane.xlu0 %7506
        %v7508 = vmul.f32 %v7504, %v3260
        %v7509 = vmul.f32 %v7507, %v3260
        %v7510 = vsub.f32 %v7500, %v7508
        %v7511 = vsub.f32 %v7501, %v7509
        %v7512 = vmul.f32 %v7510, %v7510
        %v7513 = vmul.f32 %v7511, %v7511
        %v7514 = vsel %vm1388, %v7512, 0.0
        %7515 = vadd.xlane.f32.xlu0 %v7514
        %v7516 = vpop.xlane.xlu0 %7515
        %v7517 = vsel %vm3256, %v7513, 0.0
        %7518 = vadd.xlane.f32.xlu0 %v7517
        %v7519 = vpop.xlane.xlu0 %7518
        %v7520 = vmul.f32 %v7516, %v3260
        %v7521 = vmul.f32 %v7519, %v3260
        %v7522 = vadd.f32 %v7520, 1e-05
        %v7523 = vadd.f32 %v7521, 1e-05
        %v7524 = vrsqrt.pop %v7522
        %v7525 = vrsqrt.pop %v7523
        %v7526 = vmul.f32 %v7510, %v7524
        %v7527 = vmul.f32 %v7511, %v7525
        %v7528 = vld [vmem:[%s59] sm:$0x1]
        %v7530 = vlaneseq
        %v7531 = vshrl.u32 %v7530, 7
        %v7532 = vsub.s32 0, %v7531
        %v7533 = vrot.slane %v7528, %v7532
        %v7535 = vmul.f32 %v7526, %v7533
        %v7536 = vmul.f32 %v7527, %v7533
        %v7537 = vld [vmem:[%s61] sm:$0x1]
        %v7539 = vlaneseq
        %v7540 = vshrl.u32 %v7539, 7
        %v7541 = vsub.s32 0, %v7540
        %v7542 = vrot.slane %v7537, %v7541
        %v7544 = vadd.f32 %v7535, %v7542
        %v7545 = vadd.f32 %v7536, %v7542
        %v7546 = vld [vmem:[%s63] sm:$0xff]
        %v7547 = vld [vmem:[%s63 + $0x8] sm:$0xff]
        %v7548 = vld [vmem:[%s63 + $0x10] sm:$0xff]
        %v7549 = vld [vmem:[%s63 + $0x18] sm:$0xff]
        %v7550 = vld [vmem:[%s63 + $0x20] sm:$0xff]
        %v7551 = vld [vmem:[%s63 + $0x28] sm:$0xff]
        %v7552 = vld [vmem:[%s63 + $0x30] sm:$0xff]
        %v7553 = vld [vmem:[%s63 + $0x38] sm:$0xff]
        %v7554 = vld [vmem:[%s63 + $0x40] sm:$0xff]
        %v7555 = vld [vmem:[%s63 + $0x48] sm:$0xff]
        %v7556 = vld [vmem:[%s63 + $0x50] sm:$0xff]
        %v7557 = vld [vmem:[%s63 + $0x58] sm:$0xff]
        %v7558 = vld [vmem:[%s63 + $0x60] sm:$0xff]
        %v7559 = vld [vmem:[%s63 + $0x68] sm:$0xff]
        %v7560 = vld [vmem:[%s63 + $0x70] sm:$0xff]
        %v7561 = vld [vmem:[%s63 + $0x78] sm:$0xff]
        %v7562 = vld [vmem:[%s65] sm:$0x3]
        %v7564 = vlaneseq
        %v7565 = vshrl.u32 %v7564, 7
        %v7566 = vsub.s32 0, %v7565
        %v7567 = vrot.slane %v7562, %v7566
        %v7568 = vlaneseq
        %v7569 = vshrl.u32 %v7568, 7
        %v7570 = vsub.s32 1, %v7569
        %v7571 = vrot.slane %v7562, %v7570
        %v7575 = vsel %vm1388, %v7544, 0
        %v7578 = vsel %vm1388, %v7545, 0
        %7580 = vmatprep.subr.mxu0 %v7547
        %7581 = vmatpush1.msra.mxu0 %v7546
        %7582 = vmatprep.subr.mxu0 %v7549
        %7583 = vmatpush1.msra.mxu0 %v7548
        %7584 = vmatprep.subr.mxu0 %v7551
        %7585 = vmatpush1.msra.mxu0 %v7550
        %7586 = vmatprep.subr.mxu0 %v7553
        %7587 = vmatpush1.msra.mxu0 %v7552
        %7588 = vmatprep.subr.mxu0 %v7555
        %7589 = vmatpush1.msra.mxu0 %v7554
        %7590 = vmatprep.subr.mxu0 %v7557
        %7591 = vmatpush1.msra.mxu0 %v7556
        %7592 = vmatprep.subr.mxu0 %v7559
        %7593 = vmatpush1.msra.mxu0 %v7558
        %7594 = vmatprep.subr.mxu0 %v7561
        %7595 = vmatpush1.msra.mxu0 %v7560
        %7596 = vmatprep.subr.mxu0 0.0
        %7597 = vmatpush1.msra.mxu0 0.0
        %7598 = vmatprep.subr.mxu0 0.0
        %7599 = vmatpush1.msra.mxu0 0.0
        %7600 = vmatprep.subr.mxu0 0.0
        %7601 = vmatpush1.msra.mxu0 0.0
        %7602 = vmatprep.subr.mxu0 0.0
        %7603 = vmatpush1.msra.mxu0 0.0
        %7604 = vmatprep.subr.mxu0 0.0
        %7605 = vmatpush1.msra.mxu0 0.0
        %7606 = vmatprep.subr.mxu0 0.0
        %7607 = vmatpush1.msra.mxu0 0.0
        %7608 = vmatprep.subr.mxu0 0.0
        %7609 = vmatpush1.msra.mxu0 0.0
        %7610 = vmatprep.subr.mxu0 0.0
        %7611 = vmatpush1.msra.mxu0 0.0
        %7612 = vmatprep.subr.mxu0 0.0
        %7613 = vmatpush1.msra.mxu0 0.0
        %7614 = vmatprep.subr.mxu0 0.0
        %7615 = vmatpush1.msra.mxu0 0.0
        %7616 = vmatprep.subr.mxu0 0.0
        %7617 = vmatpush1.msra.mxu0 0.0
        %7618 = vmatprep.subr.mxu0 0.0
        %7619 = vmatpush1.msra.mxu0 0.0
        %7620 = vmatprep.subr.mxu0 0.0
        %7621 = vmatpush1.msra.mxu0 0.0
        %7622 = vmatprep.subr.mxu0 0.0
        %7623 = vmatpush1.msra.mxu0 0.0
        %7624 = vmatprep.subr.mxu0 0.0
        %7625 = vmatpush1.msra.mxu0 0.0
        %7626 = vmatprep.subr.mxu0 0.0
        %7627 = vmatpush1.msra.mxu0 0.0
        %7628 = vmatprep.subr.mxu0 0.0
        %7629 = vmatpush1.msra.mxu0 0.0
        %7630 = vmatprep.subr.mxu0 0.0
        %7631 = vmatpush1.msra.mxu0 0.0
        %7632 = vmatprep.subr.mxu0 0.0
        %7633 = vmatpush1.msra.mxu0 0.0
        %7634 = vmatprep.subr.mxu0 0.0
        %7635 = vmatpush1.msra.mxu0 0.0
        %7636 = vmatprep.subr.mxu0 0.0
        %7637 = vmatpush1.msra.mxu0 0.0
        %7638 = vmatprep.subr.mxu0 0.0
        %7639 = vmatpush1.msra.mxu0 0.0
        %7640 = vmatprep.subr.mxu0 0.0
        %7641 = vmatpush1.msra.mxu0 0.0
        %7642 = vmatprep.subr.mxu0 0.0
        %7643 = vmatpush1.msra.mxu0 0.0
        %7644 = vmatprep.mubr.f32.mxu0 0.0
        %7645 = vmatmul.mubr.f32.gmra.mrb[0].mxu0 %v7575
        %v7646 = vpop.f32.mrb[0].mxu0
        %v7647 = vadd.f32 %v7567, %v7646
        %v7648 = vpop.f32.mrb[0].mxu0
        %v7649 = vadd.f32 %v7571, %v7648
        %7650 = vmatprep.mubr.f32.mxu0 0.0
        %7651 = vmatmul.mubr.f32.gmra.mrb[0].mxu0 %v7578
        %v7652 = vpop.f32.mrb[0].mxu0
        %v7653 = vadd.f32 %v7567, %v7652
        %v7654 = vpop.f32.mrb[0].mxu0
        %v7655 = vadd.f32 %v7571, %v7654
        %7656 = vdwg.mxu0
        %v7657 = vmax.f32 %v7647, 0.0
        %v7658 = vmax.f32 %v7649, 0.0
        %v7659 = vmax.f32 %v7653, 0.0
        %v7660 = vmax.f32 %v7655, 0.0
        %v7661 = vld [vmem:[%s67] sm:$0xff]
        %v7662 = vld [vmem:[%s67 + $0x8] sm:$0xff]
        %v7663 = vld [vmem:[%s67 + $0x10] sm:$0xff]
        %v7664 = vld [vmem:[%s67 + $0x18] sm:$0xff]
        %v7665 = vld [vmem:[%s67 + $0x20] sm:$0xff]
        %v7666 = vld [vmem:[%s67 + $0x28] sm:$0xff]
        %v7667 = vld [vmem:[%s67 + $0x30] sm:$0xff]
        %v7668 = vld [vmem:[%s67 + $0x38] sm:$0xff]
        %v7669 = vld [vmem:[%s67 + $0x40] sm:$0xff]
        %v7670 = vld [vmem:[%s67 + $0x48] sm:$0xff]
        %v7671 = vld [vmem:[%s67 + $0x50] sm:$0xff]
        %v7672 = vld [vmem:[%s67 + $0x58] sm:$0xff]
        %v7673 = vld [vmem:[%s67 + $0x60] sm:$0xff]
        %v7674 = vld [vmem:[%s67 + $0x68] sm:$0xff]
        %v7675 = vld [vmem:[%s67 + $0x70] sm:$0xff]
        %v7676 = vld [vmem:[%s67 + $0x78] sm:$0xff]
        %v7677 = vld [vmem:[%s67 + $0x80] sm:$0xff]
        %v7678 = vld [vmem:[%s67 + $0x88] sm:$0xff]
        %v7679 = vld [vmem:[%s67 + $0x90] sm:$0xff]
        %v7680 = vld [vmem:[%s67 + $0x98] sm:$0xff]
        %v7681 = vld [vmem:[%s67 + $0xa0] sm:$0xff]
        %v7682 = vld [vmem:[%s67 + $0xa8] sm:$0xff]
        %v7683 = vld [vmem:[%s67 + $0xb0] sm:$0xff]
        %v7684 = vld [vmem:[%s67 + $0xb8] sm:$0xff]
        %v7685 = vld [vmem:[%s67 + $0xc0] sm:$0xff]
        %v7686 = vld [vmem:[%s67 + $0xc8] sm:$0xff]
        %v7687 = vld [vmem:[%s67 + $0xd0] sm:$0xff]
        %v7688 = vld [vmem:[%s67 + $0xd8] sm:$0xff]
        %v7689 = vld [vmem:[%s67 + $0xe0] sm:$0xff]
        %v7690 = vld [vmem:[%s67 + $0xe8] sm:$0xff]
        %v7691 = vld [vmem:[%s67 + $0xf0] sm:$0xff]
        %v7692 = vld [vmem:[%s67 + $0xf8] sm:$0xff]
        %v7693 = vld [vmem:[%s69] sm:$0x1]
        %v7695 = vlaneseq
        %v7696 = vshrl.u32 %v7695, 7
        %v7697 = vsub.s32 0, %v7696
        %v7698 = vrot.slane %v7693, %v7697
        %7700 = vmatprep.subr.mxu0 0.0
        %7701 = vmatpush1.msra.mxu0 %v7661
        %7702 = vmatprep.subr.mxu0 0.0
        %7703 = vmatpush1.msra.mxu0 %v7662
        %7704 = vmatprep.subr.mxu0 0.0
        %7705 = vmatpush1.msra.mxu0 %v7663
        %7706 = vmatprep.subr.mxu0 0.0
        %7707 = vmatpush1.msra.mxu0 %v7664
        %7708 = vmatprep.subr.mxu0 0.0
        %7709 = vmatpush1.msra.mxu0 %v7665
        %7710 = vmatprep.subr.mxu0 0.0
        %7711 = vmatpush1.msra.mxu0 %v7666
        %7712 = vmatprep.subr.mxu0 0.0
        %7713 = vmatpush1.msra.mxu0 %v7667
        %7714 = vmatprep.subr.mxu0 0.0
        %7715 = vmatpush1.msra.mxu0 %v7668
        %7716 = vmatprep.subr.mxu0 0.0
        %7717 = vmatpush1.msra.mxu0 %v7669
        %7718 = vmatprep.subr.mxu0 0.0
        %7719 = vmatpush1.msra.mxu0 %v7670
        %7720 = vmatprep.subr.mxu0 0.0
        %7721 = vmatpush1.msra.mxu0 %v7671
        %7722 = vmatprep.subr.mxu0 0.0
        %7723 = vmatpush1.msra.mxu0 %v7672
        %7724 = vmatprep.subr.mxu0 0.0
        %7725 = vmatpush1.msra.mxu0 %v7673
        %7726 = vmatprep.subr.mxu0 0.0
        %7727 = vmatpush1.msra.mxu0 %v7674
        %7728 = vmatprep.subr.mxu0 0.0
        %7729 = vmatpush1.msra.mxu0 %v7675
        %7730 = vmatprep.subr.mxu0 0.0
        %7731 = vmatpush1.msra.mxu0 %v7676
        %7732 = vmatprep.subr.mxu0 0.0
        %7733 = vmatpush1.msra.mxu0 %v7677
        %7734 = vmatprep.subr.mxu0 0.0
        %7735 = vmatpush1.msra.mxu0 %v7678
        %7736 = vmatprep.subr.mxu0 0.0
        %7737 = vmatpush1.msra.mxu0 %v7679
        %7738 = vmatprep.subr.mxu0 0.0
        %7739 = vmatpush1.msra.mxu0 %v7680
        %7740 = vmatprep.subr.mxu0 0.0
        %7741 = vmatpush1.msra.mxu0 %v7681
        %7742 = vmatprep.subr.mxu0 0.0
        %7743 = vmatpush1.msra.mxu0 %v7682
        %7744 = vmatprep.subr.mxu0 0.0
        %7745 = vmatpush1.msra.mxu0 %v7683
        %7746 = vmatprep.subr.mxu0 0.0
        %7747 = vmatpush1.msra.mxu0 %v7684
        %7748 = vmatprep.subr.mxu0 0.0
        %7749 = vmatpush1.msra.mxu0 %v7685
        %7750 = vmatprep.subr.mxu0 0.0
        %7751 = vmatpush1.msra.mxu0 %v7686
        %7752 = vmatprep.subr.mxu0 0.0
        %7753 = vmatpush1.msra.mxu0 %v7687
        %7754 = vmatprep.subr.mxu0 0.0
        %7755 = vmatpush1.msra.mxu0 %v7688
        %7756 = vmatprep.subr.mxu0 0.0
        %7757 = vmatpush1.msra.mxu0 %v7689
        %7758 = vmatprep.subr.mxu0 0.0
        %7759 = vmatpush1.msra.mxu0 %v7690
        %7760 = vmatprep.subr.mxu0 0.0
        %7761 = vmatpush1.msra.mxu0 %v7691
        %7762 = vmatprep.subr.mxu0 0.0
        %7763 = vmatpush1.msra.mxu0 %v7692
        %7764 = vmatprep.mubr.f32.mxu0 %v7658
        %7765 = vmatmul.mubr.f32.gmra.mrb[0].mxu0 %v7657
        %v7766 = vpop.f32.mrb[0].mxu0
        %v7767 = vadd.f32 %v7698, %v7766
        %v7768 = vpop.f32.mrb[0].mxu0
        %7769 = vmatprep.mubr.f32.mxu0 %v7660
        %7770 = vmatmul.mubr.f32.gmra.mrb[0].mxu0 %v7659
        %v7771 = vpop.f32.mrb[0].mxu0
        %v7772 = vadd.f32 %v7698, %v7771
        %v7773 = vpop.f32.mrb[0].mxu0
        %7774 = vdwg.mxu0
        %v7775 = vadd.f32 %v7544, %v7767
        %v7776 = vadd.f32 %v7545, %v7772
        %v7777 = vsel %vm1388, %v7775, 0.0
        %7778 = vadd.xlane.f32.xlu0 %v7777
        %v7779 = vpop.xlane.xlu0 %7778
        %v7780 = vsel %vm3256, %v7776, 0.0
        %7781 = vadd.xlane.f32.xlu0 %v7780
        %v7782 = vpop.xlane.xlu0 %7781
        %v7783 = vmul.f32 %v7779, %v3260
        %v7784 = vmul.f32 %v7782, %v3260
        %v7785 = vsub.f32 %v7775, %v7783
        %v7786 = vsub.f32 %v7776, %v7784
        %v7787 = vmul.f32 %v7785, %v7785
        %v7788 = vmul.f32 %v7786, %v7786
        %v7789 = vsel %vm1388, %v7787, 0.0
        %7790 = vadd.xlane.f32.xlu0 %v7789
        %v7791 = vpop.xlane.xlu0 %7790
        %v7792 = vsel %vm3256, %v7788, 0.0
        %7793 = vadd.xlane.f32.xlu0 %v7792
        %v7794 = vpop.xlane.xlu0 %7793
        %v7795 = vmul.f32 %v7791, %v3260
        %v7796 = vmul.f32 %v7794, %v3260
        %v7797 = vadd.f32 %v7795, 1e-05
        %v7798 = vadd.f32 %v7796, 1e-05
        %v7799 = vrsqrt.pop %v7797
        %v7800 = vrsqrt.pop %v7798
        %v7801 = vmul.f32 %v7785, %v7799
        %v7802 = vmul.f32 %v7786, %v7800
        %v7803 = vld [vmem:[%s71] sm:$0x1]
        %v7805 = vlaneseq
        %v7806 = vshrl.u32 %v7805, 7
        %v7807 = vsub.s32 0, %v7806
        %v7808 = vrot.slane %v7803, %v7807
        %v7810 = vmul.f32 %v7801, %v7808
        %v7811 = vmul.f32 %v7802, %v7808
        %v7812 = vld [vmem:[%s73] sm:$0x1]
        %v7814 = vlaneseq
        %v7815 = vshrl.u32 %v7814, 7
        %v7816 = vsub.s32 0, %v7815
        %v7817 = vrot.slane %v7812, %v7816
        %v7819 = vadd.f32 %v7810, %v7817
        %v7820 = vadd.f32 %v7811, %v7817
        %v7821 = vsel %vm1388, %v7819, 0.0
        %7822 = vadd.xlane.f32.xlu0 %v7821
        %v7823 = vpop.xlane.xlu0 %7822
        %v7824 = vsel %vm3256, %v7820, 0.0
        %7825 = vadd.xlane.f32.xlu0 %v7824
        %v7826 = vpop.xlane.xlu0 %7825
        %v7827 = vmul.f32 %v7823, %v3260
        %v7828 = vmul.f32 %v7826, %v3260
        %v7829 = vsub.f32 %v7819, %v7827
        %v7830 = vsub.f32 %v7820, %v7828
        %v7831 = vmul.f32 %v7829, %v7829
        %v7832 = vmul.f32 %v7830, %v7830
        %v7833 = vsel %vm1388, %v7831, 0.0
        %7834 = vadd.xlane.f32.xlu0 %v7833
        %v7835 = vpop.xlane.xlu0 %7834
        %v7836 = vsel %vm3256, %v7832, 0.0
        %7837 = vadd.xlane.f32.xlu0 %v7836
        %v7838 = vpop.xlane.xlu0 %7837
        %v7839 = vmul.f32 %v7835, %v3260
        %v7840 = vmul.f32 %v7838, %v3260
        %v7841 = vadd.f32 %v7839, 1e-05
        %v7842 = vadd.f32 %v7840, 1e-05
        %v7843 = vrsqrt.pop %v7841
        %v7844 = vrsqrt.pop %v7842
        %v7845 = vmul.f32 %v7829, %v7843
        %v7846 = vmul.f32 %v7830, %v7844
        %v7847 = vld [vmem:[%s75] sm:$0x1]
        %v7849 = vlaneseq
        %v7850 = vshrl.u32 %v7849, 7
        %v7851 = vsub.s32 0, %v7850
        %v7852 = vrot.slane %v7847, %v7851
        %v7854 = vmul.f32 %v7845, %v7852
        %v7855 = vmul.f32 %v7846, %v7852
        %v7856 = vld [vmem:[%s77] sm:$0x1]
        %v7858 = vlaneseq
        %v7859 = vshrl.u32 %v7858, 7
        %v7860 = vsub.s32 0, %v7859
        %v7861 = vrot.slane %v7856, %v7860
        %v7863 = vadd.f32 %v7854, %v7861
        %v7864 = vadd.f32 %v7855, %v7861
        %7865 = vst.msk [vmem:[%s1351] sm:$0xff] %vm1388, %v7863
        %7866 = vst.msk [vmem:[%s1351 + $0x8] sm:$0xf] %vm3256, %v7864
        %p7867 = scmp.lt.s32.totalorder %s97, 1
        %s7868 = scalar_select %p7867, %s97, 1
        %s7869 = smul.addr %s7868, 2
        %s7870 = smul.addr %s7869, 8
        %s7871 = scalar_lea.vmem %s79, %s7870
        // Predicated region
        $region229: #{tpu_custom_call.1} parent=175 // pred_check
          %p7872 = pneg %p939
        $region230: #{tpu_custom_call.1} parent=175 // pred_check_branch
          %7874 = sbr.rel (%p7872) target = $region232
        $region231: #{tpu_custom_call.1} parent=175 // pred_region
          _
        $region232: #{tpu_custom_call.1} parent=175 // pred_fallthru
          _
      $region176: #{tpu_custom_call.1} parent=5 // pred_fallthru
        _
      %p7875 = scmp.le.s32.totalorder 2, %s92
      // Predicated region
      $region233: #{tpu_custom_call.1} parent=5 // pred_check
        %p7876 = pneg %p7875
      $region234: #{tpu_custom_call.1} parent=5 // pred_check_branch
        %7878 = sbr.rel (%p7876) target = $region236
      $region235: #{tpu_custom_call.1} parent=5 // pred_region
        %s7879 = ssub.s32 %s92, 2
        // Predicated region
        $region237: #{tpu_custom_call.1} parent=235 // pred_check
          %p7880 = pneg %p945
        $region238: #{tpu_custom_call.1} parent=235 // pred_check_branch
          %7882 = sbr.rel (%p7880) target = $region240
        $region239: #{tpu_custom_call.1} parent=235 // pred_region
          %p7883 = scmp.lt.s32.totalorder %s98, 1
          %s7884 = scalar_select %p7883, %s98, 1
          %s7885 = smul.addr %s7884, 2
          %s7886 = smul.addr %s7885, 8
          %s7887 = scalar_lea.vmem %s79, %s7886
        $region240: #{tpu_custom_call.1} parent=235 // pred_fallthru
          _
      $region236: #{tpu_custom_call.1} parent=5 // pred_fallthru
        _
    $region6: #{tpu_custom_call.1} parent=1 // loop_footer
      %s96 = sadd.s32 1, %s92
    $region7: #{tpu_custom_call.1} parent=1 // loop_footer_branch
      %91 = sbr.rel target = $region3
    $region8: #{tpu_custom_call.1} parent=1 // loop_exit
      _
    %7888 = vsyncpa [#allocation3], 1
    %s7889 = scalar_lea.sflag [#allocation3], 1
    %7890 = vsyncpa %s7889, 1
    %7891 = vsyncpa [#allocation5], 1
    %7892 = vsyncpa [#allocation8], 1
    %7893 = vsyncpa [#allocation11], 1
    %7894 = vsyncpa [#allocation14], 1
    %7895 = vsyncpa [#allocation17], 1
    %7896 = vsyncpa [#allocation20], 1

</llo_original>
